<compile_context>
chip_gen: v7x
topology: tpu7x:2x2x1
jax: 0.10.0
libtpu: 0.0.40
codegen_flags: <defaults>
</compile_context>

<pallas_src>
import math

import jax
import jax.numpy as jnp
from jax.experimental import pallas as pl
from jax.experimental.pallas import tpu as pltpu  # noqa: F401  (TPU backend)

# ---------------------------------------------------------------------------
# Small synthetic DeBERTa-style config (deberta-base scaled down).
# ---------------------------------------------------------------------------
BATCH = 2
SEQ = 16
HIDDEN = 64          # "hidden_size"
NUM_HEADS = 4
HEAD_DIM = HIDDEN // NUM_HEADS
INTERMEDIATE = 128
NUM_LAYERS = 4       # need at least 4 encoder layers ("last four")
VOCAB = 100
MAX_POS = 32
FC2_DIM = 128
INIT_STD = 0.02      # initializer_range
LN_EPS = 1e-7        # DeBERTa layer_norm_eps

BS = BATCH * SEQ     # batch folded into the sublane axis


def _layernorm(x, g, b):
    mu = jnp.mean(x, axis=-1, keepdims=True)
    var = jnp.mean((x - mu) ** 2, axis=-1, keepdims=True)
    return (x - mu) * jax.lax.rsqrt(var + LN_EPS) * g + b


def _erf(x):
    # Abramowitz & Stegun 7.1.26 polynomial erf, |abs err| ~ 1.5e-7.
    a1, a2, a3, a4, a5 = (0.254829592, -0.284496736, 1.421413741,
                          -1.453152027, 1.061405429)
    p = 0.3275911
    sgn = jnp.where(x >= 0.0, 1.0, -1.0)
    ax = jnp.abs(x)
    t = 1.0 / (1.0 + p * ax)
    poly = ((((a5 * t + a4) * t + a3) * t + a2) * t + a1) * t
    return sgn * (1.0 - poly * jnp.exp(-ax * ax))


def _gelu_erf(x):
    # Exact (erf) GELU, as used by HF DeBERTa ("gelu").
    return 0.5 * x * (1.0 + _erf(x * 0.7071067811865476))


# ---------------------------------------------------------------------------
# Single fused kernel: embedding LayerNorm + 4 encoder layers + regression head
# ---------------------------------------------------------------------------
# vech rows (width H):  0: emb_ln_gamma, 1: emb_ln_beta,
#   per layer l (base = 2 + 9*l): bq, bk, bv, bo, ln1g, ln1b, bo2, ln2g, ln2b,
#   last row (2 + 9*L): fc1 bias (concat of the four H/4 biases).
# veci rows (width I):  per-layer FFN intermediate bias.
# vecf rows (width FC2): 0: fc2 bias, 1: fc3 weight laid out as a row.
def fused_forward_kernel(x_ref, bias_ref, vech_ref, veci_ref, vecf_ref, b3_ref,
                         wq_ref, wk_ref, wv_ref, wo_ref, wi_ref, wo2_ref,
                         w1_ref, w2_ref, o_ref):
    bf16 = jnp.bfloat16
    f32 = jnp.float32

    x = x_ref[...].astype(f32)        # (BS, H)  embeddings (word + position)
    attn_bias = bias_ref[...]         # (BS, BS) additive mask (block-diag over batch)
    vech = vech_ref[...]              # (2 + 9L + 1, H) f32
    veci = veci_ref[...]              # (L, I) f32
    vecf = vecf_ref[...]              # (2, FC2) f32

    def row(slab, idx):               # static row -> (1, width)
        return slab[idx:idx + 1, :]

    # --- embedding LayerNorm ---
    h = _layernorm(x, row(vech, 0), row(vech, 1))

    scale = 1.0 / math.sqrt(HEAD_DIM)
    layer_outs = []
    for l in range(NUM_LAYERS):                       # unrolled at trace time
        base = 2 + 9 * l
        bq, bk, bv, bo = [row(vech, base + j) for j in range(4)]
        ln1g, ln1b = row(vech, base + 4), row(vech, base + 5)
        bo2 = row(vech, base + 6)
        ln2g, ln2b = row(vech, base + 7), row(vech, base + 8)
        bi = row(veci, l)

        wq = wq_ref[l]; wk = wk_ref[l]; wv = wv_ref[l]; wo = wo_ref[l]
        wi = wi_ref[l]; wo2 = wo2_ref[l]              # bf16 (H,H)/(H,I)/(I,H)

        hb = h.astype(bf16)
        q = jnp.dot(hb, wq, preferred_element_type=f32) + bq
        k = jnp.dot(hb, wk, preferred_element_type=f32) + bk
        v = jnp.dot(hb, wv, preferred_element_type=f32) + bv

        # Attention: heads are static 2-D lane slices; the batch dimension is
        # folded into rows and separated by the block-diagonal additive bias.
        head_outs = []
        for hd in range(NUM_HEADS):
            c0 = hd * HEAD_DIM
            qh = q[:, c0:c0 + HEAD_DIM].astype(bf16)      # (BS, hd)
            kh = k[:, c0:c0 + HEAD_DIM].astype(bf16)
            vh = v[:, c0:c0 + HEAD_DIM].astype(bf16)
            # q @ k^T via dot_general (no explicit transpose), f32 accumulate.
            scores = jax.lax.dot_general(
                qh, kh, (((1,), (1,)), ((), ())),
                preferred_element_type=f32) * scale + attn_bias   # (BS, BS)
            probs = jax.nn.softmax(scores, axis=-1)               # f32
            head_outs.append(jnp.dot(probs.astype(bf16), vh,
                                     preferred_element_type=f32))
        ctx = jnp.concatenate(head_outs, axis=-1)                 # (BS, H) f32

        attn = jnp.dot(ctx.astype(bf16), wo, preferred_element_type=f32) + bo
        h1 = _layernorm(h + attn, ln1g, ln1b)

        ff = jnp.dot(h1.astype(bf16), wi, preferred_element_type=f32) + bi
        ff = _gelu_erf(ff)
        ff = jnp.dot(ff.astype(bf16), wo2, preferred_element_type=f32) + bo2
        h = _layernorm(h1 + ff, ln2g, ln2b)
        layer_outs.append(h)

    # --- regression head over the last four hidden layers ---
    # (multi-sample dropout in eval mode == single application; the four fc1_k
    #  projections are fused into one block-diagonal matmul, ReLU commutes)
    b1 = row(vech, 2 + 9 * NUM_LAYERS)
    b2 = row(vecf, 0)
    w3_row = row(vecf, 1)

    hcat = jnp.concatenate([layer_outs[-1], layer_outs[-2],
                            layer_outs[-3], layer_outs[-4]], axis=-1)  # (BS, 4H)
    z1 = jnp.dot(hcat.astype(bf16), w1_ref[...], preferred_element_type=f32) + b1
    z1 = jnp.maximum(z1, 0.0)                                          # (BS, H)
    z2 = jnp.dot(z1.astype(bf16), w2_ref[...], preferred_element_type=f32) + b2
    z2 = jnp.maximum(z2, 0.0)                                          # (BS, FC2)
    # fc3 as an elementwise multiply + lane reduction (avoids an N=1 matmul).
    out = jnp.sum(z2 * w3_row, axis=-1, keepdims=True) + b3_ref[...]   # (BS, 1)
    o_ref[...] = out.astype(o_ref.dtype)


# ---------------------------------------------------------------------------
# Parameters (deterministic synthetic init, mirroring _init_weights shapes),
# pre-packed into the kernel's VMEM-friendly layout.
# ---------------------------------------------------------------------------
def init_params(key):
    n_keys = 2 + NUM_LAYERS * 6 + 4 + 2
    keys = iter(jax.random.split(key, n_keys))

    def lin(fan_in, fan_out):
        # torch Linear weight (out, in) ~ N(0, 0.02), stored transposed (in, out).
        return jax.random.normal(next(keys), (fan_in, fan_out), jnp.float32) * INIT_STD

    word_emb = jax.random.normal(next(keys), (VOCAB, HIDDEN), jnp.float32) * INIT_STD
    pos_emb = jax.random.normal(next(keys), (MAX_POS, HIDDEN), jnp.float32) * INIT_STD

    zeros_h = jnp.zeros((HIDDEN,), jnp.float32)
    ones_h = jnp.ones((HIDDEN,), jnp.float32)
    vech_rows = [ones_h, zeros_h]                    # embedding LayerNorm gamma/beta
    veci_rows = []
    wq, wk, wv, wo, wi, wo2 = [], [], [], [], [], []
    for _ in range(NUM_LAYERS):
        wq.append(lin(HIDDEN, HIDDEN)); wk.append(lin(HIDDEN, HIDDEN))
        wv.append(lin(HIDDEN, HIDDEN)); wo.append(lin(HIDDEN, HIDDEN))
        wi.append(lin(HIDDEN, INTERMEDIATE)); wo2.append(lin(INTERMEDIATE, HIDDEN))
        # bq, bk, bv, bo, ln1g, ln1b, bo2, ln2g, ln2b
        vech_rows += [zeros_h, zeros_h, zeros_h, zeros_h,
                      ones_h, zeros_h, zeros_h, ones_h, zeros_h]
        veci_rows.append(jnp.zeros((INTERMEDIATE,), jnp.float32))      # FFN bias

    # Head: block-diagonal fc1 (fc1_1..fc1_4), each block (H, H/4).
    Hq = HIDDEN // 4
    w1_parts = [lin(HIDDEN, Hq) for _ in range(4)]
    w1_blk = jnp.zeros((4 * HIDDEN, HIDDEN), jnp.float32)
    for kblk in range(4):
        w1_blk = w1_blk.at[kblk * HIDDEN:(kblk + 1) * HIDDEN,
                           kblk * Hq:(kblk + 1) * Hq].set(w1_parts[kblk])
    vech_rows.append(jnp.zeros((HIDDEN,), jnp.float32))                # fc1 biases (concat)

    w2 = lin(HIDDEN, FC2_DIM)
    b2 = jnp.zeros((FC2_DIM,), jnp.float32)
    w3_row = lin(FC2_DIM, 1).reshape(FC2_DIM)                          # fc3 weight as a row
    b3 = jnp.zeros((1, 1), jnp.float32)

    return dict(
        word_emb=word_emb, pos_emb=pos_emb,
        vech=jnp.stack(vech_rows),                     # (2 + 9L + 1, H) f32
        veci=jnp.stack(veci_rows),                     # (L, I) f32
        vecf=jnp.stack([b2, w3_row]),                  # (2, FC2) f32
        b3=b3,                                         # (1, 1) f32
        wq=jnp.stack(wq).astype(jnp.bfloat16),         # (L, H, H) bf16
        wk=jnp.stack(wk).astype(jnp.bfloat16),
        wv=jnp.stack(wv).astype(jnp.bfloat16),
        wo=jnp.stack(wo).astype(jnp.bfloat16),
        wi=jnp.stack(wi).astype(jnp.bfloat16),         # (L, H, I) bf16
        wo2=jnp.stack(wo2).astype(jnp.bfloat16),       # (L, I, H) bf16
        w1=w1_blk.astype(jnp.bfloat16),                # (4H, H) bf16 block-diag
        w2=w2.astype(jnp.bfloat16),                    # (H, FC2) bf16
    )


# ---------------------------------------------------------------------------
# Full forward pass: embedding gather + mask construction in JAX glue,
# everything else in the single fused Pallas kernel.
# ---------------------------------------------------------------------------
@jax.jit
def forward(params, input_ids, attention_mask):
    B, S = input_ids.shape
    emb = params["word_emb"][input_ids] + params["pos_emb"][jnp.arange(S)][None, :, :]
    x = emb.reshape(B * S, HIDDEN).astype(jnp.float32)

    # Block-diagonal additive attention bias over the folded (B*S) axis:
    # 0 where query/key share a batch and the key is kept, else -1e9.
    flat_keep = attention_mask.reshape(-1).astype(jnp.float32)         # (B*S,)
    batch_id = jnp.arange(B * S) // S
    allowed = (batch_id[:, None] == batch_id[None, :]) & (flat_keep[None, :] > 0.5)
    attn_bias = jnp.where(allowed, 0.0, -1e9).astype(jnp.float32)      # (B*S, B*S)

    out_flat = pl.pallas_call(
        fused_forward_kernel,
        out_shape=jax.ShapeDtypeStruct((B * S, 1), jnp.float32),
    )(x, attn_bias, params["vech"], params["veci"], params["vecf"], params["b3"],
      params["wq"], params["wk"], params["wv"], params["wo"],
      params["wi"], params["wo2"], params["w1"], params["w2"])
    return out_flat.reshape(B, S, 1)


if __name__ == "__main__":
    root = jax.random.PRNGKey(0)
    pkey, ikey = jax.random.split(root)

    params = init_params(pkey)
    input_ids = jax.random.randint(ikey, (BATCH, SEQ), 0, VOCAB, dtype=jnp.int32)
    attention_mask = jnp.ones((BATCH, SEQ), jnp.float32)

    out = jax.block_until_ready(forward(params, input_ids, attention_mask))
    assert out.shape == (BATCH, SEQ, 1), out.shape
    assert out.dtype == jnp.float32
    assert bool(jnp.all(jnp.isfinite(out)))
    print("KERNEL_OK")
</pallas_src>

<mosaic_0001>
module attributes {stable_mosaic.version = 11 : i64} {
  func.func @fused_forward_kernel(%arg0: memref<32x64xf32, #tpu.memory_space<vmem>>, %arg1: memref<32x32xf32, #tpu.memory_space<vmem>>, %arg2: memref<39x64xf32, #tpu.memory_space<vmem>>, %arg3: memref<4x128xf32, #tpu.memory_space<vmem>>, %arg4: memref<2x128xf32, #tpu.memory_space<vmem>>, %arg5: memref<1x1xf32, #tpu.memory_space<vmem>>, %arg6: memref<4x64x64xbf16, #tpu.memory_space<vmem>>, %arg7: memref<4x64x64xbf16, #tpu.memory_space<vmem>>, %arg8: memref<4x64x64xbf16, #tpu.memory_space<vmem>>, %arg9: memref<4x64x64xbf16, #tpu.memory_space<vmem>>, %arg10: memref<4x64x128xbf16, #tpu.memory_space<vmem>>, %arg11: memref<4x128x64xbf16, #tpu.memory_space<vmem>>, %arg12: memref<256x64xbf16, #tpu.memory_space<vmem>>, %arg13: memref<64x128xbf16, #tpu.memory_space<vmem>>, %arg14: memref<32x1xf32, #tpu.memory_space<vmem>>) attributes {dimension_semantics = [], scalar_prefetch = 0 : i64, scratch_operands = 0 : i64, tpu.core_type = #tpu.core_type<tc>} {
    %c0 = arith.constant 0 : index
    %c0_0 = arith.constant 0 : index
    %0 = vector.load %arg0[%c0, %c0_0] : memref<32x64xf32, #tpu.memory_space<vmem>>, vector<32x64xf32>
    %c0_1 = arith.constant 0 : index
    %c0_2 = arith.constant 0 : index
    %1 = vector.load %arg1[%c0_1, %c0_2] : memref<32x32xf32, #tpu.memory_space<vmem>>, vector<32x32xf32>
    %c0_3 = arith.constant 0 : index
    %c0_4 = arith.constant 0 : index
    %2 = vector.load %arg2[%c0_3, %c0_4] : memref<39x64xf32, #tpu.memory_space<vmem>>, vector<39x64xf32>
    %c0_5 = arith.constant 0 : index
    %c0_6 = arith.constant 0 : index
    %3 = vector.load %arg3[%c0_5, %c0_6] : memref<4x128xf32, #tpu.memory_space<vmem>>, vector<4x128xf32>
    %c0_7 = arith.constant 0 : index
    %c0_8 = arith.constant 0 : index
    %4 = vector.load %arg4[%c0_7, %c0_8] : memref<2x128xf32, #tpu.memory_space<vmem>>, vector<2x128xf32>
    %5 = vector.extract_strided_slice %2 {offsets = [0, 0], sizes = [1, 64], strides = [1, 1]} : vector<39x64xf32> to vector<1x64xf32>
    %6 = vector.extract_strided_slice %2 {offsets = [1, 0], sizes = [1, 64], strides = [1, 1]} : vector<39x64xf32> to vector<1x64xf32>
    %cst = arith.constant dense<0.000000e+00> : vector<32xf32>
    %7 = vector.multi_reduction <add>, %0, %cst [1] : vector<32x64xf32> to vector<32xf32>
    %8 = vector.shape_cast %7 : vector<32xf32> to vector<32x1xf32>
    %cst_9 = arith.constant 6.400000e+01 : f32
    %9 = vector.broadcast %cst_9 : f32 to vector<32x1xf32>
    %10 = arith.divf %8, %9 : vector<32x1xf32>
    %11 = vector.broadcast %10 : vector<32x1xf32> to vector<32x64xf32>
    %12 = arith.subf %0, %11 : vector<32x64xf32>
    %13 = arith.mulf %12, %12 : vector<32x64xf32>
    %cst_10 = arith.constant dense<0.000000e+00> : vector<32xf32>
    %14 = vector.multi_reduction <add>, %13, %cst_10 [1] : vector<32x64xf32> to vector<32xf32>
    %15 = vector.shape_cast %14 : vector<32xf32> to vector<32x1xf32>
    %cst_11 = arith.constant 6.400000e+01 : f32
    %16 = vector.broadcast %cst_11 : f32 to vector<32x1xf32>
    %17 = arith.divf %15, %16 : vector<32x1xf32>
    %18 = vector.broadcast %10 : vector<32x1xf32> to vector<32x64xf32>
    %19 = arith.subf %0, %18 : vector<32x64xf32>
    %cst_12 = arith.constant 1.000000e-07 : f32
    %20 = vector.broadcast %cst_12 : f32 to vector<32x1xf32>
    %21 = arith.addf %17, %20 : vector<32x1xf32>
    %22 = math.rsqrt %21 : vector<32x1xf32>
    %23 = vector.broadcast %22 : vector<32x1xf32> to vector<32x64xf32>
    %24 = arith.mulf %19, %23 : vector<32x64xf32>
    %25 = vector.broadcast %5 : vector<1x64xf32> to vector<32x64xf32>
    %26 = arith.mulf %24, %25 : vector<32x64xf32>
    %27 = vector.broadcast %6 : vector<1x64xf32> to vector<32x64xf32>
    %28 = arith.addf %26, %27 : vector<32x64xf32>
    %29 = vector.extract_strided_slice %2 {offsets = [2, 0], sizes = [1, 64], strides = [1, 1]} : vector<39x64xf32> to vector<1x64xf32>
    %30 = vector.extract_strided_slice %2 {offsets = [3, 0], sizes = [1, 64], strides = [1, 1]} : vector<39x64xf32> to vector<1x64xf32>
    %31 = vector.extract_strided_slice %2 {offsets = [4, 0], sizes = [1, 64], strides = [1, 1]} : vector<39x64xf32> to vector<1x64xf32>
    %32 = vector.extract_strided_slice %2 {offsets = [5, 0], sizes = [1, 64], strides = [1, 1]} : vector<39x64xf32> to vector<1x64xf32>
    %33 = vector.extract_strided_slice %2 {offsets = [6, 0], sizes = [1, 64], strides = [1, 1]} : vector<39x64xf32> to vector<1x64xf32>
    %34 = vector.extract_strided_slice %2 {offsets = [7, 0], sizes = [1, 64], strides = [1, 1]} : vector<39x64xf32> to vector<1x64xf32>
    %35 = vector.extract_strided_slice %2 {offsets = [8, 0], sizes = [1, 64], strides = [1, 1]} : vector<39x64xf32> to vector<1x64xf32>
    %36 = vector.extract_strided_slice %2 {offsets = [9, 0], sizes = [1, 64], strides = [1, 1]} : vector<39x64xf32> to vector<1x64xf32>
    %37 = vector.extract_strided_slice %2 {offsets = [10, 0], sizes = [1, 64], strides = [1, 1]} : vector<39x64xf32> to vector<1x64xf32>
    %38 = vector.extract_strided_slice %3 {offsets = [0, 0], sizes = [1, 128], strides = [1, 1]} : vector<4x128xf32> to vector<1x128xf32>
    %c0_13 = arith.constant 0 : index
    %c0_14 = arith.constant 0 : index
    %c0_15 = arith.constant 0 : index
    %39 = vector.load %arg6[%c0_13, %c0_14, %c0_15] : memref<4x64x64xbf16, #tpu.memory_space<vmem>>, vector<1x64x64xbf16>
    %40 = vector.shape_cast %39 : vector<1x64x64xbf16> to vector<64x64xbf16>
    %c0_16 = arith.constant 0 : index
    %c0_17 = arith.constant 0 : index
    %c0_18 = arith.constant 0 : index
    %41 = vector.load %arg7[%c0_16, %c0_17, %c0_18] : memref<4x64x64xbf16, #tpu.memory_space<vmem>>, vector<1x64x64xbf16>
    %42 = vector.shape_cast %41 : vector<1x64x64xbf16> to vector<64x64xbf16>
    %c0_19 = arith.constant 0 : index
    %c0_20 = arith.constant 0 : index
    %c0_21 = arith.constant 0 : index
    %43 = vector.load %arg8[%c0_19, %c0_20, %c0_21] : memref<4x64x64xbf16, #tpu.memory_space<vmem>>, vector<1x64x64xbf16>
    %44 = vector.shape_cast %43 : vector<1x64x64xbf16> to vector<64x64xbf16>
    %c0_22 = arith.constant 0 : index
    %c0_23 = arith.constant 0 : index
    %c0_24 = arith.constant 0 : index
    %45 = vector.load %arg9[%c0_22, %c0_23, %c0_24] : memref<4x64x64xbf16, #tpu.memory_space<vmem>>, vector<1x64x64xbf16>
    %46 = vector.shape_cast %45 : vector<1x64x64xbf16> to vector<64x64xbf16>
    %c0_25 = arith.constant 0 : index
    %c0_26 = arith.constant 0 : index
    %c0_27 = arith.constant 0 : index
    %47 = vector.load %arg10[%c0_25, %c0_26, %c0_27] : memref<4x64x128xbf16, #tpu.memory_space<vmem>>, vector<1x64x128xbf16>
    %48 = vector.shape_cast %47 : vector<1x64x128xbf16> to vector<64x128xbf16>
    %c0_28 = arith.constant 0 : index
    %c0_29 = arith.constant 0 : index
    %c0_30 = arith.constant 0 : index
    %49 = vector.load %arg11[%c0_28, %c0_29, %c0_30] : memref<4x128x64xbf16, #tpu.memory_space<vmem>>, vector<1x128x64xbf16>
    %50 = vector.shape_cast %49 : vector<1x128x64xbf16> to vector<128x64xbf16>
    %51 = arith.truncf %28 : vector<32x64xf32> to vector<32x64xbf16>
    %cst_31 = arith.constant dense<0.000000e+00> : vector<32x64xf32>
    %52 = tpu.matmul %51, %40, %cst_31 {dimension_numbers = #tpu.dot_dimension_numbers<[1], [0], [0], [1], [0, 0, 1, 1], [], []>} : vector<32x64xbf16>, vector<64x64xbf16>, vector<32x64xf32> -> vector<32x64xf32>
    %53 = vector.broadcast %29 : vector<1x64xf32> to vector<32x64xf32>
    %54 = arith.addf %52, %53 : vector<32x64xf32>
    %cst_32 = arith.constant dense<0.000000e+00> : vector<32x64xf32>
    %55 = tpu.matmul %51, %42, %cst_32 {dimension_numbers = #tpu.dot_dimension_numbers<[1], [0], [0], [1], [0, 0, 1, 1], [], []>} : vector<32x64xbf16>, vector<64x64xbf16>, vector<32x64xf32> -> vector<32x64xf32>
    %56 = vector.broadcast %30 : vector<1x64xf32> to vector<32x64xf32>
    %57 = arith.addf %55, %56 : vector<32x64xf32>
    %cst_33 = arith.constant dense<0.000000e+00> : vector<32x64xf32>
    %58 = tpu.matmul %51, %44, %cst_33 {dimension_numbers = #tpu.dot_dimension_numbers<[1], [0], [0], [1], [0, 0, 1, 1], [], []>} : vector<32x64xbf16>, vector<64x64xbf16>, vector<32x64xf32> -> vector<32x64xf32>
    %59 = vector.broadcast %31 : vector<1x64xf32> to vector<32x64xf32>
    %60 = arith.addf %58, %59 : vector<32x64xf32>
    %61 = vector.extract_strided_slice %54 {offsets = [0, 0], sizes = [32, 16], strides = [1, 1]} : vector<32x64xf32> to vector<32x16xf32>
    %62 = arith.truncf %61 : vector<32x16xf32> to vector<32x16xbf16>
    %63 = vector.extract_strided_slice %57 {offsets = [0, 0], sizes = [32, 16], strides = [1, 1]} : vector<32x64xf32> to vector<32x16xf32>
    %64 = arith.truncf %63 : vector<32x16xf32> to vector<32x16xbf16>
    %65 = vector.extract_strided_slice %60 {offsets = [0, 0], sizes = [32, 16], strides = [1, 1]} : vector<32x64xf32> to vector<32x16xf32>
    %66 = arith.truncf %65 : vector<32x16xf32> to vector<32x16xbf16>
    %cst_34 = arith.constant dense<0.000000e+00> : vector<32x32xf32>
    %67 = tpu.matmul %62, %64, %cst_34 {dimension_numbers = #tpu.dot_dimension_numbers<[1], [1], [0], [0], [0, 0, 1, 0], [], []>} : vector<32x16xbf16>, vector<32x16xbf16>, vector<32x32xf32> -> vector<32x32xf32>
    %cst_35 = arith.constant 2.500000e-01 : f32
    %68 = vector.broadcast %cst_35 : f32 to vector<32x32xf32>
    %69 = arith.mulf %67, %68 : vector<32x32xf32>
    %70 = arith.addf %69, %1 : vector<32x32xf32>
    %cst_36 = arith.constant dense<0xFF800000> : vector<32xf32>
    %71 = vector.multi_reduction <maximumf>, %70, %cst_36 [1] : vector<32x32xf32> to vector<32xf32>
    %cst_37 = arith.constant 0xFF800000 : f32
    %72 = vector.broadcast %cst_37 : f32 to vector<32xf32>
    %73 = arith.maximumf %72, %71 : vector<32xf32>
    %74 = vector.shape_cast %73 : vector<32xf32> to vector<32x1xf32>
    %75 = vector.broadcast %74 : vector<32x1xf32> to vector<32x32xf32>
    %76 = arith.subf %70, %75 : vector<32x32xf32>
    %77 = math.exp %76 : vector<32x32xf32>
    %cst_38 = arith.constant dense<0.000000e+00> : vector<32xf32>
    %78 = vector.multi_reduction <add>, %77, %cst_38 [1] : vector<32x32xf32> to vector<32xf32>
    %79 = vector.shape_cast %78 : vector<32xf32> to vector<32x1xf32>
    %80 = vector.broadcast %79 : vector<32x1xf32> to vector<32x32xf32>
    %81 = arith.divf %77, %80 : vector<32x32xf32>
    %82 = arith.truncf %81 : vector<32x32xf32> to vector<32x32xbf16>
    %cst_39 = arith.constant dense<0.000000e+00> : vector<32x16xf32>
    %83 = tpu.matmul %82, %66, %cst_39 {dimension_numbers = #tpu.dot_dimension_numbers<[1], [0], [0], [1], [0, 0, 1, 1], [], []>} : vector<32x32xbf16>, vector<32x16xbf16>, vector<32x16xf32> -> vector<32x16xf32>
    %84 = vector.extract_strided_slice %54 {offsets = [0, 16], sizes = [32, 16], strides = [1, 1]} : vector<32x64xf32> to vector<32x16xf32>
    %85 = arith.truncf %84 : vector<32x16xf32> to vector<32x16xbf16>
    %86 = vector.extract_strided_slice %57 {offsets = [0, 16], sizes = [32, 16], strides = [1, 1]} : vector<32x64xf32> to vector<32x16xf32>
    %87 = arith.truncf %86 : vector<32x16xf32> to vector<32x16xbf16>
    %88 = vector.extract_strided_slice %60 {offsets = [0, 16], sizes = [32, 16], strides = [1, 1]} : vector<32x64xf32> to vector<32x16xf32>
    %89 = arith.truncf %88 : vector<32x16xf32> to vector<32x16xbf16>
    %cst_40 = arith.constant dense<0.000000e+00> : vector<32x32xf32>
    %90 = tpu.matmul %85, %87, %cst_40 {dimension_numbers = #tpu.dot_dimension_numbers<[1], [1], [0], [0], [0, 0, 1, 0], [], []>} : vector<32x16xbf16>, vector<32x16xbf16>, vector<32x32xf32> -> vector<32x32xf32>
    %cst_41 = arith.constant 2.500000e-01 : f32
    %91 = vector.broadcast %cst_41 : f32 to vector<32x32xf32>
    %92 = arith.mulf %90, %91 : vector<32x32xf32>
    %93 = arith.addf %92, %1 : vector<32x32xf32>
    %cst_42 = arith.constant dense<0xFF800000> : vector<32xf32>
    %94 = vector.multi_reduction <maximumf>, %93, %cst_42 [1] : vector<32x32xf32> to vector<32xf32>
    %cst_43 = arith.constant 0xFF800000 : f32
    %95 = vector.broadcast %cst_43 : f32 to vector<32xf32>
    %96 = arith.maximumf %95, %94 : vector<32xf32>
    %97 = vector.shape_cast %96 : vector<32xf32> to vector<32x1xf32>
    %98 = vector.broadcast %97 : vector<32x1xf32> to vector<32x32xf32>
    %99 = arith.subf %93, %98 : vector<32x32xf32>
    %100 = math.exp %99 : vector<32x32xf32>
    %cst_44 = arith.constant dense<0.000000e+00> : vector<32xf32>
    %101 = vector.multi_reduction <add>, %100, %cst_44 [1] : vector<32x32xf32> to vector<32xf32>
    %102 = vector.shape_cast %101 : vector<32xf32> to vector<32x1xf32>
    %103 = vector.broadcast %102 : vector<32x1xf32> to vector<32x32xf32>
    %104 = arith.divf %100, %103 : vector<32x32xf32>
    %105 = arith.truncf %104 : vector<32x32xf32> to vector<32x32xbf16>
    %cst_45 = arith.constant dense<0.000000e+00> : vector<32x16xf32>
    %106 = tpu.matmul %105, %89, %cst_45 {dimension_numbers = #tpu.dot_dimension_numbers<[1], [0], [0], [1], [0, 0, 1, 1], [], []>} : vector<32x32xbf16>, vector<32x16xbf16>, vector<32x16xf32> -> vector<32x16xf32>
    %107 = vector.extract_strided_slice %54 {offsets = [0, 32], sizes = [32, 16], strides = [1, 1]} : vector<32x64xf32> to vector<32x16xf32>
    %108 = arith.truncf %107 : vector<32x16xf32> to vector<32x16xbf16>
    %109 = vector.extract_strided_slice %57 {offsets = [0, 32], sizes = [32, 16], strides = [1, 1]} : vector<32x64xf32> to vector<32x16xf32>
    %110 = arith.truncf %109 : vector<32x16xf32> to vector<32x16xbf16>
    %111 = vector.extract_strided_slice %60 {offsets = [0, 32], sizes = [32, 16], strides = [1, 1]} : vector<32x64xf32> to vector<32x16xf32>
    %112 = arith.truncf %111 : vector<32x16xf32> to vector<32x16xbf16>
    %cst_46 = arith.constant dense<0.000000e+00> : vector<32x32xf32>
    %113 = tpu.matmul %108, %110, %cst_46 {dimension_numbers = #tpu.dot_dimension_numbers<[1], [1], [0], [0], [0, 0, 1, 0], [], []>} : vector<32x16xbf16>, vector<32x16xbf16>, vector<32x32xf32> -> vector<32x32xf32>
    %cst_47 = arith.constant 2.500000e-01 : f32
    %114 = vector.broadcast %cst_47 : f32 to vector<32x32xf32>
    %115 = arith.mulf %113, %114 : vector<32x32xf32>
    %116 = arith.addf %115, %1 : vector<32x32xf32>
    %cst_48 = arith.constant dense<0xFF800000> : vector<32xf32>
    %117 = vector.multi_reduction <maximumf>, %116, %cst_48 [1] : vector<32x32xf32> to vector<32xf32>
    %cst_49 = arith.constant 0xFF800000 : f32
    %118 = vector.broadcast %cst_49 : f32 to vector<32xf32>
    %119 = arith.maximumf %118, %117 : vector<32xf32>
    %120 = vector.shape_cast %119 : vector<32xf32> to vector<32x1xf32>
    %121 = vector.broadcast %120 : vector<32x1xf32> to vector<32x32xf32>
    %122 = arith.subf %116, %121 : vector<32x32xf32>
    %123 = math.exp %122 : vector<32x32xf32>
    %cst_50 = arith.constant dense<0.000000e+00> : vector<32xf32>
    %124 = vector.multi_reduction <add>, %123, %cst_50 [1] : vector<32x32xf32> to vector<32xf32>
    %125 = vector.shape_cast %124 : vector<32xf32> to vector<32x1xf32>
    %126 = vector.broadcast %125 : vector<32x1xf32> to vector<32x32xf32>
    %127 = arith.divf %123, %126 : vector<32x32xf32>
    %128 = arith.truncf %127 : vector<32x32xf32> to vector<32x32xbf16>
    %cst_51 = arith.constant dense<0.000000e+00> : vector<32x16xf32>
    %129 = tpu.matmul %128, %112, %cst_51 {dimension_numbers = #tpu.dot_dimension_numbers<[1], [0], [0], [1], [0, 0, 1, 1], [], []>} : vector<32x32xbf16>, vector<32x16xbf16>, vector<32x16xf32> -> vector<32x16xf32>
    %130 = vector.extract_strided_slice %54 {offsets = [0, 48], sizes = [32, 16], strides = [1, 1]} : vector<32x64xf32> to vector<32x16xf32>
    %131 = arith.truncf %130 : vector<32x16xf32> to vector<32x16xbf16>
    %132 = vector.extract_strided_slice %57 {offsets = [0, 48], sizes = [32, 16], strides = [1, 1]} : vector<32x64xf32> to vector<32x16xf32>
    %133 = arith.truncf %132 : vector<32x16xf32> to vector<32x16xbf16>
    %134 = vector.extract_strided_slice %60 {offsets = [0, 48], sizes = [32, 16], strides = [1, 1]} : vector<32x64xf32> to vector<32x16xf32>
    %135 = arith.truncf %134 : vector<32x16xf32> to vector<32x16xbf16>
    %cst_52 = arith.constant dense<0.000000e+00> : vector<32x32xf32>
    %136 = tpu.matmul %131, %133, %cst_52 {dimension_numbers = #tpu.dot_dimension_numbers<[1], [1], [0], [0], [0, 0, 1, 0], [], []>} : vector<32x16xbf16>, vector<32x16xbf16>, vector<32x32xf32> -> vector<32x32xf32>
    %cst_53 = arith.constant 2.500000e-01 : f32
    %137 = vector.broadcast %cst_53 : f32 to vector<32x32xf32>
    %138 = arith.mulf %136, %137 : vector<32x32xf32>
    %139 = arith.addf %138, %1 : vector<32x32xf32>
    %cst_54 = arith.constant dense<0xFF800000> : vector<32xf32>
    %140 = vector.multi_reduction <maximumf>, %139, %cst_54 [1] : vector<32x32xf32> to vector<32xf32>
    %cst_55 = arith.constant 0xFF800000 : f32
    %141 = vector.broadcast %cst_55 : f32 to vector<32xf32>
    %142 = arith.maximumf %141, %140 : vector<32xf32>
    %143 = vector.shape_cast %142 : vector<32xf32> to vector<32x1xf32>
    %144 = vector.broadcast %143 : vector<32x1xf32> to vector<32x32xf32>
    %145 = arith.subf %139, %144 : vector<32x32xf32>
    %146 = math.exp %145 : vector<32x32xf32>
    %cst_56 = arith.constant dense<0.000000e+00> : vector<32xf32>
    %147 = vector.multi_reduction <add>, %146, %cst_56 [1] : vector<32x32xf32> to vector<32xf32>
    %148 = vector.shape_cast %147 : vector<32xf32> to vector<32x1xf32>
    %149 = vector.broadcast %148 : vector<32x1xf32> to vector<32x32xf32>
    %150 = arith.divf %146, %149 : vector<32x32xf32>
    %151 = arith.truncf %150 : vector<32x32xf32> to vector<32x32xbf16>
    %cst_57 = arith.constant dense<0.000000e+00> : vector<32x16xf32>
    %152 = tpu.matmul %151, %135, %cst_57 {dimension_numbers = #tpu.dot_dimension_numbers<[1], [0], [0], [1], [0, 0, 1, 1], [], []>} : vector<32x32xbf16>, vector<32x16xbf16>, vector<32x16xf32> -> vector<32x16xf32>
    %153 = tpu.concatenate %83, %106, %129, %152 in 1 : vector<32x16xf32>, vector<32x16xf32>, vector<32x16xf32>, vector<32x16xf32> -> vector<32x64xf32>
    %154 = arith.truncf %153 : vector<32x64xf32> to vector<32x64xbf16>
    %cst_58 = arith.constant dense<0.000000e+00> : vector<32x64xf32>
    %155 = tpu.matmul %154, %46, %cst_58 {dimension_numbers = #tpu.dot_dimension_numbers<[1], [0], [0], [1], [0, 0, 1, 1], [], []>} : vector<32x64xbf16>, vector<64x64xbf16>, vector<32x64xf32> -> vector<32x64xf32>
    %156 = vector.broadcast %32 : vector<1x64xf32> to vector<32x64xf32>
    %157 = arith.addf %155, %156 : vector<32x64xf32>
    %158 = arith.addf %28, %157 : vector<32x64xf32>
    %cst_59 = arith.constant dense<0.000000e+00> : vector<32xf32>
    %159 = vector.multi_reduction <add>, %158, %cst_59 [1] : vector<32x64xf32> to vector<32xf32>
    %160 = vector.shape_cast %159 : vector<32xf32> to vector<32x1xf32>
    %cst_60 = arith.constant 6.400000e+01 : f32
    %161 = vector.broadcast %cst_60 : f32 to vector<32x1xf32>
    %162 = arith.divf %160, %161 : vector<32x1xf32>
    %163 = vector.broadcast %162 : vector<32x1xf32> to vector<32x64xf32>
    %164 = arith.subf %158, %163 : vector<32x64xf32>
    %165 = arith.mulf %164, %164 : vector<32x64xf32>
    %cst_61 = arith.constant dense<0.000000e+00> : vector<32xf32>
    %166 = vector.multi_reduction <add>, %165, %cst_61 [1] : vector<32x64xf32> to vector<32xf32>
    %167 = vector.shape_cast %166 : vector<32xf32> to vector<32x1xf32>
    %cst_62 = arith.constant 6.400000e+01 : f32
    %168 = vector.broadcast %cst_62 : f32 to vector<32x1xf32>
    %169 = arith.divf %167, %168 : vector<32x1xf32>
    %170 = vector.broadcast %162 : vector<32x1xf32> to vector<32x64xf32>
    %171 = arith.subf %158, %170 : vector<32x64xf32>
    %cst_63 = arith.constant 1.000000e-07 : f32
    %172 = vector.broadcast %cst_63 : f32 to vector<32x1xf32>
    %173 = arith.addf %169, %172 : vector<32x1xf32>
    %174 = math.rsqrt %173 : vector<32x1xf32>
    %175 = vector.broadcast %174 : vector<32x1xf32> to vector<32x64xf32>
    %176 = arith.mulf %171, %175 : vector<32x64xf32>
    %177 = vector.broadcast %33 : vector<1x64xf32> to vector<32x64xf32>
    %178 = arith.mulf %176, %177 : vector<32x64xf32>
    %179 = vector.broadcast %34 : vector<1x64xf32> to vector<32x64xf32>
    %180 = arith.addf %178, %179 : vector<32x64xf32>
    %181 = arith.truncf %180 : vector<32x64xf32> to vector<32x64xbf16>
    %cst_64 = arith.constant dense<0.000000e+00> : vector<32x128xf32>
    %182 = tpu.matmul %181, %48, %cst_64 {dimension_numbers = #tpu.dot_dimension_numbers<[1], [0], [0], [1], [0, 0, 1, 1], [], []>} : vector<32x64xbf16>, vector<64x128xbf16>, vector<32x128xf32> -> vector<32x128xf32>
    %183 = vector.broadcast %38 : vector<1x128xf32> to vector<32x128xf32>
    %184 = arith.addf %182, %183 : vector<32x128xf32>
    %cst_65 = arith.constant 5.000000e-01 : f32
    %185 = vector.broadcast %cst_65 : f32 to vector<32x128xf32>
    %186 = arith.mulf %185, %184 : vector<32x128xf32>
    %cst_66 = arith.constant 0.707106769 : f32
    %187 = vector.broadcast %cst_66 : f32 to vector<32x128xf32>
    %188 = arith.mulf %184, %187 : vector<32x128xf32>
    %cst_67 = arith.constant 0.000000e+00 : f32
    %189 = vector.broadcast %cst_67 : f32 to vector<32x128xf32>
    %190 = arith.cmpf oge, %188, %189 : vector<32x128xf32>
    %cst_68 = arith.constant 1.000000e+00 : f32
    %cst_69 = arith.constant -1.000000e+00 : f32
    %191 = vector.broadcast %cst_68 : f32 to vector<32x128xf32>
    %192 = vector.broadcast %cst_69 : f32 to vector<32x128xf32>
    %193 = arith.select %190, %191, %192 : vector<32x128xi1>, vector<32x128xf32>
    %194 = math.absf %188 : vector<32x128xf32>
    %cst_70 = arith.constant 0.327591091 : f32
    %195 = vector.broadcast %cst_70 : f32 to vector<32x128xf32>
    %196 = arith.mulf %195, %194 : vector<32x128xf32>
    %cst_71 = arith.constant 1.000000e+00 : f32
    %197 = vector.broadcast %cst_71 : f32 to vector<32x128xf32>
    %198 = arith.addf %197, %196 : vector<32x128xf32>
    %cst_72 = arith.constant 1.000000e+00 : f32
    %199 = vector.broadcast %cst_72 : f32 to vector<32x128xf32>
    %200 = arith.divf %199, %198 : vector<32x128xf32>
    %cst_73 = arith.constant 1.06140542 : f32
    %201 = vector.broadcast %cst_73 : f32 to vector<32x128xf32>
    %202 = arith.mulf %201, %200 : vector<32x128xf32>
    %cst_74 = arith.constant -1.45315206 : f32
    %203 = vector.broadcast %cst_74 : f32 to vector<32x128xf32>
    %204 = arith.addf %202, %203 : vector<32x128xf32>
    %205 = arith.mulf %204, %200 : vector<32x128xf32>
    %cst_75 = arith.constant 1.42141378 : f32
    %206 = vector.broadcast %cst_75 : f32 to vector<32x128xf32>
    %207 = arith.addf %205, %206 : vector<32x128xf32>
    %208 = arith.mulf %207, %200 : vector<32x128xf32>
    %cst_76 = arith.constant -0.284496725 : f32
    %209 = vector.broadcast %cst_76 : f32 to vector<32x128xf32>
    %210 = arith.addf %208, %209 : vector<32x128xf32>
    %211 = arith.mulf %210, %200 : vector<32x128xf32>
    %cst_77 = arith.constant 0.254829586 : f32
    %212 = vector.broadcast %cst_77 : f32 to vector<32x128xf32>
    %213 = arith.addf %211, %212 : vector<32x128xf32>
    %214 = arith.mulf %213, %200 : vector<32x128xf32>
    %cst_78 = arith.constant 0.000000e+00 : f32
    %215 = vector.broadcast %cst_78 : f32 to vector<32x128xf32>
    %216 = arith.subf %215, %194 : vector<32x128xf32>
    %217 = arith.mulf %216, %194 : vector<32x128xf32>
    %218 = math.exp %217 : vector<32x128xf32>
    %219 = arith.mulf %214, %218 : vector<32x128xf32>
    %cst_79 = arith.constant 1.000000e+00 : f32
    %220 = vector.broadcast %cst_79 : f32 to vector<32x128xf32>
    %221 = arith.subf %220, %219 : vector<32x128xf32>
    %222 = arith.mulf %193, %221 : vector<32x128xf32>
    %cst_80 = arith.constant 1.000000e+00 : f32
    %223 = vector.broadcast %cst_80 : f32 to vector<32x128xf32>
    %224 = arith.addf %223, %222 : vector<32x128xf32>
    %225 = arith.mulf %186, %224 : vector<32x128xf32>
    %226 = arith.truncf %225 : vector<32x128xf32> to vector<32x128xbf16>
    %cst_81 = arith.constant dense<0.000000e+00> : vector<32x64xf32>
    %227 = tpu.matmul %226, %50, %cst_81 {dimension_numbers = #tpu.dot_dimension_numbers<[1], [0], [0], [1], [0, 0, 1, 1], [], []>} : vector<32x128xbf16>, vector<128x64xbf16>, vector<32x64xf32> -> vector<32x64xf32>
    %228 = vector.broadcast %35 : vector<1x64xf32> to vector<32x64xf32>
    %229 = arith.addf %227, %228 : vector<32x64xf32>
    %230 = arith.addf %180, %229 : vector<32x64xf32>
    %cst_82 = arith.constant dense<0.000000e+00> : vector<32xf32>
    %231 = vector.multi_reduction <add>, %230, %cst_82 [1] : vector<32x64xf32> to vector<32xf32>
    %232 = vector.shape_cast %231 : vector<32xf32> to vector<32x1xf32>
    %cst_83 = arith.constant 6.400000e+01 : f32
    %233 = vector.broadcast %cst_83 : f32 to vector<32x1xf32>
    %234 = arith.divf %232, %233 : vector<32x1xf32>
    %235 = vector.broadcast %234 : vector<32x1xf32> to vector<32x64xf32>
    %236 = arith.subf %230, %235 : vector<32x64xf32>
    %237 = arith.mulf %236, %236 : vector<32x64xf32>
    %cst_84 = arith.constant dense<0.000000e+00> : vector<32xf32>
    %238 = vector.multi_reduction <add>, %237, %cst_84 [1] : vector<32x64xf32> to vector<32xf32>
    %239 = vector.shape_cast %238 : vector<32xf32> to vector<32x1xf32>
    %cst_85 = arith.constant 6.400000e+01 : f32
    %240 = vector.broadcast %cst_85 : f32 to vector<32x1xf32>
    %241 = arith.divf %239, %240 : vector<32x1xf32>
    %242 = vector.broadcast %234 : vector<32x1xf32> to vector<32x64xf32>
    %243 = arith.subf %230, %242 : vector<32x64xf32>
    %cst_86 = arith.constant 1.000000e-07 : f32
    %244 = vector.broadcast %cst_86 : f32 to vector<32x1xf32>
    %245 = arith.addf %241, %244 : vector<32x1xf32>
    %246 = math.rsqrt %245 : vector<32x1xf32>
    %247 = vector.broadcast %246 : vector<32x1xf32> to vector<32x64xf32>
    %248 = arith.mulf %243, %247 : vector<32x64xf32>
    %249 = vector.broadcast %36 : vector<1x64xf32> to vector<32x64xf32>
    %250 = arith.mulf %248, %249 : vector<32x64xf32>
    %251 = vector.broadcast %37 : vector<1x64xf32> to vector<32x64xf32>
    %252 = arith.addf %250, %251 : vector<32x64xf32>
    %253 = vector.extract_strided_slice %2 {offsets = [11, 0], sizes = [1, 64], strides = [1, 1]} : vector<39x64xf32> to vector<1x64xf32>
    %254 = vector.extract_strided_slice %2 {offsets = [12, 0], sizes = [1, 64], strides = [1, 1]} : vector<39x64xf32> to vector<1x64xf32>
    %255 = vector.extract_strided_slice %2 {offsets = [13, 0], sizes = [1, 64], strides = [1, 1]} : vector<39x64xf32> to vector<1x64xf32>
    %256 = vector.extract_strided_slice %2 {offsets = [14, 0], sizes = [1, 64], strides = [1, 1]} : vector<39x64xf32> to vector<1x64xf32>
    %257 = vector.extract_strided_slice %2 {offsets = [15, 0], sizes = [1, 64], strides = [1, 1]} : vector<39x64xf32> to vector<1x64xf32>
    %258 = vector.extract_strided_slice %2 {offsets = [16, 0], sizes = [1, 64], strides = [1, 1]} : vector<39x64xf32> to vector<1x64xf32>
    %259 = vector.extract_strided_slice %2 {offsets = [17, 0], sizes = [1, 64], strides = [1, 1]} : vector<39x64xf32> to vector<1x64xf32>
    %260 = vector.extract_strided_slice %2 {offsets = [18, 0], sizes = [1, 64], strides = [1, 1]} : vector<39x64xf32> to vector<1x64xf32>
    %261 = vector.extract_strided_slice %2 {offsets = [19, 0], sizes = [1, 64], strides = [1, 1]} : vector<39x64xf32> to vector<1x64xf32>
    %262 = vector.extract_strided_slice %3 {offsets = [1, 0], sizes = [1, 128], strides = [1, 1]} : vector<4x128xf32> to vector<1x128xf32>
    %c1 = arith.constant 1 : index
    %c0_87 = arith.constant 0 : index
    %c0_88 = arith.constant 0 : index
    %263 = vector.load %arg6[%c1, %c0_87, %c0_88] : memref<4x64x64xbf16, #tpu.memory_space<vmem>>, vector<1x64x64xbf16>
    %264 = vector.shape_cast %263 : vector<1x64x64xbf16> to vector<64x64xbf16>
    %c1_89 = arith.constant 1 : index
    %c0_90 = arith.constant 0 : index
    %c0_91 = arith.constant 0 : index
    %265 = vector.load %arg7[%c1_89, %c0_90, %c0_91] : memref<4x64x64xbf16, #tpu.memory_space<vmem>>, vector<1x64x64xbf16>
    %266 = vector.shape_cast %265 : vector<1x64x64xbf16> to vector<64x64xbf16>
    %c1_92 = arith.constant 1 : index
    %c0_93 = arith.constant 0 : index
    %c0_94 = arith.constant 0 : index
    %267 = vector.load %arg8[%c1_92, %c0_93, %c0_94] : memref<4x64x64xbf16, #tpu.memory_space<vmem>>, vector<1x64x64xbf16>
    %268 = vector.shape_cast %267 : vector<1x64x64xbf16> to vector<64x64xbf16>
    %c1_95 = arith.constant 1 : index
    %c0_96 = arith.constant 0 : index
    %c0_97 = arith.constant 0 : index
    %269 = vector.load %arg9[%c1_95, %c0_96, %c0_97] : memref<4x64x64xbf16, #tpu.memory_space<vmem>>, vector<1x64x64xbf16>
    %270 = vector.shape_cast %269 : vector<1x64x64xbf16> to vector<64x64xbf16>
    %c1_98 = arith.constant 1 : index
    %c0_99 = arith.constant 0 : index
    %c0_100 = arith.constant 0 : index
    %271 = vector.load %arg10[%c1_98, %c0_99, %c0_100] : memref<4x64x128xbf16, #tpu.memory_space<vmem>>, vector<1x64x128xbf16>
    %272 = vector.shape_cast %271 : vector<1x64x128xbf16> to vector<64x128xbf16>
    %c1_101 = arith.constant 1 : index
    %c0_102 = arith.constant 0 : index
    %c0_103 = arith.constant 0 : index
    %273 = vector.load %arg11[%c1_101, %c0_102, %c0_103] : memref<4x128x64xbf16, #tpu.memory_space<vmem>>, vector<1x128x64xbf16>
    %274 = vector.shape_cast %273 : vector<1x128x64xbf16> to vector<128x64xbf16>
    %275 = arith.truncf %252 : vector<32x64xf32> to vector<32x64xbf16>
    %cst_104 = arith.constant dense<0.000000e+00> : vector<32x64xf32>
    %276 = tpu.matmul %275, %264, %cst_104 {dimension_numbers = #tpu.dot_dimension_numbers<[1], [0], [0], [1], [0, 0, 1, 1], [], []>} : vector<32x64xbf16>, vector<64x64xbf16>, vector<32x64xf32> -> vector<32x64xf32>
    %277 = vector.broadcast %253 : vector<1x64xf32> to vector<32x64xf32>
    %278 = arith.addf %276, %277 : vector<32x64xf32>
    %cst_105 = arith.constant dense<0.000000e+00> : vector<32x64xf32>
    %279 = tpu.matmul %275, %266, %cst_105 {dimension_numbers = #tpu.dot_dimension_numbers<[1], [0], [0], [1], [0, 0, 1, 1], [], []>} : vector<32x64xbf16>, vector<64x64xbf16>, vector<32x64xf32> -> vector<32x64xf32>
    %280 = vector.broadcast %254 : vector<1x64xf32> to vector<32x64xf32>
    %281 = arith.addf %279, %280 : vector<32x64xf32>
    %cst_106 = arith.constant dense<0.000000e+00> : vector<32x64xf32>
    %282 = tpu.matmul %275, %268, %cst_106 {dimension_numbers = #tpu.dot_dimension_numbers<[1], [0], [0], [1], [0, 0, 1, 1], [], []>} : vector<32x64xbf16>, vector<64x64xbf16>, vector<32x64xf32> -> vector<32x64xf32>
    %283 = vector.broadcast %255 : vector<1x64xf32> to vector<32x64xf32>
    %284 = arith.addf %282, %283 : vector<32x64xf32>
    %285 = vector.extract_strided_slice %278 {offsets = [0, 0], sizes = [32, 16], strides = [1, 1]} : vector<32x64xf32> to vector<32x16xf32>
    %286 = arith.truncf %285 : vector<32x16xf32> to vector<32x16xbf16>
    %287 = vector.extract_strided_slice %281 {offsets = [0, 0], sizes = [32, 16], strides = [1, 1]} : vector<32x64xf32> to vector<32x16xf32>
    %288 = arith.truncf %287 : vector<32x16xf32> to vector<32x16xbf16>
    %289 = vector.extract_strided_slice %284 {offsets = [0, 0], sizes = [32, 16], strides = [1, 1]} : vector<32x64xf32> to vector<32x16xf32>
    %290 = arith.truncf %289 : vector<32x16xf32> to vector<32x16xbf16>
    %cst_107 = arith.constant dense<0.000000e+00> : vector<32x32xf32>
    %291 = tpu.matmul %286, %288, %cst_107 {dimension_numbers = #tpu.dot_dimension_numbers<[1], [1], [0], [0], [0, 0, 1, 0], [], []>} : vector<32x16xbf16>, vector<32x16xbf16>, vector<32x32xf32> -> vector<32x32xf32>
    %cst_108 = arith.constant 2.500000e-01 : f32
    %292 = vector.broadcast %cst_108 : f32 to vector<32x32xf32>
    %293 = arith.mulf %291, %292 : vector<32x32xf32>
    %294 = arith.addf %293, %1 : vector<32x32xf32>
    %cst_109 = arith.constant dense<0xFF800000> : vector<32xf32>
    %295 = vector.multi_reduction <maximumf>, %294, %cst_109 [1] : vector<32x32xf32> to vector<32xf32>
    %cst_110 = arith.constant 0xFF800000 : f32
    %296 = vector.broadcast %cst_110 : f32 to vector<32xf32>
    %297 = arith.maximumf %296, %295 : vector<32xf32>
    %298 = vector.shape_cast %297 : vector<32xf32> to vector<32x1xf32>
    %299 = vector.broadcast %298 : vector<32x1xf32> to vector<32x32xf32>
    %300 = arith.subf %294, %299 : vector<32x32xf32>
    %301 = math.exp %300 : vector<32x32xf32>
    %cst_111 = arith.constant dense<0.000000e+00> : vector<32xf32>
    %302 = vector.multi_reduction <add>, %301, %cst_111 [1] : vector<32x32xf32> to vector<32xf32>
    %303 = vector.shape_cast %302 : vector<32xf32> to vector<32x1xf32>
    %304 = vector.broadcast %303 : vector<32x1xf32> to vector<32x32xf32>
    %305 = arith.divf %301, %304 : vector<32x32xf32>
    %306 = arith.truncf %305 : vector<32x32xf32> to vector<32x32xbf16>
    %cst_112 = arith.constant dense<0.000000e+00> : vector<32x16xf32>
    %307 = tpu.matmul %306, %290, %cst_112 {dimension_numbers = #tpu.dot_dimension_numbers<[1], [0], [0], [1], [0, 0, 1, 1], [], []>} : vector<32x32xbf16>, vector<32x16xbf16>, vector<32x16xf32> -> vector<32x16xf32>
    %308 = vector.extract_strided_slice %278 {offsets = [0, 16], sizes = [32, 16], strides = [1, 1]} : vector<32x64xf32> to vector<32x16xf32>
    %309 = arith.truncf %308 : vector<32x16xf32> to vector<32x16xbf16>
    %310 = vector.extract_strided_slice %281 {offsets = [0, 16], sizes = [32, 16], strides = [1, 1]} : vector<32x64xf32> to vector<32x16xf32>
    %311 = arith.truncf %310 : vector<32x16xf32> to vector<32x16xbf16>
    %312 = vector.extract_strided_slice %284 {offsets = [0, 16], sizes = [32, 16], strides = [1, 1]} : vector<32x64xf32> to vector<32x16xf32>
    %313 = arith.truncf %312 : vector<32x16xf32> to vector<32x16xbf16>
    %cst_113 = arith.constant dense<0.000000e+00> : vector<32x32xf32>
    %314 = tpu.matmul %309, %311, %cst_113 {dimension_numbers = #tpu.dot_dimension_numbers<[1], [1], [0], [0], [0, 0, 1, 0], [], []>} : vector<32x16xbf16>, vector<32x16xbf16>, vector<32x32xf32> -> vector<32x32xf32>
    %cst_114 = arith.constant 2.500000e-01 : f32
    %315 = vector.broadcast %cst_114 : f32 to vector<32x32xf32>
    %316 = arith.mulf %314, %315 : vector<32x32xf32>
    %317 = arith.addf %316, %1 : vector<32x32xf32>
    %cst_115 = arith.constant dense<0xFF800000> : vector<32xf32>
    %318 = vector.multi_reduction <maximumf>, %317, %cst_115 [1] : vector<32x32xf32> to vector<32xf32>
    %cst_116 = arith.constant 0xFF800000 : f32
    %319 = vector.broadcast %cst_116 : f32 to vector<32xf32>
    %320 = arith.maximumf %319, %318 : vector<32xf32>
    %321 = vector.shape_cast %320 : vector<32xf32> to vector<32x1xf32>
    %322 = vector.broadcast %321 : vector<32x1xf32> to vector<32x32xf32>
    %323 = arith.subf %317, %322 : vector<32x32xf32>
    %324 = math.exp %323 : vector<32x32xf32>
    %cst_117 = arith.constant dense<0.000000e+00> : vector<32xf32>
    %325 = vector.multi_reduction <add>, %324, %cst_117 [1] : vector<32x32xf32> to vector<32xf32>
    %326 = vector.shape_cast %325 : vector<32xf32> to vector<32x1xf32>
    %327 = vector.broadcast %326 : vector<32x1xf32> to vector<32x32xf32>
    %328 = arith.divf %324, %327 : vector<32x32xf32>
    %329 = arith.truncf %328 : vector<32x32xf32> to vector<32x32xbf16>
    %cst_118 = arith.constant dense<0.000000e+00> : vector<32x16xf32>
    %330 = tpu.matmul %329, %313, %cst_118 {dimension_numbers = #tpu.dot_dimension_numbers<[1], [0], [0], [1], [0, 0, 1, 1], [], []>} : vector<32x32xbf16>, vector<32x16xbf16>, vector<32x16xf32> -> vector<32x16xf32>
    %331 = vector.extract_strided_slice %278 {offsets = [0, 32], sizes = [32, 16], strides = [1, 1]} : vector<32x64xf32> to vector<32x16xf32>
    %332 = arith.truncf %331 : vector<32x16xf32> to vector<32x16xbf16>
    %333 = vector.extract_strided_slice %281 {offsets = [0, 32], sizes = [32, 16], strides = [1, 1]} : vector<32x64xf32> to vector<32x16xf32>
    %334 = arith.truncf %333 : vector<32x16xf32> to vector<32x16xbf16>
    %335 = vector.extract_strided_slice %284 {offsets = [0, 32], sizes = [32, 16], strides = [1, 1]} : vector<32x64xf32> to vector<32x16xf32>
    %336 = arith.truncf %335 : vector<32x16xf32> to vector<32x16xbf16>
    %cst_119 = arith.constant dense<0.000000e+00> : vector<32x32xf32>
    %337 = tpu.matmul %332, %334, %cst_119 {dimension_numbers = #tpu.dot_dimension_numbers<[1], [1], [0], [0], [0, 0, 1, 0], [], []>} : vector<32x16xbf16>, vector<32x16xbf16>, vector<32x32xf32> -> vector<32x32xf32>
    %cst_120 = arith.constant 2.500000e-01 : f32
    %338 = vector.broadcast %cst_120 : f32 to vector<32x32xf32>
    %339 = arith.mulf %337, %338 : vector<32x32xf32>
    %340 = arith.addf %339, %1 : vector<32x32xf32>
    %cst_121 = arith.constant dense<0xFF800000> : vector<32xf32>
    %341 = vector.multi_reduction <maximumf>, %340, %cst_121 [1] : vector<32x32xf32> to vector<32xf32>
    %cst_122 = arith.constant 0xFF800000 : f32
    %342 = vector.broadcast %cst_122 : f32 to vector<32xf32>
    %343 = arith.maximumf %342, %341 : vector<32xf32>
    %344 = vector.shape_cast %343 : vector<32xf32> to vector<32x1xf32>
    %345 = vector.broadcast %344 : vector<32x1xf32> to vector<32x32xf32>
    %346 = arith.subf %340, %345 : vector<32x32xf32>
    %347 = math.exp %346 : vector<32x32xf32>
    %cst_123 = arith.constant dense<0.000000e+00> : vector<32xf32>
    %348 = vector.multi_reduction <add>, %347, %cst_123 [1] : vector<32x32xf32> to vector<32xf32>
    %349 = vector.shape_cast %348 : vector<32xf32> to vector<32x1xf32>
    %350 = vector.broadcast %349 : vector<32x1xf32> to vector<32x32xf32>
    %351 = arith.divf %347, %350 : vector<32x32xf32>
    %352 = arith.truncf %351 : vector<32x32xf32> to vector<32x32xbf16>
    %cst_124 = arith.constant dense<0.000000e+00> : vector<32x16xf32>
    %353 = tpu.matmul %352, %336, %cst_124 {dimension_numbers = #tpu.dot_dimension_numbers<[1], [0], [0], [1], [0, 0, 1, 1], [], []>} : vector<32x32xbf16>, vector<32x16xbf16>, vector<32x16xf32> -> vector<32x16xf32>
    %354 = vector.extract_strided_slice %278 {offsets = [0, 48], sizes = [32, 16], strides = [1, 1]} : vector<32x64xf32> to vector<32x16xf32>
    %355 = arith.truncf %354 : vector<32x16xf32> to vector<32x16xbf16>
    %356 = vector.extract_strided_slice %281 {offsets = [0, 48], sizes = [32, 16], strides = [1, 1]} : vector<32x64xf32> to vector<32x16xf32>
    %357 = arith.truncf %356 : vector<32x16xf32> to vector<32x16xbf16>
    %358 = vector.extract_strided_slice %284 {offsets = [0, 48], sizes = [32, 16], strides = [1, 1]} : vector<32x64xf32> to vector<32x16xf32>
    %359 = arith.truncf %358 : vector<32x16xf32> to vector<32x16xbf16>
    %cst_125 = arith.constant dense<0.000000e+00> : vector<32x32xf32>
    %360 = tpu.matmul %355, %357, %cst_125 {dimension_numbers = #tpu.dot_dimension_numbers<[1], [1], [0], [0], [0, 0, 1, 0], [], []>} : vector<32x16xbf16>, vector<32x16xbf16>, vector<32x32xf32> -> vector<32x32xf32>
    %cst_126 = arith.constant 2.500000e-01 : f32
    %361 = vector.broadcast %cst_126 : f32 to vector<32x32xf32>
    %362 = arith.mulf %360, %361 : vector<32x32xf32>
    %363 = arith.addf %362, %1 : vector<32x32xf32>
    %cst_127 = arith.constant dense<0xFF800000> : vector<32xf32>
    %364 = vector.multi_reduction <maximumf>, %363, %cst_127 [1] : vector<32x32xf32> to vector<32xf32>
    %cst_128 = arith.constant 0xFF800000 : f32
    %365 = vector.broadcast %cst_128 : f32 to vector<32xf32>
    %366 = arith.maximumf %365, %364 : vector<32xf32>
    %367 = vector.shape_cast %366 : vector<32xf32> to vector<32x1xf32>
    %368 = vector.broadcast %367 : vector<32x1xf32> to vector<32x32xf32>
    %369 = arith.subf %363, %368 : vector<32x32xf32>
    %370 = math.exp %369 : vector<32x32xf32>
    %cst_129 = arith.constant dense<0.000000e+00> : vector<32xf32>
    %371 = vector.multi_reduction <add>, %370, %cst_129 [1] : vector<32x32xf32> to vector<32xf32>
    %372 = vector.shape_cast %371 : vector<32xf32> to vector<32x1xf32>
    %373 = vector.broadcast %372 : vector<32x1xf32> to vector<32x32xf32>
    %374 = arith.divf %370, %373 : vector<32x32xf32>
    %375 = arith.truncf %374 : vector<32x32xf32> to vector<32x32xbf16>
    %cst_130 = arith.constant dense<0.000000e+00> : vector<32x16xf32>
    %376 = tpu.matmul %375, %359, %cst_130 {dimension_numbers = #tpu.dot_dimension_numbers<[1], [0], [0], [1], [0, 0, 1, 1], [], []>} : vector<32x32xbf16>, vector<32x16xbf16>, vector<32x16xf32> -> vector<32x16xf32>
    %377 = tpu.concatenate %307, %330, %353, %376 in 1 : vector<32x16xf32>, vector<32x16xf32>, vector<32x16xf32>, vector<32x16xf32> -> vector<32x64xf32>
    %378 = arith.truncf %377 : vector<32x64xf32> to vector<32x64xbf16>
    %cst_131 = arith.constant dense<0.000000e+00> : vector<32x64xf32>
    %379 = tpu.matmul %378, %270, %cst_131 {dimension_numbers = #tpu.dot_dimension_numbers<[1], [0], [0], [1], [0, 0, 1, 1], [], []>} : vector<32x64xbf16>, vector<64x64xbf16>, vector<32x64xf32> -> vector<32x64xf32>
    %380 = vector.broadcast %256 : vector<1x64xf32> to vector<32x64xf32>
    %381 = arith.addf %379, %380 : vector<32x64xf32>
    %382 = arith.addf %252, %381 : vector<32x64xf32>
    %cst_132 = arith.constant dense<0.000000e+00> : vector<32xf32>
    %383 = vector.multi_reduction <add>, %382, %cst_132 [1] : vector<32x64xf32> to vector<32xf32>
    %384 = vector.shape_cast %383 : vector<32xf32> to vector<32x1xf32>
    %cst_133 = arith.constant 6.400000e+01 : f32
    %385 = vector.broadcast %cst_133 : f32 to vector<32x1xf32>
    %386 = arith.divf %384, %385 : vector<32x1xf32>
    %387 = vector.broadcast %386 : vector<32x1xf32> to vector<32x64xf32>
    %388 = arith.subf %382, %387 : vector<32x64xf32>
    %389 = arith.mulf %388, %388 : vector<32x64xf32>
    %cst_134 = arith.constant dense<0.000000e+00> : vector<32xf32>
    %390 = vector.multi_reduction <add>, %389, %cst_134 [1] : vector<32x64xf32> to vector<32xf32>
    %391 = vector.shape_cast %390 : vector<32xf32> to vector<32x1xf32>
    %cst_135 = arith.constant 6.400000e+01 : f32
    %392 = vector.broadcast %cst_135 : f32 to vector<32x1xf32>
    %393 = arith.divf %391, %392 : vector<32x1xf32>
    %394 = vector.broadcast %386 : vector<32x1xf32> to vector<32x64xf32>
    %395 = arith.subf %382, %394 : vector<32x64xf32>
    %cst_136 = arith.constant 1.000000e-07 : f32
    %396 = vector.broadcast %cst_136 : f32 to vector<32x1xf32>
    %397 = arith.addf %393, %396 : vector<32x1xf32>
    %398 = math.rsqrt %397 : vector<32x1xf32>
    %399 = vector.broadcast %398 : vector<32x1xf32> to vector<32x64xf32>
    %400 = arith.mulf %395, %399 : vector<32x64xf32>
    %401 = vector.broadcast %257 : vector<1x64xf32> to vector<32x64xf32>
    %402 = arith.mulf %400, %401 : vector<32x64xf32>
    %403 = vector.broadcast %258 : vector<1x64xf32> to vector<32x64xf32>
    %404 = arith.addf %402, %403 : vector<32x64xf32>
    %405 = arith.truncf %404 : vector<32x64xf32> to vector<32x64xbf16>
    %cst_137 = arith.constant dense<0.000000e+00> : vector<32x128xf32>
    %406 = tpu.matmul %405, %272, %cst_137 {dimension_numbers = #tpu.dot_dimension_numbers<[1], [0], [0], [1], [0, 0, 1, 1], [], []>} : vector<32x64xbf16>, vector<64x128xbf16>, vector<32x128xf32> -> vector<32x128xf32>
    %407 = vector.broadcast %262 : vector<1x128xf32> to vector<32x128xf32>
    %408 = arith.addf %406, %407 : vector<32x128xf32>
    %cst_138 = arith.constant 5.000000e-01 : f32
    %409 = vector.broadcast %cst_138 : f32 to vector<32x128xf32>
    %410 = arith.mulf %409, %408 : vector<32x128xf32>
    %cst_139 = arith.constant 0.707106769 : f32
    %411 = vector.broadcast %cst_139 : f32 to vector<32x128xf32>
    %412 = arith.mulf %408, %411 : vector<32x128xf32>
    %cst_140 = arith.constant 0.000000e+00 : f32
    %413 = vector.broadcast %cst_140 : f32 to vector<32x128xf32>
    %414 = arith.cmpf oge, %412, %413 : vector<32x128xf32>
    %cst_141 = arith.constant 1.000000e+00 : f32
    %cst_142 = arith.constant -1.000000e+00 : f32
    %415 = vector.broadcast %cst_141 : f32 to vector<32x128xf32>
    %416 = vector.broadcast %cst_142 : f32 to vector<32x128xf32>
    %417 = arith.select %414, %415, %416 : vector<32x128xi1>, vector<32x128xf32>
    %418 = math.absf %412 : vector<32x128xf32>
    %cst_143 = arith.constant 0.327591091 : f32
    %419 = vector.broadcast %cst_143 : f32 to vector<32x128xf32>
    %420 = arith.mulf %419, %418 : vector<32x128xf32>
    %cst_144 = arith.constant 1.000000e+00 : f32
    %421 = vector.broadcast %cst_144 : f32 to vector<32x128xf32>
    %422 = arith.addf %421, %420 : vector<32x128xf32>
    %cst_145 = arith.constant 1.000000e+00 : f32
    %423 = vector.broadcast %cst_145 : f32 to vector<32x128xf32>
    %424 = arith.divf %423, %422 : vector<32x128xf32>
    %cst_146 = arith.constant 1.06140542 : f32
    %425 = vector.broadcast %cst_146 : f32 to vector<32x128xf32>
    %426 = arith.mulf %425, %424 : vector<32x128xf32>
    %cst_147 = arith.constant -1.45315206 : f32
    %427 = vector.broadcast %cst_147 : f32 to vector<32x128xf32>
    %428 = arith.addf %426, %427 : vector<32x128xf32>
    %429 = arith.mulf %428, %424 : vector<32x128xf32>
    %cst_148 = arith.constant 1.42141378 : f32
    %430 = vector.broadcast %cst_148 : f32 to vector<32x128xf32>
    %431 = arith.addf %429, %430 : vector<32x128xf32>
    %432 = arith.mulf %431, %424 : vector<32x128xf32>
    %cst_149 = arith.constant -0.284496725 : f32
    %433 = vector.broadcast %cst_149 : f32 to vector<32x128xf32>
    %434 = arith.addf %432, %433 : vector<32x128xf32>
    %435 = arith.mulf %434, %424 : vector<32x128xf32>
    %cst_150 = arith.constant 0.254829586 : f32
    %436 = vector.broadcast %cst_150 : f32 to vector<32x128xf32>
    %437 = arith.addf %435, %436 : vector<32x128xf32>
    %438 = arith.mulf %437, %424 : vector<32x128xf32>
    %cst_151 = arith.constant 0.000000e+00 : f32
    %439 = vector.broadcast %cst_151 : f32 to vector<32x128xf32>
    %440 = arith.subf %439, %418 : vector<32x128xf32>
    %441 = arith.mulf %440, %418 : vector<32x128xf32>
    %442 = math.exp %441 : vector<32x128xf32>
    %443 = arith.mulf %438, %442 : vector<32x128xf32>
    %cst_152 = arith.constant 1.000000e+00 : f32
    %444 = vector.broadcast %cst_152 : f32 to vector<32x128xf32>
    %445 = arith.subf %444, %443 : vector<32x128xf32>
    %446 = arith.mulf %417, %445 : vector<32x128xf32>
    %cst_153 = arith.constant 1.000000e+00 : f32
    %447 = vector.broadcast %cst_153 : f32 to vector<32x128xf32>
    %448 = arith.addf %447, %446 : vector<32x128xf32>
    %449 = arith.mulf %410, %448 : vector<32x128xf32>
    %450 = arith.truncf %449 : vector<32x128xf32> to vector<32x128xbf16>
    %cst_154 = arith.constant dense<0.000000e+00> : vector<32x64xf32>
    %451 = tpu.matmul %450, %274, %cst_154 {dimension_numbers = #tpu.dot_dimension_numbers<[1], [0], [0], [1], [0, 0, 1, 1], [], []>} : vector<32x128xbf16>, vector<128x64xbf16>, vector<32x64xf32> -> vector<32x64xf32>
    %452 = vector.broadcast %259 : vector<1x64xf32> to vector<32x64xf32>
    %453 = arith.addf %451, %452 : vector<32x64xf32>
    %454 = arith.addf %404, %453 : vector<32x64xf32>
    %cst_155 = arith.constant dense<0.000000e+00> : vector<32xf32>
    %455 = vector.multi_reduction <add>, %454, %cst_155 [1] : vector<32x64xf32> to vector<32xf32>
    %456 = vector.shape_cast %455 : vector<32xf32> to vector<32x1xf32>
    %cst_156 = arith.constant 6.400000e+01 : f32
    %457 = vector.broadcast %cst_156 : f32 to vector<32x1xf32>
    %458 = arith.divf %456, %457 : vector<32x1xf32>
    %459 = vector.broadcast %458 : vector<32x1xf32> to vector<32x64xf32>
    %460 = arith.subf %454, %459 : vector<32x64xf32>
    %461 = arith.mulf %460, %460 : vector<32x64xf32>
    %cst_157 = arith.constant dense<0.000000e+00> : vector<32xf32>
    %462 = vector.multi_reduction <add>, %461, %cst_157 [1] : vector<32x64xf32> to vector<32xf32>
    %463 = vector.shape_cast %462 : vector<32xf32> to vector<32x1xf32>
    %cst_158 = arith.constant 6.400000e+01 : f32
    %464 = vector.broadcast %cst_158 : f32 to vector<32x1xf32>
    %465 = arith.divf %463, %464 : vector<32x1xf32>
    %466 = vector.broadcast %458 : vector<32x1xf32> to vector<32x64xf32>
    %467 = arith.subf %454, %466 : vector<32x64xf32>
    %cst_159 = arith.constant 1.000000e-07 : f32
    %468 = vector.broadcast %cst_159 : f32 to vector<32x1xf32>
    %469 = arith.addf %465, %468 : vector<32x1xf32>
    %470 = math.rsqrt %469 : vector<32x1xf32>
    %471 = vector.broadcast %470 : vector<32x1xf32> to vector<32x64xf32>
    %472 = arith.mulf %467, %471 : vector<32x64xf32>
    %473 = vector.broadcast %260 : vector<1x64xf32> to vector<32x64xf32>
    %474 = arith.mulf %472, %473 : vector<32x64xf32>
    %475 = vector.broadcast %261 : vector<1x64xf32> to vector<32x64xf32>
    %476 = arith.addf %474, %475 : vector<32x64xf32>
    %477 = vector.extract_strided_slice %2 {offsets = [20, 0], sizes = [1, 64], strides = [1, 1]} : vector<39x64xf32> to vector<1x64xf32>
    %478 = vector.extract_strided_slice %2 {offsets = [21, 0], sizes = [1, 64], strides = [1, 1]} : vector<39x64xf32> to vector<1x64xf32>
    %479 = vector.extract_strided_slice %2 {offsets = [22, 0], sizes = [1, 64], strides = [1, 1]} : vector<39x64xf32> to vector<1x64xf32>
    %480 = vector.extract_strided_slice %2 {offsets = [23, 0], sizes = [1, 64], strides = [1, 1]} : vector<39x64xf32> to vector<1x64xf32>
    %481 = vector.extract_strided_slice %2 {offsets = [24, 0], sizes = [1, 64], strides = [1, 1]} : vector<39x64xf32> to vector<1x64xf32>
    %482 = vector.extract_strided_slice %2 {offsets = [25, 0], sizes = [1, 64], strides = [1, 1]} : vector<39x64xf32> to vector<1x64xf32>
    %483 = vector.extract_strided_slice %2 {offsets = [26, 0], sizes = [1, 64], strides = [1, 1]} : vector<39x64xf32> to vector<1x64xf32>
    %484 = vector.extract_strided_slice %2 {offsets = [27, 0], sizes = [1, 64], strides = [1, 1]} : vector<39x64xf32> to vector<1x64xf32>
    %485 = vector.extract_strided_slice %2 {offsets = [28, 0], sizes = [1, 64], strides = [1, 1]} : vector<39x64xf32> to vector<1x64xf32>
    %486 = vector.extract_strided_slice %3 {offsets = [2, 0], sizes = [1, 128], strides = [1, 1]} : vector<4x128xf32> to vector<1x128xf32>
    %c2 = arith.constant 2 : index
    %c0_160 = arith.constant 0 : index
    %c0_161 = arith.constant 0 : index
    %487 = vector.load %arg6[%c2, %c0_160, %c0_161] : memref<4x64x64xbf16, #tpu.memory_space<vmem>>, vector<1x64x64xbf16>
    %488 = vector.shape_cast %487 : vector<1x64x64xbf16> to vector<64x64xbf16>
    %c2_162 = arith.constant 2 : index
    %c0_163 = arith.constant 0 : index
    %c0_164 = arith.constant 0 : index
    %489 = vector.load %arg7[%c2_162, %c0_163, %c0_164] : memref<4x64x64xbf16, #tpu.memory_space<vmem>>, vector<1x64x64xbf16>
    %490 = vector.shape_cast %489 : vector<1x64x64xbf16> to vector<64x64xbf16>
    %c2_165 = arith.constant 2 : index
    %c0_166 = arith.constant 0 : index
    %c0_167 = arith.constant 0 : index
    %491 = vector.load %arg8[%c2_165, %c0_166, %c0_167] : memref<4x64x64xbf16, #tpu.memory_space<vmem>>, vector<1x64x64xbf16>
    %492 = vector.shape_cast %491 : vector<1x64x64xbf16> to vector<64x64xbf16>
    %c2_168 = arith.constant 2 : index
    %c0_169 = arith.constant 0 : index
    %c0_170 = arith.constant 0 : index
    %493 = vector.load %arg9[%c2_168, %c0_169, %c0_170] : memref<4x64x64xbf16, #tpu.memory_space<vmem>>, vector<1x64x64xbf16>
    %494 = vector.shape_cast %493 : vector<1x64x64xbf16> to vector<64x64xbf16>
    %c2_171 = arith.constant 2 : index
    %c0_172 = arith.constant 0 : index
    %c0_173 = arith.constant 0 : index
    %495 = vector.load %arg10[%c2_171, %c0_172, %c0_173] : memref<4x64x128xbf16, #tpu.memory_space<vmem>>, vector<1x64x128xbf16>
    %496 = vector.shape_cast %495 : vector<1x64x128xbf16> to vector<64x128xbf16>
    %c2_174 = arith.constant 2 : index
    %c0_175 = arith.constant 0 : index
    %c0_176 = arith.constant 0 : index
    %497 = vector.load %arg11[%c2_174, %c0_175, %c0_176] : memref<4x128x64xbf16, #tpu.memory_space<vmem>>, vector<1x128x64xbf16>
    %498 = vector.shape_cast %497 : vector<1x128x64xbf16> to vector<128x64xbf16>
    %499 = arith.truncf %476 : vector<32x64xf32> to vector<32x64xbf16>
    %cst_177 = arith.constant dense<0.000000e+00> : vector<32x64xf32>
    %500 = tpu.matmul %499, %488, %cst_177 {dimension_numbers = #tpu.dot_dimension_numbers<[1], [0], [0], [1], [0, 0, 1, 1], [], []>} : vector<32x64xbf16>, vector<64x64xbf16>, vector<32x64xf32> -> vector<32x64xf32>
    %501 = vector.broadcast %477 : vector<1x64xf32> to vector<32x64xf32>
    %502 = arith.addf %500, %501 : vector<32x64xf32>
    %cst_178 = arith.constant dense<0.000000e+00> : vector<32x64xf32>
    %503 = tpu.matmul %499, %490, %cst_178 {dimension_numbers = #tpu.dot_dimension_numbers<[1], [0], [0], [1], [0, 0, 1, 1], [], []>} : vector<32x64xbf16>, vector<64x64xbf16>, vector<32x64xf32> -> vector<32x64xf32>
    %504 = vector.broadcast %478 : vector<1x64xf32> to vector<32x64xf32>
    %505 = arith.addf %503, %504 : vector<32x64xf32>
    %cst_179 = arith.constant dense<0.000000e+00> : vector<32x64xf32>
    %506 = tpu.matmul %499, %492, %cst_179 {dimension_numbers = #tpu.dot_dimension_numbers<[1], [0], [0], [1], [0, 0, 1, 1], [], []>} : vector<32x64xbf16>, vector<64x64xbf16>, vector<32x64xf32> -> vector<32x64xf32>
    %507 = vector.broadcast %479 : vector<1x64xf32> to vector<32x64xf32>
    %508 = arith.addf %506, %507 : vector<32x64xf32>
    %509 = vector.extract_strided_slice %502 {offsets = [0, 0], sizes = [32, 16], strides = [1, 1]} : vector<32x64xf32> to vector<32x16xf32>
    %510 = arith.truncf %509 : vector<32x16xf32> to vector<32x16xbf16>
    %511 = vector.extract_strided_slice %505 {offsets = [0, 0], sizes = [32, 16], strides = [1, 1]} : vector<32x64xf32> to vector<32x16xf32>
    %512 = arith.truncf %511 : vector<32x16xf32> to vector<32x16xbf16>
    %513 = vector.extract_strided_slice %508 {offsets = [0, 0], sizes = [32, 16], strides = [1, 1]} : vector<32x64xf32> to vector<32x16xf32>
    %514 = arith.truncf %513 : vector<32x16xf32> to vector<32x16xbf16>
    %cst_180 = arith.constant dense<0.000000e+00> : vector<32x32xf32>
    %515 = tpu.matmul %510, %512, %cst_180 {dimension_numbers = #tpu.dot_dimension_numbers<[1], [1], [0], [0], [0, 0, 1, 0], [], []>} : vector<32x16xbf16>, vector<32x16xbf16>, vector<32x32xf32> -> vector<32x32xf32>
    %cst_181 = arith.constant 2.500000e-01 : f32
    %516 = vector.broadcast %cst_181 : f32 to vector<32x32xf32>
    %517 = arith.mulf %515, %516 : vector<32x32xf32>
    %518 = arith.addf %517, %1 : vector<32x32xf32>
    %cst_182 = arith.constant dense<0xFF800000> : vector<32xf32>
    %519 = vector.multi_reduction <maximumf>, %518, %cst_182 [1] : vector<32x32xf32> to vector<32xf32>
    %cst_183 = arith.constant 0xFF800000 : f32
    %520 = vector.broadcast %cst_183 : f32 to vector<32xf32>
    %521 = arith.maximumf %520, %519 : vector<32xf32>
    %522 = vector.shape_cast %521 : vector<32xf32> to vector<32x1xf32>
    %523 = vector.broadcast %522 : vector<32x1xf32> to vector<32x32xf32>
    %524 = arith.subf %518, %523 : vector<32x32xf32>
    %525 = math.exp %524 : vector<32x32xf32>
    %cst_184 = arith.constant dense<0.000000e+00> : vector<32xf32>
    %526 = vector.multi_reduction <add>, %525, %cst_184 [1] : vector<32x32xf32> to vector<32xf32>
    %527 = vector.shape_cast %526 : vector<32xf32> to vector<32x1xf32>
    %528 = vector.broadcast %527 : vector<32x1xf32> to vector<32x32xf32>
    %529 = arith.divf %525, %528 : vector<32x32xf32>
    %530 = arith.truncf %529 : vector<32x32xf32> to vector<32x32xbf16>
    %cst_185 = arith.constant dense<0.000000e+00> : vector<32x16xf32>
    %531 = tpu.matmul %530, %514, %cst_185 {dimension_numbers = #tpu.dot_dimension_numbers<[1], [0], [0], [1], [0, 0, 1, 1], [], []>} : vector<32x32xbf16>, vector<32x16xbf16>, vector<32x16xf32> -> vector<32x16xf32>
    %532 = vector.extract_strided_slice %502 {offsets = [0, 16], sizes = [32, 16], strides = [1, 1]} : vector<32x64xf32> to vector<32x16xf32>
    %533 = arith.truncf %532 : vector<32x16xf32> to vector<32x16xbf16>
    %534 = vector.extract_strided_slice %505 {offsets = [0, 16], sizes = [32, 16], strides = [1, 1]} : vector<32x64xf32> to vector<32x16xf32>
    %535 = arith.truncf %534 : vector<32x16xf32> to vector<32x16xbf16>
    %536 = vector.extract_strided_slice %508 {offsets = [0, 16], sizes = [32, 16], strides = [1, 1]} : vector<32x64xf32> to vector<32x16xf32>
    %537 = arith.truncf %536 : vector<32x16xf32> to vector<32x16xbf16>
    %cst_186 = arith.constant dense<0.000000e+00> : vector<32x32xf32>
    %538 = tpu.matmul %533, %535, %cst_186 {dimension_numbers = #tpu.dot_dimension_numbers<[1], [1], [0], [0], [0, 0, 1, 0], [], []>} : vector<32x16xbf16>, vector<32x16xbf16>, vector<32x32xf32> -> vector<32x32xf32>
    %cst_187 = arith.constant 2.500000e-01 : f32
    %539 = vector.broadcast %cst_187 : f32 to vector<32x32xf32>
    %540 = arith.mulf %538, %539 : vector<32x32xf32>
    %541 = arith.addf %540, %1 : vector<32x32xf32>
    %cst_188 = arith.constant dense<0xFF800000> : vector<32xf32>
    %542 = vector.multi_reduction <maximumf>, %541, %cst_188 [1] : vector<32x32xf32> to vector<32xf32>
    %cst_189 = arith.constant 0xFF800000 : f32
    %543 = vector.broadcast %cst_189 : f32 to vector<32xf32>
    %544 = arith.maximumf %543, %542 : vector<32xf32>
    %545 = vector.shape_cast %544 : vector<32xf32> to vector<32x1xf32>
    %546 = vector.broadcast %545 : vector<32x1xf32> to vector<32x32xf32>
    %547 = arith.subf %541, %546 : vector<32x32xf32>
    %548 = math.exp %547 : vector<32x32xf32>
    %cst_190 = arith.constant dense<0.000000e+00> : vector<32xf32>
    %549 = vector.multi_reduction <add>, %548, %cst_190 [1] : vector<32x32xf32> to vector<32xf32>
    %550 = vector.shape_cast %549 : vector<32xf32> to vector<32x1xf32>
    %551 = vector.broadcast %550 : vector<32x1xf32> to vector<32x32xf32>
    %552 = arith.divf %548, %551 : vector<32x32xf32>
    %553 = arith.truncf %552 : vector<32x32xf32> to vector<32x32xbf16>
    %cst_191 = arith.constant dense<0.000000e+00> : vector<32x16xf32>
    %554 = tpu.matmul %553, %537, %cst_191 {dimension_numbers = #tpu.dot_dimension_numbers<[1], [0], [0], [1], [0, 0, 1, 1], [], []>} : vector<32x32xbf16>, vector<32x16xbf16>, vector<32x16xf32> -> vector<32x16xf32>
    %555 = vector.extract_strided_slice %502 {offsets = [0, 32], sizes = [32, 16], strides = [1, 1]} : vector<32x64xf32> to vector<32x16xf32>
    %556 = arith.truncf %555 : vector<32x16xf32> to vector<32x16xbf16>
    %557 = vector.extract_strided_slice %505 {offsets = [0, 32], sizes = [32, 16], strides = [1, 1]} : vector<32x64xf32> to vector<32x16xf32>
    %558 = arith.truncf %557 : vector<32x16xf32> to vector<32x16xbf16>
    %559 = vector.extract_strided_slice %508 {offsets = [0, 32], sizes = [32, 16], strides = [1, 1]} : vector<32x64xf32> to vector<32x16xf32>
    %560 = arith.truncf %559 : vector<32x16xf32> to vector<32x16xbf16>
    %cst_192 = arith.constant dense<0.000000e+00> : vector<32x32xf32>
    %561 = tpu.matmul %556, %558, %cst_192 {dimension_numbers = #tpu.dot_dimension_numbers<[1], [1], [0], [0], [0, 0, 1, 0], [], []>} : vector<32x16xbf16>, vector<32x16xbf16>, vector<32x32xf32> -> vector<32x32xf32>
    %cst_193 = arith.constant 2.500000e-01 : f32
    %562 = vector.broadcast %cst_193 : f32 to vector<32x32xf32>
    %563 = arith.mulf %561, %562 : vector<32x32xf32>
    %564 = arith.addf %563, %1 : vector<32x32xf32>
    %cst_194 = arith.constant dense<0xFF800000> : vector<32xf32>
    %565 = vector.multi_reduction <maximumf>, %564, %cst_194 [1] : vector<32x32xf32> to vector<32xf32>
    %cst_195 = arith.constant 0xFF800000 : f32
    %566 = vector.broadcast %cst_195 : f32 to vector<32xf32>
    %567 = arith.maximumf %566, %565 : vector<32xf32>
    %568 = vector.shape_cast %567 : vector<32xf32> to vector<32x1xf32>
    %569 = vector.broadcast %568 : vector<32x1xf32> to vector<32x32xf32>
    %570 = arith.subf %564, %569 : vector<32x32xf32>
    %571 = math.exp %570 : vector<32x32xf32>
    %cst_196 = arith.constant dense<0.000000e+00> : vector<32xf32>
    %572 = vector.multi_reduction <add>, %571, %cst_196 [1] : vector<32x32xf32> to vector<32xf32>
    %573 = vector.shape_cast %572 : vector<32xf32> to vector<32x1xf32>
    %574 = vector.broadcast %573 : vector<32x1xf32> to vector<32x32xf32>
    %575 = arith.divf %571, %574 : vector<32x32xf32>
    %576 = arith.truncf %575 : vector<32x32xf32> to vector<32x32xbf16>
    %cst_197 = arith.constant dense<0.000000e+00> : vector<32x16xf32>
    %577 = tpu.matmul %576, %560, %cst_197 {dimension_numbers = #tpu.dot_dimension_numbers<[1], [0], [0], [1], [0, 0, 1, 1], [], []>} : vector<32x32xbf16>, vector<32x16xbf16>, vector<32x16xf32> -> vector<32x16xf32>
    %578 = vector.extract_strided_slice %502 {offsets = [0, 48], sizes = [32, 16], strides = [1, 1]} : vector<32x64xf32> to vector<32x16xf32>
    %579 = arith.truncf %578 : vector<32x16xf32> to vector<32x16xbf16>
    %580 = vector.extract_strided_slice %505 {offsets = [0, 48], sizes = [32, 16], strides = [1, 1]} : vector<32x64xf32> to vector<32x16xf32>
    %581 = arith.truncf %580 : vector<32x16xf32> to vector<32x16xbf16>
    %582 = vector.extract_strided_slice %508 {offsets = [0, 48], sizes = [32, 16], strides = [1, 1]} : vector<32x64xf32> to vector<32x16xf32>
    %583 = arith.truncf %582 : vector<32x16xf32> to vector<32x16xbf16>
    %cst_198 = arith.constant dense<0.000000e+00> : vector<32x32xf32>
    %584 = tpu.matmul %579, %581, %cst_198 {dimension_numbers = #tpu.dot_dimension_numbers<[1], [1], [0], [0], [0, 0, 1, 0], [], []>} : vector<32x16xbf16>, vector<32x16xbf16>, vector<32x32xf32> -> vector<32x32xf32>
    %cst_199 = arith.constant 2.500000e-01 : f32
    %585 = vector.broadcast %cst_199 : f32 to vector<32x32xf32>
    %586 = arith.mulf %584, %585 : vector<32x32xf32>
    %587 = arith.addf %586, %1 : vector<32x32xf32>
    %cst_200 = arith.constant dense<0xFF800000> : vector<32xf32>
    %588 = vector.multi_reduction <maximumf>, %587, %cst_200 [1] : vector<32x32xf32> to vector<32xf32>
    %cst_201 = arith.constant 0xFF800000 : f32
    %589 = vector.broadcast %cst_201 : f32 to vector<32xf32>
    %590 = arith.maximumf %589, %588 : vector<32xf32>
    %591 = vector.shape_cast %590 : vector<32xf32> to vector<32x1xf32>
    %592 = vector.broadcast %591 : vector<32x1xf32> to vector<32x32xf32>
    %593 = arith.subf %587, %592 : vector<32x32xf32>
    %594 = math.exp %593 : vector<32x32xf32>
    %cst_202 = arith.constant dense<0.000000e+00> : vector<32xf32>
    %595 = vector.multi_reduction <add>, %594, %cst_202 [1] : vector<32x32xf32> to vector<32xf32>
    %596 = vector.shape_cast %595 : vector<32xf32> to vector<32x1xf32>
    %597 = vector.broadcast %596 : vector<32x1xf32> to vector<32x32xf32>
    %598 = arith.divf %594, %597 : vector<32x32xf32>
    %599 = arith.truncf %598 : vector<32x32xf32> to vector<32x32xbf16>
    %cst_203 = arith.constant dense<0.000000e+00> : vector<32x16xf32>
    %600 = tpu.matmul %599, %583, %cst_203 {dimension_numbers = #tpu.dot_dimension_numbers<[1], [0], [0], [1], [0, 0, 1, 1], [], []>} : vector<32x32xbf16>, vector<32x16xbf16>, vector<32x16xf32> -> vector<32x16xf32>
    %601 = tpu.concatenate %531, %554, %577, %600 in 1 : vector<32x16xf32>, vector<32x16xf32>, vector<32x16xf32>, vector<32x16xf32> -> vector<32x64xf32>
    %602 = arith.truncf %601 : vector<32x64xf32> to vector<32x64xbf16>
    %cst_204 = arith.constant dense<0.000000e+00> : vector<32x64xf32>
    %603 = tpu.matmul %602, %494, %cst_204 {dimension_numbers = #tpu.dot_dimension_numbers<[1], [0], [0], [1], [0, 0, 1, 1], [], []>} : vector<32x64xbf16>, vector<64x64xbf16>, vector<32x64xf32> -> vector<32x64xf32>
    %604 = vector.broadcast %480 : vector<1x64xf32> to vector<32x64xf32>
    %605 = arith.addf %603, %604 : vector<32x64xf32>
    %606 = arith.addf %476, %605 : vector<32x64xf32>
    %cst_205 = arith.constant dense<0.000000e+00> : vector<32xf32>
    %607 = vector.multi_reduction <add>, %606, %cst_205 [1] : vector<32x64xf32> to vector<32xf32>
    %608 = vector.shape_cast %607 : vector<32xf32> to vector<32x1xf32>
    %cst_206 = arith.constant 6.400000e+01 : f32
    %609 = vector.broadcast %cst_206 : f32 to vector<32x1xf32>
    %610 = arith.divf %608, %609 : vector<32x1xf32>
    %611 = vector.broadcast %610 : vector<32x1xf32> to vector<32x64xf32>
    %612 = arith.subf %606, %611 : vector<32x64xf32>
    %613 = arith.mulf %612, %612 : vector<32x64xf32>
    %cst_207 = arith.constant dense<0.000000e+00> : vector<32xf32>
    %614 = vector.multi_reduction <add>, %613, %cst_207 [1] : vector<32x64xf32> to vector<32xf32>
    %615 = vector.shape_cast %614 : vector<32xf32> to vector<32x1xf32>
    %cst_208 = arith.constant 6.400000e+01 : f32
    %616 = vector.broadcast %cst_208 : f32 to vector<32x1xf32>
    %617 = arith.divf %615, %616 : vector<32x1xf32>
    %618 = vector.broadcast %610 : vector<32x1xf32> to vector<32x64xf32>
    %619 = arith.subf %606, %618 : vector<32x64xf32>
    %cst_209 = arith.constant 1.000000e-07 : f32
    %620 = vector.broadcast %cst_209 : f32 to vector<32x1xf32>
    %621 = arith.addf %617, %620 : vector<32x1xf32>
    %622 = math.rsqrt %621 : vector<32x1xf32>
    %623 = vector.broadcast %622 : vector<32x1xf32> to vector<32x64xf32>
    %624 = arith.mulf %619, %623 : vector<32x64xf32>
    %625 = vector.broadcast %481 : vector<1x64xf32> to vector<32x64xf32>
    %626 = arith.mulf %624, %625 : vector<32x64xf32>
    %627 = vector.broadcast %482 : vector<1x64xf32> to vector<32x64xf32>
    %628 = arith.addf %626, %627 : vector<32x64xf32>
    %629 = arith.truncf %628 : vector<32x64xf32> to vector<32x64xbf16>
    %cst_210 = arith.constant dense<0.000000e+00> : vector<32x128xf32>
    %630 = tpu.matmul %629, %496, %cst_210 {dimension_numbers = #tpu.dot_dimension_numbers<[1], [0], [0], [1], [0, 0, 1, 1], [], []>} : vector<32x64xbf16>, vector<64x128xbf16>, vector<32x128xf32> -> vector<32x128xf32>
    %631 = vector.broadcast %486 : vector<1x128xf32> to vector<32x128xf32>
    %632 = arith.addf %630, %631 : vector<32x128xf32>
    %cst_211 = arith.constant 5.000000e-01 : f32
    %633 = vector.broadcast %cst_211 : f32 to vector<32x128xf32>
    %634 = arith.mulf %633, %632 : vector<32x128xf32>
    %cst_212 = arith.constant 0.707106769 : f32
    %635 = vector.broadcast %cst_212 : f32 to vector<32x128xf32>
    %636 = arith.mulf %632, %635 : vector<32x128xf32>
    %cst_213 = arith.constant 0.000000e+00 : f32
    %637 = vector.broadcast %cst_213 : f32 to vector<32x128xf32>
    %638 = arith.cmpf oge, %636, %637 : vector<32x128xf32>
    %cst_214 = arith.constant 1.000000e+00 : f32
    %cst_215 = arith.constant -1.000000e+00 : f32
    %639 = vector.broadcast %cst_214 : f32 to vector<32x128xf32>
    %640 = vector.broadcast %cst_215 : f32 to vector<32x128xf32>
    %641 = arith.select %638, %639, %640 : vector<32x128xi1>, vector<32x128xf32>
    %642 = math.absf %636 : vector<32x128xf32>
    %cst_216 = arith.constant 0.327591091 : f32
    %643 = vector.broadcast %cst_216 : f32 to vector<32x128xf32>
    %644 = arith.mulf %643, %642 : vector<32x128xf32>
    %cst_217 = arith.constant 1.000000e+00 : f32
    %645 = vector.broadcast %cst_217 : f32 to vector<32x128xf32>
    %646 = arith.addf %645, %644 : vector<32x128xf32>
    %cst_218 = arith.constant 1.000000e+00 : f32
    %647 = vector.broadcast %cst_218 : f32 to vector<32x128xf32>
    %648 = arith.divf %647, %646 : vector<32x128xf32>
    %cst_219 = arith.constant 1.06140542 : f32
    %649 = vector.broadcast %cst_219 : f32 to vector<32x128xf32>
    %650 = arith.mulf %649, %648 : vector<32x128xf32>
    %cst_220 = arith.constant -1.45315206 : f32
    %651 = vector.broadcast %cst_220 : f32 to vector<32x128xf32>
    %652 = arith.addf %650, %651 : vector<32x128xf32>
    %653 = arith.mulf %652, %648 : vector<32x128xf32>
    %cst_221 = arith.constant 1.42141378 : f32
    %654 = vector.broadcast %cst_221 : f32 to vector<32x128xf32>
    %655 = arith.addf %653, %654 : vector<32x128xf32>
    %656 = arith.mulf %655, %648 : vector<32x128xf32>
    %cst_222 = arith.constant -0.284496725 : f32
    %657 = vector.broadcast %cst_222 : f32 to vector<32x128xf32>
    %658 = arith.addf %656, %657 : vector<32x128xf32>
    %659 = arith.mulf %658, %648 : vector<32x128xf32>
    %cst_223 = arith.constant 0.254829586 : f32
    %660 = vector.broadcast %cst_223 : f32 to vector<32x128xf32>
    %661 = arith.addf %659, %660 : vector<32x128xf32>
    %662 = arith.mulf %661, %648 : vector<32x128xf32>
    %cst_224 = arith.constant 0.000000e+00 : f32
    %663 = vector.broadcast %cst_224 : f32 to vector<32x128xf32>
    %664 = arith.subf %663, %642 : vector<32x128xf32>
    %665 = arith.mulf %664, %642 : vector<32x128xf32>
    %666 = math.exp %665 : vector<32x128xf32>
    %667 = arith.mulf %662, %666 : vector<32x128xf32>
    %cst_225 = arith.constant 1.000000e+00 : f32
    %668 = vector.broadcast %cst_225 : f32 to vector<32x128xf32>
    %669 = arith.subf %668, %667 : vector<32x128xf32>
    %670 = arith.mulf %641, %669 : vector<32x128xf32>
    %cst_226 = arith.constant 1.000000e+00 : f32
    %671 = vector.broadcast %cst_226 : f32 to vector<32x128xf32>
    %672 = arith.addf %671, %670 : vector<32x128xf32>
    %673 = arith.mulf %634, %672 : vector<32x128xf32>
    %674 = arith.truncf %673 : vector<32x128xf32> to vector<32x128xbf16>
    %cst_227 = arith.constant dense<0.000000e+00> : vector<32x64xf32>
    %675 = tpu.matmul %674, %498, %cst_227 {dimension_numbers = #tpu.dot_dimension_numbers<[1], [0], [0], [1], [0, 0, 1, 1], [], []>} : vector<32x128xbf16>, vector<128x64xbf16>, vector<32x64xf32> -> vector<32x64xf32>
    %676 = vector.broadcast %483 : vector<1x64xf32> to vector<32x64xf32>
    %677 = arith.addf %675, %676 : vector<32x64xf32>
    %678 = arith.addf %628, %677 : vector<32x64xf32>
    %cst_228 = arith.constant dense<0.000000e+00> : vector<32xf32>
    %679 = vector.multi_reduction <add>, %678, %cst_228 [1] : vector<32x64xf32> to vector<32xf32>
    %680 = vector.shape_cast %679 : vector<32xf32> to vector<32x1xf32>
    %cst_229 = arith.constant 6.400000e+01 : f32
    %681 = vector.broadcast %cst_229 : f32 to vector<32x1xf32>
    %682 = arith.divf %680, %681 : vector<32x1xf32>
    %683 = vector.broadcast %682 : vector<32x1xf32> to vector<32x64xf32>
    %684 = arith.subf %678, %683 : vector<32x64xf32>
    %685 = arith.mulf %684, %684 : vector<32x64xf32>
    %cst_230 = arith.constant dense<0.000000e+00> : vector<32xf32>
    %686 = vector.multi_reduction <add>, %685, %cst_230 [1] : vector<32x64xf32> to vector<32xf32>
    %687 = vector.shape_cast %686 : vector<32xf32> to vector<32x1xf32>
    %cst_231 = arith.constant 6.400000e+01 : f32
    %688 = vector.broadcast %cst_231 : f32 to vector<32x1xf32>
    %689 = arith.divf %687, %688 : vector<32x1xf32>
    %690 = vector.broadcast %682 : vector<32x1xf32> to vector<32x64xf32>
    %691 = arith.subf %678, %690 : vector<32x64xf32>
    %cst_232 = arith.constant 1.000000e-07 : f32
    %692 = vector.broadcast %cst_232 : f32 to vector<32x1xf32>
    %693 = arith.addf %689, %692 : vector<32x1xf32>
    %694 = math.rsqrt %693 : vector<32x1xf32>
    %695 = vector.broadcast %694 : vector<32x1xf32> to vector<32x64xf32>
    %696 = arith.mulf %691, %695 : vector<32x64xf32>
    %697 = vector.broadcast %484 : vector<1x64xf32> to vector<32x64xf32>
    %698 = arith.mulf %696, %697 : vector<32x64xf32>
    %699 = vector.broadcast %485 : vector<1x64xf32> to vector<32x64xf32>
    %700 = arith.addf %698, %699 : vector<32x64xf32>
    %701 = vector.extract_strided_slice %2 {offsets = [29, 0], sizes = [1, 64], strides = [1, 1]} : vector<39x64xf32> to vector<1x64xf32>
    %702 = vector.extract_strided_slice %2 {offsets = [30, 0], sizes = [1, 64], strides = [1, 1]} : vector<39x64xf32> to vector<1x64xf32>
    %703 = vector.extract_strided_slice %2 {offsets = [31, 0], sizes = [1, 64], strides = [1, 1]} : vector<39x64xf32> to vector<1x64xf32>
    %704 = vector.extract_strided_slice %2 {offsets = [32, 0], sizes = [1, 64], strides = [1, 1]} : vector<39x64xf32> to vector<1x64xf32>
    %705 = vector.extract_strided_slice %2 {offsets = [33, 0], sizes = [1, 64], strides = [1, 1]} : vector<39x64xf32> to vector<1x64xf32>
    %706 = vector.extract_strided_slice %2 {offsets = [34, 0], sizes = [1, 64], strides = [1, 1]} : vector<39x64xf32> to vector<1x64xf32>
    %707 = vector.extract_strided_slice %2 {offsets = [35, 0], sizes = [1, 64], strides = [1, 1]} : vector<39x64xf32> to vector<1x64xf32>
    %708 = vector.extract_strided_slice %2 {offsets = [36, 0], sizes = [1, 64], strides = [1, 1]} : vector<39x64xf32> to vector<1x64xf32>
    %709 = vector.extract_strided_slice %2 {offsets = [37, 0], sizes = [1, 64], strides = [1, 1]} : vector<39x64xf32> to vector<1x64xf32>
    %710 = vector.extract_strided_slice %3 {offsets = [3, 0], sizes = [1, 128], strides = [1, 1]} : vector<4x128xf32> to vector<1x128xf32>
    %c3 = arith.constant 3 : index
    %c0_233 = arith.constant 0 : index
    %c0_234 = arith.constant 0 : index
    %711 = vector.load %arg6[%c3, %c0_233, %c0_234] : memref<4x64x64xbf16, #tpu.memory_space<vmem>>, vector<1x64x64xbf16>
    %712 = vector.shape_cast %711 : vector<1x64x64xbf16> to vector<64x64xbf16>
    %c3_235 = arith.constant 3 : index
    %c0_236 = arith.constant 0 : index
    %c0_237 = arith.constant 0 : index
    %713 = vector.load %arg7[%c3_235, %c0_236, %c0_237] : memref<4x64x64xbf16, #tpu.memory_space<vmem>>, vector<1x64x64xbf16>
    %714 = vector.shape_cast %713 : vector<1x64x64xbf16> to vector<64x64xbf16>
    %c3_238 = arith.constant 3 : index
    %c0_239 = arith.constant 0 : index
    %c0_240 = arith.constant 0 : index
    %715 = vector.load %arg8[%c3_238, %c0_239, %c0_240] : memref<4x64x64xbf16, #tpu.memory_space<vmem>>, vector<1x64x64xbf16>
    %716 = vector.shape_cast %715 : vector<1x64x64xbf16> to vector<64x64xbf16>
    %c3_241 = arith.constant 3 : index
    %c0_242 = arith.constant 0 : index
    %c0_243 = arith.constant 0 : index
    %717 = vector.load %arg9[%c3_241, %c0_242, %c0_243] : memref<4x64x64xbf16, #tpu.memory_space<vmem>>, vector<1x64x64xbf16>
    %718 = vector.shape_cast %717 : vector<1x64x64xbf16> to vector<64x64xbf16>
    %c3_244 = arith.constant 3 : index
    %c0_245 = arith.constant 0 : index
    %c0_246 = arith.constant 0 : index
    %719 = vector.load %arg10[%c3_244, %c0_245, %c0_246] : memref<4x64x128xbf16, #tpu.memory_space<vmem>>, vector<1x64x128xbf16>
    %720 = vector.shape_cast %719 : vector<1x64x128xbf16> to vector<64x128xbf16>
    %c3_247 = arith.constant 3 : index
    %c0_248 = arith.constant 0 : index
    %c0_249 = arith.constant 0 : index
    %721 = vector.load %arg11[%c3_247, %c0_248, %c0_249] : memref<4x128x64xbf16, #tpu.memory_space<vmem>>, vector<1x128x64xbf16>
    %722 = vector.shape_cast %721 : vector<1x128x64xbf16> to vector<128x64xbf16>
    %723 = arith.truncf %700 : vector<32x64xf32> to vector<32x64xbf16>
    %cst_250 = arith.constant dense<0.000000e+00> : vector<32x64xf32>
    %724 = tpu.matmul %723, %712, %cst_250 {dimension_numbers = #tpu.dot_dimension_numbers<[1], [0], [0], [1], [0, 0, 1, 1], [], []>} : vector<32x64xbf16>, vector<64x64xbf16>, vector<32x64xf32> -> vector<32x64xf32>
    %725 = vector.broadcast %701 : vector<1x64xf32> to vector<32x64xf32>
    %726 = arith.addf %724, %725 : vector<32x64xf32>
    %cst_251 = arith.constant dense<0.000000e+00> : vector<32x64xf32>
    %727 = tpu.matmul %723, %714, %cst_251 {dimension_numbers = #tpu.dot_dimension_numbers<[1], [0], [0], [1], [0, 0, 1, 1], [], []>} : vector<32x64xbf16>, vector<64x64xbf16>, vector<32x64xf32> -> vector<32x64xf32>
    %728 = vector.broadcast %702 : vector<1x64xf32> to vector<32x64xf32>
    %729 = arith.addf %727, %728 : vector<32x64xf32>
    %cst_252 = arith.constant dense<0.000000e+00> : vector<32x64xf32>
    %730 = tpu.matmul %723, %716, %cst_252 {dimension_numbers = #tpu.dot_dimension_numbers<[1], [0], [0], [1], [0, 0, 1, 1], [], []>} : vector<32x64xbf16>, vector<64x64xbf16>, vector<32x64xf32> -> vector<32x64xf32>
    %731 = vector.broadcast %703 : vector<1x64xf32> to vector<32x64xf32>
    %732 = arith.addf %730, %731 : vector<32x64xf32>
    %733 = vector.extract_strided_slice %726 {offsets = [0, 0], sizes = [32, 16], strides = [1, 1]} : vector<32x64xf32> to vector<32x16xf32>
    %734 = arith.truncf %733 : vector<32x16xf32> to vector<32x16xbf16>
    %735 = vector.extract_strided_slice %729 {offsets = [0, 0], sizes = [32, 16], strides = [1, 1]} : vector<32x64xf32> to vector<32x16xf32>
    %736 = arith.truncf %735 : vector<32x16xf32> to vector<32x16xbf16>
    %737 = vector.extract_strided_slice %732 {offsets = [0, 0], sizes = [32, 16], strides = [1, 1]} : vector<32x64xf32> to vector<32x16xf32>
    %738 = arith.truncf %737 : vector<32x16xf32> to vector<32x16xbf16>
    %cst_253 = arith.constant dense<0.000000e+00> : vector<32x32xf32>
    %739 = tpu.matmul %734, %736, %cst_253 {dimension_numbers = #tpu.dot_dimension_numbers<[1], [1], [0], [0], [0, 0, 1, 0], [], []>} : vector<32x16xbf16>, vector<32x16xbf16>, vector<32x32xf32> -> vector<32x32xf32>
    %cst_254 = arith.constant 2.500000e-01 : f32
    %740 = vector.broadcast %cst_254 : f32 to vector<32x32xf32>
    %741 = arith.mulf %739, %740 : vector<32x32xf32>
    %742 = arith.addf %741, %1 : vector<32x32xf32>
    %cst_255 = arith.constant dense<0xFF800000> : vector<32xf32>
    %743 = vector.multi_reduction <maximumf>, %742, %cst_255 [1] : vector<32x32xf32> to vector<32xf32>
    %cst_256 = arith.constant 0xFF800000 : f32
    %744 = vector.broadcast %cst_256 : f32 to vector<32xf32>
    %745 = arith.maximumf %744, %743 : vector<32xf32>
    %746 = vector.shape_cast %745 : vector<32xf32> to vector<32x1xf32>
    %747 = vector.broadcast %746 : vector<32x1xf32> to vector<32x32xf32>
    %748 = arith.subf %742, %747 : vector<32x32xf32>
    %749 = math.exp %748 : vector<32x32xf32>
    %cst_257 = arith.constant dense<0.000000e+00> : vector<32xf32>
    %750 = vector.multi_reduction <add>, %749, %cst_257 [1] : vector<32x32xf32> to vector<32xf32>
    %751 = vector.shape_cast %750 : vector<32xf32> to vector<32x1xf32>
    %752 = vector.broadcast %751 : vector<32x1xf32> to vector<32x32xf32>
    %753 = arith.divf %749, %752 : vector<32x32xf32>
    %754 = arith.truncf %753 : vector<32x32xf32> to vector<32x32xbf16>
    %cst_258 = arith.constant dense<0.000000e+00> : vector<32x16xf32>
    %755 = tpu.matmul %754, %738, %cst_258 {dimension_numbers = #tpu.dot_dimension_numbers<[1], [0], [0], [1], [0, 0, 1, 1], [], []>} : vector<32x32xbf16>, vector<32x16xbf16>, vector<32x16xf32> -> vector<32x16xf32>
    %756 = vector.extract_strided_slice %726 {offsets = [0, 16], sizes = [32, 16], strides = [1, 1]} : vector<32x64xf32> to vector<32x16xf32>
    %757 = arith.truncf %756 : vector<32x16xf32> to vector<32x16xbf16>
    %758 = vector.extract_strided_slice %729 {offsets = [0, 16], sizes = [32, 16], strides = [1, 1]} : vector<32x64xf32> to vector<32x16xf32>
    %759 = arith.truncf %758 : vector<32x16xf32> to vector<32x16xbf16>
    %760 = vector.extract_strided_slice %732 {offsets = [0, 16], sizes = [32, 16], strides = [1, 1]} : vector<32x64xf32> to vector<32x16xf32>
    %761 = arith.truncf %760 : vector<32x16xf32> to vector<32x16xbf16>
    %cst_259 = arith.constant dense<0.000000e+00> : vector<32x32xf32>
    %762 = tpu.matmul %757, %759, %cst_259 {dimension_numbers = #tpu.dot_dimension_numbers<[1], [1], [0], [0], [0, 0, 1, 0], [], []>} : vector<32x16xbf16>, vector<32x16xbf16>, vector<32x32xf32> -> vector<32x32xf32>
    %cst_260 = arith.constant 2.500000e-01 : f32
    %763 = vector.broadcast %cst_260 : f32 to vector<32x32xf32>
    %764 = arith.mulf %762, %763 : vector<32x32xf32>
    %765 = arith.addf %764, %1 : vector<32x32xf32>
    %cst_261 = arith.constant dense<0xFF800000> : vector<32xf32>
    %766 = vector.multi_reduction <maximumf>, %765, %cst_261 [1] : vector<32x32xf32> to vector<32xf32>
    %cst_262 = arith.constant 0xFF800000 : f32
    %767 = vector.broadcast %cst_262 : f32 to vector<32xf32>
    %768 = arith.maximumf %767, %766 : vector<32xf32>
    %769 = vector.shape_cast %768 : vector<32xf32> to vector<32x1xf32>
    %770 = vector.broadcast %769 : vector<32x1xf32> to vector<32x32xf32>
    %771 = arith.subf %765, %770 : vector<32x32xf32>
    %772 = math.exp %771 : vector<32x32xf32>
    %cst_263 = arith.constant dense<0.000000e+00> : vector<32xf32>
    %773 = vector.multi_reduction <add>, %772, %cst_263 [1] : vector<32x32xf32> to vector<32xf32>
    %774 = vector.shape_cast %773 : vector<32xf32> to vector<32x1xf32>
    %775 = vector.broadcast %774 : vector<32x1xf32> to vector<32x32xf32>
    %776 = arith.divf %772, %775 : vector<32x32xf32>
    %777 = arith.truncf %776 : vector<32x32xf32> to vector<32x32xbf16>
    %cst_264 = arith.constant dense<0.000000e+00> : vector<32x16xf32>
    %778 = tpu.matmul %777, %761, %cst_264 {dimension_numbers = #tpu.dot_dimension_numbers<[1], [0], [0], [1], [0, 0, 1, 1], [], []>} : vector<32x32xbf16>, vector<32x16xbf16>, vector<32x16xf32> -> vector<32x16xf32>
    %779 = vector.extract_strided_slice %726 {offsets = [0, 32], sizes = [32, 16], strides = [1, 1]} : vector<32x64xf32> to vector<32x16xf32>
    %780 = arith.truncf %779 : vector<32x16xf32> to vector<32x16xbf16>
    %781 = vector.extract_strided_slice %729 {offsets = [0, 32], sizes = [32, 16], strides = [1, 1]} : vector<32x64xf32> to vector<32x16xf32>
    %782 = arith.truncf %781 : vector<32x16xf32> to vector<32x16xbf16>
    %783 = vector.extract_strided_slice %732 {offsets = [0, 32], sizes = [32, 16], strides = [1, 1]} : vector<32x64xf32> to vector<32x16xf32>
    %784 = arith.truncf %783 : vector<32x16xf32> to vector<32x16xbf16>
    %cst_265 = arith.constant dense<0.000000e+00> : vector<32x32xf32>
    %785 = tpu.matmul %780, %782, %cst_265 {dimension_numbers = #tpu.dot_dimension_numbers<[1], [1], [0], [0], [0, 0, 1, 0], [], []>} : vector<32x16xbf16>, vector<32x16xbf16>, vector<32x32xf32> -> vector<32x32xf32>
    %cst_266 = arith.constant 2.500000e-01 : f32
    %786 = vector.broadcast %cst_266 : f32 to vector<32x32xf32>
    %787 = arith.mulf %785, %786 : vector<32x32xf32>
    %788 = arith.addf %787, %1 : vector<32x32xf32>
    %cst_267 = arith.constant dense<0xFF800000> : vector<32xf32>
    %789 = vector.multi_reduction <maximumf>, %788, %cst_267 [1] : vector<32x32xf32> to vector<32xf32>
    %cst_268 = arith.constant 0xFF800000 : f32
    %790 = vector.broadcast %cst_268 : f32 to vector<32xf32>
    %791 = arith.maximumf %790, %789 : vector<32xf32>
    %792 = vector.shape_cast %791 : vector<32xf32> to vector<32x1xf32>
    %793 = vector.broadcast %792 : vector<32x1xf32> to vector<32x32xf32>
    %794 = arith.subf %788, %793 : vector<32x32xf32>
    %795 = math.exp %794 : vector<32x32xf32>
    %cst_269 = arith.constant dense<0.000000e+00> : vector<32xf32>
    %796 = vector.multi_reduction <add>, %795, %cst_269 [1] : vector<32x32xf32> to vector<32xf32>
    %797 = vector.shape_cast %796 : vector<32xf32> to vector<32x1xf32>
    %798 = vector.broadcast %797 : vector<32x1xf32> to vector<32x32xf32>
    %799 = arith.divf %795, %798 : vector<32x32xf32>
    %800 = arith.truncf %799 : vector<32x32xf32> to vector<32x32xbf16>
    %cst_270 = arith.constant dense<0.000000e+00> : vector<32x16xf32>
    %801 = tpu.matmul %800, %784, %cst_270 {dimension_numbers = #tpu.dot_dimension_numbers<[1], [0], [0], [1], [0, 0, 1, 1], [], []>} : vector<32x32xbf16>, vector<32x16xbf16>, vector<32x16xf32> -> vector<32x16xf32>
    %802 = vector.extract_strided_slice %726 {offsets = [0, 48], sizes = [32, 16], strides = [1, 1]} : vector<32x64xf32> to vector<32x16xf32>
    %803 = arith.truncf %802 : vector<32x16xf32> to vector<32x16xbf16>
    %804 = vector.extract_strided_slice %729 {offsets = [0, 48], sizes = [32, 16], strides = [1, 1]} : vector<32x64xf32> to vector<32x16xf32>
    %805 = arith.truncf %804 : vector<32x16xf32> to vector<32x16xbf16>
    %806 = vector.extract_strided_slice %732 {offsets = [0, 48], sizes = [32, 16], strides = [1, 1]} : vector<32x64xf32> to vector<32x16xf32>
    %807 = arith.truncf %806 : vector<32x16xf32> to vector<32x16xbf16>
    %cst_271 = arith.constant dense<0.000000e+00> : vector<32x32xf32>
    %808 = tpu.matmul %803, %805, %cst_271 {dimension_numbers = #tpu.dot_dimension_numbers<[1], [1], [0], [0], [0, 0, 1, 0], [], []>} : vector<32x16xbf16>, vector<32x16xbf16>, vector<32x32xf32> -> vector<32x32xf32>
    %cst_272 = arith.constant 2.500000e-01 : f32
    %809 = vector.broadcast %cst_272 : f32 to vector<32x32xf32>
    %810 = arith.mulf %808, %809 : vector<32x32xf32>
    %811 = arith.addf %810, %1 : vector<32x32xf32>
    %cst_273 = arith.constant dense<0xFF800000> : vector<32xf32>
    %812 = vector.multi_reduction <maximumf>, %811, %cst_273 [1] : vector<32x32xf32> to vector<32xf32>
    %cst_274 = arith.constant 0xFF800000 : f32
    %813 = vector.broadcast %cst_274 : f32 to vector<32xf32>
    %814 = arith.maximumf %813, %812 : vector<32xf32>
    %815 = vector.shape_cast %814 : vector<32xf32> to vector<32x1xf32>
    %816 = vector.broadcast %815 : vector<32x1xf32> to vector<32x32xf32>
    %817 = arith.subf %811, %816 : vector<32x32xf32>
    %818 = math.exp %817 : vector<32x32xf32>
    %cst_275 = arith.constant dense<0.000000e+00> : vector<32xf32>
    %819 = vector.multi_reduction <add>, %818, %cst_275 [1] : vector<32x32xf32> to vector<32xf32>
    %820 = vector.shape_cast %819 : vector<32xf32> to vector<32x1xf32>
    %821 = vector.broadcast %820 : vector<32x1xf32> to vector<32x32xf32>
    %822 = arith.divf %818, %821 : vector<32x32xf32>
    %823 = arith.truncf %822 : vector<32x32xf32> to vector<32x32xbf16>
    %cst_276 = arith.constant dense<0.000000e+00> : vector<32x16xf32>
    %824 = tpu.matmul %823, %807, %cst_276 {dimension_numbers = #tpu.dot_dimension_numbers<[1], [0], [0], [1], [0, 0, 1, 1], [], []>} : vector<32x32xbf16>, vector<32x16xbf16>, vector<32x16xf32> -> vector<32x16xf32>
    %825 = tpu.concatenate %755, %778, %801, %824 in 1 : vector<32x16xf32>, vector<32x16xf32>, vector<32x16xf32>, vector<32x16xf32> -> vector<32x64xf32>
    %826 = arith.truncf %825 : vector<32x64xf32> to vector<32x64xbf16>
    %cst_277 = arith.constant dense<0.000000e+00> : vector<32x64xf32>
    %827 = tpu.matmul %826, %718, %cst_277 {dimension_numbers = #tpu.dot_dimension_numbers<[1], [0], [0], [1], [0, 0, 1, 1], [], []>} : vector<32x64xbf16>, vector<64x64xbf16>, vector<32x64xf32> -> vector<32x64xf32>
    %828 = vector.broadcast %704 : vector<1x64xf32> to vector<32x64xf32>
    %829 = arith.addf %827, %828 : vector<32x64xf32>
    %830 = arith.addf %700, %829 : vector<32x64xf32>
    %cst_278 = arith.constant dense<0.000000e+00> : vector<32xf32>
    %831 = vector.multi_reduction <add>, %830, %cst_278 [1] : vector<32x64xf32> to vector<32xf32>
    %832 = vector.shape_cast %831 : vector<32xf32> to vector<32x1xf32>
    %cst_279 = arith.constant 6.400000e+01 : f32
    %833 = vector.broadcast %cst_279 : f32 to vector<32x1xf32>
    %834 = arith.divf %832, %833 : vector<32x1xf32>
    %835 = vector.broadcast %834 : vector<32x1xf32> to vector<32x64xf32>
    %836 = arith.subf %830, %835 : vector<32x64xf32>
    %837 = arith.mulf %836, %836 : vector<32x64xf32>
    %cst_280 = arith.constant dense<0.000000e+00> : vector<32xf32>
    %838 = vector.multi_reduction <add>, %837, %cst_280 [1] : vector<32x64xf32> to vector<32xf32>
    %839 = vector.shape_cast %838 : vector<32xf32> to vector<32x1xf32>
    %cst_281 = arith.constant 6.400000e+01 : f32
    %840 = vector.broadcast %cst_281 : f32 to vector<32x1xf32>
    %841 = arith.divf %839, %840 : vector<32x1xf32>
    %842 = vector.broadcast %834 : vector<32x1xf32> to vector<32x64xf32>
    %843 = arith.subf %830, %842 : vector<32x64xf32>
    %cst_282 = arith.constant 1.000000e-07 : f32
    %844 = vector.broadcast %cst_282 : f32 to vector<32x1xf32>
    %845 = arith.addf %841, %844 : vector<32x1xf32>
    %846 = math.rsqrt %845 : vector<32x1xf32>
    %847 = vector.broadcast %846 : vector<32x1xf32> to vector<32x64xf32>
    %848 = arith.mulf %843, %847 : vector<32x64xf32>
    %849 = vector.broadcast %705 : vector<1x64xf32> to vector<32x64xf32>
    %850 = arith.mulf %848, %849 : vector<32x64xf32>
    %851 = vector.broadcast %706 : vector<1x64xf32> to vector<32x64xf32>
    %852 = arith.addf %850, %851 : vector<32x64xf32>
    %853 = arith.truncf %852 : vector<32x64xf32> to vector<32x64xbf16>
    %cst_283 = arith.constant dense<0.000000e+00> : vector<32x128xf32>
    %854 = tpu.matmul %853, %720, %cst_283 {dimension_numbers = #tpu.dot_dimension_numbers<[1], [0], [0], [1], [0, 0, 1, 1], [], []>} : vector<32x64xbf16>, vector<64x128xbf16>, vector<32x128xf32> -> vector<32x128xf32>
    %855 = vector.broadcast %710 : vector<1x128xf32> to vector<32x128xf32>
    %856 = arith.addf %854, %855 : vector<32x128xf32>
    %cst_284 = arith.constant 5.000000e-01 : f32
    %857 = vector.broadcast %cst_284 : f32 to vector<32x128xf32>
    %858 = arith.mulf %857, %856 : vector<32x128xf32>
    %cst_285 = arith.constant 0.707106769 : f32
    %859 = vector.broadcast %cst_285 : f32 to vector<32x128xf32>
    %860 = arith.mulf %856, %859 : vector<32x128xf32>
    %cst_286 = arith.constant 0.000000e+00 : f32
    %861 = vector.broadcast %cst_286 : f32 to vector<32x128xf32>
    %862 = arith.cmpf oge, %860, %861 : vector<32x128xf32>
    %cst_287 = arith.constant 1.000000e+00 : f32
    %cst_288 = arith.constant -1.000000e+00 : f32
    %863 = vector.broadcast %cst_287 : f32 to vector<32x128xf32>
    %864 = vector.broadcast %cst_288 : f32 to vector<32x128xf32>
    %865 = arith.select %862, %863, %864 : vector<32x128xi1>, vector<32x128xf32>
    %866 = math.absf %860 : vector<32x128xf32>
    %cst_289 = arith.constant 0.327591091 : f32
    %867 = vector.broadcast %cst_289 : f32 to vector<32x128xf32>
    %868 = arith.mulf %867, %866 : vector<32x128xf32>
    %cst_290 = arith.constant 1.000000e+00 : f32
    %869 = vector.broadcast %cst_290 : f32 to vector<32x128xf32>
    %870 = arith.addf %869, %868 : vector<32x128xf32>
    %cst_291 = arith.constant 1.000000e+00 : f32
    %871 = vector.broadcast %cst_291 : f32 to vector<32x128xf32>
    %872 = arith.divf %871, %870 : vector<32x128xf32>
    %cst_292 = arith.constant 1.06140542 : f32
    %873 = vector.broadcast %cst_292 : f32 to vector<32x128xf32>
    %874 = arith.mulf %873, %872 : vector<32x128xf32>
    %cst_293 = arith.constant -1.45315206 : f32
    %875 = vector.broadcast %cst_293 : f32 to vector<32x128xf32>
    %876 = arith.addf %874, %875 : vector<32x128xf32>
    %877 = arith.mulf %876, %872 : vector<32x128xf32>
    %cst_294 = arith.constant 1.42141378 : f32
    %878 = vector.broadcast %cst_294 : f32 to vector<32x128xf32>
    %879 = arith.addf %877, %878 : vector<32x128xf32>
    %880 = arith.mulf %879, %872 : vector<32x128xf32>
    %cst_295 = arith.constant -0.284496725 : f32
    %881 = vector.broadcast %cst_295 : f32 to vector<32x128xf32>
    %882 = arith.addf %880, %881 : vector<32x128xf32>
    %883 = arith.mulf %882, %872 : vector<32x128xf32>
    %cst_296 = arith.constant 0.254829586 : f32
    %884 = vector.broadcast %cst_296 : f32 to vector<32x128xf32>
    %885 = arith.addf %883, %884 : vector<32x128xf32>
    %886 = arith.mulf %885, %872 : vector<32x128xf32>
    %cst_297 = arith.constant 0.000000e+00 : f32
    %887 = vector.broadcast %cst_297 : f32 to vector<32x128xf32>
    %888 = arith.subf %887, %866 : vector<32x128xf32>
    %889 = arith.mulf %888, %866 : vector<32x128xf32>
    %890 = math.exp %889 : vector<32x128xf32>
    %891 = arith.mulf %886, %890 : vector<32x128xf32>
    %cst_298 = arith.constant 1.000000e+00 : f32
    %892 = vector.broadcast %cst_298 : f32 to vector<32x128xf32>
    %893 = arith.subf %892, %891 : vector<32x128xf32>
    %894 = arith.mulf %865, %893 : vector<32x128xf32>
    %cst_299 = arith.constant 1.000000e+00 : f32
    %895 = vector.broadcast %cst_299 : f32 to vector<32x128xf32>
    %896 = arith.addf %895, %894 : vector<32x128xf32>
    %897 = arith.mulf %858, %896 : vector<32x128xf32>
    %898 = arith.truncf %897 : vector<32x128xf32> to vector<32x128xbf16>
    %cst_300 = arith.constant dense<0.000000e+00> : vector<32x64xf32>
    %899 = tpu.matmul %898, %722, %cst_300 {dimension_numbers = #tpu.dot_dimension_numbers<[1], [0], [0], [1], [0, 0, 1, 1], [], []>} : vector<32x128xbf16>, vector<128x64xbf16>, vector<32x64xf32> -> vector<32x64xf32>
    %900 = vector.broadcast %707 : vector<1x64xf32> to vector<32x64xf32>
    %901 = arith.addf %899, %900 : vector<32x64xf32>
    %902 = arith.addf %852, %901 : vector<32x64xf32>
    %cst_301 = arith.constant dense<0.000000e+00> : vector<32xf32>
    %903 = vector.multi_reduction <add>, %902, %cst_301 [1] : vector<32x64xf32> to vector<32xf32>
    %904 = vector.shape_cast %903 : vector<32xf32> to vector<32x1xf32>
    %cst_302 = arith.constant 6.400000e+01 : f32
    %905 = vector.broadcast %cst_302 : f32 to vector<32x1xf32>
    %906 = arith.divf %904, %905 : vector<32x1xf32>
    %907 = vector.broadcast %906 : vector<32x1xf32> to vector<32x64xf32>
    %908 = arith.subf %902, %907 : vector<32x64xf32>
    %909 = arith.mulf %908, %908 : vector<32x64xf32>
    %cst_303 = arith.constant dense<0.000000e+00> : vector<32xf32>
    %910 = vector.multi_reduction <add>, %909, %cst_303 [1] : vector<32x64xf32> to vector<32xf32>
    %911 = vector.shape_cast %910 : vector<32xf32> to vector<32x1xf32>
    %cst_304 = arith.constant 6.400000e+01 : f32
    %912 = vector.broadcast %cst_304 : f32 to vector<32x1xf32>
    %913 = arith.divf %911, %912 : vector<32x1xf32>
    %914 = vector.broadcast %906 : vector<32x1xf32> to vector<32x64xf32>
    %915 = arith.subf %902, %914 : vector<32x64xf32>
    %cst_305 = arith.constant 1.000000e-07 : f32
    %916 = vector.broadcast %cst_305 : f32 to vector<32x1xf32>
    %917 = arith.addf %913, %916 : vector<32x1xf32>
    %918 = math.rsqrt %917 : vector<32x1xf32>
    %919 = vector.broadcast %918 : vector<32x1xf32> to vector<32x64xf32>
    %920 = arith.mulf %915, %919 : vector<32x64xf32>
    %921 = vector.broadcast %708 : vector<1x64xf32> to vector<32x64xf32>
    %922 = arith.mulf %920, %921 : vector<32x64xf32>
    %923 = vector.broadcast %709 : vector<1x64xf32> to vector<32x64xf32>
    %924 = arith.addf %922, %923 : vector<32x64xf32>
    %925 = vector.extract_strided_slice %2 {offsets = [38, 0], sizes = [1, 64], strides = [1, 1]} : vector<39x64xf32> to vector<1x64xf32>
    %926 = vector.extract_strided_slice %4 {offsets = [0, 0], sizes = [1, 128], strides = [1, 1]} : vector<2x128xf32> to vector<1x128xf32>
    %927 = vector.extract_strided_slice %4 {offsets = [1, 0], sizes = [1, 128], strides = [1, 1]} : vector<2x128xf32> to vector<1x128xf32>
    %928 = tpu.concatenate %924, %700, %476, %252 in 1 : vector<32x64xf32>, vector<32x64xf32>, vector<32x64xf32>, vector<32x64xf32> -> vector<32x256xf32>
    %929 = arith.truncf %928 : vector<32x256xf32> to vector<32x256xbf16>
    %c0_306 = arith.constant 0 : index
    %c0_307 = arith.constant 0 : index
    %930 = vector.load %arg12[%c0_306, %c0_307] : memref<256x64xbf16, #tpu.memory_space<vmem>>, vector<256x64xbf16>
    %cst_308 = arith.constant dense<0.000000e+00> : vector<32x64xf32>
    %931 = tpu.matmul %929, %930, %cst_308 {dimension_numbers = #tpu.dot_dimension_numbers<[1], [0], [0], [1], [0, 0, 1, 1], [], []>} : vector<32x256xbf16>, vector<256x64xbf16>, vector<32x64xf32> -> vector<32x64xf32>
    %932 = vector.broadcast %925 : vector<1x64xf32> to vector<32x64xf32>
    %933 = arith.addf %931, %932 : vector<32x64xf32>
    %cst_309 = arith.constant 0.000000e+00 : f32
    %934 = vector.broadcast %cst_309 : f32 to vector<32x64xf32>
    %935 = arith.maximumf %933, %934 : vector<32x64xf32>
    %936 = arith.truncf %935 : vector<32x64xf32> to vector<32x64xbf16>
    %c0_310 = arith.constant 0 : index
    %c0_311 = arith.constant 0 : index
    %937 = vector.load %arg13[%c0_310, %c0_311] : memref<64x128xbf16, #tpu.memory_space<vmem>>, vector<64x128xbf16>
    %cst_312 = arith.constant dense<0.000000e+00> : vector<32x128xf32>
    %938 = tpu.matmul %936, %937, %cst_312 {dimension_numbers = #tpu.dot_dimension_numbers<[1], [0], [0], [1], [0, 0, 1, 1], [], []>} : vector<32x64xbf16>, vector<64x128xbf16>, vector<32x128xf32> -> vector<32x128xf32>
    %939 = vector.broadcast %926 : vector<1x128xf32> to vector<32x128xf32>
    %940 = arith.addf %938, %939 : vector<32x128xf32>
    %cst_313 = arith.constant 0.000000e+00 : f32
    %941 = vector.broadcast %cst_313 : f32 to vector<32x128xf32>
    %942 = arith.maximumf %940, %941 : vector<32x128xf32>
    %943 = vector.broadcast %927 : vector<1x128xf32> to vector<32x128xf32>
    %944 = arith.mulf %942, %943 : vector<32x128xf32>
    %cst_314 = arith.constant dense<0.000000e+00> : vector<32xf32>
    %945 = vector.multi_reduction <add>, %944, %cst_314 [1] : vector<32x128xf32> to vector<32xf32>
    %946 = vector.shape_cast %945 : vector<32xf32> to vector<32x1xf32>
    %c0_315 = arith.constant 0 : index
    %c0_316 = arith.constant 0 : index
    %947 = vector.load %arg5[%c0_315, %c0_316] : memref<1x1xf32, #tpu.memory_space<vmem>>, vector<1x1xf32>
    %948 = vector.broadcast %947 : vector<1x1xf32> to vector<32x1xf32>
    %949 = arith.addf %946, %948 : vector<32x1xf32>
    %c0_317 = arith.constant 0 : index
    %c0_318 = arith.constant 0 : index
    %950 = vector.load %arg14[%c0_317, %c0_318] : memref<32x1xf32, #tpu.memory_space<vmem>>, vector<32x1xf32>
    tpu.vector_store %arg14[%c0_317, %c0_318], %949 {strides = array<i32>} : memref<32x1xf32, #tpu.memory_space<vmem>>, vector<32x1xf32>,
    return
  }
}

</mosaic_0001>

<llo_original>
// kernel: forward.1
$region0: #{forward.1}
  #allocation0 [shape = 'u32[]', space=smem, size = 0x4, offset = 0x4, fixed_abs, tag = 'smem constant byte address 0x4 - core index']
  #allocation1 [shape = 'u32[144,128]{1,0:T(1,128)}', space=vmem, size = 0x12000, scoped, tag = 'internal scratch']
  #allocation2 [shape = 'f32[1,1]{1,0:T(1,128)S(1)}', space=vmem, size = 0x200, scoped, tag = 'scoped memory for forward.1']
  %s0 = inlined_call_operand.vmem [shape: f32[32,64], index: 0, kind: input, shape index: {}]
  %s1 = inlined_call_operand.vmem [shape: f32[32,32], index: 1, kind: input, shape index: {}]
  %s2 = inlined_call_operand.vmem [shape: f32[39,64], index: 2, kind: input, shape index: {}]
  %s3 = inlined_call_operand.vmem [shape: f32[4,128], index: 3, kind: input, shape index: {}]
  %s4 = inlined_call_operand.vmem [shape: f32[2,128], index: 4, kind: input, shape index: {}]
  %s5 = inlined_call_operand.<no memory space> [shape: f32[1,1], index: 5, kind: input, shape index: {}]
  %s6 = inlined_call_operand.vmem [shape: bf16[4,64,64], index: 6, kind: input, shape index: {}]
  %s7 = inlined_call_operand.vmem [shape: bf16[4,64,64], index: 7, kind: input, shape index: {}]
  %s8 = inlined_call_operand.vmem [shape: bf16[4,64,64], index: 8, kind: input, shape index: {}]
  %s9 = inlined_call_operand.vmem [shape: bf16[4,64,64], index: 9, kind: input, shape index: {}]
  %s10 = inlined_call_operand.vmem [shape: bf16[4,64,128], index: 10, kind: input, shape index: {}]
  %s11 = inlined_call_operand.vmem [shape: bf16[4,128,64], index: 11, kind: input, shape index: {}]
  %s12 = inlined_call_operand.vmem [shape: bf16[256,64], index: 12, kind: input, shape index: {}]
  %s13 = inlined_call_operand.vmem [shape: bf16[64,128], index: 13, kind: input, shape index: {}]
  %s14 = inlined_call_operand.vmem [shape: f32[32,1], index: 14, kind: output, shape index: {}]
  %s15 = sld [smem:[#allocation0]]
  $region66: #{forward.1} parent=0
    _
  %s17 = ssub.s32 1, %s15
  %s18 = scalar_select 0, %s17, %s15
  %v19 = vstv %s5
  %20 = vst [vmem:[#allocation2] sm:$0x1] %v19
  // Predicated region
  $region2: #{forward.1} parent=0 // pred_check
    _
  $region3: #{forward.1} parent=0 // pred_check_branch
    %22 = sbr.rel (0) target = $region5
  $region4: #{forward.1} parent=0 // pred_region
    _
  $region5: #{forward.1} parent=0 // pred_fallthru
    _
  // Predicated region
  $region6: #{forward.1} parent=0 // pred_check
    _
  $region7: #{forward.1} parent=0 // pred_check_branch
    %24 = sbr.rel (0) target = $region9
  $region8: #{forward.1} parent=0 // pred_region
    _
  $region9: #{forward.1} parent=0 // pred_fallthru
    _
  // Predicated region
  $region10: #{forward.1} parent=0 // pred_check
    _
  $region11: #{forward.1} parent=0 // pred_check_branch
    %26 = sbr.rel (0) target = $region13
  $region12: #{forward.1} parent=0 // pred_region
    _
  $region13: #{forward.1} parent=0 // pred_fallthru
    _
  // Predicated region
  $region14: #{forward.1} parent=0 // pred_check
    _
  $region15: #{forward.1} parent=0 // pred_check_branch
    %28 = sbr.rel (0) target = $region17
  $region16: #{forward.1} parent=0 // pred_region
    _
  $region17: #{forward.1} parent=0 // pred_fallthru
    _
  // Predicated region
  $region18: #{forward.1} parent=0 // pred_check
    _
  $region19: #{forward.1} parent=0 // pred_check_branch
    %30 = sbr.rel (0) target = $region21
  $region20: #{forward.1} parent=0 // pred_region
    _
  $region21: #{forward.1} parent=0 // pred_fallthru
    _
  // Predicated region
  $region22: #{forward.1} parent=0 // pred_check
    _
  $region23: #{forward.1} parent=0 // pred_check_branch
    %32 = sbr.rel (0) target = $region25
  $region24: #{forward.1} parent=0 // pred_region
    _
  $region25: #{forward.1} parent=0 // pred_fallthru
    _
  // Predicated region
  $region26: #{forward.1} parent=0 // pred_check
    _
  $region27: #{forward.1} parent=0 // pred_check_branch
    %34 = sbr.rel (0) target = $region29
  $region28: #{forward.1} parent=0 // pred_region
    _
  $region29: #{forward.1} parent=0 // pred_fallthru
    _
  // Predicated region
  $region30: #{forward.1} parent=0 // pred_check
    _
  $region31: #{forward.1} parent=0 // pred_check_branch
    %36 = sbr.rel (0) target = $region33
  $region32: #{forward.1} parent=0 // pred_region
    _
  $region33: #{forward.1} parent=0 // pred_fallthru
    _
  // Predicated region
  $region34: #{forward.1} parent=0 // pred_check
    _
  $region35: #{forward.1} parent=0 // pred_check_branch
    %38 = sbr.rel (0) target = $region37
  $region36: #{forward.1} parent=0 // pred_region
    _
  $region37: #{forward.1} parent=0 // pred_fallthru
    _
  // Predicated region
  $region38: #{forward.1} parent=0 // pred_check
    _
  $region39: #{forward.1} parent=0 // pred_check_branch
    %40 = sbr.rel (0) target = $region41
  $region40: #{forward.1} parent=0 // pred_region
    _
  $region41: #{forward.1} parent=0 // pred_fallthru
    _
  // Predicated region
  $region42: #{forward.1} parent=0 // pred_check
    _
  $region43: #{forward.1} parent=0 // pred_check_branch
    %42 = sbr.rel (0) target = $region45
  $region44: #{forward.1} parent=0 // pred_region
    _
  $region45: #{forward.1} parent=0 // pred_fallthru
    _
  // Predicated region
  $region46: #{forward.1} parent=0 // pred_check
    _
  $region47: #{forward.1} parent=0 // pred_check_branch
    %44 = sbr.rel (0) target = $region49
  $region48: #{forward.1} parent=0 // pred_region
    _
  $region49: #{forward.1} parent=0 // pred_fallthru
    _
  // Predicated region
  $region50: #{forward.1} parent=0 // pred_check
    _
  $region51: #{forward.1} parent=0 // pred_check_branch
    %46 = sbr.rel (0) target = $region53
  $region52: #{forward.1} parent=0 // pred_region
    _
  $region53: #{forward.1} parent=0 // pred_fallthru
    _
  // Predicated region
  $region54: #{forward.1} parent=0 // pred_check
    _
  $region55: #{forward.1} parent=0 // pred_check_branch
    %48 = sbr.rel (0) target = $region57
  $region56: #{forward.1} parent=0 // pred_region
    _
  $region57: #{forward.1} parent=0 // pred_fallthru
    _
  %v50 = vld [vmem:[%s0] sm:$0xff]
  %v51 = vld [vmem:[%s0 + $0x8] sm:$0xff]
  %v52 = vld [vmem:[%s0 + $0x10] sm:$0xff]
  %v53 = vld [vmem:[%s0 + $0x18] sm:$0xff]
  %v54 = vld [vmem:[%s1] sm:$0xff]
  %v55 = vld [vmem:[%s1 + $0x8] sm:$0xff]
  %v56 = vld [vmem:[%s1 + $0x10] sm:$0xff]
  %v57 = vld [vmem:[%s1 + $0x18] sm:$0xff]
  %v58 = vld [vmem:[%s2] sm:$0xff]
  %v59 = vld [vmem:[%s2 + $0x8] sm:$0xff]
  %v60 = vld [vmem:[%s2 + $0x10] sm:$0xff]
  %v61 = vld [vmem:[%s2 + $0x18] sm:$0xff]
  %v62 = vld [vmem:[%s2 + $0x20] sm:$0x7f]
  %v63 = vld [vmem:[%s3] sm:$0xf]
  %v64 = vld [vmem:[%s4] sm:$0x3]
  %vm65 = vcmask 523264
  %v66 = vsel %vm65, %v50, 0.0
  %67 = vadd.xlane.f32.xlu0 %v66
  %v68 = vpop.xlane.xlu0 %67
  %v69 = vsel %vm65, %v51, 0.0
  %70 = vadd.xlane.f32.xlu0 %v69
  %v71 = vpop.xlane.xlu0 %70
  %v72 = vsel %vm65, %v52, 0.0
  %73 = vadd.xlane.f32.xlu0 %v72
  %v74 = vpop.xlane.xlu0 %73
  %v75 = vsel %vm65, %v53, 0.0
  %76 = vadd.xlane.f32.xlu0 %v75
  %v77 = vpop.xlane.xlu0 %76
  %v78 = vrcp.pop 64.0
  %v79 = vmul.f32 %v68, %v78
  %v80 = vmul.f32 %v71, %v78
  %v81 = vmul.f32 %v74, %v78
  %v82 = vmul.f32 %v77, %v78
  %v83 = vsub.f32 %v50, %v79
  %v84 = vsub.f32 %v51, %v80
  %v85 = vsub.f32 %v52, %v81
  %v86 = vsub.f32 %v53, %v82
  %v87 = vmul.f32 %v83, %v83
  %v88 = vmul.f32 %v84, %v84
  %v89 = vmul.f32 %v85, %v85
  %v90 = vmul.f32 %v86, %v86
  %v91 = vsel %vm65, %v87, 0.0
  %92 = vadd.xlane.f32.xlu0 %v91
  %v93 = vpop.xlane.xlu0 %92
  %v94 = vsel %vm65, %v88, 0.0
  %95 = vadd.xlane.f32.xlu0 %v94
  %v96 = vpop.xlane.xlu0 %95
  %v97 = vsel %vm65, %v89, 0.0
  %98 = vadd.xlane.f32.xlu0 %v97
  %v99 = vpop.xlane.xlu0 %98
  %v100 = vsel %vm65, %v90, 0.0
  %101 = vadd.xlane.f32.xlu0 %v100
  %v102 = vpop.xlane.xlu0 %101
  %v103 = vmul.f32 %v93, %v78
  %v104 = vmul.f32 %v96, %v78
  %v105 = vmul.f32 %v99, %v78
  %v106 = vmul.f32 %v102, %v78
  %v107 = vadd.f32 %v103, 1e-07
  %v108 = vadd.f32 %v104, 1e-07
  %v109 = vadd.f32 %v105, 1e-07
  %v110 = vadd.f32 %v106, 1e-07
  %v111 = vrsqrt.pop %v107
  %v112 = vrsqrt.pop %v108
  %v113 = vrsqrt.pop %v109
  %v114 = vrsqrt.pop %v110
  %v115 = vmul.f32 %v83, %v111
  %v116 = vmul.f32 %v84, %v112
  %v117 = vmul.f32 %v85, %v113
  %v118 = vmul.f32 %v86, %v114
  %v119 = vlaneseq
  %v120 = vshrl.u32 %v119, 7
  %v121 = vsub.s32 0, %v120
  %v122 = vrot.slane %v58, %v121
  %v123 = vmul.f32 %v115, %v122
  %v124 = vmul.f32 %v116, %v122
  %v125 = vmul.f32 %v117, %v122
  %v126 = vmul.f32 %v118, %v122
  %v127 = vlaneseq
  %v128 = vshrl.u32 %v127, 7
  %v129 = vsub.s32 1, %v128
  %v130 = vrot.slane %v58, %v129
  %v131 = vadd.f32 %v123, %v130
  %v132 = vadd.f32 %v124, %v130
  %v133 = vadd.f32 %v125, %v130
  %v134 = vadd.f32 %v126, %v130
  %v135 = vld [vmem:[%s6] sm:$0xf]
  %v136 = vld [vmem:[%s6 + $0x4] sm:$0xf]
  %v137 = vld [vmem:[%s6 + $0x8] sm:$0xf]
  %v138 = vld [vmem:[%s6 + $0xc] sm:$0xf]
  %v139 = vld [vmem:[%s6 + $0x10] sm:$0xf]
  %v140 = vld [vmem:[%s6 + $0x14] sm:$0xf]
  %v141 = vld [vmem:[%s6 + $0x18] sm:$0xf]
  %v142 = vld [vmem:[%s6 + $0x1c] sm:$0xf]
  %v143 = vld [vmem:[%s7] sm:$0xf]
  %v144 = vld [vmem:[%s7 + $0x4] sm:$0xf]
  %v145 = vld [vmem:[%s7 + $0x8] sm:$0xf]
  %v146 = vld [vmem:[%s7 + $0xc] sm:$0xf]
  %v147 = vld [vmem:[%s7 + $0x10] sm:$0xf]
  %v148 = vld [vmem:[%s7 + $0x14] sm:$0xf]
  %v149 = vld [vmem:[%s7 + $0x18] sm:$0xf]
  %v150 = vld [vmem:[%s7 + $0x1c] sm:$0xf]
  %v151 = vld [vmem:[%s8] sm:$0xf]
  %v152 = vld [vmem:[%s8 + $0x4] sm:$0xf]
  %v153 = vld [vmem:[%s8 + $0x8] sm:$0xf]
  %v154 = vld [vmem:[%s8 + $0xc] sm:$0xf]
  %v155 = vld [vmem:[%s8 + $0x10] sm:$0xf]
  %v156 = vld [vmem:[%s8 + $0x14] sm:$0xf]
  %v157 = vld [vmem:[%s8 + $0x18] sm:$0xf]
  %v158 = vld [vmem:[%s8 + $0x1c] sm:$0xf]
  %v159 = vld [vmem:[%s9] sm:$0xf]
  %v160 = vld [vmem:[%s9 + $0x4] sm:$0xf]
  %v161 = vld [vmem:[%s9 + $0x8] sm:$0xf]
  %v162 = vld [vmem:[%s9 + $0xc] sm:$0xf]
  %v163 = vld [vmem:[%s9 + $0x10] sm:$0xf]
  %v164 = vld [vmem:[%s9 + $0x14] sm:$0xf]
  %v165 = vld [vmem:[%s9 + $0x18] sm:$0xf]
  %v166 = vld [vmem:[%s9 + $0x1c] sm:$0xf]
  %v167 = vld [vmem:[%s10] sm:$0xf]
  %v168 = vld [vmem:[%s10 + $0x4] sm:$0xf]
  %v169 = vld [vmem:[%s10 + $0x8] sm:$0xf]
  %v170 = vld [vmem:[%s10 + $0xc] sm:$0xf]
  %v171 = vld [vmem:[%s10 + $0x10] sm:$0xf]
  %v172 = vld [vmem:[%s10 + $0x14] sm:$0xf]
  %v173 = vld [vmem:[%s10 + $0x18] sm:$0xf]
  %v174 = vld [vmem:[%s10 + $0x1c] sm:$0xf]
  %v175 = vld [vmem:[%s11] sm:$0xf]
  %v176 = vld [vmem:[%s11 + $0x4] sm:$0xf]
  %v177 = vld [vmem:[%s11 + $0x8] sm:$0xf]
  %v178 = vld [vmem:[%s11 + $0xc] sm:$0xf]
  %v179 = vld [vmem:[%s11 + $0x10] sm:$0xf]
  %v180 = vld [vmem:[%s11 + $0x14] sm:$0xf]
  %v181 = vld [vmem:[%s11 + $0x18] sm:$0xf]
  %v182 = vld [vmem:[%s11 + $0x1c] sm:$0xf]
  %v183 = vld [vmem:[%s11 + $0x20] sm:$0xf]
  %v184 = vld [vmem:[%s11 + $0x24] sm:$0xf]
  %v185 = vld [vmem:[%s11 + $0x28] sm:$0xf]
  %v186 = vld [vmem:[%s11 + $0x2c] sm:$0xf]
  %v187 = vld [vmem:[%s11 + $0x30] sm:$0xf]
  %v188 = vld [vmem:[%s11 + $0x34] sm:$0xf]
  %v189 = vld [vmem:[%s11 + $0x38] sm:$0xf]
  %v190 = vld [vmem:[%s11 + $0x3c] sm:$0xf]
  %v191 = vpack.c.bf16 %v132, %v131
  %v192 = vpack.c.bf16 %v134, %v133
  %v193 = vlaneseq
  %v194 = vshrl.u32 %v193, 7
  %v195 = vsub.s32 2, %v194
  %v196 = vrot.slane %v58, %v195
  %v205 = vunpack.c.l.b16 %v135
  %v206 = vunpack.c.l.b16 %v136
  %v207 = vunpack.c.l.b16 %v137
  %v208 = vunpack.c.l.b16 %v138
  %v209 = vunpack.c.l.b16 %v139
  %v210 = vunpack.c.l.b16 %v140
  %v211 = vunpack.c.l.b16 %v141
  %v212 = vunpack.c.l.b16 %v142
  %v213 = vpack.c.b16 %v206, %v205
  %v214 = vpack.c.b16 %v208, %v207
  %v215 = vpack.c.b16 %v210, %v209
  %v216 = vpack.c.b16 %v212, %v211
  %v222 = vsel %vm65, %v191, 0
  %v225 = vsel %vm65, %v192, 0
  %227 = vmatprep.subr.bf16.mxu0 0
  %228 = vmatpush1.bf16.msra.mxu0 %v213
  %229 = vmatprep.subr.bf16.mxu0 0
  %230 = vmatpush1.bf16.msra.mxu0 %v214
  %231 = vmatprep.subr.bf16.mxu0 0
  %232 = vmatpush1.bf16.msra.mxu0 %v215
  %233 = vmatprep.subr.bf16.mxu0 0
  %234 = vmatpush1.bf16.msra.mxu0 %v216
  %235 = vmatprep.subr.bf16.mxu0 0
  %236 = vmatpush1.bf16.msra.mxu0 0
  %237 = vmatprep.subr.bf16.mxu0 0
  %238 = vmatpush1.bf16.msra.mxu0 0
  %239 = vmatprep.subr.bf16.mxu0 0
  %240 = vmatpush1.bf16.msra.mxu0 0
  %241 = vmatprep.subr.bf16.mxu0 0
  %242 = vmatpush1.bf16.msra.mxu0 0
  %243 = vmatprep.subr.bf16.mxu0 0
  %244 = vmatpush1.bf16.msra.mxu0 0
  %245 = vmatprep.subr.bf16.mxu0 0
  %246 = vmatpush1.bf16.msra.mxu0 0
  %247 = vmatprep.subr.bf16.mxu0 0
  %248 = vmatpush1.bf16.msra.mxu0 0
  %249 = vmatprep.subr.bf16.mxu0 0
  %250 = vmatpush1.bf16.msra.mxu0 0
  %251 = vmatprep.subr.bf16.mxu0 0
  %252 = vmatpush1.bf16.msra.mxu0 0
  %253 = vmatprep.subr.bf16.mxu0 0
  %254 = vmatpush1.bf16.msra.mxu0 0
  %255 = vmatprep.subr.bf16.mxu0 0
  %256 = vmatpush1.bf16.msra.mxu0 0
  %257 = vmatprep.subr.bf16.mxu0 0
  %258 = vmatpush1.bf16.msra.mxu0 0
  %259 = vmatprep.mubr.bf16.mxu0 0
  %260 = vmatmul.mubr.bf16.gmra.mrb[0].mxu0 %v222
  %v261 = vpop.f32.mrb[0].mxu0
  %v262 = vadd.f32 %v196, %v261
  %v263 = vpop.f32.mrb[0].mxu0
  %v264 = vpop.f32.mrb[0].mxu0
  %v265 = vadd.f32 %v196, %v264
  %v266 = vpop.f32.mrb[0].mxu0
  %267 = vmatprep.mubr.bf16.mxu0 0
  %268 = vmatmul.mubr.bf16.gmra.mrb[0].mxu0 %v225
  %v269 = vpop.f32.mrb[0].mxu0
  %v270 = vadd.f32 %v196, %v269
  %v271 = vpop.f32.mrb[0].mxu0
  %v272 = vpop.f32.mrb[0].mxu0
  %v273 = vadd.f32 %v196, %v272
  %v274 = vpop.f32.mrb[0].mxu0
  %275 = vdwg.mxu0
  %v276 = vlaneseq
  %v277 = vshrl.u32 %v276, 7
  %v278 = vsub.s32 3, %v277
  %v279 = vrot.slane %v58, %v278
  %v288 = vunpack.c.l.b16 %v143
  %v289 = vunpack.c.l.b16 %v144
  %v290 = vunpack.c.l.b16 %v145
  %v291 = vunpack.c.l.b16 %v146
  %v292 = vunpack.c.l.b16 %v147
  %v293 = vunpack.c.l.b16 %v148
  %v294 = vunpack.c.l.b16 %v149
  %v295 = vunpack.c.l.b16 %v150
  %v296 = vpack.c.b16 %v289, %v288
  %v297 = vpack.c.b16 %v291, %v290
  %v298 = vpack.c.b16 %v293, %v292
  %v299 = vpack.c.b16 %v295, %v294
  %304 = vmatprep.subr.bf16.mxu0 0
  %305 = vmatpush1.bf16.msra.mxu0 %v296
  %306 = vmatprep.subr.bf16.mxu0 0
  %307 = vmatpush1.bf16.msra.mxu0 %v297
  %308 = vmatprep.subr.bf16.mxu0 0
  %309 = vmatpush1.bf16.msra.mxu0 %v298
  %310 = vmatprep.subr.bf16.mxu0 0
  %311 = vmatpush1.bf16.msra.mxu0 %v299
  %312 = vmatprep.subr.bf16.mxu0 0
  %313 = vmatpush1.bf16.msra.mxu0 0
  %314 = vmatprep.subr.bf16.mxu0 0
  %315 = vmatpush1.bf16.msra.mxu0 0
  %316 = vmatprep.subr.bf16.mxu0 0
  %317 = vmatpush1.bf16.msra.mxu0 0
  %318 = vmatprep.subr.bf16.mxu0 0
  %319 = vmatpush1.bf16.msra.mxu0 0
  %320 = vmatprep.subr.bf16.mxu0 0
  %321 = vmatpush1.bf16.msra.mxu0 0
  %322 = vmatprep.subr.bf16.mxu0 0
  %323 = vmatpush1.bf16.msra.mxu0 0
  %324 = vmatprep.subr.bf16.mxu0 0
  %325 = vmatpush1.bf16.msra.mxu0 0
  %326 = vmatprep.subr.bf16.mxu0 0
  %327 = vmatpush1.bf16.msra.mxu0 0
  %328 = vmatprep.subr.bf16.mxu0 0
  %329 = vmatpush1.bf16.msra.mxu0 0
  %330 = vmatprep.subr.bf16.mxu0 0
  %331 = vmatpush1.bf16.msra.mxu0 0
  %332 = vmatprep.subr.bf16.mxu0 0
  %333 = vmatpush1.bf16.msra.mxu0 0
  %334 = vmatprep.subr.bf16.mxu0 0
  %335 = vmatpush1.bf16.msra.mxu0 0
  %336 = vmatprep.mubr.bf16.mxu0 0
  %337 = vmatmul.mubr.bf16.gmra.mrb[0].mxu0 %v222
  %v338 = vpop.f32.mrb[0].mxu0
  %v339 = vadd.f32 %v279, %v338
  %v340 = vpop.f32.mrb[0].mxu0
  %v341 = vpop.f32.mrb[0].mxu0
  %v342 = vadd.f32 %v279, %v341
  %v343 = vpop.f32.mrb[0].mxu0
  %344 = vmatprep.mubr.bf16.mxu0 0
  %345 = vmatmul.mubr.bf16.gmra.mrb[0].mxu0 %v225
  %v346 = vpop.f32.mrb[0].mxu0
  %v347 = vadd.f32 %v279, %v346
  %v348 = vpop.f32.mrb[0].mxu0
  %v349 = vpop.f32.mrb[0].mxu0
  %v350 = vadd.f32 %v279, %v349
  %v351 = vpop.f32.mrb[0].mxu0
  %352 = vdwg.mxu0
  %v353 = vlaneseq
  %v354 = vshrl.u32 %v353, 7
  %v355 = vsub.s32 4, %v354
  %v356 = vrot.slane %v58, %v355
  %v365 = vunpack.c.l.b16 %v151
  %v366 = vunpack.c.l.b16 %v152
  %v367 = vunpack.c.l.b16 %v153
  %v368 = vunpack.c.l.b16 %v154
  %v369 = vunpack.c.l.b16 %v155
  %v370 = vunpack.c.l.b16 %v156
  %v371 = vunpack.c.l.b16 %v157
  %v372 = vunpack.c.l.b16 %v158
  %v373 = vpack.c.b16 %v366, %v365
  %v374 = vpack.c.b16 %v368, %v367
  %v375 = vpack.c.b16 %v370, %v369
  %v376 = vpack.c.b16 %v372, %v371
  %381 = vmatprep.subr.bf16.mxu0 0
  %382 = vmatpush1.bf16.msra.mxu0 %v373
  %383 = vmatprep.subr.bf16.mxu0 0
  %384 = vmatpush1.bf16.msra.mxu0 %v374
  %385 = vmatprep.subr.bf16.mxu0 0
  %386 = vmatpush1.bf16.msra.mxu0 %v375
  %387 = vmatprep.subr.bf16.mxu0 0
  %388 = vmatpush1.bf16.msra.mxu0 %v376
  %389 = vmatprep.subr.bf16.mxu0 0
  %390 = vmatpush1.bf16.msra.mxu0 0
  %391 = vmatprep.subr.bf16.mxu0 0
  %392 = vmatpush1.bf16.msra.mxu0 0
  %393 = vmatprep.subr.bf16.mxu0 0
  %394 = vmatpush1.bf16.msra.mxu0 0
  %395 = vmatprep.subr.bf16.mxu0 0
  %396 = vmatpush1.bf16.msra.mxu0 0
  %397 = vmatprep.subr.bf16.mxu0 0
  %398 = vmatpush1.bf16.msra.mxu0 0
  %399 = vmatprep.subr.bf16.mxu0 0
  %400 = vmatpush1.bf16.msra.mxu0 0
  %401 = vmatprep.subr.bf16.mxu0 0
  %402 = vmatpush1.bf16.msra.mxu0 0
  %403 = vmatprep.subr.bf16.mxu0 0
  %404 = vmatpush1.bf16.msra.mxu0 0
  %405 = vmatprep.subr.bf16.mxu0 0
  %406 = vmatpush1.bf16.msra.mxu0 0
  %407 = vmatprep.subr.bf16.mxu0 0
  %408 = vmatpush1.bf16.msra.mxu0 0
  %409 = vmatprep.subr.bf16.mxu0 0
  %410 = vmatpush1.bf16.msra.mxu0 0
  %411 = vmatprep.subr.bf16.mxu0 0
  %412 = vmatpush1.bf16.msra.mxu0 0
  %413 = vmatprep.mubr.bf16.mxu0 0
  %414 = vmatmul.mubr.bf16.gmra.mrb[0].mxu0 %v222
  %v415 = vpop.f32.mrb[0].mxu0
  %v416 = vadd.f32 %v356, %v415
  %v417 = vpop.f32.mrb[0].mxu0
  %v418 = vpop.f32.mrb[0].mxu0
  %v419 = vadd.f32 %v356, %v418
  %v420 = vpop.f32.mrb[0].mxu0
  %421 = vmatprep.mubr.bf16.mxu0 0
  %422 = vmatmul.mubr.bf16.gmra.mrb[0].mxu0 %v225
  %v423 = vpop.f32.mrb[0].mxu0
  %v424 = vadd.f32 %v356, %v423
  %v425 = vpop.f32.mrb[0].mxu0
  %v426 = vpop.f32.mrb[0].mxu0
  %v427 = vadd.f32 %v356, %v426
  %v428 = vpop.f32.mrb[0].mxu0
  %429 = vdwg.mxu0
  %v430 = vpack.c.bf16 %v265, %v262
  %v431 = vpack.c.bf16 %v273, %v270
  %v432 = vpack.c.bf16 %v342, %v339
  %v433 = vpack.c.bf16 %v350, %v347
  %v434 = vpack.c.bf16 %v419, %v416
  %v435 = vpack.c.bf16 %v427, %v424
  %vm436 = vcmask 130048
  %v438 = vsel %vm436, %v430, 0
  %v441 = vsel %vm436, %v431, 0
  %v444 = vsel %vm436, %v432, 0
  %v447 = vsel %vm436, %v433, 0
  %449 = vmatprep.subr.bf16.mxu0 0
  %450 = vmatpush1.bf16.xpose.msra.mxu0 %v444
  %451 = vmatprep.subr.bf16.mxu0 0
  %452 = vmatpush1.bf16.xpose.msra.mxu0 %v447
  %453 = vmatprep.subr.bf16.mxu0 0
  %454 = vmatpush1.bf16.xpose.msra.mxu0 0
  %455 = vmatprep.subr.bf16.mxu0 0
  %456 = vmatpush1.bf16.xpose.msra.mxu0 0
  %457 = vmatprep.subr.bf16.mxu0 0
  %458 = vmatpush1.bf16.xpose.msra.mxu0 0
  %459 = vmatprep.subr.bf16.mxu0 0
  %460 = vmatpush1.bf16.xpose.msra.mxu0 0
  %461 = vmatprep.subr.bf16.mxu0 0
  %462 = vmatpush1.bf16.xpose.msra.mxu0 0
  %463 = vmatprep.subr.bf16.mxu0 0
  %464 = vmatpush1.bf16.xpose.msra.mxu0 0
  %465 = vmatprep.subr.bf16.mxu0 0
  %466 = vmatpush1.bf16.xpose.msra.mxu0 0
  %467 = vmatprep.subr.bf16.mxu0 0
  %468 = vmatpush1.bf16.xpose.msra.mxu0 0
  %469 = vmatprep.subr.bf16.mxu0 0
  %470 = vmatpush1.bf16.xpose.msra.mxu0 0
  %471 = vmatprep.subr.bf16.mxu0 0
  %472 = vmatpush1.bf16.xpose.msra.mxu0 0
  %473 = vmatprep.subr.bf16.mxu0 0
  %474 = vmatpush1.bf16.xpose.msra.mxu0 0
  %475 = vmatprep.subr.bf16.mxu0 0
  %476 = vmatpush1.bf16.xpose.msra.mxu0 0
  %477 = vmatprep.subr.bf16.mxu0 0
  %478 = vmatpush1.bf16.xpose.msra.mxu0 0
  %479 = vmatprep.subr.bf16.mxu0 0
  %480 = vmatpush1.bf16.xpose.msra.mxu0 0
  %481 = vmatprep.mubr.bf16.mxu0 0
  %482 = vmatmul.mubr.bf16.gmra.mrb[0].mxu0 %v438
  %v483 = vpop.f32.mrb[0].mxu0
  %v484 = vadd.f32 0.0, %v483
  %v485 = vpop.f32.mrb[0].mxu0
  %v486 = vpop.f32.mrb[0].mxu0
  %v487 = vadd.f32 0.0, %v486
  %v488 = vpop.f32.mrb[0].mxu0
  %489 = vmatprep.mubr.bf16.mxu0 0
  %490 = vmatmul.mubr.bf16.gmra.mrb[0].mxu0 %v441
  %v491 = vpop.f32.mrb[0].mxu0
  %v492 = vadd.f32 0.0, %v491
  %v493 = vpop.f32.mrb[0].mxu0
  %v494 = vpop.f32.mrb[0].mxu0
  %v495 = vadd.f32 0.0, %v494
  %v496 = vpop.f32.mrb[0].mxu0
  %497 = vdwg.mxu0
  %v498 = vmul.f32 %v484, 0.25
  %v499 = vmul.f32 %v487, 0.25
  %v500 = vmul.f32 %v492, 0.25
  %v501 = vmul.f32 %v495, 0.25
  %v502 = vadd.f32 %v498, %v54
  %v503 = vadd.f32 %v499, %v55
  %v504 = vadd.f32 %v500, %v56
  %v505 = vadd.f32 %v501, %v57
  %vm506 = vcmask 261120
  %v507 = vsel %vm506, %v502, -inf
  %508 = vmax.xlane.f32.xlu0 %v507
  %v509 = vpop.xlane.xlu0 %508
  %v510 = vsel %vm506, %v503, -inf
  %511 = vmax.xlane.f32.xlu0 %v510
  %v512 = vpop.xlane.xlu0 %511
  %v513 = vsel %vm506, %v504, -inf
  %514 = vmax.xlane.f32.xlu0 %v513
  %v515 = vpop.xlane.xlu0 %514
  %v516 = vsel %vm506, %v505, -inf
  %517 = vmax.xlane.f32.xlu0 %v516
  %v518 = vpop.xlane.xlu0 %517
  %v519 = vsub.f32 %v502, %v509
  %v520 = vsub.f32 %v503, %v512
  %v521 = vsub.f32 %v504, %v515
  %v522 = vsub.f32 %v505, %v518
  %v523 = vmul.f32 %v519, 1.442695
  %v524 = vpow.pop %v523
  %v525 = vmul.f32 %v520, 1.442695
  %v526 = vpow.pop %v525
  %v527 = vmul.f32 %v521, 1.442695
  %v528 = vpow.pop %v527
  %v529 = vmul.f32 %v522, 1.442695
  %v530 = vpow.pop %v529
  %v531 = vsel %vm506, %v524, 0.0
  %532 = vadd.xlane.f32.xlu0 %v531
  %v533 = vpop.xlane.xlu0 %532
  %v534 = vsel %vm506, %v526, 0.0
  %535 = vadd.xlane.f32.xlu0 %v534
  %v536 = vpop.xlane.xlu0 %535
  %v537 = vsel %vm506, %v528, 0.0
  %538 = vadd.xlane.f32.xlu0 %v537
  %v539 = vpop.xlane.xlu0 %538
  %v540 = vsel %vm506, %v530, 0.0
  %541 = vadd.xlane.f32.xlu0 %v540
  %v542 = vpop.xlane.xlu0 %541
  %v543 = vrcp.pop %v533
  %v544 = vmul.f32 %v524, %v543
  %v545 = vrcp.pop %v536
  %v546 = vmul.f32 %v526, %v545
  %v547 = vrcp.pop %v539
  %v548 = vmul.f32 %v528, %v547
  %v549 = vrcp.pop %v542
  %v550 = vmul.f32 %v530, %v549
  %v551 = vpack.c.bf16 %v546, %v544
  %v552 = vpack.c.bf16 %v550, %v548
  %v554 = vsel %vm506, %v551, 0
  %v557 = vsel %vm506, %v552, 0
  %559 = vmatprep.subr.bf16.mxu0 0
  %560 = vmatpush1.bf16.msra.mxu0 %v434
  %561 = vmatprep.subr.bf16.mxu0 0
  %562 = vmatpush1.bf16.msra.mxu0 %v435
  %563 = vmatprep.subr.bf16.mxu0 0
  %564 = vmatpush1.bf16.msra.mxu0 0
  %565 = vmatprep.subr.bf16.mxu0 0
  %566 = vmatpush1.bf16.msra.mxu0 0
  %567 = vmatprep.subr.bf16.mxu0 0
  %568 = vmatpush1.bf16.msra.mxu0 0
  %569 = vmatprep.subr.bf16.mxu0 0
  %570 = vmatpush1.bf16.msra.mxu0 0
  %571 = vmatprep.subr.bf16.mxu0 0
  %572 = vmatpush1.bf16.msra.mxu0 0
  %573 = vmatprep.subr.bf16.mxu0 0
  %574 = vmatpush1.bf16.msra.mxu0 0
  %575 = vmatprep.subr.bf16.mxu0 0
  %576 = vmatpush1.bf16.msra.mxu0 0
  %577 = vmatprep.subr.bf16.mxu0 0
  %578 = vmatpush1.bf16.msra.mxu0 0
  %579 = vmatprep.subr.bf16.mxu0 0
  %580 = vmatpush1.bf16.msra.mxu0 0
  %581 = vmatprep.subr.bf16.mxu0 0
  %582 = vmatpush1.bf16.msra.mxu0 0
  %583 = vmatprep.subr.bf16.mxu0 0
  %584 = vmatpush1.bf16.msra.mxu0 0
  %585 = vmatprep.subr.bf16.mxu0 0
  %586 = vmatpush1.bf16.msra.mxu0 0
  %587 = vmatprep.subr.bf16.mxu0 0
  %588 = vmatpush1.bf16.msra.mxu0 0
  %589 = vmatprep.subr.bf16.mxu0 0
  %590 = vmatpush1.bf16.msra.mxu0 0
  %591 = vmatprep.mubr.bf16.mxu0 0
  %592 = vmatmul.mubr.bf16.gmra.mrb[0].mxu0 %v554
  %v593 = vpop.f32.mrb[0].mxu0
  %v594 = vadd.f32 0.0, %v593
  %v595 = vpop.f32.mrb[0].mxu0
  %v596 = vpop.f32.mrb[0].mxu0
  %v597 = vadd.f32 0.0, %v596
  %v598 = vpop.f32.mrb[0].mxu0
  %599 = vmatprep.mubr.bf16.mxu0 0
  %600 = vmatmul.mubr.bf16.gmra.mrb[0].mxu0 %v557
  %v601 = vpop.f32.mrb[0].mxu0
  %v602 = vadd.f32 0.0, %v601
  %v603 = vpop.f32.mrb[0].mxu0
  %v604 = vpop.f32.mrb[0].mxu0
  %v605 = vadd.f32 0.0, %v604
  %v606 = vpop.f32.mrb[0].mxu0
  %607 = vdwg.mxu0
  %610 = vrot.lane.b32.xlu0 %v430, 112
  %v611 = vpop.permute.xlu0 %610
  %612 = vrot.lane.b32.xlu0 %v431, 112
  %v613 = vpop.permute.xlu0 %612
  %616 = vrot.lane.b32.xlu0 %v432, 112
  %v617 = vpop.permute.xlu0 %616
  %618 = vrot.lane.b32.xlu0 %v433, 112
  %v619 = vpop.permute.xlu0 %618
  %v621 = vsel %vm436, %v611, 0
  %v624 = vsel %vm436, %v613, 0
  %v627 = vsel %vm436, %v617, 0
  %v630 = vsel %vm436, %v619, 0
  %632 = vmatprep.subr.bf16.mxu0 0
  %633 = vmatpush1.bf16.xpose.msra.mxu0 %v627
  %634 = vmatprep.subr.bf16.mxu0 0
  %635 = vmatpush1.bf16.xpose.msra.mxu0 %v630
  %636 = vmatprep.subr.bf16.mxu0 0
  %637 = vmatpush1.bf16.xpose.msra.mxu0 0
  %638 = vmatprep.subr.bf16.mxu0 0
  %639 = vmatpush1.bf16.xpose.msra.mxu0 0
  %640 = vmatprep.subr.bf16.mxu0 0
  %641 = vmatpush1.bf16.xpose.msra.mxu0 0
  %642 = vmatprep.subr.bf16.mxu0 0
  %643 = vmatpush1.bf16.xpose.msra.mxu0 0
  %644 = vmatprep.subr.bf16.mxu0 0
  %645 = vmatpush1.bf16.xpose.msra.mxu0 0
  %646 = vmatprep.subr.bf16.mxu0 0
  %647 = vmatpush1.bf16.xpose.msra.mxu0 0
  %648 = vmatprep.subr.bf16.mxu0 0
  %649 = vmatpush1.bf16.xpose.msra.mxu0 0
  %650 = vmatprep.subr.bf16.mxu0 0
  %651 = vmatpush1.bf16.xpose.msra.mxu0 0
  %652 = vmatprep.subr.bf16.mxu0 0
  %653 = vmatpush1.bf16.xpose.msra.mxu0 0
  %654 = vmatprep.subr.bf16.mxu0 0
  %655 = vmatpush1.bf16.xpose.msra.mxu0 0
  %656 = vmatprep.subr.bf16.mxu0 0
  %657 = vmatpush1.bf16.xpose.msra.mxu0 0
  %658 = vmatprep.subr.bf16.mxu0 0
  %659 = vmatpush1.bf16.xpose.msra.mxu0 0
  %660 = vmatprep.subr.bf16.mxu0 0
  %661 = vmatpush1.bf16.xpose.msra.mxu0 0
  %662 = vmatprep.subr.bf16.mxu0 0
  %663 = vmatpush1.bf16.xpose.msra.mxu0 0
  %664 = vmatprep.mubr.bf16.mxu0 0
  %665 = vmatmul.mubr.bf16.gmra.mrb[0].mxu0 %v621
  %v666 = vpop.f32.mrb[0].mxu0
  %v667 = vadd.f32 0.0, %v666
  %v668 = vpop.f32.mrb[0].mxu0
  %v669 = vpop.f32.mrb[0].mxu0
  %v670 = vadd.f32 0.0, %v669
  %v671 = vpop.f32.mrb[0].mxu0
  %672 = vmatprep.mubr.bf16.mxu0 0
  %673 = vmatmul.mubr.bf16.gmra.mrb[0].mxu0 %v624
  %v674 = vpop.f32.mrb[0].mxu0
  %v675 = vadd.f32 0.0, %v674
  %v676 = vpop.f32.mrb[0].mxu0
  %v677 = vpop.f32.mrb[0].mxu0
  %v678 = vadd.f32 0.0, %v677
  %v679 = vpop.f32.mrb[0].mxu0
  %680 = vdwg.mxu0
  %v681 = vmul.f32 %v667, 0.25
  %v682 = vmul.f32 %v670, 0.25
  %v683 = vmul.f32 %v675, 0.25
  %v684 = vmul.f32 %v678, 0.25
  %v685 = vadd.f32 %v681, %v54
  %v686 = vadd.f32 %v682, %v55
  %v687 = vadd.f32 %v683, %v56
  %v688 = vadd.f32 %v684, %v57
  %v689 = vsel %vm506, %v685, -inf
  %690 = vmax.xlane.f32.xlu0 %v689
  %v691 = vpop.xlane.xlu0 %690
  %v692 = vsel %vm506, %v686, -inf
  %693 = vmax.xlane.f32.xlu0 %v692
  %v694 = vpop.xlane.xlu0 %693
  %v695 = vsel %vm506, %v687, -inf
  %696 = vmax.xlane.f32.xlu0 %v695
  %v697 = vpop.xlane.xlu0 %696
  %v698 = vsel %vm506, %v688, -inf
  %699 = vmax.xlane.f32.xlu0 %v698
  %v700 = vpop.xlane.xlu0 %699
  %v701 = vsub.f32 %v685, %v691
  %v702 = vsub.f32 %v686, %v694
  %v703 = vsub.f32 %v687, %v697
  %v704 = vsub.f32 %v688, %v700
  %v705 = vmul.f32 %v701, 1.442695
  %v706 = vpow.pop %v705
  %v707 = vmul.f32 %v702, 1.442695
  %v708 = vpow.pop %v707
  %v709 = vmul.f32 %v703, 1.442695
  %v710 = vpow.pop %v709
  %v711 = vmul.f32 %v704, 1.442695
  %v712 = vpow.pop %v711
  %v713 = vsel %vm506, %v706, 0.0
  %714 = vadd.xlane.f32.xlu0 %v713
  %v715 = vpop.xlane.xlu0 %714
  %v716 = vsel %vm506, %v708, 0.0
  %717 = vadd.xlane.f32.xlu0 %v716
  %v718 = vpop.xlane.xlu0 %717
  %v719 = vsel %vm506, %v710, 0.0
  %720 = vadd.xlane.f32.xlu0 %v719
  %v721 = vpop.xlane.xlu0 %720
  %v722 = vsel %vm506, %v712, 0.0
  %723 = vadd.xlane.f32.xlu0 %v722
  %v724 = vpop.xlane.xlu0 %723
  %v725 = vrcp.pop %v715
  %v726 = vmul.f32 %v706, %v725
  %v727 = vrcp.pop %v718
  %v728 = vmul.f32 %v708, %v727
  %v729 = vrcp.pop %v721
  %v730 = vmul.f32 %v710, %v729
  %v731 = vrcp.pop %v724
  %v732 = vmul.f32 %v712, %v731
  %v733 = vpack.c.bf16 %v728, %v726
  %v734 = vpack.c.bf16 %v732, %v730
  %737 = vrot.lane.b32.xlu0 %v434, 112
  %v738 = vpop.permute.xlu0 %737
  %739 = vrot.lane.b32.xlu0 %v435, 112
  %v740 = vpop.permute.xlu0 %739
  %v744 = vsel %vm506, %v733, 0
  %v747 = vsel %vm506, %v734, 0
  %749 = vmatprep.subr.bf16.mxu0 0
  %750 = vmatpush1.bf16.msra.mxu0 %v738
  %751 = vmatprep.subr.bf16.mxu0 0
  %752 = vmatpush1.bf16.msra.mxu0 %v740
  %753 = vmatprep.subr.bf16.mxu0 0
  %754 = vmatpush1.bf16.msra.mxu0 0
  %755 = vmatprep.subr.bf16.mxu0 0
  %756 = vmatpush1.bf16.msra.mxu0 0
  %757 = vmatprep.subr.bf16.mxu0 0
  %758 = vmatpush1.bf16.msra.mxu0 0
  %759 = vmatprep.subr.bf16.mxu0 0
  %760 = vmatpush1.bf16.msra.mxu0 0
  %761 = vmatprep.subr.bf16.mxu0 0
  %762 = vmatpush1.bf16.msra.mxu0 0
  %763 = vmatprep.subr.bf16.mxu0 0
  %764 = vmatpush1.bf16.msra.mxu0 0
  %765 = vmatprep.subr.bf16.mxu0 0
  %766 = vmatpush1.bf16.msra.mxu0 0
  %767 = vmatprep.subr.bf16.mxu0 0
  %768 = vmatpush1.bf16.msra.mxu0 0
  %769 = vmatprep.subr.bf16.mxu0 0
  %770 = vmatpush1.bf16.msra.mxu0 0
  %771 = vmatprep.subr.bf16.mxu0 0
  %772 = vmatpush1.bf16.msra.mxu0 0
  %773 = vmatprep.subr.bf16.mxu0 0
  %774 = vmatpush1.bf16.msra.mxu0 0
  %775 = vmatprep.subr.bf16.mxu0 0
  %776 = vmatpush1.bf16.msra.mxu0 0
  %777 = vmatprep.subr.bf16.mxu0 0
  %778 = vmatpush1.bf16.msra.mxu0 0
  %779 = vmatprep.subr.bf16.mxu0 0
  %780 = vmatpush1.bf16.msra.mxu0 0
  %781 = vmatprep.mubr.bf16.mxu0 0
  %782 = vmatmul.mubr.bf16.gmra.mrb[0].mxu0 %v744
  %v783 = vpop.f32.mrb[0].mxu0
  %v784 = vadd.f32 0.0, %v783
  %v785 = vpop.f32.mrb[0].mxu0
  %v786 = vpop.f32.mrb[0].mxu0
  %v787 = vadd.f32 0.0, %v786
  %v788 = vpop.f32.mrb[0].mxu0
  %789 = vmatprep.mubr.bf16.mxu0 0
  %790 = vmatmul.mubr.bf16.gmra.mrb[0].mxu0 %v747
  %v791 = vpop.f32.mrb[0].mxu0
  %v792 = vadd.f32 0.0, %v791
  %v793 = vpop.f32.mrb[0].mxu0
  %v794 = vpop.f32.mrb[0].mxu0
  %v795 = vadd.f32 0.0, %v794
  %v796 = vpop.f32.mrb[0].mxu0
  %797 = vdwg.mxu0
  %798 = vrot.lane.b32.xlu0 %v430, 96
  %v799 = vpop.permute.xlu0 %798
  %800 = vrot.lane.b32.xlu0 %v431, 96
  %v801 = vpop.permute.xlu0 %800
  %802 = vrot.lane.b32.xlu0 %v432, 96
  %v803 = vpop.permute.xlu0 %802
  %804 = vrot.lane.b32.xlu0 %v433, 96
  %v805 = vpop.permute.xlu0 %804
  %v807 = vsel %vm436, %v799, 0
  %v810 = vsel %vm436, %v801, 0
  %v813 = vsel %vm436, %v803, 0
  %v816 = vsel %vm436, %v805, 0
  %818 = vmatprep.subr.bf16.mxu0 0
  %819 = vmatpush1.bf16.xpose.msra.mxu0 %v813
  %820 = vmatprep.subr.bf16.mxu0 0
  %821 = vmatpush1.bf16.xpose.msra.mxu0 %v816
  %822 = vmatprep.subr.bf16.mxu0 0
  %823 = vmatpush1.bf16.xpose.msra.mxu0 0
  %824 = vmatprep.subr.bf16.mxu0 0
  %825 = vmatpush1.bf16.xpose.msra.mxu0 0
  %826 = vmatprep.subr.bf16.mxu0 0
  %827 = vmatpush1.bf16.xpose.msra.mxu0 0
  %828 = vmatprep.subr.bf16.mxu0 0
  %829 = vmatpush1.bf16.xpose.msra.mxu0 0
  %830 = vmatprep.subr.bf16.mxu0 0
  %831 = vmatpush1.bf16.xpose.msra.mxu0 0
  %832 = vmatprep.subr.bf16.mxu0 0
  %833 = vmatpush1.bf16.xpose.msra.mxu0 0
  %834 = vmatprep.subr.bf16.mxu0 0
  %835 = vmatpush1.bf16.xpose.msra.mxu0 0
  %836 = vmatprep.subr.bf16.mxu0 0
  %837 = vmatpush1.bf16.xpose.msra.mxu0 0
  %838 = vmatprep.subr.bf16.mxu0 0
  %839 = vmatpush1.bf16.xpose.msra.mxu0 0
  %840 = vmatprep.subr.bf16.mxu0 0
  %841 = vmatpush1.bf16.xpose.msra.mxu0 0
  %842 = vmatprep.subr.bf16.mxu0 0
  %843 = vmatpush1.bf16.xpose.msra.mxu0 0
  %844 = vmatprep.subr.bf16.mxu0 0
  %845 = vmatpush1.bf16.xpose.msra.mxu0 0
  %846 = vmatprep.subr.bf16.mxu0 0
  %847 = vmatpush1.bf16.xpose.msra.mxu0 0
  %848 = vmatprep.subr.bf16.mxu0 0
  %849 = vmatpush1.bf16.xpose.msra.mxu0 0
  %850 = vmatprep.mubr.bf16.mxu0 0
  %851 = vmatmul.mubr.bf16.gmra.mrb[0].mxu0 %v807
  %v852 = vpop.f32.mrb[0].mxu0
  %v853 = vadd.f32 0.0, %v852
  %v854 = vpop.f32.mrb[0].mxu0
  %v855 = vpop.f32.mrb[0].mxu0
  %v856 = vadd.f32 0.0, %v855
  %v857 = vpop.f32.mrb[0].mxu0
  %858 = vmatprep.mubr.bf16.mxu0 0
  %859 = vmatmul.mubr.bf16.gmra.mrb[0].mxu0 %v810
  %v860 = vpop.f32.mrb[0].mxu0
  %v861 = vadd.f32 0.0, %v860
  %v862 = vpop.f32.mrb[0].mxu0
  %v863 = vpop.f32.mrb[0].mxu0
  %v864 = vadd.f32 0.0, %v863
  %v865 = vpop.f32.mrb[0].mxu0
  %866 = vdwg.mxu0
  %v867 = vmul.f32 %v853, 0.25
  %v868 = vmul.f32 %v856, 0.25
  %v869 = vmul.f32 %v861, 0.25
  %v870 = vmul.f32 %v864, 0.25
  %v871 = vadd.f32 %v867, %v54
  %v872 = vadd.f32 %v868, %v55
  %v873 = vadd.f32 %v869, %v56
  %v874 = vadd.f32 %v870, %v57
  %v875 = vsel %vm506, %v871, -inf
  %876 = vmax.xlane.f32.xlu0 %v875
  %v877 = vpop.xlane.xlu0 %876
  %v878 = vsel %vm506, %v872, -inf
  %879 = vmax.xlane.f32.xlu0 %v878
  %v880 = vpop.xlane.xlu0 %879
  %v881 = vsel %vm506, %v873, -inf
  %882 = vmax.xlane.f32.xlu0 %v881
  %v883 = vpop.xlane.xlu0 %882
  %v884 = vsel %vm506, %v874, -inf
  %885 = vmax.xlane.f32.xlu0 %v884
  %v886 = vpop.xlane.xlu0 %885
  %v887 = vsub.f32 %v871, %v877
  %v888 = vsub.f32 %v872, %v880
  %v889 = vsub.f32 %v873, %v883
  %v890 = vsub.f32 %v874, %v886
  %v891 = vmul.f32 %v887, 1.442695
  %v892 = vpow.pop %v891
  %v893 = vmul.f32 %v888, 1.442695
  %v894 = vpow.pop %v893
  %v895 = vmul.f32 %v889, 1.442695
  %v896 = vpow.pop %v895
  %v897 = vmul.f32 %v890, 1.442695
  %v898 = vpow.pop %v897
  %v899 = vsel %vm506, %v892, 0.0
  %900 = vadd.xlane.f32.xlu0 %v899
  %v901 = vpop.xlane.xlu0 %900
  %v902 = vsel %vm506, %v894, 0.0
  %903 = vadd.xlane.f32.xlu0 %v902
  %v904 = vpop.xlane.xlu0 %903
  %v905 = vsel %vm506, %v896, 0.0
  %906 = vadd.xlane.f32.xlu0 %v905
  %v907 = vpop.xlane.xlu0 %906
  %v908 = vsel %vm506, %v898, 0.0
  %909 = vadd.xlane.f32.xlu0 %v908
  %v910 = vpop.xlane.xlu0 %909
  %v911 = vrcp.pop %v901
  %v912 = vmul.f32 %v892, %v911
  %v913 = vrcp.pop %v904
  %v914 = vmul.f32 %v894, %v913
  %v915 = vrcp.pop %v907
  %v916 = vmul.f32 %v896, %v915
  %v917 = vrcp.pop %v910
  %v918 = vmul.f32 %v898, %v917
  %v919 = vpack.c.bf16 %v914, %v912
  %v920 = vpack.c.bf16 %v918, %v916
  %921 = vrot.lane.b32.xlu0 %v434, 96
  %v922 = vpop.permute.xlu0 %921
  %923 = vrot.lane.b32.xlu0 %v435, 96
  %v924 = vpop.permute.xlu0 %923
  %v928 = vsel %vm506, %v919, 0
  %v931 = vsel %vm506, %v920, 0
  %933 = vmatprep.subr.bf16.mxu0 0
  %934 = vmatpush1.bf16.msra.mxu0 %v922
  %935 = vmatprep.subr.bf16.mxu0 0
  %936 = vmatpush1.bf16.msra.mxu0 %v924
  %937 = vmatprep.subr.bf16.mxu0 0
  %938 = vmatpush1.bf16.msra.mxu0 0
  %939 = vmatprep.subr.bf16.mxu0 0
  %940 = vmatpush1.bf16.msra.mxu0 0
  %941 = vmatprep.subr.bf16.mxu0 0
  %942 = vmatpush1.bf16.msra.mxu0 0
  %943 = vmatprep.subr.bf16.mxu0 0
  %944 = vmatpush1.bf16.msra.mxu0 0
  %945 = vmatprep.subr.bf16.mxu0 0
  %946 = vmatpush1.bf16.msra.mxu0 0
  %947 = vmatprep.subr.bf16.mxu0 0
  %948 = vmatpush1.bf16.msra.mxu0 0
  %949 = vmatprep.subr.bf16.mxu0 0
  %950 = vmatpush1.bf16.msra.mxu0 0
  %951 = vmatprep.subr.bf16.mxu0 0
  %952 = vmatpush1.bf16.msra.mxu0 0
  %953 = vmatprep.subr.bf16.mxu0 0
  %954 = vmatpush1.bf16.msra.mxu0 0
  %955 = vmatprep.subr.bf16.mxu0 0
  %956 = vmatpush1.bf16.msra.mxu0 0
  %957 = vmatprep.subr.bf16.mxu0 0
  %958 = vmatpush1.bf16.msra.mxu0 0
  %959 = vmatprep.subr.bf16.mxu0 0
  %960 = vmatpush1.bf16.msra.mxu0 0
  %961 = vmatprep.subr.bf16.mxu0 0
  %962 = vmatpush1.bf16.msra.mxu0 0
  %963 = vmatprep.subr.bf16.mxu0 0
  %964 = vmatpush1.bf16.msra.mxu0 0
  %965 = vmatprep.mubr.bf16.mxu0 0
  %966 = vmatmul.mubr.bf16.gmra.mrb[0].mxu0 %v928
  %v967 = vpop.f32.mrb[0].mxu0
  %v968 = vadd.f32 0.0, %v967
  %v969 = vpop.f32.mrb[0].mxu0
  %v970 = vpop.f32.mrb[0].mxu0
  %v971 = vadd.f32 0.0, %v970
  %v972 = vpop.f32.mrb[0].mxu0
  %973 = vmatprep.mubr.bf16.mxu0 0
  %974 = vmatmul.mubr.bf16.gmra.mrb[0].mxu0 %v931
  %v975 = vpop.f32.mrb[0].mxu0
  %v976 = vadd.f32 0.0, %v975
  %v977 = vpop.f32.mrb[0].mxu0
  %v978 = vpop.f32.mrb[0].mxu0
  %v979 = vadd.f32 0.0, %v978
  %v980 = vpop.f32.mrb[0].mxu0
  %981 = vdwg.mxu0
  %982 = vrot.lane.b32.xlu0 %v430, 80
  %v983 = vpop.permute.xlu0 %982
  %984 = vrot.lane.b32.xlu0 %v431, 80
  %v985 = vpop.permute.xlu0 %984
  %986 = vrot.lane.b32.xlu0 %v432, 80
  %v987 = vpop.permute.xlu0 %986
  %988 = vrot.lane.b32.xlu0 %v433, 80
  %v989 = vpop.permute.xlu0 %988
  %v991 = vsel %vm436, %v983, 0
  %v994 = vsel %vm436, %v985, 0
  %v997 = vsel %vm436, %v987, 0
  %v1000 = vsel %vm436, %v989, 0
  %1002 = vmatprep.subr.bf16.mxu0 0
  %1003 = vmatpush1.bf16.xpose.msra.mxu0 %v997
  %1004 = vmatprep.subr.bf16.mxu0 0
  %1005 = vmatpush1.bf16.xpose.msra.mxu0 %v1000
  %1006 = vmatprep.subr.bf16.mxu0 0
  %1007 = vmatpush1.bf16.xpose.msra.mxu0 0
  %1008 = vmatprep.subr.bf16.mxu0 0
  %1009 = vmatpush1.bf16.xpose.msra.mxu0 0
  %1010 = vmatprep.subr.bf16.mxu0 0
  %1011 = vmatpush1.bf16.xpose.msra.mxu0 0
  %1012 = vmatprep.subr.bf16.mxu0 0
  %1013 = vmatpush1.bf16.xpose.msra.mxu0 0
  %1014 = vmatprep.subr.bf16.mxu0 0
  %1015 = vmatpush1.bf16.xpose.msra.mxu0 0
  %1016 = vmatprep.subr.bf16.mxu0 0
  %1017 = vmatpush1.bf16.xpose.msra.mxu0 0
  %1018 = vmatprep.subr.bf16.mxu0 0
  %1019 = vmatpush1.bf16.xpose.msra.mxu0 0
  %1020 = vmatprep.subr.bf16.mxu0 0
  %1021 = vmatpush1.bf16.xpose.msra.mxu0 0
  %1022 = vmatprep.subr.bf16.mxu0 0
  %1023 = vmatpush1.bf16.xpose.msra.mxu0 0
  %1024 = vmatprep.subr.bf16.mxu0 0
  %1025 = vmatpush1.bf16.xpose.msra.mxu0 0
  %1026 = vmatprep.subr.bf16.mxu0 0
  %1027 = vmatpush1.bf16.xpose.msra.mxu0 0
  %1028 = vmatprep.subr.bf16.mxu0 0
  %1029 = vmatpush1.bf16.xpose.msra.mxu0 0
  %1030 = vmatprep.subr.bf16.mxu0 0
  %1031 = vmatpush1.bf16.xpose.msra.mxu0 0
  %1032 = vmatprep.subr.bf16.mxu0 0
  %1033 = vmatpush1.bf16.xpose.msra.mxu0 0
  %1034 = vmatprep.mubr.bf16.mxu0 0
  %1035 = vmatmul.mubr.bf16.gmra.mrb[0].mxu0 %v991
  %v1036 = vpop.f32.mrb[0].mxu0
  %v1037 = vadd.f32 0.0, %v1036
  %v1038 = vpop.f32.mrb[0].mxu0
  %v1039 = vpop.f32.mrb[0].mxu0
  %v1040 = vadd.f32 0.0, %v1039
  %v1041 = vpop.f32.mrb[0].mxu0
  %1042 = vmatprep.mubr.bf16.mxu0 0
  %1043 = vmatmul.mubr.bf16.gmra.mrb[0].mxu0 %v994
  %v1044 = vpop.f32.mrb[0].mxu0
  %v1045 = vadd.f32 0.0, %v1044
  %v1046 = vpop.f32.mrb[0].mxu0
  %v1047 = vpop.f32.mrb[0].mxu0
  %v1048 = vadd.f32 0.0, %v1047
  %v1049 = vpop.f32.mrb[0].mxu0
  %1050 = vdwg.mxu0
  %v1051 = vmul.f32 %v1037, 0.25
  %v1052 = vmul.f32 %v1040, 0.25
  %v1053 = vmul.f32 %v1045, 0.25
  %v1054 = vmul.f32 %v1048, 0.25
  %v1055 = vadd.f32 %v1051, %v54
  %v1056 = vadd.f32 %v1052, %v55
  %v1057 = vadd.f32 %v1053, %v56
  %v1058 = vadd.f32 %v1054, %v57
  %v1059 = vsel %vm506, %v1055, -inf
  %1060 = vmax.xlane.f32.xlu0 %v1059
  %v1061 = vpop.xlane.xlu0 %1060
  %v1062 = vsel %vm506, %v1056, -inf
  %1063 = vmax.xlane.f32.xlu0 %v1062
  %v1064 = vpop.xlane.xlu0 %1063
  %v1065 = vsel %vm506, %v1057, -inf
  %1066 = vmax.xlane.f32.xlu0 %v1065
  %v1067 = vpop.xlane.xlu0 %1066
  %v1068 = vsel %vm506, %v1058, -inf
  %1069 = vmax.xlane.f32.xlu0 %v1068
  %v1070 = vpop.xlane.xlu0 %1069
  %v1071 = vsub.f32 %v1055, %v1061
  %v1072 = vsub.f32 %v1056, %v1064
  %v1073 = vsub.f32 %v1057, %v1067
  %v1074 = vsub.f32 %v1058, %v1070
  %v1075 = vmul.f32 %v1071, 1.442695
  %v1076 = vpow.pop %v1075
  %v1077 = vmul.f32 %v1072, 1.442695
  %v1078 = vpow.pop %v1077
  %v1079 = vmul.f32 %v1073, 1.442695
  %v1080 = vpow.pop %v1079
  %v1081 = vmul.f32 %v1074, 1.442695
  %v1082 = vpow.pop %v1081
  %v1083 = vsel %vm506, %v1076, 0.0
  %1084 = vadd.xlane.f32.xlu0 %v1083
  %v1085 = vpop.xlane.xlu0 %1084
  %v1086 = vsel %vm506, %v1078, 0.0
  %1087 = vadd.xlane.f32.xlu0 %v1086
  %v1088 = vpop.xlane.xlu0 %1087
  %v1089 = vsel %vm506, %v1080, 0.0
  %1090 = vadd.xlane.f32.xlu0 %v1089
  %v1091 = vpop.xlane.xlu0 %1090
  %v1092 = vsel %vm506, %v1082, 0.0
  %1093 = vadd.xlane.f32.xlu0 %v1092
  %v1094 = vpop.xlane.xlu0 %1093
  %v1095 = vrcp.pop %v1085
  %v1096 = vmul.f32 %v1076, %v1095
  %v1097 = vrcp.pop %v1088
  %v1098 = vmul.f32 %v1078, %v1097
  %v1099 = vrcp.pop %v1091
  %v1100 = vmul.f32 %v1080, %v1099
  %v1101 = vrcp.pop %v1094
  %v1102 = vmul.f32 %v1082, %v1101
  %v1103 = vpack.c.bf16 %v1098, %v1096
  %v1104 = vpack.c.bf16 %v1102, %v1100
  %1105 = vrot.lane.b32.xlu0 %v434, 80
  %v1106 = vpop.permute.xlu0 %1105
  %1107 = vrot.lane.b32.xlu0 %v435, 80
  %v1108 = vpop.permute.xlu0 %1107
  %v1112 = vsel %vm506, %v1103, 0
  %v1115 = vsel %vm506, %v1104, 0
  %1117 = vmatprep.subr.bf16.mxu0 0
  %1118 = vmatpush1.bf16.msra.mxu0 %v1106
  %1119 = vmatprep.subr.bf16.mxu0 0
  %1120 = vmatpush1.bf16.msra.mxu0 %v1108
  %1121 = vmatprep.subr.bf16.mxu0 0
  %1122 = vmatpush1.bf16.msra.mxu0 0
  %1123 = vmatprep.subr.bf16.mxu0 0
  %1124 = vmatpush1.bf16.msra.mxu0 0
  %1125 = vmatprep.subr.bf16.mxu0 0
  %1126 = vmatpush1.bf16.msra.mxu0 0
  %1127 = vmatprep.subr.bf16.mxu0 0
  %1128 = vmatpush1.bf16.msra.mxu0 0
  %1129 = vmatprep.subr.bf16.mxu0 0
  %1130 = vmatpush1.bf16.msra.mxu0 0
  %1131 = vmatprep.subr.bf16.mxu0 0
  %1132 = vmatpush1.bf16.msra.mxu0 0
  %1133 = vmatprep.subr.bf16.mxu0 0
  %1134 = vmatpush1.bf16.msra.mxu0 0
  %1135 = vmatprep.subr.bf16.mxu0 0
  %1136 = vmatpush1.bf16.msra.mxu0 0
  %1137 = vmatprep.subr.bf16.mxu0 0
  %1138 = vmatpush1.bf16.msra.mxu0 0
  %1139 = vmatprep.subr.bf16.mxu0 0
  %1140 = vmatpush1.bf16.msra.mxu0 0
  %1141 = vmatprep.subr.bf16.mxu0 0
  %1142 = vmatpush1.bf16.msra.mxu0 0
  %1143 = vmatprep.subr.bf16.mxu0 0
  %1144 = vmatpush1.bf16.msra.mxu0 0
  %1145 = vmatprep.subr.bf16.mxu0 0
  %1146 = vmatpush1.bf16.msra.mxu0 0
  %1147 = vmatprep.subr.bf16.mxu0 0
  %1148 = vmatpush1.bf16.msra.mxu0 0
  %1149 = vmatprep.mubr.bf16.mxu0 0
  %1150 = vmatmul.mubr.bf16.gmra.mrb[0].mxu0 %v1112
  %v1151 = vpop.f32.mrb[0].mxu0
  %v1152 = vadd.f32 0.0, %v1151
  %v1153 = vpop.f32.mrb[0].mxu0
  %v1154 = vpop.f32.mrb[0].mxu0
  %v1155 = vadd.f32 0.0, %v1154
  %v1156 = vpop.f32.mrb[0].mxu0
  %1157 = vmatprep.mubr.bf16.mxu0 0
  %1158 = vmatmul.mubr.bf16.gmra.mrb[0].mxu0 %v1115
  %v1159 = vpop.f32.mrb[0].mxu0
  %v1160 = vadd.f32 0.0, %v1159
  %v1161 = vpop.f32.mrb[0].mxu0
  %v1162 = vpop.f32.mrb[0].mxu0
  %v1163 = vadd.f32 0.0, %v1162
  %v1164 = vpop.f32.mrb[0].mxu0
  %1165 = vdwg.mxu0
  %1170 = vrot.lane.b32.xlu0 %v784, 16
  %v1171 = vpop.permute.xlu0 %1170
  %1172 = vrot.lane.b32.xlu0 %v787, 16
  %v1173 = vpop.permute.xlu0 %1172
  %1174 = vrot.lane.b32.xlu0 %v792, 16
  %v1175 = vpop.permute.xlu0 %1174
  %1176 = vrot.lane.b32.xlu0 %v795, 16
  %v1177 = vpop.permute.xlu0 %1176
  %1186 = vrot.lane.b32.xlu0 %v968, 32
  %v1187 = vpop.permute.xlu0 %1186
  %1188 = vrot.lane.b32.xlu0 %v971, 32
  %v1189 = vpop.permute.xlu0 %1188
  %1190 = vrot.lane.b32.xlu0 %v976, 32
  %v1191 = vpop.permute.xlu0 %1190
  %1192 = vrot.lane.b32.xlu0 %v979, 32
  %v1193 = vpop.permute.xlu0 %1192
  %1202 = vrot.lane.b32.xlu0 %v1152, 48
  %v1203 = vpop.permute.xlu0 %1202
  %1204 = vrot.lane.b32.xlu0 %v1155, 48
  %v1205 = vpop.permute.xlu0 %1204
  %1206 = vrot.lane.b32.xlu0 %v1160, 48
  %v1207 = vpop.permute.xlu0 %1206
  %1208 = vrot.lane.b32.xlu0 %v1163, 48
  %v1209 = vpop.permute.xlu0 %1208
  %v1214 = vsel %vm436, %v594, %v1171
  %v1215 = vsel %vm436, %v597, %v1173
  %v1216 = vsel %vm436, %v602, %v1175
  %v1217 = vsel %vm436, %v605, %v1177
  %v1218 = vsel %vm506, %v1214, %v1187
  %v1219 = vsel %vm506, %v1215, %v1189
  %v1220 = vsel %vm506, %v1216, %v1191
  %v1221 = vsel %vm506, %v1217, %v1193
  %vm1222 = vcmask 392192
  %v1223 = vsel %vm1222, %v1218, %v1203
  %v1224 = vsel %vm1222, %v1219, %v1205
  %v1225 = vsel %vm1222, %v1220, %v1207
  %v1226 = vsel %vm1222, %v1221, %v1209
  %v1227 = vpack.c.bf16 %v1224, %v1223
  %v1228 = vpack.c.bf16 %v1226, %v1225
  %v1229 = vlaneseq
  %v1230 = vshrl.u32 %v1229, 7
  %v1231 = vsub.s32 5, %v1230
  %v1232 = vrot.slane %v58, %v1231
  %v1241 = vunpack.c.l.b16 %v159
  %v1242 = vunpack.c.l.b16 %v160
  %v1243 = vunpack.c.l.b16 %v161
  %v1244 = vunpack.c.l.b16 %v162
  %v1245 = vunpack.c.l.b16 %v163
  %v1246 = vunpack.c.l.b16 %v164
  %v1247 = vunpack.c.l.b16 %v165
  %v1248 = vunpack.c.l.b16 %v166
  %v1249 = vpack.c.b16 %v1242, %v1241
  %v1250 = vpack.c.b16 %v1244, %v1243
  %v1251 = vpack.c.b16 %v1246, %v1245
  %v1252 = vpack.c.b16 %v1248, %v1247
  %v1258 = vsel %vm65, %v1227, 0
  %v1261 = vsel %vm65, %v1228, 0
  %1263 = vmatprep.subr.bf16.mxu0 0
  %1264 = vmatpush1.bf16.msra.mxu0 %v1249
  %1265 = vmatprep.subr.bf16.mxu0 0
  %1266 = vmatpush1.bf16.msra.mxu0 %v1250
  %1267 = vmatprep.subr.bf16.mxu0 0
  %1268 = vmatpush1.bf16.msra.mxu0 %v1251
  %1269 = vmatprep.subr.bf16.mxu0 0
  %1270 = vmatpush1.bf16.msra.mxu0 %v1252
  %1271 = vmatprep.subr.bf16.mxu0 0
  %1272 = vmatpush1.bf16.msra.mxu0 0
  %1273 = vmatprep.subr.bf16.mxu0 0
  %1274 = vmatpush1.bf16.msra.mxu0 0
  %1275 = vmatprep.subr.bf16.mxu0 0
  %1276 = vmatpush1.bf16.msra.mxu0 0
  %1277 = vmatprep.subr.bf16.mxu0 0
  %1278 = vmatpush1.bf16.msra.mxu0 0
  %1279 = vmatprep.subr.bf16.mxu0 0
  %1280 = vmatpush1.bf16.msra.mxu0 0
  %1281 = vmatprep.subr.bf16.mxu0 0
  %1282 = vmatpush1.bf16.msra.mxu0 0
  %1283 = vmatprep.subr.bf16.mxu0 0
  %1284 = vmatpush1.bf16.msra.mxu0 0
  %1285 = vmatprep.subr.bf16.mxu0 0
  %1286 = vmatpush1.bf16.msra.mxu0 0
  %1287 = vmatprep.subr.bf16.mxu0 0
  %1288 = vmatpush1.bf16.msra.mxu0 0
  %1289 = vmatprep.subr.bf16.mxu0 0
  %1290 = vmatpush1.bf16.msra.mxu0 0
  %1291 = vmatprep.subr.bf16.mxu0 0
  %1292 = vmatpush1.bf16.msra.mxu0 0
  %1293 = vmatprep.subr.bf16.mxu0 0
  %1294 = vmatpush1.bf16.msra.mxu0 0
  %1295 = vmatprep.mubr.bf16.mxu0 0
  %1296 = vmatmul.mubr.bf16.gmra.mrb[0].mxu0 %v1258
  %v1297 = vpop.f32.mrb[0].mxu0
  %v1298 = vadd.f32 %v1232, %v1297
  %v1299 = vpop.f32.mrb[0].mxu0
  %v1300 = vpop.f32.mrb[0].mxu0
  %v1301 = vadd.f32 %v1232, %v1300
  %v1302 = vpop.f32.mrb[0].mxu0
  %1303 = vmatprep.mubr.bf16.mxu0 0
  %1304 = vmatmul.mubr.bf16.gmra.mrb[0].mxu0 %v1261
  %v1305 = vpop.f32.mrb[0].mxu0
  %v1306 = vadd.f32 %v1232, %v1305
  %v1307 = vpop.f32.mrb[0].mxu0
  %v1308 = vpop.f32.mrb[0].mxu0
  %v1309 = vadd.f32 %v1232, %v1308
  %v1310 = vpop.f32.mrb[0].mxu0
  %1311 = vdwg.mxu0
  %v1312 = vadd.f32 %v131, %v1298
  %v1313 = vadd.f32 %v132, %v1301
  %v1314 = vadd.f32 %v133, %v1306
  %v1315 = vadd.f32 %v134, %v1309
  %v1316 = vsel %vm65, %v1312, 0.0
  %1317 = vadd.xlane.f32.xlu0 %v1316
  %v1318 = vpop.xlane.xlu0 %1317
  %v1319 = vsel %vm65, %v1313, 0.0
  %1320 = vadd.xlane.f32.xlu0 %v1319
  %v1321 = vpop.xlane.xlu0 %1320
  %v1322 = vsel %vm65, %v1314, 0.0
  %1323 = vadd.xlane.f32.xlu0 %v1322
  %v1324 = vpop.xlane.xlu0 %1323
  %v1325 = vsel %vm65, %v1315, 0.0
  %1326 = vadd.xlane.f32.xlu0 %v1325
  %v1327 = vpop.xlane.xlu0 %1326
  %v1328 = vmul.f32 %v1318, %v78
  %v1329 = vmul.f32 %v1321, %v78
  %v1330 = vmul.f32 %v1324, %v78
  %v1331 = vmul.f32 %v1327, %v78
  %v1332 = vsub.f32 %v1312, %v1328
  %v1333 = vsub.f32 %v1313, %v1329
  %v1334 = vsub.f32 %v1314, %v1330
  %v1335 = vsub.f32 %v1315, %v1331
  %v1336 = vmul.f32 %v1332, %v1332
  %v1337 = vmul.f32 %v1333, %v1333
  %v1338 = vmul.f32 %v1334, %v1334
  %v1339 = vmul.f32 %v1335, %v1335
  %v1340 = vsel %vm65, %v1336, 0.0
  %1341 = vadd.xlane.f32.xlu0 %v1340
  %v1342 = vpop.xlane.xlu0 %1341
  %v1343 = vsel %vm65, %v1337, 0.0
  %1344 = vadd.xlane.f32.xlu0 %v1343
  %v1345 = vpop.xlane.xlu0 %1344
  %v1346 = vsel %vm65, %v1338, 0.0
  %1347 = vadd.xlane.f32.xlu0 %v1346
  %v1348 = vpop.xlane.xlu0 %1347
  %v1349 = vsel %vm65, %v1339, 0.0
  %1350 = vadd.xlane.f32.xlu0 %v1349
  %v1351 = vpop.xlane.xlu0 %1350
  %v1352 = vmul.f32 %v1342, %v78
  %v1353 = vmul.f32 %v1345, %v78
  %v1354 = vmul.f32 %v1348, %v78
  %v1355 = vmul.f32 %v1351, %v78
  %v1356 = vadd.f32 %v1352, 1e-07
  %v1357 = vadd.f32 %v1353, 1e-07
  %v1358 = vadd.f32 %v1354, 1e-07
  %v1359 = vadd.f32 %v1355, 1e-07
  %v1360 = vrsqrt.pop %v1356
  %v1361 = vrsqrt.pop %v1357
  %v1362 = vrsqrt.pop %v1358
  %v1363 = vrsqrt.pop %v1359
  %v1364 = vmul.f32 %v1332, %v1360
  %v1365 = vmul.f32 %v1333, %v1361
  %v1366 = vmul.f32 %v1334, %v1362
  %v1367 = vmul.f32 %v1335, %v1363
  %v1368 = vlaneseq
  %v1369 = vshrl.u32 %v1368, 7
  %v1370 = vsub.s32 6, %v1369
  %v1371 = vrot.slane %v58, %v1370
  %v1372 = vmul.f32 %v1364, %v1371
  %v1373 = vmul.f32 %v1365, %v1371
  %v1374 = vmul.f32 %v1366, %v1371
  %v1375 = vmul.f32 %v1367, %v1371
  %v1376 = vlaneseq
  %v1377 = vshrl.u32 %v1376, 7
  %v1378 = vsub.s32 7, %v1377
  %v1379 = vrot.slane %v58, %v1378
  %v1380 = vadd.f32 %v1372, %v1379
  %v1381 = vadd.f32 %v1373, %v1379
  %v1382 = vadd.f32 %v1374, %v1379
  %v1383 = vadd.f32 %v1375, %v1379
  %v1384 = vpack.c.bf16 %v1381, %v1380
  %v1385 = vpack.c.bf16 %v1383, %v1382
  %v1386 = vlaneseq
  %v1387 = vshrl.u32 %v1386, 7
  %v1388 = vsub.s32 0, %v1387
  %v1389 = vrot.slane %v63, %v1388
  %v1398 = vunpack.c.l.b16 %v167
  %v1399 = vunpack.c.l.b16 %v168
  %v1400 = vunpack.c.l.b16 %v169
  %v1401 = vunpack.c.l.b16 %v170
  %v1402 = vunpack.c.l.b16 %v171
  %v1403 = vunpack.c.l.b16 %v172
  %v1404 = vunpack.c.l.b16 %v173
  %v1405 = vunpack.c.l.b16 %v174
  %v1406 = vpack.c.b16 %v1399, %v1398
  %v1407 = vpack.c.b16 %v1401, %v1400
  %v1408 = vpack.c.b16 %v1403, %v1402
  %v1409 = vpack.c.b16 %v1405, %v1404
  %v1415 = vsel %vm65, %v1384, 0
  %v1418 = vsel %vm65, %v1385, 0
  %1420 = vmatprep.subr.bf16.mxu0 0
  %1421 = vmatpush1.bf16.msra.mxu0 %v1406
  %1422 = vmatprep.subr.bf16.mxu0 0
  %1423 = vmatpush1.bf16.msra.mxu0 %v1407
  %1424 = vmatprep.subr.bf16.mxu0 0
  %1425 = vmatpush1.bf16.msra.mxu0 %v1408
  %1426 = vmatprep.subr.bf16.mxu0 0
  %1427 = vmatpush1.bf16.msra.mxu0 %v1409
  %1428 = vmatprep.subr.bf16.mxu0 0
  %1429 = vmatpush1.bf16.msra.mxu0 0
  %1430 = vmatprep.subr.bf16.mxu0 0
  %1431 = vmatpush1.bf16.msra.mxu0 0
  %1432 = vmatprep.subr.bf16.mxu0 0
  %1433 = vmatpush1.bf16.msra.mxu0 0
  %1434 = vmatprep.subr.bf16.mxu0 0
  %1435 = vmatpush1.bf16.msra.mxu0 0
  %1436 = vmatprep.subr.bf16.mxu0 0
  %1437 = vmatpush1.bf16.msra.mxu0 0
  %1438 = vmatprep.subr.bf16.mxu0 0
  %1439 = vmatpush1.bf16.msra.mxu0 0
  %1440 = vmatprep.subr.bf16.mxu0 0
  %1441 = vmatpush1.bf16.msra.mxu0 0
  %1442 = vmatprep.subr.bf16.mxu0 0
  %1443 = vmatpush1.bf16.msra.mxu0 0
  %1444 = vmatprep.subr.bf16.mxu0 0
  %1445 = vmatpush1.bf16.msra.mxu0 0
  %1446 = vmatprep.subr.bf16.mxu0 0
  %1447 = vmatpush1.bf16.msra.mxu0 0
  %1448 = vmatprep.subr.bf16.mxu0 0
  %1449 = vmatpush1.bf16.msra.mxu0 0
  %1450 = vmatprep.subr.bf16.mxu0 0
  %1451 = vmatpush1.bf16.msra.mxu0 0
  %1452 = vmatprep.mubr.bf16.mxu0 0
  %1453 = vmatmul.mubr.bf16.gmra.mrb[0].mxu0 %v1415
  %v1454 = vpop.f32.mrb[0].mxu0
  %v1455 = vadd.f32 %v1389, %v1454
  %v1456 = vpop.f32.mrb[0].mxu0
  %v1457 = vpop.f32.mrb[0].mxu0
  %v1458 = vadd.f32 %v1389, %v1457
  %v1459 = vpop.f32.mrb[0].mxu0
  %1460 = vmatprep.mubr.bf16.mxu0 0
  %1461 = vmatmul.mubr.bf16.gmra.mrb[0].mxu0 %v1418
  %v1462 = vpop.f32.mrb[0].mxu0
  %v1463 = vadd.f32 %v1389, %v1462
  %v1464 = vpop.f32.mrb[0].mxu0
  %v1465 = vpop.f32.mrb[0].mxu0
  %v1466 = vadd.f32 %v1389, %v1465
  %v1467 = vpop.f32.mrb[0].mxu0
  %1468 = vdwg.mxu0
  %v1469 = vmul.f32 %v1455, 0.5
  %v1470 = vmul.f32 %v1458, 0.5
  %v1471 = vmul.f32 %v1463, 0.5
  %v1472 = vmul.f32 %v1466, 0.5
  %v1473 = vmul.f32 %v1455, 0.70710677
  %v1474 = vmul.f32 %v1458, 0.70710677
  %v1475 = vmul.f32 %v1463, 0.70710677
  %v1476 = vmul.f32 %v1466, 0.70710677
  %vm1477 = vcmp.ge.f32.partialorder %v1473, 0.0
  %vm1478 = vcmp.ge.f32.partialorder %v1474, 0.0
  %vm1479 = vcmp.ge.f32.partialorder %v1475, 0.0
  %vm1480 = vcmp.ge.f32.partialorder %v1476, 0.0
  %v1481 = vsel %vm1477, 1.0, -1.0
  %v1482 = vsel %vm1478, 1.0, -1.0
  %v1483 = vsel %vm1479, 1.0, -1.0
  %v1484 = vsel %vm1480, 1.0, -1.0
  %v1485 = vand.u32 2147483647, %v1473
  %v1486 = vand.u32 2147483647, %v1474
  %v1487 = vand.u32 2147483647, %v1475
  %v1488 = vand.u32 2147483647, %v1476
  %v1489 = vmul.f32 %v1485, 0.3275911
  %v1490 = vmul.f32 %v1486, 0.3275911
  %v1491 = vmul.f32 %v1487, 0.3275911
  %v1492 = vmul.f32 %v1488, 0.3275911
  %v1493 = vadd.f32 %v1489, 1.0
  %v1494 = vadd.f32 %v1490, 1.0
  %v1495 = vadd.f32 %v1491, 1.0
  %v1496 = vadd.f32 %v1492, 1.0
  %v1497 = vrcp.pop %v1493
  %v1498 = vmul.f32 1.0, %v1497
  %v1499 = vrcp.pop %v1494
  %v1500 = vmul.f32 1.0, %v1499
  %v1501 = vrcp.pop %v1495
  %v1502 = vmul.f32 1.0, %v1501
  %v1503 = vrcp.pop %v1496
  %v1504 = vmul.f32 1.0, %v1503
  %v1505 = vmul.f32 %v1498, 1.0614054
  %v1506 = vmul.f32 %v1500, 1.0614054
  %v1507 = vmul.f32 %v1502, 1.0614054
  %v1508 = vmul.f32 %v1504, 1.0614054
  %v1509 = vadd.f32 %v1505, -1.4531521
  %v1510 = vadd.f32 %v1506, -1.4531521
  %v1511 = vadd.f32 %v1507, -1.4531521
  %v1512 = vadd.f32 %v1508, -1.4531521
  %v1513 = vmul.f32 %v1509, %v1498
  %v1514 = vmul.f32 %v1510, %v1500
  %v1515 = vmul.f32 %v1511, %v1502
  %v1516 = vmul.f32 %v1512, %v1504
  %v1517 = vadd.f32 %v1513, 1.4214138
  %v1518 = vadd.f32 %v1514, 1.4214138
  %v1519 = vadd.f32 %v1515, 1.4214138
  %v1520 = vadd.f32 %v1516, 1.4214138
  %v1521 = vmul.f32 %v1517, %v1498
  %v1522 = vmul.f32 %v1518, %v1500
  %v1523 = vmul.f32 %v1519, %v1502
  %v1524 = vmul.f32 %v1520, %v1504
  %v1525 = vadd.f32 %v1521, -0.28449672
  %v1526 = vadd.f32 %v1522, -0.28449672
  %v1527 = vadd.f32 %v1523, -0.28449672
  %v1528 = vadd.f32 %v1524, -0.28449672
  %v1529 = vmul.f32 %v1525, %v1498
  %v1530 = vmul.f32 %v1526, %v1500
  %v1531 = vmul.f32 %v1527, %v1502
  %v1532 = vmul.f32 %v1528, %v1504
  %v1533 = vadd.f32 %v1529, 0.2548296
  %v1534 = vadd.f32 %v1530, 0.2548296
  %v1535 = vadd.f32 %v1531, 0.2548296
  %v1536 = vadd.f32 %v1532, 0.2548296
  %v1537 = vmul.f32 %v1533, %v1498
  %v1538 = vmul.f32 %v1534, %v1500
  %v1539 = vmul.f32 %v1535, %v1502
  %v1540 = vmul.f32 %v1536, %v1504
  %v1541 = vsub.f32 0.0, %v1485
  %v1542 = vsub.f32 0.0, %v1486
  %v1543 = vsub.f32 0.0, %v1487
  %v1544 = vsub.f32 0.0, %v1488
  %v1545 = vmul.f32 %v1541, %v1485
  %v1546 = vmul.f32 %v1542, %v1486
  %v1547 = vmul.f32 %v1543, %v1487
  %v1548 = vmul.f32 %v1544, %v1488
  %v1549 = vmul.f32 %v1545, 1.442695
  %v1550 = vpow.pop %v1549
  %v1551 = vmul.f32 %v1546, 1.442695
  %v1552 = vpow.pop %v1551
  %v1553 = vmul.f32 %v1547, 1.442695
  %v1554 = vpow.pop %v1553
  %v1555 = vmul.f32 %v1548, 1.442695
  %v1556 = vpow.pop %v1555
  %v1557 = vmul.f32 %v1537, %v1550
  %v1558 = vmul.f32 %v1538, %v1552
  %v1559 = vmul.f32 %v1539, %v1554
  %v1560 = vmul.f32 %v1540, %v1556
  %v1561 = vsub.f32 1.0, %v1557
  %v1562 = vsub.f32 1.0, %v1558
  %v1563 = vsub.f32 1.0, %v1559
  %v1564 = vsub.f32 1.0, %v1560
  %v1565 = vmul.f32 %v1481, %v1561
  %v1566 = vmul.f32 %v1482, %v1562
  %v1567 = vmul.f32 %v1483, %v1563
  %v1568 = vmul.f32 %v1484, %v1564
  %v1569 = vadd.f32 %v1565, 1.0
  %v1570 = vadd.f32 %v1566, 1.0
  %v1571 = vadd.f32 %v1567, 1.0
  %v1572 = vadd.f32 %v1568, 1.0
  %v1573 = vmul.f32 %v1469, %v1569
  %v1574 = vmul.f32 %v1470, %v1570
  %v1575 = vmul.f32 %v1471, %v1571
  %v1576 = vmul.f32 %v1472, %v1572
  %v1577 = vpack.c.bf16 %v1574, %v1573
  %v1578 = vpack.c.bf16 %v1576, %v1575
  %v1579 = vlaneseq
  %v1580 = vshrl.u32 %v1579, 7
  %v1581 = vsub.s32 0, %v1580
  %v1582 = vrot.slane %v59, %v1581
  %v1599 = vunpack.c.l.b16 %v175
  %v1600 = vunpack.c.l.b16 %v176
  %v1601 = vunpack.c.l.b16 %v177
  %v1602 = vunpack.c.l.b16 %v178
  %v1603 = vunpack.c.l.b16 %v179
  %v1604 = vunpack.c.l.b16 %v180
  %v1605 = vunpack.c.l.b16 %v181
  %v1606 = vunpack.c.l.b16 %v182
  %v1607 = vunpack.c.l.b16 %v183
  %v1608 = vunpack.c.l.b16 %v184
  %v1609 = vunpack.c.l.b16 %v185
  %v1610 = vunpack.c.l.b16 %v186
  %v1611 = vunpack.c.l.b16 %v187
  %v1612 = vunpack.c.l.b16 %v188
  %v1613 = vunpack.c.l.b16 %v189
  %v1614 = vunpack.c.l.b16 %v190
  %v1615 = vpack.c.b16 %v1600, %v1599
  %v1616 = vpack.c.b16 %v1602, %v1601
  %v1617 = vpack.c.b16 %v1604, %v1603
  %v1618 = vpack.c.b16 %v1606, %v1605
  %v1619 = vpack.c.b16 %v1608, %v1607
  %v1620 = vpack.c.b16 %v1610, %v1609
  %v1621 = vpack.c.b16 %v1612, %v1611
  %v1622 = vpack.c.b16 %v1614, %v1613
  %1631 = vmatprep.subr.bf16.mxu0 0
  %1632 = vmatpush1.bf16.msra.mxu0 %v1615
  %1633 = vmatprep.subr.bf16.mxu0 0
  %1634 = vmatpush1.bf16.msra.mxu0 %v1616
  %1635 = vmatprep.subr.bf16.mxu0 0
  %1636 = vmatpush1.bf16.msra.mxu0 %v1617
  %1637 = vmatprep.subr.bf16.mxu0 0
  %1638 = vmatpush1.bf16.msra.mxu0 %v1618
  %1639 = vmatprep.subr.bf16.mxu0 0
  %1640 = vmatpush1.bf16.msra.mxu0 %v1619
  %1641 = vmatprep.subr.bf16.mxu0 0
  %1642 = vmatpush1.bf16.msra.mxu0 %v1620
  %1643 = vmatprep.subr.bf16.mxu0 0
  %1644 = vmatpush1.bf16.msra.mxu0 %v1621
  %1645 = vmatprep.subr.bf16.mxu0 0
  %1646 = vmatpush1.bf16.msra.mxu0 %v1622
  %1647 = vmatprep.subr.bf16.mxu0 0
  %1648 = vmatpush1.bf16.msra.mxu0 0
  %1649 = vmatprep.subr.bf16.mxu0 0
  %1650 = vmatpush1.bf16.msra.mxu0 0
  %1651 = vmatprep.subr.bf16.mxu0 0
  %1652 = vmatpush1.bf16.msra.mxu0 0
  %1653 = vmatprep.subr.bf16.mxu0 0
  %1654 = vmatpush1.bf16.msra.mxu0 0
  %1655 = vmatprep.subr.bf16.mxu0 0
  %1656 = vmatpush1.bf16.msra.mxu0 0
  %1657 = vmatprep.subr.bf16.mxu0 0
  %1658 = vmatpush1.bf16.msra.mxu0 0
  %1659 = vmatprep.subr.bf16.mxu0 0
  %1660 = vmatpush1.bf16.msra.mxu0 0
  %1661 = vmatprep.subr.bf16.mxu0 0
  %1662 = vmatpush1.bf16.msra.mxu0 0
  %1663 = vmatprep.mubr.bf16.mxu0 0
  %1664 = vmatmul.mubr.bf16.gmra.mrb[0].mxu0 %v1577
  %v1665 = vpop.f32.mrb[0].mxu0
  %v1666 = vadd.f32 %v1582, %v1665
  %v1667 = vpop.f32.mrb[0].mxu0
  %v1668 = vpop.f32.mrb[0].mxu0
  %v1669 = vadd.f32 %v1582, %v1668
  %v1670 = vpop.f32.mrb[0].mxu0
  %1671 = vmatprep.mubr.bf16.mxu0 0
  %1672 = vmatmul.mubr.bf16.gmra.mrb[0].mxu0 %v1578
  %v1673 = vpop.f32.mrb[0].mxu0
  %v1674 = vadd.f32 %v1582, %v1673
  %v1675 = vpop.f32.mrb[0].mxu0
  %v1676 = vpop.f32.mrb[0].mxu0
  %v1677 = vadd.f32 %v1582, %v1676
  %v1678 = vpop.f32.mrb[0].mxu0
  %1679 = vdwg.mxu0
  %v1680 = vadd.f32 %v1380, %v1666
  %v1681 = vadd.f32 %v1381, %v1669
  %v1682 = vadd.f32 %v1382, %v1674
  %v1683 = vadd.f32 %v1383, %v1677
  %v1684 = vsel %vm65, %v1680, 0.0
  %1685 = vadd.xlane.f32.xlu0 %v1684
  %v1686 = vpop.xlane.xlu0 %1685
  %v1687 = vsel %vm65, %v1681, 0.0
  %1688 = vadd.xlane.f32.xlu0 %v1687
  %v1689 = vpop.xlane.xlu0 %1688
  %v1690 = vsel %vm65, %v1682, 0.0
  %1691 = vadd.xlane.f32.xlu0 %v1690
  %v1692 = vpop.xlane.xlu0 %1691
  %v1693 = vsel %vm65, %v1683, 0.0
  %1694 = vadd.xlane.f32.xlu0 %v1693
  %v1695 = vpop.xlane.xlu0 %1694
  %v1696 = vmul.f32 %v1686, %v78
  %v1697 = vmul.f32 %v1689, %v78
  %v1698 = vmul.f32 %v1692, %v78
  %v1699 = vmul.f32 %v1695, %v78
  %v1700 = vsub.f32 %v1680, %v1696
  %v1701 = vsub.f32 %v1681, %v1697
  %v1702 = vsub.f32 %v1682, %v1698
  %v1703 = vsub.f32 %v1683, %v1699
  %v1704 = vmul.f32 %v1700, %v1700
  %v1705 = vmul.f32 %v1701, %v1701
  %v1706 = vmul.f32 %v1702, %v1702
  %v1707 = vmul.f32 %v1703, %v1703
  %v1708 = vsel %vm65, %v1704, 0.0
  %1709 = vadd.xlane.f32.xlu0 %v1708
  %v1710 = vpop.xlane.xlu0 %1709
  %v1711 = vsel %vm65, %v1705, 0.0
  %1712 = vadd.xlane.f32.xlu0 %v1711
  %v1713 = vpop.xlane.xlu0 %1712
  %v1714 = vsel %vm65, %v1706, 0.0
  %1715 = vadd.xlane.f32.xlu0 %v1714
  %v1716 = vpop.xlane.xlu0 %1715
  %v1717 = vsel %vm65, %v1707, 0.0
  %1718 = vadd.xlane.f32.xlu0 %v1717
  %v1719 = vpop.xlane.xlu0 %1718
  %v1720 = vmul.f32 %v1710, %v78
  %v1721 = vmul.f32 %v1713, %v78
  %v1722 = vmul.f32 %v1716, %v78
  %v1723 = vmul.f32 %v1719, %v78
  %v1724 = vadd.f32 %v1720, 1e-07
  %v1725 = vadd.f32 %v1721, 1e-07
  %v1726 = vadd.f32 %v1722, 1e-07
  %v1727 = vadd.f32 %v1723, 1e-07
  %v1728 = vrsqrt.pop %v1724
  %v1729 = vrsqrt.pop %v1725
  %v1730 = vrsqrt.pop %v1726
  %v1731 = vrsqrt.pop %v1727
  %v1732 = vmul.f32 %v1700, %v1728
  %v1733 = vmul.f32 %v1701, %v1729
  %v1734 = vmul.f32 %v1702, %v1730
  %v1735 = vmul.f32 %v1703, %v1731
  %v1736 = vlaneseq
  %v1737 = vshrl.u32 %v1736, 7
  %v1738 = vsub.s32 1, %v1737
  %v1739 = vrot.slane %v59, %v1738
  %v1740 = vmul.f32 %v1732, %v1739
  %v1741 = vmul.f32 %v1733, %v1739
  %v1742 = vmul.f32 %v1734, %v1739
  %v1743 = vmul.f32 %v1735, %v1739
  %v1744 = vlaneseq
  %v1745 = vshrl.u32 %v1744, 7
  %v1746 = vsub.s32 2, %v1745
  %v1747 = vrot.slane %v59, %v1746
  %v1748 = vadd.f32 %v1740, %v1747
  %v1749 = vadd.f32 %v1741, %v1747
  %v1750 = vadd.f32 %v1742, %v1747
  %v1751 = vadd.f32 %v1743, %v1747
  %s1752 = scalar_lea.vmem %s6, 32
  %v1753 = vld [vmem:[%s1752] sm:$0xf]
  %v1754 = vld [vmem:[%s1752 + $0x4] sm:$0xf]
  %v1755 = vld [vmem:[%s1752 + $0x8] sm:$0xf]
  %v1756 = vld [vmem:[%s1752 + $0xc] sm:$0xf]
  %v1757 = vld [vmem:[%s1752 + $0x10] sm:$0xf]
  %v1758 = vld [vmem:[%s1752 + $0x14] sm:$0xf]
  %v1759 = vld [vmem:[%s1752 + $0x18] sm:$0xf]
  %v1760 = vld [vmem:[%s1752 + $0x1c] sm:$0xf]
  %s1761 = scalar_lea.vmem %s7, 32
  %v1762 = vld [vmem:[%s1761] sm:$0xf]
  %v1763 = vld [vmem:[%s1761 + $0x4] sm:$0xf]
  %v1764 = vld [vmem:[%s1761 + $0x8] sm:$0xf]
  %v1765 = vld [vmem:[%s1761 + $0xc] sm:$0xf]
  %v1766 = vld [vmem:[%s1761 + $0x10] sm:$0xf]
  %v1767 = vld [vmem:[%s1761 + $0x14] sm:$0xf]
  %v1768 = vld [vmem:[%s1761 + $0x18] sm:$0xf]
  %v1769 = vld [vmem:[%s1761 + $0x1c] sm:$0xf]
  %s1770 = scalar_lea.vmem %s8, 32
  %v1771 = vld [vmem:[%s1770] sm:$0xf]
  %v1772 = vld [vmem:[%s1770 + $0x4] sm:$0xf]
  %v1773 = vld [vmem:[%s1770 + $0x8] sm:$0xf]
  %v1774 = vld [vmem:[%s1770 + $0xc] sm:$0xf]
  %v1775 = vld [vmem:[%s1770 + $0x10] sm:$0xf]
  %v1776 = vld [vmem:[%s1770 + $0x14] sm:$0xf]
  %v1777 = vld [vmem:[%s1770 + $0x18] sm:$0xf]
  %v1778 = vld [vmem:[%s1770 + $0x1c] sm:$0xf]
  %s1779 = scalar_lea.vmem %s9, 32
  %v1780 = vld [vmem:[%s1779] sm:$0xf]
  %v1781 = vld [vmem:[%s1779 + $0x4] sm:$0xf]
  %v1782 = vld [vmem:[%s1779 + $0x8] sm:$0xf]
  %v1783 = vld [vmem:[%s1779 + $0xc] sm:$0xf]
  %v1784 = vld [vmem:[%s1779 + $0x10] sm:$0xf]
  %v1785 = vld [vmem:[%s1779 + $0x14] sm:$0xf]
  %v1786 = vld [vmem:[%s1779 + $0x18] sm:$0xf]
  %v1787 = vld [vmem:[%s1779 + $0x1c] sm:$0xf]
  %s1788 = scalar_lea.vmem %s10, 32
  %v1789 = vld [vmem:[%s1788] sm:$0xf]
  %v1790 = vld [vmem:[%s1788 + $0x4] sm:$0xf]
  %v1791 = vld [vmem:[%s1788 + $0x8] sm:$0xf]
  %v1792 = vld [vmem:[%s1788 + $0xc] sm:$0xf]
  %v1793 = vld [vmem:[%s1788 + $0x10] sm:$0xf]
  %v1794 = vld [vmem:[%s1788 + $0x14] sm:$0xf]
  %v1795 = vld [vmem:[%s1788 + $0x18] sm:$0xf]
  %v1796 = vld [vmem:[%s1788 + $0x1c] sm:$0xf]
  %s1797 = scalar_lea.vmem %s11, 64
  %v1798 = vld [vmem:[%s1797] sm:$0xf]
  %v1799 = vld [vmem:[%s1797 + $0x4] sm:$0xf]
  %v1800 = vld [vmem:[%s1797 + $0x8] sm:$0xf]
  %v1801 = vld [vmem:[%s1797 + $0xc] sm:$0xf]
  %v1802 = vld [vmem:[%s1797 + $0x10] sm:$0xf]
  %v1803 = vld [vmem:[%s1797 + $0x14] sm:$0xf]
  %v1804 = vld [vmem:[%s1797 + $0x18] sm:$0xf]
  %v1805 = vld [vmem:[%s1797 + $0x1c] sm:$0xf]
  %v1806 = vld [vmem:[%s1797 + $0x20] sm:$0xf]
  %v1807 = vld [vmem:[%s1797 + $0x24] sm:$0xf]
  %v1808 = vld [vmem:[%s1797 + $0x28] sm:$0xf]
  %v1809 = vld [vmem:[%s1797 + $0x2c] sm:$0xf]
  %v1810 = vld [vmem:[%s1797 + $0x30] sm:$0xf]
  %v1811 = vld [vmem:[%s1797 + $0x34] sm:$0xf]
  %v1812 = vld [vmem:[%s1797 + $0x38] sm:$0xf]
  %v1813 = vld [vmem:[%s1797 + $0x3c] sm:$0xf]
  %v1814 = vpack.c.bf16 %v1749, %v1748
  %v1815 = vpack.c.bf16 %v1751, %v1750
  %v1816 = vlaneseq
  %v1817 = vshrl.u32 %v1816, 7
  %v1818 = vsub.s32 3, %v1817
  %v1819 = vrot.slane %v59, %v1818
  %v1828 = vunpack.c.l.b16 %v1753
  %v1829 = vunpack.c.l.b16 %v1754
  %v1830 = vunpack.c.l.b16 %v1755
  %v1831 = vunpack.c.l.b16 %v1756
  %v1832 = vunpack.c.l.b16 %v1757
  %v1833 = vunpack.c.l.b16 %v1758
  %v1834 = vunpack.c.l.b16 %v1759
  %v1835 = vunpack.c.l.b16 %v1760
  %v1836 = vpack.c.b16 %v1829, %v1828
  %v1837 = vpack.c.b16 %v1831, %v1830
  %v1838 = vpack.c.b16 %v1833, %v1832
  %v1839 = vpack.c.b16 %v1835, %v1834
  %v1845 = vsel %vm65, %v1814, 0
  %v1848 = vsel %vm65, %v1815, 0
  %1850 = vmatprep.subr.bf16.mxu0 0
  %1851 = vmatpush1.bf16.msra.mxu0 %v1836
  %1852 = vmatprep.subr.bf16.mxu0 0
  %1853 = vmatpush1.bf16.msra.mxu0 %v1837
  %1854 = vmatprep.subr.bf16.mxu0 0
  %1855 = vmatpush1.bf16.msra.mxu0 %v1838
  %1856 = vmatprep.subr.bf16.mxu0 0
  %1857 = vmatpush1.bf16.msra.mxu0 %v1839
  %1858 = vmatprep.subr.bf16.mxu0 0
  %1859 = vmatpush1.bf16.msra.mxu0 0
  %1860 = vmatprep.subr.bf16.mxu0 0
  %1861 = vmatpush1.bf16.msra.mxu0 0
  %1862 = vmatprep.subr.bf16.mxu0 0
  %1863 = vmatpush1.bf16.msra.mxu0 0
  %1864 = vmatprep.subr.bf16.mxu0 0
  %1865 = vmatpush1.bf16.msra.mxu0 0
  %1866 = vmatprep.subr.bf16.mxu0 0
  %1867 = vmatpush1.bf16.msra.mxu0 0
  %1868 = vmatprep.subr.bf16.mxu0 0
  %1869 = vmatpush1.bf16.msra.mxu0 0
  %1870 = vmatprep.subr.bf16.mxu0 0
  %1871 = vmatpush1.bf16.msra.mxu0 0
  %1872 = vmatprep.subr.bf16.mxu0 0
  %1873 = vmatpush1.bf16.msra.mxu0 0
  %1874 = vmatprep.subr.bf16.mxu0 0
  %1875 = vmatpush1.bf16.msra.mxu0 0
  %1876 = vmatprep.subr.bf16.mxu0 0
  %1877 = vmatpush1.bf16.msra.mxu0 0
  %1878 = vmatprep.subr.bf16.mxu0 0
  %1879 = vmatpush1.bf16.msra.mxu0 0
  %1880 = vmatprep.subr.bf16.mxu0 0
  %1881 = vmatpush1.bf16.msra.mxu0 0
  %1882 = vmatprep.mubr.bf16.mxu0 0
  %1883 = vmatmul.mubr.bf16.gmra.mrb[0].mxu0 %v1845
  %v1884 = vpop.f32.mrb[0].mxu0
  %v1885 = vadd.f32 %v1819, %v1884
  %v1886 = vpop.f32.mrb[0].mxu0
  %v1887 = vpop.f32.mrb[0].mxu0
  %v1888 = vadd.f32 %v1819, %v1887
  %v1889 = vpop.f32.mrb[0].mxu0
  %1890 = vmatprep.mubr.bf16.mxu0 0
  %1891 = vmatmul.mubr.bf16.gmra.mrb[0].mxu0 %v1848
  %v1892 = vpop.f32.mrb[0].mxu0
  %v1893 = vadd.f32 %v1819, %v1892
  %v1894 = vpop.f32.mrb[0].mxu0
  %v1895 = vpop.f32.mrb[0].mxu0
  %v1896 = vadd.f32 %v1819, %v1895
  %v1897 = vpop.f32.mrb[0].mxu0
  %1898 = vdwg.mxu0
  %v1899 = vlaneseq
  %v1900 = vshrl.u32 %v1899, 7
  %v1901 = vsub.s32 4, %v1900
  %v1902 = vrot.slane %v59, %v1901
  %v1911 = vunpack.c.l.b16 %v1762
  %v1912 = vunpack.c.l.b16 %v1763
  %v1913 = vunpack.c.l.b16 %v1764
  %v1914 = vunpack.c.l.b16 %v1765
  %v1915 = vunpack.c.l.b16 %v1766
  %v1916 = vunpack.c.l.b16 %v1767
  %v1917 = vunpack.c.l.b16 %v1768
  %v1918 = vunpack.c.l.b16 %v1769
  %v1919 = vpack.c.b16 %v1912, %v1911
  %v1920 = vpack.c.b16 %v1914, %v1913
  %v1921 = vpack.c.b16 %v1916, %v1915
  %v1922 = vpack.c.b16 %v1918, %v1917
  %1927 = vmatprep.subr.bf16.mxu0 0
  %1928 = vmatpush1.bf16.msra.mxu0 %v1919
  %1929 = vmatprep.subr.bf16.mxu0 0
  %1930 = vmatpush1.bf16.msra.mxu0 %v1920
  %1931 = vmatprep.subr.bf16.mxu0 0
  %1932 = vmatpush1.bf16.msra.mxu0 %v1921
  %1933 = vmatprep.subr.bf16.mxu0 0
  %1934 = vmatpush1.bf16.msra.mxu0 %v1922
  %1935 = vmatprep.subr.bf16.mxu0 0
  %1936 = vmatpush1.bf16.msra.mxu0 0
  %1937 = vmatprep.subr.bf16.mxu0 0
  %1938 = vmatpush1.bf16.msra.mxu0 0
  %1939 = vmatprep.subr.bf16.mxu0 0
  %1940 = vmatpush1.bf16.msra.mxu0 0
  %1941 = vmatprep.subr.bf16.mxu0 0
  %1942 = vmatpush1.bf16.msra.mxu0 0
  %1943 = vmatprep.subr.bf16.mxu0 0
  %1944 = vmatpush1.bf16.msra.mxu0 0
  %1945 = vmatprep.subr.bf16.mxu0 0
  %1946 = vmatpush1.bf16.msra.mxu0 0
  %1947 = vmatprep.subr.bf16.mxu0 0
  %1948 = vmatpush1.bf16.msra.mxu0 0
  %1949 = vmatprep.subr.bf16.mxu0 0
  %1950 = vmatpush1.bf16.msra.mxu0 0
  %1951 = vmatprep.subr.bf16.mxu0 0
  %1952 = vmatpush1.bf16.msra.mxu0 0
  %1953 = vmatprep.subr.bf16.mxu0 0
  %1954 = vmatpush1.bf16.msra.mxu0 0
  %1955 = vmatprep.subr.bf16.mxu0 0
  %1956 = vmatpush1.bf16.msra.mxu0 0
  %1957 = vmatprep.subr.bf16.mxu0 0
  %1958 = vmatpush1.bf16.msra.mxu0 0
  %1959 = vmatprep.mubr.bf16.mxu0 0
  %1960 = vmatmul.mubr.bf16.gmra.mrb[0].mxu0 %v1845
  %v1961 = vpop.f32.mrb[0].mxu0
  %v1962 = vadd.f32 %v1902, %v1961
  %v1963 = vpop.f32.mrb[0].mxu0
  %v1964 = vpop.f32.mrb[0].mxu0
  %v1965 = vadd.f32 %v1902, %v1964
  %v1966 = vpop.f32.mrb[0].mxu0
  %1967 = vmatprep.mubr.bf16.mxu0 0
  %1968 = vmatmul.mubr.bf16.gmra.mrb[0].mxu0 %v1848
  %v1969 = vpop.f32.mrb[0].mxu0
  %v1970 = vadd.f32 %v1902, %v1969
  %v1971 = vpop.f32.mrb[0].mxu0
  %v1972 = vpop.f32.mrb[0].mxu0
  %v1973 = vadd.f32 %v1902, %v1972
  %v1974 = vpop.f32.mrb[0].mxu0
  %1975 = vdwg.mxu0
  %v1976 = vlaneseq
  %v1977 = vshrl.u32 %v1976, 7
  %v1978 = vsub.s32 5, %v1977
  %v1979 = vrot.slane %v59, %v1978
  %v1988 = vunpack.c.l.b16 %v1771
  %v1989 = vunpack.c.l.b16 %v1772
  %v1990 = vunpack.c.l.b16 %v1773
  %v1991 = vunpack.c.l.b16 %v1774
  %v1992 = vunpack.c.l.b16 %v1775
  %v1993 = vunpack.c.l.b16 %v1776
  %v1994 = vunpack.c.l.b16 %v1777
  %v1995 = vunpack.c.l.b16 %v1778
  %v1996 = vpack.c.b16 %v1989, %v1988
  %v1997 = vpack.c.b16 %v1991, %v1990
  %v1998 = vpack.c.b16 %v1993, %v1992
  %v1999 = vpack.c.b16 %v1995, %v1994
  %2004 = vmatprep.subr.bf16.mxu0 0
  %2005 = vmatpush1.bf16.msra.mxu0 %v1996
  %2006 = vmatprep.subr.bf16.mxu0 0
  %2007 = vmatpush1.bf16.msra.mxu0 %v1997
  %2008 = vmatprep.subr.bf16.mxu0 0
  %2009 = vmatpush1.bf16.msra.mxu0 %v1998
  %2010 = vmatprep.subr.bf16.mxu0 0
  %2011 = vmatpush1.bf16.msra.mxu0 %v1999
  %2012 = vmatprep.subr.bf16.mxu0 0
  %2013 = vmatpush1.bf16.msra.mxu0 0
  %2014 = vmatprep.subr.bf16.mxu0 0
  %2015 = vmatpush1.bf16.msra.mxu0 0
  %2016 = vmatprep.subr.bf16.mxu0 0
  %2017 = vmatpush1.bf16.msra.mxu0 0
  %2018 = vmatprep.subr.bf16.mxu0 0
  %2019 = vmatpush1.bf16.msra.mxu0 0
  %2020 = vmatprep.subr.bf16.mxu0 0
  %2021 = vmatpush1.bf16.msra.mxu0 0
  %2022 = vmatprep.subr.bf16.mxu0 0
  %2023 = vmatpush1.bf16.msra.mxu0 0
  %2024 = vmatprep.subr.bf16.mxu0 0
  %2025 = vmatpush1.bf16.msra.mxu0 0
  %2026 = vmatprep.subr.bf16.mxu0 0
  %2027 = vmatpush1.bf16.msra.mxu0 0
  %2028 = vmatprep.subr.bf16.mxu0 0
  %2029 = vmatpush1.bf16.msra.mxu0 0
  %2030 = vmatprep.subr.bf16.mxu0 0
  %2031 = vmatpush1.bf16.msra.mxu0 0
  %2032 = vmatprep.subr.bf16.mxu0 0
  %2033 = vmatpush1.bf16.msra.mxu0 0
  %2034 = vmatprep.subr.bf16.mxu0 0
  %2035 = vmatpush1.bf16.msra.mxu0 0
  %2036 = vmatprep.mubr.bf16.mxu0 0
  %2037 = vmatmul.mubr.bf16.gmra.mrb[0].mxu0 %v1845
  %v2038 = vpop.f32.mrb[0].mxu0
  %v2039 = vadd.f32 %v1979, %v2038
  %v2040 = vpop.f32.mrb[0].mxu0
  %v2041 = vpop.f32.mrb[0].mxu0
  %v2042 = vadd.f32 %v1979, %v2041
  %v2043 = vpop.f32.mrb[0].mxu0
  %2044 = vmatprep.mubr.bf16.mxu0 0
  %2045 = vmatmul.mubr.bf16.gmra.mrb[0].mxu0 %v1848
  %v2046 = vpop.f32.mrb[0].mxu0
  %v2047 = vadd.f32 %v1979, %v2046
  %v2048 = vpop.f32.mrb[0].mxu0
  %v2049 = vpop.f32.mrb[0].mxu0
  %v2050 = vadd.f32 %v1979, %v2049
  %v2051 = vpop.f32.mrb[0].mxu0
  %2052 = vdwg.mxu0
  %v2053 = vpack.c.bf16 %v1888, %v1885
  %v2054 = vpack.c.bf16 %v1896, %v1893
  %v2055 = vpack.c.bf16 %v1965, %v1962
  %v2056 = vpack.c.bf16 %v1973, %v1970
  %v2057 = vpack.c.bf16 %v2042, %v2039
  %v2058 = vpack.c.bf16 %v2050, %v2047
  %v2060 = vsel %vm436, %v2053, 0
  %v2063 = vsel %vm436, %v2054, 0
  %v2066 = vsel %vm436, %v2055, 0
  %v2069 = vsel %vm436, %v2056, 0
  %2071 = vmatprep.subr.bf16.mxu0 0
  %2072 = vmatpush1.bf16.xpose.msra.mxu0 %v2066
  %2073 = vmatprep.subr.bf16.mxu0 0
  %2074 = vmatpush1.bf16.xpose.msra.mxu0 %v2069
  %2075 = vmatprep.subr.bf16.mxu0 0
  %2076 = vmatpush1.bf16.xpose.msra.mxu0 0
  %2077 = vmatprep.subr.bf16.mxu0 0
  %2078 = vmatpush1.bf16.xpose.msra.mxu0 0
  %2079 = vmatprep.subr.bf16.mxu0 0
  %2080 = vmatpush1.bf16.xpose.msra.mxu0 0
  %2081 = vmatprep.subr.bf16.mxu0 0
  %2082 = vmatpush1.bf16.xpose.msra.mxu0 0
  %2083 = vmatprep.subr.bf16.mxu0 0
  %2084 = vmatpush1.bf16.xpose.msra.mxu0 0
  %2085 = vmatprep.subr.bf16.mxu0 0
  %2086 = vmatpush1.bf16.xpose.msra.mxu0 0
  %2087 = vmatprep.subr.bf16.mxu0 0
  %2088 = vmatpush1.bf16.xpose.msra.mxu0 0
  %2089 = vmatprep.subr.bf16.mxu0 0
  %2090 = vmatpush1.bf16.xpose.msra.mxu0 0
  %2091 = vmatprep.subr.bf16.mxu0 0
  %2092 = vmatpush1.bf16.xpose.msra.mxu0 0
  %2093 = vmatprep.subr.bf16.mxu0 0
  %2094 = vmatpush1.bf16.xpose.msra.mxu0 0
  %2095 = vmatprep.subr.bf16.mxu0 0
  %2096 = vmatpush1.bf16.xpose.msra.mxu0 0
  %2097 = vmatprep.subr.bf16.mxu0 0
  %2098 = vmatpush1.bf16.xpose.msra.mxu0 0
  %2099 = vmatprep.subr.bf16.mxu0 0
  %2100 = vmatpush1.bf16.xpose.msra.mxu0 0
  %2101 = vmatprep.subr.bf16.mxu0 0
  %2102 = vmatpush1.bf16.xpose.msra.mxu0 0
  %2103 = vmatprep.mubr.bf16.mxu0 0
  %2104 = vmatmul.mubr.bf16.gmra.mrb[0].mxu0 %v2060
  %v2105 = vpop.f32.mrb[0].mxu0
  %v2106 = vadd.f32 0.0, %v2105
  %v2107 = vpop.f32.mrb[0].mxu0
  %v2108 = vpop.f32.mrb[0].mxu0
  %v2109 = vadd.f32 0.0, %v2108
  %v2110 = vpop.f32.mrb[0].mxu0
  %2111 = vmatprep.mubr.bf16.mxu0 0
  %2112 = vmatmul.mubr.bf16.gmra.mrb[0].mxu0 %v2063
  %v2113 = vpop.f32.mrb[0].mxu0
  %v2114 = vadd.f32 0.0, %v2113
  %v2115 = vpop.f32.mrb[0].mxu0
  %v2116 = vpop.f32.mrb[0].mxu0
  %v2117 = vadd.f32 0.0, %v2116
  %v2118 = vpop.f32.mrb[0].mxu0
  %2119 = vdwg.mxu0
  %v2120 = vmul.f32 %v2106, 0.25
  %v2121 = vmul.f32 %v2109, 0.25
  %v2122 = vmul.f32 %v2114, 0.25
  %v2123 = vmul.f32 %v2117, 0.25
  %v2124 = vadd.f32 %v2120, %v54
  %v2125 = vadd.f32 %v2121, %v55
  %v2126 = vadd.f32 %v2122, %v56
  %v2127 = vadd.f32 %v2123, %v57
  %v2128 = vsel %vm506, %v2124, -inf
  %2129 = vmax.xlane.f32.xlu0 %v2128
  %v2130 = vpop.xlane.xlu0 %2129
  %v2131 = vsel %vm506, %v2125, -inf
  %2132 = vmax.xlane.f32.xlu0 %v2131
  %v2133 = vpop.xlane.xlu0 %2132
  %v2134 = vsel %vm506, %v2126, -inf
  %2135 = vmax.xlane.f32.xlu0 %v2134
  %v2136 = vpop.xlane.xlu0 %2135
  %v2137 = vsel %vm506, %v2127, -inf
  %2138 = vmax.xlane.f32.xlu0 %v2137
  %v2139 = vpop.xlane.xlu0 %2138
  %v2140 = vsub.f32 %v2124, %v2130
  %v2141 = vsub.f32 %v2125, %v2133
  %v2142 = vsub.f32 %v2126, %v2136
  %v2143 = vsub.f32 %v2127, %v2139
  %v2144 = vmul.f32 %v2140, 1.442695
  %v2145 = vpow.pop %v2144
  %v2146 = vmul.f32 %v2141, 1.442695
  %v2147 = vpow.pop %v2146
  %v2148 = vmul.f32 %v2142, 1.442695
  %v2149 = vpow.pop %v2148
  %v2150 = vmul.f32 %v2143, 1.442695
  %v2151 = vpow.pop %v2150
  %v2152 = vsel %vm506, %v2145, 0.0
  %2153 = vadd.xlane.f32.xlu0 %v2152
  %v2154 = vpop.xlane.xlu0 %2153
  %v2155 = vsel %vm506, %v2147, 0.0
  %2156 = vadd.xlane.f32.xlu0 %v2155
  %v2157 = vpop.xlane.xlu0 %2156
  %v2158 = vsel %vm506, %v2149, 0.0
  %2159 = vadd.xlane.f32.xlu0 %v2158
  %v2160 = vpop.xlane.xlu0 %2159
  %v2161 = vsel %vm506, %v2151, 0.0
  %2162 = vadd.xlane.f32.xlu0 %v2161
  %v2163 = vpop.xlane.xlu0 %2162
  %v2164 = vrcp.pop %v2154
  %v2165 = vmul.f32 %v2145, %v2164
  %v2166 = vrcp.pop %v2157
  %v2167 = vmul.f32 %v2147, %v2166
  %v2168 = vrcp.pop %v2160
  %v2169 = vmul.f32 %v2149, %v2168
  %v2170 = vrcp.pop %v2163
  %v2171 = vmul.f32 %v2151, %v2170
  %v2172 = vpack.c.bf16 %v2167, %v2165
  %v2173 = vpack.c.bf16 %v2171, %v2169
  %v2175 = vsel %vm506, %v2172, 0
  %v2178 = vsel %vm506, %v2173, 0
  %2180 = vmatprep.subr.bf16.mxu0 0
  %2181 = vmatpush1.bf16.msra.mxu0 %v2057
  %2182 = vmatprep.subr.bf16.mxu0 0
  %2183 = vmatpush1.bf16.msra.mxu0 %v2058
  %2184 = vmatprep.subr.bf16.mxu0 0
  %2185 = vmatpush1.bf16.msra.mxu0 0
  %2186 = vmatprep.subr.bf16.mxu0 0
  %2187 = vmatpush1.bf16.msra.mxu0 0
  %2188 = vmatprep.subr.bf16.mxu0 0
  %2189 = vmatpush1.bf16.msra.mxu0 0
  %2190 = vmatprep.subr.bf16.mxu0 0
  %2191 = vmatpush1.bf16.msra.mxu0 0
  %2192 = vmatprep.subr.bf16.mxu0 0
  %2193 = vmatpush1.bf16.msra.mxu0 0
  %2194 = vmatprep.subr.bf16.mxu0 0
  %2195 = vmatpush1.bf16.msra.mxu0 0
  %2196 = vmatprep.subr.bf16.mxu0 0
  %2197 = vmatpush1.bf16.msra.mxu0 0
  %2198 = vmatprep.subr.bf16.mxu0 0
  %2199 = vmatpush1.bf16.msra.mxu0 0
  %2200 = vmatprep.subr.bf16.mxu0 0
  %2201 = vmatpush1.bf16.msra.mxu0 0
  %2202 = vmatprep.subr.bf16.mxu0 0
  %2203 = vmatpush1.bf16.msra.mxu0 0
  %2204 = vmatprep.subr.bf16.mxu0 0
  %2205 = vmatpush1.bf16.msra.mxu0 0
  %2206 = vmatprep.subr.bf16.mxu0 0
  %2207 = vmatpush1.bf16.msra.mxu0 0
  %2208 = vmatprep.subr.bf16.mxu0 0
  %2209 = vmatpush1.bf16.msra.mxu0 0
  %2210 = vmatprep.subr.bf16.mxu0 0
  %2211 = vmatpush1.bf16.msra.mxu0 0
  %2212 = vmatprep.mubr.bf16.mxu0 0
  %2213 = vmatmul.mubr.bf16.gmra.mrb[0].mxu0 %v2175
  %v2214 = vpop.f32.mrb[0].mxu0
  %v2215 = vadd.f32 0.0, %v2214
  %v2216 = vpop.f32.mrb[0].mxu0
  %v2217 = vpop.f32.mrb[0].mxu0
  %v2218 = vadd.f32 0.0, %v2217
  %v2219 = vpop.f32.mrb[0].mxu0
  %2220 = vmatprep.mubr.bf16.mxu0 0
  %2221 = vmatmul.mubr.bf16.gmra.mrb[0].mxu0 %v2178
  %v2222 = vpop.f32.mrb[0].mxu0
  %v2223 = vadd.f32 0.0, %v2222
  %v2224 = vpop.f32.mrb[0].mxu0
  %v2225 = vpop.f32.mrb[0].mxu0
  %v2226 = vadd.f32 0.0, %v2225
  %v2227 = vpop.f32.mrb[0].mxu0
  %2228 = vdwg.mxu0
  %2231 = vrot.lane.b32.xlu0 %v2053, 112
  %v2232 = vpop.permute.xlu0 %2231
  %2233 = vrot.lane.b32.xlu0 %v2054, 112
  %v2234 = vpop.permute.xlu0 %2233
  %2237 = vrot.lane.b32.xlu0 %v2055, 112
  %v2238 = vpop.permute.xlu0 %2237
  %2239 = vrot.lane.b32.xlu0 %v2056, 112
  %v2240 = vpop.permute.xlu0 %2239
  %v2242 = vsel %vm436, %v2232, 0
  %v2245 = vsel %vm436, %v2234, 0
  %v2248 = vsel %vm436, %v2238, 0
  %v2251 = vsel %vm436, %v2240, 0
  %2253 = vmatprep.subr.bf16.mxu0 0
  %2254 = vmatpush1.bf16.xpose.msra.mxu0 %v2248
  %2255 = vmatprep.subr.bf16.mxu0 0
  %2256 = vmatpush1.bf16.xpose.msra.mxu0 %v2251
  %2257 = vmatprep.subr.bf16.mxu0 0
  %2258 = vmatpush1.bf16.xpose.msra.mxu0 0
  %2259 = vmatprep.subr.bf16.mxu0 0
  %2260 = vmatpush1.bf16.xpose.msra.mxu0 0
  %2261 = vmatprep.subr.bf16.mxu0 0
  %2262 = vmatpush1.bf16.xpose.msra.mxu0 0
  %2263 = vmatprep.subr.bf16.mxu0 0
  %2264 = vmatpush1.bf16.xpose.msra.mxu0 0
  %2265 = vmatprep.subr.bf16.mxu0 0
  %2266 = vmatpush1.bf16.xpose.msra.mxu0 0
  %2267 = vmatprep.subr.bf16.mxu0 0
  %2268 = vmatpush1.bf16.xpose.msra.mxu0 0
  %2269 = vmatprep.subr.bf16.mxu0 0
  %2270 = vmatpush1.bf16.xpose.msra.mxu0 0
  %2271 = vmatprep.subr.bf16.mxu0 0
  %2272 = vmatpush1.bf16.xpose.msra.mxu0 0
  %2273 = vmatprep.subr.bf16.mxu0 0
  %2274 = vmatpush1.bf16.xpose.msra.mxu0 0
  %2275 = vmatprep.subr.bf16.mxu0 0
  %2276 = vmatpush1.bf16.xpose.msra.mxu0 0
  %2277 = vmatprep.subr.bf16.mxu0 0
  %2278 = vmatpush1.bf16.xpose.msra.mxu0 0
  %2279 = vmatprep.subr.bf16.mxu0 0
  %2280 = vmatpush1.bf16.xpose.msra.mxu0 0
  %2281 = vmatprep.subr.bf16.mxu0 0
  %2282 = vmatpush1.bf16.xpose.msra.mxu0 0
  %2283 = vmatprep.subr.bf16.mxu0 0
  %2284 = vmatpush1.bf16.xpose.msra.mxu0 0
  %2285 = vmatprep.mubr.bf16.mxu0 0
  %2286 = vmatmul.mubr.bf16.gmra.mrb[0].mxu0 %v2242
  %v2287 = vpop.f32.mrb[0].mxu0
  %v2288 = vadd.f32 0.0, %v2287
  %v2289 = vpop.f32.mrb[0].mxu0
  %v2290 = vpop.f32.mrb[0].mxu0
  %v2291 = vadd.f32 0.0, %v2290
  %v2292 = vpop.f32.mrb[0].mxu0
  %2293 = vmatprep.mubr.bf16.mxu0 0
  %2294 = vmatmul.mubr.bf16.gmra.mrb[0].mxu0 %v2245
  %v2295 = vpop.f32.mrb[0].mxu0
  %v2296 = vadd.f32 0.0, %v2295
  %v2297 = vpop.f32.mrb[0].mxu0
  %v2298 = vpop.f32.mrb[0].mxu0
  %v2299 = vadd.f32 0.0, %v2298
  %v2300 = vpop.f32.mrb[0].mxu0
  %2301 = vdwg.mxu0
  %v2302 = vmul.f32 %v2288, 0.25
  %v2303 = vmul.f32 %v2291, 0.25
  %v2304 = vmul.f32 %v2296, 0.25
  %v2305 = vmul.f32 %v2299, 0.25
  %v2306 = vadd.f32 %v2302, %v54
  %v2307 = vadd.f32 %v2303, %v55
  %v2308 = vadd.f32 %v2304, %v56
  %v2309 = vadd.f32 %v2305, %v57
  %v2310 = vsel %vm506, %v2306, -inf
  %2311 = vmax.xlane.f32.xlu0 %v2310
  %v2312 = vpop.xlane.xlu0 %2311
  %v2313 = vsel %vm506, %v2307, -inf
  %2314 = vmax.xlane.f32.xlu0 %v2313
  %v2315 = vpop.xlane.xlu0 %2314
  %v2316 = vsel %vm506, %v2308, -inf
  %2317 = vmax.xlane.f32.xlu0 %v2316
  %v2318 = vpop.xlane.xlu0 %2317
  %v2319 = vsel %vm506, %v2309, -inf
  %2320 = vmax.xlane.f32.xlu0 %v2319
  %v2321 = vpop.xlane.xlu0 %2320
  %v2322 = vsub.f32 %v2306, %v2312
  %v2323 = vsub.f32 %v2307, %v2315
  %v2324 = vsub.f32 %v2308, %v2318
  %v2325 = vsub.f32 %v2309, %v2321
  %v2326 = vmul.f32 %v2322, 1.442695
  %v2327 = vpow.pop %v2326
  %v2328 = vmul.f32 %v2323, 1.442695
  %v2329 = vpow.pop %v2328
  %v2330 = vmul.f32 %v2324, 1.442695
  %v2331 = vpow.pop %v2330
  %v2332 = vmul.f32 %v2325, 1.442695
  %v2333 = vpow.pop %v2332
  %v2334 = vsel %vm506, %v2327, 0.0
  %2335 = vadd.xlane.f32.xlu0 %v2334
  %v2336 = vpop.xlane.xlu0 %2335
  %v2337 = vsel %vm506, %v2329, 0.0
  %2338 = vadd.xlane.f32.xlu0 %v2337
  %v2339 = vpop.xlane.xlu0 %2338
  %v2340 = vsel %vm506, %v2331, 0.0
  %2341 = vadd.xlane.f32.xlu0 %v2340
  %v2342 = vpop.xlane.xlu0 %2341
  %v2343 = vsel %vm506, %v2333, 0.0
  %2344 = vadd.xlane.f32.xlu0 %v2343
  %v2345 = vpop.xlane.xlu0 %2344
  %v2346 = vrcp.pop %v2336
  %v2347 = vmul.f32 %v2327, %v2346
  %v2348 = vrcp.pop %v2339
  %v2349 = vmul.f32 %v2329, %v2348
  %v2350 = vrcp.pop %v2342
  %v2351 = vmul.f32 %v2331, %v2350
  %v2352 = vrcp.pop %v2345
  %v2353 = vmul.f32 %v2333, %v2352
  %v2354 = vpack.c.bf16 %v2349, %v2347
  %v2355 = vpack.c.bf16 %v2353, %v2351
  %2358 = vrot.lane.b32.xlu0 %v2057, 112
  %v2359 = vpop.permute.xlu0 %2358
  %2360 = vrot.lane.b32.xlu0 %v2058, 112
  %v2361 = vpop.permute.xlu0 %2360
  %v2365 = vsel %vm506, %v2354, 0
  %v2368 = vsel %vm506, %v2355, 0
  %2370 = vmatprep.subr.bf16.mxu0 0
  %2371 = vmatpush1.bf16.msra.mxu0 %v2359
  %2372 = vmatprep.subr.bf16.mxu0 0
  %2373 = vmatpush1.bf16.msra.mxu0 %v2361
  %2374 = vmatprep.subr.bf16.mxu0 0
  %2375 = vmatpush1.bf16.msra.mxu0 0
  %2376 = vmatprep.subr.bf16.mxu0 0
  %2377 = vmatpush1.bf16.msra.mxu0 0
  %2378 = vmatprep.subr.bf16.mxu0 0
  %2379 = vmatpush1.bf16.msra.mxu0 0
  %2380 = vmatprep.subr.bf16.mxu0 0
  %2381 = vmatpush1.bf16.msra.mxu0 0
  %2382 = vmatprep.subr.bf16.mxu0 0
  %2383 = vmatpush1.bf16.msra.mxu0 0
  %2384 = vmatprep.subr.bf16.mxu0 0
  %2385 = vmatpush1.bf16.msra.mxu0 0
  %2386 = vmatprep.subr.bf16.mxu0 0
  %2387 = vmatpush1.bf16.msra.mxu0 0
  %2388 = vmatprep.subr.bf16.mxu0 0
  %2389 = vmatpush1.bf16.msra.mxu0 0
  %2390 = vmatprep.subr.bf16.mxu0 0
  %2391 = vmatpush1.bf16.msra.mxu0 0
  %2392 = vmatprep.subr.bf16.mxu0 0
  %2393 = vmatpush1.bf16.msra.mxu0 0
  %2394 = vmatprep.subr.bf16.mxu0 0
  %2395 = vmatpush1.bf16.msra.mxu0 0
  %2396 = vmatprep.subr.bf16.mxu0 0
  %2397 = vmatpush1.bf16.msra.mxu0 0
  %2398 = vmatprep.subr.bf16.mxu0 0
  %2399 = vmatpush1.bf16.msra.mxu0 0
  %2400 = vmatprep.subr.bf16.mxu0 0
  %2401 = vmatpush1.bf16.msra.mxu0 0
  %2402 = vmatprep.mubr.bf16.mxu0 0
  %2403 = vmatmul.mubr.bf16.gmra.mrb[0].mxu0 %v2365
  %v2404 = vpop.f32.mrb[0].mxu0
  %v2405 = vadd.f32 0.0, %v2404
  %v2406 = vpop.f32.mrb[0].mxu0
  %v2407 = vpop.f32.mrb[0].mxu0
  %v2408 = vadd.f32 0.0, %v2407
  %v2409 = vpop.f32.mrb[0].mxu0
  %2410 = vmatprep.mubr.bf16.mxu0 0
  %2411 = vmatmul.mubr.bf16.gmra.mrb[0].mxu0 %v2368
  %v2412 = vpop.f32.mrb[0].mxu0
  %v2413 = vadd.f32 0.0, %v2412
  %v2414 = vpop.f32.mrb[0].mxu0
  %v2415 = vpop.f32.mrb[0].mxu0
  %v2416 = vadd.f32 0.0, %v2415
  %v2417 = vpop.f32.mrb[0].mxu0
  %2418 = vdwg.mxu0
  %2419 = vrot.lane.b32.xlu0 %v2053, 96
  %v2420 = vpop.permute.xlu0 %2419
  %2421 = vrot.lane.b32.xlu0 %v2054, 96
  %v2422 = vpop.permute.xlu0 %2421
  %2423 = vrot.lane.b32.xlu0 %v2055, 96
  %v2424 = vpop.permute.xlu0 %2423
  %2425 = vrot.lane.b32.xlu0 %v2056, 96
  %v2426 = vpop.permute.xlu0 %2425
  %v2428 = vsel %vm436, %v2420, 0
  %v2431 = vsel %vm436, %v2422, 0
  %v2434 = vsel %vm436, %v2424, 0
  %v2437 = vsel %vm436, %v2426, 0
  %2439 = vmatprep.subr.bf16.mxu0 0
  %2440 = vmatpush1.bf16.xpose.msra.mxu0 %v2434
  %2441 = vmatprep.subr.bf16.mxu0 0
  %2442 = vmatpush1.bf16.xpose.msra.mxu0 %v2437
  %2443 = vmatprep.subr.bf16.mxu0 0
  %2444 = vmatpush1.bf16.xpose.msra.mxu0 0
  %2445 = vmatprep.subr.bf16.mxu0 0
  %2446 = vmatpush1.bf16.xpose.msra.mxu0 0
  %2447 = vmatprep.subr.bf16.mxu0 0
  %2448 = vmatpush1.bf16.xpose.msra.mxu0 0
  %2449 = vmatprep.subr.bf16.mxu0 0
  %2450 = vmatpush1.bf16.xpose.msra.mxu0 0
  %2451 = vmatprep.subr.bf16.mxu0 0
  %2452 = vmatpush1.bf16.xpose.msra.mxu0 0
  %2453 = vmatprep.subr.bf16.mxu0 0
  %2454 = vmatpush1.bf16.xpose.msra.mxu0 0
  %2455 = vmatprep.subr.bf16.mxu0 0
  %2456 = vmatpush1.bf16.xpose.msra.mxu0 0
  %2457 = vmatprep.subr.bf16.mxu0 0
  %2458 = vmatpush1.bf16.xpose.msra.mxu0 0
  %2459 = vmatprep.subr.bf16.mxu0 0
  %2460 = vmatpush1.bf16.xpose.msra.mxu0 0
  %2461 = vmatprep.subr.bf16.mxu0 0
  %2462 = vmatpush1.bf16.xpose.msra.mxu0 0
  %2463 = vmatprep.subr.bf16.mxu0 0
  %2464 = vmatpush1.bf16.xpose.msra.mxu0 0
  %2465 = vmatprep.subr.bf16.mxu0 0
  %2466 = vmatpush1.bf16.xpose.msra.mxu0 0
  %2467 = vmatprep.subr.bf16.mxu0 0
  %2468 = vmatpush1.bf16.xpose.msra.mxu0 0
  %2469 = vmatprep.subr.bf16.mxu0 0
  %2470 = vmatpush1.bf16.xpose.msra.mxu0 0
  %2471 = vmatprep.mubr.bf16.mxu0 0
  %2472 = vmatmul.mubr.bf16.gmra.mrb[0].mxu0 %v2428
  %v2473 = vpop.f32.mrb[0].mxu0
  %v2474 = vadd.f32 0.0, %v2473
  %v2475 = vpop.f32.mrb[0].mxu0
  %v2476 = vpop.f32.mrb[0].mxu0
  %v2477 = vadd.f32 0.0, %v2476
  %v2478 = vpop.f32.mrb[0].mxu0
  %2479 = vmatprep.mubr.bf16.mxu0 0
  %2480 = vmatmul.mubr.bf16.gmra.mrb[0].mxu0 %v2431
  %v2481 = vpop.f32.mrb[0].mxu0
  %v2482 = vadd.f32 0.0, %v2481
  %v2483 = vpop.f32.mrb[0].mxu0
  %v2484 = vpop.f32.mrb[0].mxu0
  %v2485 = vadd.f32 0.0, %v2484
  %v2486 = vpop.f32.mrb[0].mxu0
  %2487 = vdwg.mxu0
  %v2488 = vmul.f32 %v2474, 0.25
  %v2489 = vmul.f32 %v2477, 0.25
  %v2490 = vmul.f32 %v2482, 0.25
  %v2491 = vmul.f32 %v2485, 0.25
  %v2492 = vadd.f32 %v2488, %v54
  %v2493 = vadd.f32 %v2489, %v55
  %v2494 = vadd.f32 %v2490, %v56
  %v2495 = vadd.f32 %v2491, %v57
  %v2496 = vsel %vm506, %v2492, -inf
  %2497 = vmax.xlane.f32.xlu0 %v2496
  %v2498 = vpop.xlane.xlu0 %2497
  %v2499 = vsel %vm506, %v2493, -inf
  %2500 = vmax.xlane.f32.xlu0 %v2499
  %v2501 = vpop.xlane.xlu0 %2500
  %v2502 = vsel %vm506, %v2494, -inf
  %2503 = vmax.xlane.f32.xlu0 %v2502
  %v2504 = vpop.xlane.xlu0 %2503
  %v2505 = vsel %vm506, %v2495, -inf
  %2506 = vmax.xlane.f32.xlu0 %v2505
  %v2507 = vpop.xlane.xlu0 %2506
  %v2508 = vsub.f32 %v2492, %v2498
  %v2509 = vsub.f32 %v2493, %v2501
  %v2510 = vsub.f32 %v2494, %v2504
  %v2511 = vsub.f32 %v2495, %v2507
  %v2512 = vmul.f32 %v2508, 1.442695
  %v2513 = vpow.pop %v2512
  %v2514 = vmul.f32 %v2509, 1.442695
  %v2515 = vpow.pop %v2514
  %v2516 = vmul.f32 %v2510, 1.442695
  %v2517 = vpow.pop %v2516
  %v2518 = vmul.f32 %v2511, 1.442695
  %v2519 = vpow.pop %v2518
  %v2520 = vsel %vm506, %v2513, 0.0
  %2521 = vadd.xlane.f32.xlu0 %v2520
  %v2522 = vpop.xlane.xlu0 %2521
  %v2523 = vsel %vm506, %v2515, 0.0
  %2524 = vadd.xlane.f32.xlu0 %v2523
  %v2525 = vpop.xlane.xlu0 %2524
  %v2526 = vsel %vm506, %v2517, 0.0
  %2527 = vadd.xlane.f32.xlu0 %v2526
  %v2528 = vpop.xlane.xlu0 %2527
  %v2529 = vsel %vm506, %v2519, 0.0
  %2530 = vadd.xlane.f32.xlu0 %v2529
  %v2531 = vpop.xlane.xlu0 %2530
  %v2532 = vrcp.pop %v2522
  %v2533 = vmul.f32 %v2513, %v2532
  %v2534 = vrcp.pop %v2525
  %v2535 = vmul.f32 %v2515, %v2534
  %v2536 = vrcp.pop %v2528
  %v2537 = vmul.f32 %v2517, %v2536
  %v2538 = vrcp.pop %v2531
  %v2539 = vmul.f32 %v2519, %v2538
  %v2540 = vpack.c.bf16 %v2535, %v2533
  %v2541 = vpack.c.bf16 %v2539, %v2537
  %2542 = vrot.lane.b32.xlu0 %v2057, 96
  %v2543 = vpop.permute.xlu0 %2542
  %2544 = vrot.lane.b32.xlu0 %v2058, 96
  %v2545 = vpop.permute.xlu0 %2544
  %v2549 = vsel %vm506, %v2540, 0
  %v2552 = vsel %vm506, %v2541, 0
  %2554 = vmatprep.subr.bf16.mxu0 0
  %2555 = vmatpush1.bf16.msra.mxu0 %v2543
  %2556 = vmatprep.subr.bf16.mxu0 0
  %2557 = vmatpush1.bf16.msra.mxu0 %v2545
  %2558 = vmatprep.subr.bf16.mxu0 0
  %2559 = vmatpush1.bf16.msra.mxu0 0
  %2560 = vmatprep.subr.bf16.mxu0 0
  %2561 = vmatpush1.bf16.msra.mxu0 0
  %2562 = vmatprep.subr.bf16.mxu0 0
  %2563 = vmatpush1.bf16.msra.mxu0 0
  %2564 = vmatprep.subr.bf16.mxu0 0
  %2565 = vmatpush1.bf16.msra.mxu0 0
  %2566 = vmatprep.subr.bf16.mxu0 0
  %2567 = vmatpush1.bf16.msra.mxu0 0
  %2568 = vmatprep.subr.bf16.mxu0 0
  %2569 = vmatpush1.bf16.msra.mxu0 0
  %2570 = vmatprep.subr.bf16.mxu0 0
  %2571 = vmatpush1.bf16.msra.mxu0 0
  %2572 = vmatprep.subr.bf16.mxu0 0
  %2573 = vmatpush1.bf16.msra.mxu0 0
  %2574 = vmatprep.subr.bf16.mxu0 0
  %2575 = vmatpush1.bf16.msra.mxu0 0
  %2576 = vmatprep.subr.bf16.mxu0 0
  %2577 = vmatpush1.bf16.msra.mxu0 0
  %2578 = vmatprep.subr.bf16.mxu0 0
  %2579 = vmatpush1.bf16.msra.mxu0 0
  %2580 = vmatprep.subr.bf16.mxu0 0
  %2581 = vmatpush1.bf16.msra.mxu0 0
  %2582 = vmatprep.subr.bf16.mxu0 0
  %2583 = vmatpush1.bf16.msra.mxu0 0
  %2584 = vmatprep.subr.bf16.mxu0 0
  %2585 = vmatpush1.bf16.msra.mxu0 0
  %2586 = vmatprep.mubr.bf16.mxu0 0
  %2587 = vmatmul.mubr.bf16.gmra.mrb[0].mxu0 %v2549
  %v2588 = vpop.f32.mrb[0].mxu0
  %v2589 = vadd.f32 0.0, %v2588
  %v2590 = vpop.f32.mrb[0].mxu0
  %v2591 = vpop.f32.mrb[0].mxu0
  %v2592 = vadd.f32 0.0, %v2591
  %v2593 = vpop.f32.mrb[0].mxu0
  %2594 = vmatprep.mubr.bf16.mxu0 0
  %2595 = vmatmul.mubr.bf16.gmra.mrb[0].mxu0 %v2552
  %v2596 = vpop.f32.mrb[0].mxu0
  %v2597 = vadd.f32 0.0, %v2596
  %v2598 = vpop.f32.mrb[0].mxu0
  %v2599 = vpop.f32.mrb[0].mxu0
  %v2600 = vadd.f32 0.0, %v2599
  %v2601 = vpop.f32.mrb[0].mxu0
  %2602 = vdwg.mxu0
  %2603 = vrot.lane.b32.xlu0 %v2053, 80
  %v2604 = vpop.permute.xlu0 %2603
  %2605 = vrot.lane.b32.xlu0 %v2054, 80
  %v2606 = vpop.permute.xlu0 %2605
  %2607 = vrot.lane.b32.xlu0 %v2055, 80
  %v2608 = vpop.permute.xlu0 %2607
  %2609 = vrot.lane.b32.xlu0 %v2056, 80
  %v2610 = vpop.permute.xlu0 %2609
  %v2612 = vsel %vm436, %v2604, 0
  %v2615 = vsel %vm436, %v2606, 0
  %v2618 = vsel %vm436, %v2608, 0
  %v2621 = vsel %vm436, %v2610, 0
  %2623 = vmatprep.subr.bf16.mxu0 0
  %2624 = vmatpush1.bf16.xpose.msra.mxu0 %v2618
  %2625 = vmatprep.subr.bf16.mxu0 0
  %2626 = vmatpush1.bf16.xpose.msra.mxu0 %v2621
  %2627 = vmatprep.subr.bf16.mxu0 0
  %2628 = vmatpush1.bf16.xpose.msra.mxu0 0
  %2629 = vmatprep.subr.bf16.mxu0 0
  %2630 = vmatpush1.bf16.xpose.msra.mxu0 0
  %2631 = vmatprep.subr.bf16.mxu0 0
  %2632 = vmatpush1.bf16.xpose.msra.mxu0 0
  %2633 = vmatprep.subr.bf16.mxu0 0
  %2634 = vmatpush1.bf16.xpose.msra.mxu0 0
  %2635 = vmatprep.subr.bf16.mxu0 0
  %2636 = vmatpush1.bf16.xpose.msra.mxu0 0
  %2637 = vmatprep.subr.bf16.mxu0 0
  %2638 = vmatpush1.bf16.xpose.msra.mxu0 0
  %2639 = vmatprep.subr.bf16.mxu0 0
  %2640 = vmatpush1.bf16.xpose.msra.mxu0 0
  %2641 = vmatprep.subr.bf16.mxu0 0
  %2642 = vmatpush1.bf16.xpose.msra.mxu0 0
  %2643 = vmatprep.subr.bf16.mxu0 0
  %2644 = vmatpush1.bf16.xpose.msra.mxu0 0
  %2645 = vmatprep.subr.bf16.mxu0 0
  %2646 = vmatpush1.bf16.xpose.msra.mxu0 0
  %2647 = vmatprep.subr.bf16.mxu0 0
  %2648 = vmatpush1.bf16.xpose.msra.mxu0 0
  %2649 = vmatprep.subr.bf16.mxu0 0
  %2650 = vmatpush1.bf16.xpose.msra.mxu0 0
  %2651 = vmatprep.subr.bf16.mxu0 0
  %2652 = vmatpush1.bf16.xpose.msra.mxu0 0
  %2653 = vmatprep.subr.bf16.mxu0 0
  %2654 = vmatpush1.bf16.xpose.msra.mxu0 0
  %2655 = vmatprep.mubr.bf16.mxu0 0
  %2656 = vmatmul.mubr.bf16.gmra.mrb[0].mxu0 %v2612
  %v2657 = vpop.f32.mrb[0].mxu0
  %v2658 = vadd.f32 0.0, %v2657
  %v2659 = vpop.f32.mrb[0].mxu0
  %v2660 = vpop.f32.mrb[0].mxu0
  %v2661 = vadd.f32 0.0, %v2660
  %v2662 = vpop.f32.mrb[0].mxu0
  %2663 = vmatprep.mubr.bf16.mxu0 0
  %2664 = vmatmul.mubr.bf16.gmra.mrb[0].mxu0 %v2615
  %v2665 = vpop.f32.mrb[0].mxu0
  %v2666 = vadd.f32 0.0, %v2665
  %v2667 = vpop.f32.mrb[0].mxu0
  %v2668 = vpop.f32.mrb[0].mxu0
  %v2669 = vadd.f32 0.0, %v2668
  %v2670 = vpop.f32.mrb[0].mxu0
  %2671 = vdwg.mxu0
  %v2672 = vmul.f32 %v2658, 0.25
  %v2673 = vmul.f32 %v2661, 0.25
  %v2674 = vmul.f32 %v2666, 0.25
  %v2675 = vmul.f32 %v2669, 0.25
  %v2676 = vadd.f32 %v2672, %v54
  %v2677 = vadd.f32 %v2673, %v55
  %v2678 = vadd.f32 %v2674, %v56
  %v2679 = vadd.f32 %v2675, %v57
  %v2680 = vsel %vm506, %v2676, -inf
  %2681 = vmax.xlane.f32.xlu0 %v2680
  %v2682 = vpop.xlane.xlu0 %2681
  %v2683 = vsel %vm506, %v2677, -inf
  %2684 = vmax.xlane.f32.xlu0 %v2683
  %v2685 = vpop.xlane.xlu0 %2684
  %v2686 = vsel %vm506, %v2678, -inf
  %2687 = vmax.xlane.f32.xlu0 %v2686
  %v2688 = vpop.xlane.xlu0 %2687
  %v2689 = vsel %vm506, %v2679, -inf
  %2690 = vmax.xlane.f32.xlu0 %v2689
  %v2691 = vpop.xlane.xlu0 %2690
  %v2692 = vsub.f32 %v2676, %v2682
  %v2693 = vsub.f32 %v2677, %v2685
  %v2694 = vsub.f32 %v2678, %v2688
  %v2695 = vsub.f32 %v2679, %v2691
  %v2696 = vmul.f32 %v2692, 1.442695
  %v2697 = vpow.pop %v2696
  %v2698 = vmul.f32 %v2693, 1.442695
  %v2699 = vpow.pop %v2698
  %v2700 = vmul.f32 %v2694, 1.442695
  %v2701 = vpow.pop %v2700
  %v2702 = vmul.f32 %v2695, 1.442695
  %v2703 = vpow.pop %v2702
  %v2704 = vsel %vm506, %v2697, 0.0
  %2705 = vadd.xlane.f32.xlu0 %v2704
  %v2706 = vpop.xlane.xlu0 %2705
  %v2707 = vsel %vm506, %v2699, 0.0
  %2708 = vadd.xlane.f32.xlu0 %v2707
  %v2709 = vpop.xlane.xlu0 %2708
  %v2710 = vsel %vm506, %v2701, 0.0
  %2711 = vadd.xlane.f32.xlu0 %v2710
  %v2712 = vpop.xlane.xlu0 %2711
  %v2713 = vsel %vm506, %v2703, 0.0
  %2714 = vadd.xlane.f32.xlu0 %v2713
  %v2715 = vpop.xlane.xlu0 %2714
  %v2716 = vrcp.pop %v2706
  %v2717 = vmul.f32 %v2697, %v2716
  %v2718 = vrcp.pop %v2709
  %v2719 = vmul.f32 %v2699, %v2718
  %v2720 = vrcp.pop %v2712
  %v2721 = vmul.f32 %v2701, %v2720
  %v2722 = vrcp.pop %v2715
  %v2723 = vmul.f32 %v2703, %v2722
  %v2724 = vpack.c.bf16 %v2719, %v2717
  %v2725 = vpack.c.bf16 %v2723, %v2721
  %2726 = vrot.lane.b32.xlu0 %v2057, 80
  %v2727 = vpop.permute.xlu0 %2726
  %2728 = vrot.lane.b32.xlu0 %v2058, 80
  %v2729 = vpop.permute.xlu0 %2728
  %v2733 = vsel %vm506, %v2724, 0
  %v2736 = vsel %vm506, %v2725, 0
  %2738 = vmatprep.subr.bf16.mxu0 0
  %2739 = vmatpush1.bf16.msra.mxu0 %v2727
  %2740 = vmatprep.subr.bf16.mxu0 0
  %2741 = vmatpush1.bf16.msra.mxu0 %v2729
  %2742 = vmatprep.subr.bf16.mxu0 0
  %2743 = vmatpush1.bf16.msra.mxu0 0
  %2744 = vmatprep.subr.bf16.mxu0 0
  %2745 = vmatpush1.bf16.msra.mxu0 0
  %2746 = vmatprep.subr.bf16.mxu0 0
  %2747 = vmatpush1.bf16.msra.mxu0 0
  %2748 = vmatprep.subr.bf16.mxu0 0
  %2749 = vmatpush1.bf16.msra.mxu0 0
  %2750 = vmatprep.subr.bf16.mxu0 0
  %2751 = vmatpush1.bf16.msra.mxu0 0
  %2752 = vmatprep.subr.bf16.mxu0 0
  %2753 = vmatpush1.bf16.msra.mxu0 0
  %2754 = vmatprep.subr.bf16.mxu0 0
  %2755 = vmatpush1.bf16.msra.mxu0 0
  %2756 = vmatprep.subr.bf16.mxu0 0
  %2757 = vmatpush1.bf16.msra.mxu0 0
  %2758 = vmatprep.subr.bf16.mxu0 0
  %2759 = vmatpush1.bf16.msra.mxu0 0
  %2760 = vmatprep.subr.bf16.mxu0 0
  %2761 = vmatpush1.bf16.msra.mxu0 0
  %2762 = vmatprep.subr.bf16.mxu0 0
  %2763 = vmatpush1.bf16.msra.mxu0 0
  %2764 = vmatprep.subr.bf16.mxu0 0
  %2765 = vmatpush1.bf16.msra.mxu0 0
  %2766 = vmatprep.subr.bf16.mxu0 0
  %2767 = vmatpush1.bf16.msra.mxu0 0
  %2768 = vmatprep.subr.bf16.mxu0 0
  %2769 = vmatpush1.bf16.msra.mxu0 0
  %2770 = vmatprep.mubr.bf16.mxu0 0
  %2771 = vmatmul.mubr.bf16.gmra.mrb[0].mxu0 %v2733
  %v2772 = vpop.f32.mrb[0].mxu0
  %v2773 = vadd.f32 0.0, %v2772
  %v2774 = vpop.f32.mrb[0].mxu0
  %v2775 = vpop.f32.mrb[0].mxu0
  %v2776 = vadd.f32 0.0, %v2775
  %v2777 = vpop.f32.mrb[0].mxu0
  %2778 = vmatprep.mubr.bf16.mxu0 0
  %2779 = vmatmul.mubr.bf16.gmra.mrb[0].mxu0 %v2736
  %v2780 = vpop.f32.mrb[0].mxu0
  %v2781 = vadd.f32 0.0, %v2780
  %v2782 = vpop.f32.mrb[0].mxu0
  %v2783 = vpop.f32.mrb[0].mxu0
  %v2784 = vadd.f32 0.0, %v2783
  %v2785 = vpop.f32.mrb[0].mxu0
  %2786 = vdwg.mxu0
  %2791 = vrot.lane.b32.xlu0 %v2405, 16
  %v2792 = vpop.permute.xlu0 %2791
  %2793 = vrot.lane.b32.xlu0 %v2408, 16
  %v2794 = vpop.permute.xlu0 %2793
  %2795 = vrot.lane.b32.xlu0 %v2413, 16
  %v2796 = vpop.permute.xlu0 %2795
  %2797 = vrot.lane.b32.xlu0 %v2416, 16
  %v2798 = vpop.permute.xlu0 %2797
  %2807 = vrot.lane.b32.xlu0 %v2589, 32
  %v2808 = vpop.permute.xlu0 %2807
  %2809 = vrot.lane.b32.xlu0 %v2592, 32
  %v2810 = vpop.permute.xlu0 %2809
  %2811 = vrot.lane.b32.xlu0 %v2597, 32
  %v2812 = vpop.permute.xlu0 %2811
  %2813 = vrot.lane.b32.xlu0 %v2600, 32
  %v2814 = vpop.permute.xlu0 %2813
  %2823 = vrot.lane.b32.xlu0 %v2773, 48
  %v2824 = vpop.permute.xlu0 %2823
  %2825 = vrot.lane.b32.xlu0 %v2776, 48
  %v2826 = vpop.permute.xlu0 %2825
  %2827 = vrot.lane.b32.xlu0 %v2781, 48
  %v2828 = vpop.permute.xlu0 %2827
  %2829 = vrot.lane.b32.xlu0 %v2784, 48
  %v2830 = vpop.permute.xlu0 %2829
  %v2835 = vsel %vm436, %v2215, %v2792
  %v2836 = vsel %vm436, %v2218, %v2794
  %v2837 = vsel %vm436, %v2223, %v2796
  %v2838 = vsel %vm436, %v2226, %v2798
  %v2839 = vsel %vm506, %v2835, %v2808
  %v2840 = vsel %vm506, %v2836, %v2810
  %v2841 = vsel %vm506, %v2837, %v2812
  %v2842 = vsel %vm506, %v2838, %v2814
  %v2843 = vsel %vm1222, %v2839, %v2824
  %v2844 = vsel %vm1222, %v2840, %v2826
  %v2845 = vsel %vm1222, %v2841, %v2828
  %v2846 = vsel %vm1222, %v2842, %v2830
  %v2847 = vpack.c.bf16 %v2844, %v2843
  %v2848 = vpack.c.bf16 %v2846, %v2845
  %v2849 = vlaneseq
  %v2850 = vshrl.u32 %v2849, 7
  %v2851 = vsub.s32 6, %v2850
  %v2852 = vrot.slane %v59, %v2851
  %v2861 = vunpack.c.l.b16 %v1780
  %v2862 = vunpack.c.l.b16 %v1781
  %v2863 = vunpack.c.l.b16 %v1782
  %v2864 = vunpack.c.l.b16 %v1783
  %v2865 = vunpack.c.l.b16 %v1784
  %v2866 = vunpack.c.l.b16 %v1785
  %v2867 = vunpack.c.l.b16 %v1786
  %v2868 = vunpack.c.l.b16 %v1787
  %v2869 = vpack.c.b16 %v2862, %v2861
  %v2870 = vpack.c.b16 %v2864, %v2863
  %v2871 = vpack.c.b16 %v2866, %v2865
  %v2872 = vpack.c.b16 %v2868, %v2867
  %v2878 = vsel %vm65, %v2847, 0
  %v2881 = vsel %vm65, %v2848, 0
  %2883 = vmatprep.subr.bf16.mxu0 0
  %2884 = vmatpush1.bf16.msra.mxu0 %v2869
  %2885 = vmatprep.subr.bf16.mxu0 0
  %2886 = vmatpush1.bf16.msra.mxu0 %v2870
  %2887 = vmatprep.subr.bf16.mxu0 0
  %2888 = vmatpush1.bf16.msra.mxu0 %v2871
  %2889 = vmatprep.subr.bf16.mxu0 0
  %2890 = vmatpush1.bf16.msra.mxu0 %v2872
  %2891 = vmatprep.subr.bf16.mxu0 0
  %2892 = vmatpush1.bf16.msra.mxu0 0
  %2893 = vmatprep.subr.bf16.mxu0 0
  %2894 = vmatpush1.bf16.msra.mxu0 0
  %2895 = vmatprep.subr.bf16.mxu0 0
  %2896 = vmatpush1.bf16.msra.mxu0 0
  %2897 = vmatprep.subr.bf16.mxu0 0
  %2898 = vmatpush1.bf16.msra.mxu0 0
  %2899 = vmatprep.subr.bf16.mxu0 0
  %2900 = vmatpush1.bf16.msra.mxu0 0
  %2901 = vmatprep.subr.bf16.mxu0 0
  %2902 = vmatpush1.bf16.msra.mxu0 0
  %2903 = vmatprep.subr.bf16.mxu0 0
  %2904 = vmatpush1.bf16.msra.mxu0 0
  %2905 = vmatprep.subr.bf16.mxu0 0
  %2906 = vmatpush1.bf16.msra.mxu0 0
  %2907 = vmatprep.subr.bf16.mxu0 0
  %2908 = vmatpush1.bf16.msra.mxu0 0
  %2909 = vmatprep.subr.bf16.mxu0 0
  %2910 = vmatpush1.bf16.msra.mxu0 0
  %2911 = vmatprep.subr.bf16.mxu0 0
  %2912 = vmatpush1.bf16.msra.mxu0 0
  %2913 = vmatprep.subr.bf16.mxu0 0
  %2914 = vmatpush1.bf16.msra.mxu0 0
  %2915 = vmatprep.mubr.bf16.mxu0 0
  %2916 = vmatmul.mubr.bf16.gmra.mrb[0].mxu0 %v2878
  %v2917 = vpop.f32.mrb[0].mxu0
  %v2918 = vadd.f32 %v2852, %v2917
  %v2919 = vpop.f32.mrb[0].mxu0
  %v2920 = vpop.f32.mrb[0].mxu0
  %v2921 = vadd.f32 %v2852, %v2920
  %v2922 = vpop.f32.mrb[0].mxu0
  %2923 = vmatprep.mubr.bf16.mxu0 0
  %2924 = vmatmul.mubr.bf16.gmra.mrb[0].mxu0 %v2881
  %v2925 = vpop.f32.mrb[0].mxu0
  %v2926 = vadd.f32 %v2852, %v2925
  %v2927 = vpop.f32.mrb[0].mxu0
  %v2928 = vpop.f32.mrb[0].mxu0
  %v2929 = vadd.f32 %v2852, %v2928
  %v2930 = vpop.f32.mrb[0].mxu0
  %2931 = vdwg.mxu0
  %v2932 = vadd.f32 %v1748, %v2918
  %v2933 = vadd.f32 %v1749, %v2921
  %v2934 = vadd.f32 %v1750, %v2926
  %v2935 = vadd.f32 %v1751, %v2929
  %v2936 = vsel %vm65, %v2932, 0.0
  %2937 = vadd.xlane.f32.xlu0 %v2936
  %v2938 = vpop.xlane.xlu0 %2937
  %v2939 = vsel %vm65, %v2933, 0.0
  %2940 = vadd.xlane.f32.xlu0 %v2939
  %v2941 = vpop.xlane.xlu0 %2940
  %v2942 = vsel %vm65, %v2934, 0.0
  %2943 = vadd.xlane.f32.xlu0 %v2942
  %v2944 = vpop.xlane.xlu0 %2943
  %v2945 = vsel %vm65, %v2935, 0.0
  %2946 = vadd.xlane.f32.xlu0 %v2945
  %v2947 = vpop.xlane.xlu0 %2946
  %v2948 = vmul.f32 %v2938, %v78
  %v2949 = vmul.f32 %v2941, %v78
  %v2950 = vmul.f32 %v2944, %v78
  %v2951 = vmul.f32 %v2947, %v78
  %v2952 = vsub.f32 %v2932, %v2948
  %v2953 = vsub.f32 %v2933, %v2949
  %v2954 = vsub.f32 %v2934, %v2950
  %v2955 = vsub.f32 %v2935, %v2951
  %v2956 = vmul.f32 %v2952, %v2952
  %v2957 = vmul.f32 %v2953, %v2953
  %v2958 = vmul.f32 %v2954, %v2954
  %v2959 = vmul.f32 %v2955, %v2955
  %v2960 = vsel %vm65, %v2956, 0.0
  %2961 = vadd.xlane.f32.xlu0 %v2960
  %v2962 = vpop.xlane.xlu0 %2961
  %v2963 = vsel %vm65, %v2957, 0.0
  %2964 = vadd.xlane.f32.xlu0 %v2963
  %v2965 = vpop.xlane.xlu0 %2964
  %v2966 = vsel %vm65, %v2958, 0.0
  %2967 = vadd.xlane.f32.xlu0 %v2966
  %v2968 = vpop.xlane.xlu0 %2967
  %v2969 = vsel %vm65, %v2959, 0.0
  %2970 = vadd.xlane.f32.xlu0 %v2969
  %v2971 = vpop.xlane.xlu0 %2970
  %v2972 = vmul.f32 %v2962, %v78
  %v2973 = vmul.f32 %v2965, %v78
  %v2974 = vmul.f32 %v2968, %v78
  %v2975 = vmul.f32 %v2971, %v78
  %v2976 = vadd.f32 %v2972, 1e-07
  %v2977 = vadd.f32 %v2973, 1e-07
  %v2978 = vadd.f32 %v2974, 1e-07
  %v2979 = vadd.f32 %v2975, 1e-07
  %v2980 = vrsqrt.pop %v2976
  %v2981 = vrsqrt.pop %v2977
  %v2982 = vrsqrt.pop %v2978
  %v2983 = vrsqrt.pop %v2979
  %v2984 = vmul.f32 %v2952, %v2980
  %v2985 = vmul.f32 %v2953, %v2981
  %v2986 = vmul.f32 %v2954, %v2982
  %v2987 = vmul.f32 %v2955, %v2983
  %v2988 = vlaneseq
  %v2989 = vshrl.u32 %v2988, 7
  %v2990 = vsub.s32 7, %v2989
  %v2991 = vrot.slane %v59, %v2990
  %v2992 = vmul.f32 %v2984, %v2991
  %v2993 = vmul.f32 %v2985, %v2991
  %v2994 = vmul.f32 %v2986, %v2991
  %v2995 = vmul.f32 %v2987, %v2991
  %v2996 = vlaneseq
  %v2997 = vshrl.u32 %v2996, 7
  %v2998 = vsub.s32 0, %v2997
  %v2999 = vrot.slane %v60, %v2998
  %v3000 = vadd.f32 %v2992, %v2999
  %v3001 = vadd.f32 %v2993, %v2999
  %v3002 = vadd.f32 %v2994, %v2999
  %v3003 = vadd.f32 %v2995, %v2999
  %v3004 = vpack.c.bf16 %v3001, %v3000
  %v3005 = vpack.c.bf16 %v3003, %v3002
  %v3006 = vlaneseq
  %v3007 = vshrl.u32 %v3006, 7
  %v3008 = vsub.s32 1, %v3007
  %v3009 = vrot.slane %v63, %v3008
  %v3018 = vunpack.c.l.b16 %v1789
  %v3019 = vunpack.c.l.b16 %v1790
  %v3020 = vunpack.c.l.b16 %v1791
  %v3021 = vunpack.c.l.b16 %v1792
  %v3022 = vunpack.c.l.b16 %v1793
  %v3023 = vunpack.c.l.b16 %v1794
  %v3024 = vunpack.c.l.b16 %v1795
  %v3025 = vunpack.c.l.b16 %v1796
  %v3026 = vpack.c.b16 %v3019, %v3018
  %v3027 = vpack.c.b16 %v3021, %v3020
  %v3028 = vpack.c.b16 %v3023, %v3022
  %v3029 = vpack.c.b16 %v3025, %v3024
  %v3035 = vsel %vm65, %v3004, 0
  %v3038 = vsel %vm65, %v3005, 0
  %3040 = vmatprep.subr.bf16.mxu0 0
  %3041 = vmatpush1.bf16.msra.mxu0 %v3026
  %3042 = vmatprep.subr.bf16.mxu0 0
  %3043 = vmatpush1.bf16.msra.mxu0 %v3027
  %3044 = vmatprep.subr.bf16.mxu0 0
  %3045 = vmatpush1.bf16.msra.mxu0 %v3028
  %3046 = vmatprep.subr.bf16.mxu0 0
  %3047 = vmatpush1.bf16.msra.mxu0 %v3029
  %3048 = vmatprep.subr.bf16.mxu0 0
  %3049 = vmatpush1.bf16.msra.mxu0 0
  %3050 = vmatprep.subr.bf16.mxu0 0
  %3051 = vmatpush1.bf16.msra.mxu0 0
  %3052 = vmatprep.subr.bf16.mxu0 0
  %3053 = vmatpush1.bf16.msra.mxu0 0
  %3054 = vmatprep.subr.bf16.mxu0 0
  %3055 = vmatpush1.bf16.msra.mxu0 0
  %3056 = vmatprep.subr.bf16.mxu0 0
  %3057 = vmatpush1.bf16.msra.mxu0 0
  %3058 = vmatprep.subr.bf16.mxu0 0
  %3059 = vmatpush1.bf16.msra.mxu0 0
  %3060 = vmatprep.subr.bf16.mxu0 0
  %3061 = vmatpush1.bf16.msra.mxu0 0
  %3062 = vmatprep.subr.bf16.mxu0 0
  %3063 = vmatpush1.bf16.msra.mxu0 0
  %3064 = vmatprep.subr.bf16.mxu0 0
  %3065 = vmatpush1.bf16.msra.mxu0 0
  %3066 = vmatprep.subr.bf16.mxu0 0
  %3067 = vmatpush1.bf16.msra.mxu0 0
  %3068 = vmatprep.subr.bf16.mxu0 0
  %3069 = vmatpush1.bf16.msra.mxu0 0
  %3070 = vmatprep.subr.bf16.mxu0 0
  %3071 = vmatpush1.bf16.msra.mxu0 0
  %3072 = vmatprep.mubr.bf16.mxu0 0
  %3073 = vmatmul.mubr.bf16.gmra.mrb[0].mxu0 %v3035
  %v3074 = vpop.f32.mrb[0].mxu0
  %v3075 = vadd.f32 %v3009, %v3074
  %v3076 = vpop.f32.mrb[0].mxu0
  %v3077 = vpop.f32.mrb[0].mxu0
  %v3078 = vadd.f32 %v3009, %v3077
  %v3079 = vpop.f32.mrb[0].mxu0
  %3080 = vmatprep.mubr.bf16.mxu0 0
  %3081 = vmatmul.mubr.bf16.gmra.mrb[0].mxu0 %v3038
  %v3082 = vpop.f32.mrb[0].mxu0
  %v3083 = vadd.f32 %v3009, %v3082
  %v3084 = vpop.f32.mrb[0].mxu0
  %v3085 = vpop.f32.mrb[0].mxu0
  %v3086 = vadd.f32 %v3009, %v3085
  %v3087 = vpop.f32.mrb[0].mxu0
  %3088 = vdwg.mxu0
  %v3089 = vmul.f32 %v3075, 0.5
  %v3090 = vmul.f32 %v3078, 0.5
  %v3091 = vmul.f32 %v3083, 0.5
  %v3092 = vmul.f32 %v3086, 0.5
  %v3093 = vmul.f32 %v3075, 0.70710677
  %v3094 = vmul.f32 %v3078, 0.70710677
  %v3095 = vmul.f32 %v3083, 0.70710677
  %v3096 = vmul.f32 %v3086, 0.70710677
  %vm3097 = vcmp.ge.f32.partialorder %v3093, 0.0
  %vm3098 = vcmp.ge.f32.partialorder %v3094, 0.0
  %vm3099 = vcmp.ge.f32.partialorder %v3095, 0.0
  %vm3100 = vcmp.ge.f32.partialorder %v3096, 0.0
  %v3101 = vsel %vm3097, 1.0, -1.0
  %v3102 = vsel %vm3098, 1.0, -1.0
  %v3103 = vsel %vm3099, 1.0, -1.0
  %v3104 = vsel %vm3100, 1.0, -1.0
  %v3105 = vand.u32 2147483647, %v3093
  %v3106 = vand.u32 2147483647, %v3094
  %v3107 = vand.u32 2147483647, %v3095
  %v3108 = vand.u32 2147483647, %v3096
  %v3109 = vmul.f32 %v3105, 0.3275911
  %v3110 = vmul.f32 %v3106, 0.3275911
  %v3111 = vmul.f32 %v3107, 0.3275911
  %v3112 = vmul.f32 %v3108, 0.3275911
  %v3113 = vadd.f32 %v3109, 1.0
  %v3114 = vadd.f32 %v3110, 1.0
  %v3115 = vadd.f32 %v3111, 1.0
  %v3116 = vadd.f32 %v3112, 1.0
  %v3117 = vrcp.pop %v3113
  %v3118 = vmul.f32 1.0, %v3117
  %v3119 = vrcp.pop %v3114
  %v3120 = vmul.f32 1.0, %v3119
  %v3121 = vrcp.pop %v3115
  %v3122 = vmul.f32 1.0, %v3121
  %v3123 = vrcp.pop %v3116
  %v3124 = vmul.f32 1.0, %v3123
  %v3125 = vmul.f32 %v3118, 1.0614054
  %v3126 = vmul.f32 %v3120, 1.0614054
  %v3127 = vmul.f32 %v3122, 1.0614054
  %v3128 = vmul.f32 %v3124, 1.0614054
  %v3129 = vadd.f32 %v3125, -1.4531521
  %v3130 = vadd.f32 %v3126, -1.4531521
  %v3131 = vadd.f32 %v3127, -1.4531521
  %v3132 = vadd.f32 %v3128, -1.4531521
  %v3133 = vmul.f32 %v3129, %v3118
  %v3134 = vmul.f32 %v3130, %v3120
  %v3135 = vmul.f32 %v3131, %v3122
  %v3136 = vmul.f32 %v3132, %v3124
  %v3137 = vadd.f32 %v3133, 1.4214138
  %v3138 = vadd.f32 %v3134, 1.4214138
  %v3139 = vadd.f32 %v3135, 1.4214138
  %v3140 = vadd.f32 %v3136, 1.4214138
  %v3141 = vmul.f32 %v3137, %v3118
  %v3142 = vmul.f32 %v3138, %v3120
  %v3143 = vmul.f32 %v3139, %v3122
  %v3144 = vmul.f32 %v3140, %v3124
  %v3145 = vadd.f32 %v3141, -0.28449672
  %v3146 = vadd.f32 %v3142, -0.28449672
  %v3147 = vadd.f32 %v3143, -0.28449672
  %v3148 = vadd.f32 %v3144, -0.28449672
  %v3149 = vmul.f32 %v3145, %v3118
  %v3150 = vmul.f32 %v3146, %v3120
  %v3151 = vmul.f32 %v3147, %v3122
  %v3152 = vmul.f32 %v3148, %v3124
  %v3153 = vadd.f32 %v3149, 0.2548296
  %v3154 = vadd.f32 %v3150, 0.2548296
  %v3155 = vadd.f32 %v3151, 0.2548296
  %v3156 = vadd.f32 %v3152, 0.2548296
  %v3157 = vmul.f32 %v3153, %v3118
  %v3158 = vmul.f32 %v3154, %v3120
  %v3159 = vmul.f32 %v3155, %v3122
  %v3160 = vmul.f32 %v3156, %v3124
  %v3161 = vsub.f32 0.0, %v3105
  %v3162 = vsub.f32 0.0, %v3106
  %v3163 = vsub.f32 0.0, %v3107
  %v3164 = vsub.f32 0.0, %v3108
  %v3165 = vmul.f32 %v3161, %v3105
  %v3166 = vmul.f32 %v3162, %v3106
  %v3167 = vmul.f32 %v3163, %v3107
  %v3168 = vmul.f32 %v3164, %v3108
  %v3169 = vmul.f32 %v3165, 1.442695
  %v3170 = vpow.pop %v3169
  %v3171 = vmul.f32 %v3166, 1.442695
  %v3172 = vpow.pop %v3171
  %v3173 = vmul.f32 %v3167, 1.442695
  %v3174 = vpow.pop %v3173
  %v3175 = vmul.f32 %v3168, 1.442695
  %v3176 = vpow.pop %v3175
  %v3177 = vmul.f32 %v3157, %v3170
  %v3178 = vmul.f32 %v3158, %v3172
  %v3179 = vmul.f32 %v3159, %v3174
  %v3180 = vmul.f32 %v3160, %v3176
  %v3181 = vsub.f32 1.0, %v3177
  %v3182 = vsub.f32 1.0, %v3178
  %v3183 = vsub.f32 1.0, %v3179
  %v3184 = vsub.f32 1.0, %v3180
  %v3185 = vmul.f32 %v3101, %v3181
  %v3186 = vmul.f32 %v3102, %v3182
  %v3187 = vmul.f32 %v3103, %v3183
  %v3188 = vmul.f32 %v3104, %v3184
  %v3189 = vadd.f32 %v3185, 1.0
  %v3190 = vadd.f32 %v3186, 1.0
  %v3191 = vadd.f32 %v3187, 1.0
  %v3192 = vadd.f32 %v3188, 1.0
  %v3193 = vmul.f32 %v3089, %v3189
  %v3194 = vmul.f32 %v3090, %v3190
  %v3195 = vmul.f32 %v3091, %v3191
  %v3196 = vmul.f32 %v3092, %v3192
  %v3197 = vpack.c.bf16 %v3194, %v3193
  %v3198 = vpack.c.bf16 %v3196, %v3195
  %v3199 = vlaneseq
  %v3200 = vshrl.u32 %v3199, 7
  %v3201 = vsub.s32 1, %v3200
  %v3202 = vrot.slane %v60, %v3201
  %v3219 = vunpack.c.l.b16 %v1798
  %v3220 = vunpack.c.l.b16 %v1799
  %v3221 = vunpack.c.l.b16 %v1800
  %v3222 = vunpack.c.l.b16 %v1801
  %v3223 = vunpack.c.l.b16 %v1802
  %v3224 = vunpack.c.l.b16 %v1803
  %v3225 = vunpack.c.l.b16 %v1804
  %v3226 = vunpack.c.l.b16 %v1805
  %v3227 = vunpack.c.l.b16 %v1806
  %v3228 = vunpack.c.l.b16 %v1807
  %v3229 = vunpack.c.l.b16 %v1808
  %v3230 = vunpack.c.l.b16 %v1809
  %v3231 = vunpack.c.l.b16 %v1810
  %v3232 = vunpack.c.l.b16 %v1811
  %v3233 = vunpack.c.l.b16 %v1812
  %v3234 = vunpack.c.l.b16 %v1813
  %v3235 = vpack.c.b16 %v3220, %v3219
  %v3236 = vpack.c.b16 %v3222, %v3221
  %v3237 = vpack.c.b16 %v3224, %v3223
  %v3238 = vpack.c.b16 %v3226, %v3225
  %v3239 = vpack.c.b16 %v3228, %v3227
  %v3240 = vpack.c.b16 %v3230, %v3229
  %v3241 = vpack.c.b16 %v3232, %v3231
  %v3242 = vpack.c.b16 %v3234, %v3233
  %3251 = vmatprep.subr.bf16.mxu0 0
  %3252 = vmatpush1.bf16.msra.mxu0 %v3235
  %3253 = vmatprep.subr.bf16.mxu0 0
  %3254 = vmatpush1.bf16.msra.mxu0 %v3236
  %3255 = vmatprep.subr.bf16.mxu0 0
  %3256 = vmatpush1.bf16.msra.mxu0 %v3237
  %3257 = vmatprep.subr.bf16.mxu0 0
  %3258 = vmatpush1.bf16.msra.mxu0 %v3238
  %3259 = vmatprep.subr.bf16.mxu0 0
  %3260 = vmatpush1.bf16.msra.mxu0 %v3239
  %3261 = vmatprep.subr.bf16.mxu0 0
  %3262 = vmatpush1.bf16.msra.mxu0 %v3240
  %3263 = vmatprep.subr.bf16.mxu0 0
  %3264 = vmatpush1.bf16.msra.mxu0 %v3241
  %3265 = vmatprep.subr.bf16.mxu0 0
  %3266 = vmatpush1.bf16.msra.mxu0 %v3242
  %3267 = vmatprep.subr.bf16.mxu0 0
  %3268 = vmatpush1.bf16.msra.mxu0 0
  %3269 = vmatprep.subr.bf16.mxu0 0
  %3270 = vmatpush1.bf16.msra.mxu0 0
  %3271 = vmatprep.subr.bf16.mxu0 0
  %3272 = vmatpush1.bf16.msra.mxu0 0
  %3273 = vmatprep.subr.bf16.mxu0 0
  %3274 = vmatpush1.bf16.msra.mxu0 0
  %3275 = vmatprep.subr.bf16.mxu0 0
  %3276 = vmatpush1.bf16.msra.mxu0 0
  %3277 = vmatprep.subr.bf16.mxu0 0
  %3278 = vmatpush1.bf16.msra.mxu0 0
  %3279 = vmatprep.subr.bf16.mxu0 0
  %3280 = vmatpush1.bf16.msra.mxu0 0
  %3281 = vmatprep.subr.bf16.mxu0 0
  %3282 = vmatpush1.bf16.msra.mxu0 0
  %3283 = vmatprep.mubr.bf16.mxu0 0
  %3284 = vmatmul.mubr.bf16.gmra.mrb[0].mxu0 %v3197
  %v3285 = vpop.f32.mrb[0].mxu0
  %v3286 = vadd.f32 %v3202, %v3285
  %v3287 = vpop.f32.mrb[0].mxu0
  %v3288 = vpop.f32.mrb[0].mxu0
  %v3289 = vadd.f32 %v3202, %v3288
  %v3290 = vpop.f32.mrb[0].mxu0
  %3291 = vmatprep.mubr.bf16.mxu0 0
  %3292 = vmatmul.mubr.bf16.gmra.mrb[0].mxu0 %v3198
  %v3293 = vpop.f32.mrb[0].mxu0
  %v3294 = vadd.f32 %v3202, %v3293
  %v3295 = vpop.f32.mrb[0].mxu0
  %v3296 = vpop.f32.mrb[0].mxu0
  %v3297 = vadd.f32 %v3202, %v3296
  %v3298 = vpop.f32.mrb[0].mxu0
  %3299 = vdwg.mxu0
  %v3300 = vadd.f32 %v3000, %v3286
  %v3301 = vadd.f32 %v3001, %v3289
  %v3302 = vadd.f32 %v3002, %v3294
  %v3303 = vadd.f32 %v3003, %v3297
  %v3304 = vsel %vm65, %v3300, 0.0
  %3305 = vadd.xlane.f32.xlu0 %v3304
  %v3306 = vpop.xlane.xlu0 %3305
  %v3307 = vsel %vm65, %v3301, 0.0
  %3308 = vadd.xlane.f32.xlu0 %v3307
  %v3309 = vpop.xlane.xlu0 %3308
  %v3310 = vsel %vm65, %v3302, 0.0
  %3311 = vadd.xlane.f32.xlu0 %v3310
  %v3312 = vpop.xlane.xlu0 %3311
  %v3313 = vsel %vm65, %v3303, 0.0
  %3314 = vadd.xlane.f32.xlu0 %v3313
  %v3315 = vpop.xlane.xlu0 %3314
  %v3316 = vmul.f32 %v3306, %v78
  %v3317 = vmul.f32 %v3309, %v78
  %v3318 = vmul.f32 %v3312, %v78
  %v3319 = vmul.f32 %v3315, %v78
  %v3320 = vsub.f32 %v3300, %v3316
  %v3321 = vsub.f32 %v3301, %v3317
  %v3322 = vsub.f32 %v3302, %v3318
  %v3323 = vsub.f32 %v3303, %v3319
  %v3324 = vmul.f32 %v3320, %v3320
  %v3325 = vmul.f32 %v3321, %v3321
  %v3326 = vmul.f32 %v3322, %v3322
  %v3327 = vmul.f32 %v3323, %v3323
  %v3328 = vsel %vm65, %v3324, 0.0
  %3329 = vadd.xlane.f32.xlu0 %v3328
  %v3330 = vpop.xlane.xlu0 %3329
  %v3331 = vsel %vm65, %v3325, 0.0
  %3332 = vadd.xlane.f32.xlu0 %v3331
  %v3333 = vpop.xlane.xlu0 %3332
  %v3334 = vsel %vm65, %v3326, 0.0
  %3335 = vadd.xlane.f32.xlu0 %v3334
  %v3336 = vpop.xlane.xlu0 %3335
  %v3337 = vsel %vm65, %v3327, 0.0
  %3338 = vadd.xlane.f32.xlu0 %v3337
  %v3339 = vpop.xlane.xlu0 %3338
  %v3340 = vmul.f32 %v3330, %v78
  %v3341 = vmul.f32 %v3333, %v78
  %v3342 = vmul.f32 %v3336, %v78
  %v3343 = vmul.f32 %v3339, %v78
  %v3344 = vadd.f32 %v3340, 1e-07
  %v3345 = vadd.f32 %v3341, 1e-07
  %v3346 = vadd.f32 %v3342, 1e-07
  %v3347 = vadd.f32 %v3343, 1e-07
  %v3348 = vrsqrt.pop %v3344
  %v3349 = vrsqrt.pop %v3345
  %v3350 = vrsqrt.pop %v3346
  %v3351 = vrsqrt.pop %v3347
  %v3352 = vmul.f32 %v3320, %v3348
  %v3353 = vmul.f32 %v3321, %v3349
  %v3354 = vmul.f32 %v3322, %v3350
  %v3355 = vmul.f32 %v3323, %v3351
  %v3356 = vlaneseq
  %v3357 = vshrl.u32 %v3356, 7
  %v3358 = vsub.s32 2, %v3357
  %v3359 = vrot.slane %v60, %v3358
  %v3360 = vmul.f32 %v3352, %v3359
  %v3361 = vmul.f32 %v3353, %v3359
  %v3362 = vmul.f32 %v3354, %v3359
  %v3363 = vmul.f32 %v3355, %v3359
  %v3364 = vlaneseq
  %v3365 = vshrl.u32 %v3364, 7
  %v3366 = vsub.s32 3, %v3365
  %v3367 = vrot.slane %v60, %v3366
  %v3368 = vadd.f32 %v3360, %v3367
  %v3369 = vadd.f32 %v3361, %v3367
  %v3370 = vadd.f32 %v3362, %v3367
  %v3371 = vadd.f32 %v3363, %v3367
  %s3372 = scalar_lea.vmem %s6, 64
  %v3373 = vld [vmem:[%s3372] sm:$0xf]
  %v3374 = vld [vmem:[%s3372 + $0x4] sm:$0xf]
  %v3375 = vld [vmem:[%s3372 + $0x8] sm:$0xf]
  %v3376 = vld [vmem:[%s3372 + $0xc] sm:$0xf]
  %v3377 = vld [vmem:[%s3372 + $0x10] sm:$0xf]
  %v3378 = vld [vmem:[%s3372 + $0x14] sm:$0xf]
  %v3379 = vld [vmem:[%s3372 + $0x18] sm:$0xf]
  %v3380 = vld [vmem:[%s3372 + $0x1c] sm:$0xf]
  %s3381 = scalar_lea.vmem %s7, 64
  %v3382 = vld [vmem:[%s3381] sm:$0xf]
  %v3383 = vld [vmem:[%s3381 + $0x4] sm:$0xf]
  %v3384 = vld [vmem:[%s3381 + $0x8] sm:$0xf]
  %v3385 = vld [vmem:[%s3381 + $0xc] sm:$0xf]
  %v3386 = vld [vmem:[%s3381 + $0x10] sm:$0xf]
  %v3387 = vld [vmem:[%s3381 + $0x14] sm:$0xf]
  %v3388 = vld [vmem:[%s3381 + $0x18] sm:$0xf]
  %v3389 = vld [vmem:[%s3381 + $0x1c] sm:$0xf]
  %s3390 = scalar_lea.vmem %s8, 64
  %v3391 = vld [vmem:[%s3390] sm:$0xf]
  %v3392 = vld [vmem:[%s3390 + $0x4] sm:$0xf]
  %v3393 = vld [vmem:[%s3390 + $0x8] sm:$0xf]
  %v3394 = vld [vmem:[%s3390 + $0xc] sm:$0xf]
  %v3395 = vld [vmem:[%s3390 + $0x10] sm:$0xf]
  %v3396 = vld [vmem:[%s3390 + $0x14] sm:$0xf]
  %v3397 = vld [vmem:[%s3390 + $0x18] sm:$0xf]
  %v3398 = vld [vmem:[%s3390 + $0x1c] sm:$0xf]
  %s3399 = scalar_lea.vmem %s9, 64
  %v3400 = vld [vmem:[%s3399] sm:$0xf]
  %v3401 = vld [vmem:[%s3399 + $0x4] sm:$0xf]
  %v3402 = vld [vmem:[%s3399 + $0x8] sm:$0xf]
  %v3403 = vld [vmem:[%s3399 + $0xc] sm:$0xf]
  %v3404 = vld [vmem:[%s3399 + $0x10] sm:$0xf]
  %v3405 = vld [vmem:[%s3399 + $0x14] sm:$0xf]
  %v3406 = vld [vmem:[%s3399 + $0x18] sm:$0xf]
  %v3407 = vld [vmem:[%s3399 + $0x1c] sm:$0xf]
  %s3408 = scalar_lea.vmem %s10, 64
  %v3409 = vld [vmem:[%s3408] sm:$0xf]
  %v3410 = vld [vmem:[%s3408 + $0x4] sm:$0xf]
  %v3411 = vld [vmem:[%s3408 + $0x8] sm:$0xf]
  %v3412 = vld [vmem:[%s3408 + $0xc] sm:$0xf]
  %v3413 = vld [vmem:[%s3408 + $0x10] sm:$0xf]
  %v3414 = vld [vmem:[%s3408 + $0x14] sm:$0xf]
  %v3415 = vld [vmem:[%s3408 + $0x18] sm:$0xf]
  %v3416 = vld [vmem:[%s3408 + $0x1c] sm:$0xf]
  %s3417 = scalar_lea.vmem %s11, 128
  %v3418 = vld [vmem:[%s3417] sm:$0xf]
  %v3419 = vld [vmem:[%s3417 + $0x4] sm:$0xf]
  %v3420 = vld [vmem:[%s3417 + $0x8] sm:$0xf]
  %v3421 = vld [vmem:[%s3417 + $0xc] sm:$0xf]
  %v3422 = vld [vmem:[%s3417 + $0x10] sm:$0xf]
  %v3423 = vld [vmem:[%s3417 + $0x14] sm:$0xf]
  %v3424 = vld [vmem:[%s3417 + $0x18] sm:$0xf]
  %v3425 = vld [vmem:[%s3417 + $0x1c] sm:$0xf]
  %v3426 = vld [vmem:[%s3417 + $0x20] sm:$0xf]
  %v3427 = vld [vmem:[%s3417 + $0x24] sm:$0xf]
  %v3428 = vld [vmem:[%s3417 + $0x28] sm:$0xf]
  %v3429 = vld [vmem:[%s3417 + $0x2c] sm:$0xf]
  %v3430 = vld [vmem:[%s3417 + $0x30] sm:$0xf]
  %v3431 = vld [vmem:[%s3417 + $0x34] sm:$0xf]
  %v3432 = vld [vmem:[%s3417 + $0x38] sm:$0xf]
  %v3433 = vld [vmem:[%s3417 + $0x3c] sm:$0xf]
  %v3434 = vpack.c.bf16 %v3369, %v3368
  %v3435 = vpack.c.bf16 %v3371, %v3370
  %v3436 = vlaneseq
  %v3437 = vshrl.u32 %v3436, 7
  %v3438 = vsub.s32 4, %v3437
  %v3439 = vrot.slane %v60, %v3438
  %v3448 = vunpack.c.l.b16 %v3373
  %v3449 = vunpack.c.l.b16 %v3374
  %v3450 = vunpack.c.l.b16 %v3375
  %v3451 = vunpack.c.l.b16 %v3376
  %v3452 = vunpack.c.l.b16 %v3377
  %v3453 = vunpack.c.l.b16 %v3378
  %v3454 = vunpack.c.l.b16 %v3379
  %v3455 = vunpack.c.l.b16 %v3380
  %v3456 = vpack.c.b16 %v3449, %v3448
  %v3457 = vpack.c.b16 %v3451, %v3450
  %v3458 = vpack.c.b16 %v3453, %v3452
  %v3459 = vpack.c.b16 %v3455, %v3454
  %v3465 = vsel %vm65, %v3434, 0
  %v3468 = vsel %vm65, %v3435, 0
  %3470 = vmatprep.subr.bf16.mxu0 0
  %3471 = vmatpush1.bf16.msra.mxu0 %v3456
  %3472 = vmatprep.subr.bf16.mxu0 0
  %3473 = vmatpush1.bf16.msra.mxu0 %v3457
  %3474 = vmatprep.subr.bf16.mxu0 0
  %3475 = vmatpush1.bf16.msra.mxu0 %v3458
  %3476 = vmatprep.subr.bf16.mxu0 0
  %3477 = vmatpush1.bf16.msra.mxu0 %v3459
  %3478 = vmatprep.subr.bf16.mxu0 0
  %3479 = vmatpush1.bf16.msra.mxu0 0
  %3480 = vmatprep.subr.bf16.mxu0 0
  %3481 = vmatpush1.bf16.msra.mxu0 0
  %3482 = vmatprep.subr.bf16.mxu0 0
  %3483 = vmatpush1.bf16.msra.mxu0 0
  %3484 = vmatprep.subr.bf16.mxu0 0
  %3485 = vmatpush1.bf16.msra.mxu0 0
  %3486 = vmatprep.subr.bf16.mxu0 0
  %3487 = vmatpush1.bf16.msra.mxu0 0
  %3488 = vmatprep.subr.bf16.mxu0 0
  %3489 = vmatpush1.bf16.msra.mxu0 0
  %3490 = vmatprep.subr.bf16.mxu0 0
  %3491 = vmatpush1.bf16.msra.mxu0 0
  %3492 = vmatprep.subr.bf16.mxu0 0
  %3493 = vmatpush1.bf16.msra.mxu0 0
  %3494 = vmatprep.subr.bf16.mxu0 0
  %3495 = vmatpush1.bf16.msra.mxu0 0
  %3496 = vmatprep.subr.bf16.mxu0 0
  %3497 = vmatpush1.bf16.msra.mxu0 0
  %3498 = vmatprep.subr.bf16.mxu0 0
  %3499 = vmatpush1.bf16.msra.mxu0 0
  %3500 = vmatprep.subr.bf16.mxu0 0
  %3501 = vmatpush1.bf16.msra.mxu0 0
  %3502 = vmatprep.mubr.bf16.mxu0 0
  %3503 = vmatmul.mubr.bf16.gmra.mrb[0].mxu0 %v3465
  %v3504 = vpop.f32.mrb[0].mxu0
  %v3505 = vadd.f32 %v3439, %v3504
  %v3506 = vpop.f32.mrb[0].mxu0
  %v3507 = vpop.f32.mrb[0].mxu0
  %v3508 = vadd.f32 %v3439, %v3507
  %v3509 = vpop.f32.mrb[0].mxu0
  %3510 = vmatprep.mubr.bf16.mxu0 0
  %3511 = vmatmul.mubr.bf16.gmra.mrb[0].mxu0 %v3468
  %v3512 = vpop.f32.mrb[0].mxu0
  %v3513 = vadd.f32 %v3439, %v3512
  %v3514 = vpop.f32.mrb[0].mxu0
  %v3515 = vpop.f32.mrb[0].mxu0
  %v3516 = vadd.f32 %v3439, %v3515
  %v3517 = vpop.f32.mrb[0].mxu0
  %3518 = vdwg.mxu0
  %v3519 = vlaneseq
  %v3520 = vshrl.u32 %v3519, 7
  %v3521 = vsub.s32 5, %v3520
  %v3522 = vrot.slane %v60, %v3521
  %v3531 = vunpack.c.l.b16 %v3382
  %v3532 = vunpack.c.l.b16 %v3383
  %v3533 = vunpack.c.l.b16 %v3384
  %v3534 = vunpack.c.l.b16 %v3385
  %v3535 = vunpack.c.l.b16 %v3386
  %v3536 = vunpack.c.l.b16 %v3387
  %v3537 = vunpack.c.l.b16 %v3388
  %v3538 = vunpack.c.l.b16 %v3389
  %v3539 = vpack.c.b16 %v3532, %v3531
  %v3540 = vpack.c.b16 %v3534, %v3533
  %v3541 = vpack.c.b16 %v3536, %v3535
  %v3542 = vpack.c.b16 %v3538, %v3537
  %3547 = vmatprep.subr.bf16.mxu0 0
  %3548 = vmatpush1.bf16.msra.mxu0 %v3539
  %3549 = vmatprep.subr.bf16.mxu0 0
  %3550 = vmatpush1.bf16.msra.mxu0 %v3540
  %3551 = vmatprep.subr.bf16.mxu0 0
  %3552 = vmatpush1.bf16.msra.mxu0 %v3541
  %3553 = vmatprep.subr.bf16.mxu0 0
  %3554 = vmatpush1.bf16.msra.mxu0 %v3542
  %3555 = vmatprep.subr.bf16.mxu0 0
  %3556 = vmatpush1.bf16.msra.mxu0 0
  %3557 = vmatprep.subr.bf16.mxu0 0
  %3558 = vmatpush1.bf16.msra.mxu0 0
  %3559 = vmatprep.subr.bf16.mxu0 0
  %3560 = vmatpush1.bf16.msra.mxu0 0
  %3561 = vmatprep.subr.bf16.mxu0 0
  %3562 = vmatpush1.bf16.msra.mxu0 0
  %3563 = vmatprep.subr.bf16.mxu0 0
  %3564 = vmatpush1.bf16.msra.mxu0 0
  %3565 = vmatprep.subr.bf16.mxu0 0
  %3566 = vmatpush1.bf16.msra.mxu0 0
  %3567 = vmatprep.subr.bf16.mxu0 0
  %3568 = vmatpush1.bf16.msra.mxu0 0
  %3569 = vmatprep.subr.bf16.mxu0 0
  %3570 = vmatpush1.bf16.msra.mxu0 0
  %3571 = vmatprep.subr.bf16.mxu0 0
  %3572 = vmatpush1.bf16.msra.mxu0 0
  %3573 = vmatprep.subr.bf16.mxu0 0
  %3574 = vmatpush1.bf16.msra.mxu0 0
  %3575 = vmatprep.subr.bf16.mxu0 0
  %3576 = vmatpush1.bf16.msra.mxu0 0
  %3577 = vmatprep.subr.bf16.mxu0 0
  %3578 = vmatpush1.bf16.msra.mxu0 0
  %3579 = vmatprep.mubr.bf16.mxu0 0
  %3580 = vmatmul.mubr.bf16.gmra.mrb[0].mxu0 %v3465
  %v3581 = vpop.f32.mrb[0].mxu0
  %v3582 = vadd.f32 %v3522, %v3581
  %v3583 = vpop.f32.mrb[0].mxu0
  %v3584 = vpop.f32.mrb[0].mxu0
  %v3585 = vadd.f32 %v3522, %v3584
  %v3586 = vpop.f32.mrb[0].mxu0
  %3587 = vmatprep.mubr.bf16.mxu0 0
  %3588 = vmatmul.mubr.bf16.gmra.mrb[0].mxu0 %v3468
  %v3589 = vpop.f32.mrb[0].mxu0
  %v3590 = vadd.f32 %v3522, %v3589
  %v3591 = vpop.f32.mrb[0].mxu0
  %v3592 = vpop.f32.mrb[0].mxu0
  %v3593 = vadd.f32 %v3522, %v3592
  %v3594 = vpop.f32.mrb[0].mxu0
  %3595 = vdwg.mxu0
  %v3596 = vlaneseq
  %v3597 = vshrl.u32 %v3596, 7
  %v3598 = vsub.s32 6, %v3597
  %v3599 = vrot.slane %v60, %v3598
  %v3608 = vunpack.c.l.b16 %v3391
  %v3609 = vunpack.c.l.b16 %v3392
  %v3610 = vunpack.c.l.b16 %v3393
  %v3611 = vunpack.c.l.b16 %v3394
  %v3612 = vunpack.c.l.b16 %v3395
  %v3613 = vunpack.c.l.b16 %v3396
  %v3614 = vunpack.c.l.b16 %v3397
  %v3615 = vunpack.c.l.b16 %v3398
  %v3616 = vpack.c.b16 %v3609, %v3608
  %v3617 = vpack.c.b16 %v3611, %v3610
  %v3618 = vpack.c.b16 %v3613, %v3612
  %v3619 = vpack.c.b16 %v3615, %v3614
  %3624 = vmatprep.subr.bf16.mxu0 0
  %3625 = vmatpush1.bf16.msra.mxu0 %v3616
  %3626 = vmatprep.subr.bf16.mxu0 0
  %3627 = vmatpush1.bf16.msra.mxu0 %v3617
  %3628 = vmatprep.subr.bf16.mxu0 0
  %3629 = vmatpush1.bf16.msra.mxu0 %v3618
  %3630 = vmatprep.subr.bf16.mxu0 0
  %3631 = vmatpush1.bf16.msra.mxu0 %v3619
  %3632 = vmatprep.subr.bf16.mxu0 0
  %3633 = vmatpush1.bf16.msra.mxu0 0
  %3634 = vmatprep.subr.bf16.mxu0 0
  %3635 = vmatpush1.bf16.msra.mxu0 0
  %3636 = vmatprep.subr.bf16.mxu0 0
  %3637 = vmatpush1.bf16.msra.mxu0 0
  %3638 = vmatprep.subr.bf16.mxu0 0
  %3639 = vmatpush1.bf16.msra.mxu0 0
  %3640 = vmatprep.subr.bf16.mxu0 0
  %3641 = vmatpush1.bf16.msra.mxu0 0
  %3642 = vmatprep.subr.bf16.mxu0 0
  %3643 = vmatpush1.bf16.msra.mxu0 0
  %3644 = vmatprep.subr.bf16.mxu0 0
  %3645 = vmatpush1.bf16.msra.mxu0 0
  %3646 = vmatprep.subr.bf16.mxu0 0
  %3647 = vmatpush1.bf16.msra.mxu0 0
  %3648 = vmatprep.subr.bf16.mxu0 0
  %3649 = vmatpush1.bf16.msra.mxu0 0
  %3650 = vmatprep.subr.bf16.mxu0 0
  %3651 = vmatpush1.bf16.msra.mxu0 0
  %3652 = vmatprep.subr.bf16.mxu0 0
  %3653 = vmatpush1.bf16.msra.mxu0 0
  %3654 = vmatprep.subr.bf16.mxu0 0
  %3655 = vmatpush1.bf16.msra.mxu0 0
  %3656 = vmatprep.mubr.bf16.mxu0 0
  %3657 = vmatmul.mubr.bf16.gmra.mrb[0].mxu0 %v3465
  %v3658 = vpop.f32.mrb[0].mxu0
  %v3659 = vadd.f32 %v3599, %v3658
  %v3660 = vpop.f32.mrb[0].mxu0
  %v3661 = vpop.f32.mrb[0].mxu0
  %v3662 = vadd.f32 %v3599, %v3661
  %v3663 = vpop.f32.mrb[0].mxu0
  %3664 = vmatprep.mubr.bf16.mxu0 0
  %3665 = vmatmul.mubr.bf16.gmra.mrb[0].mxu0 %v3468
  %v3666 = vpop.f32.mrb[0].mxu0
  %v3667 = vadd.f32 %v3599, %v3666
  %v3668 = vpop.f32.mrb[0].mxu0
  %v3669 = vpop.f32.mrb[0].mxu0
  %v3670 = vadd.f32 %v3599, %v3669
  %v3671 = vpop.f32.mrb[0].mxu0
  %3672 = vdwg.mxu0
  %v3673 = vpack.c.bf16 %v3508, %v3505
  %v3674 = vpack.c.bf16 %v3516, %v3513
  %v3675 = vpack.c.bf16 %v3585, %v3582
  %v3676 = vpack.c.bf16 %v3593, %v3590
  %v3677 = vpack.c.bf16 %v3662, %v3659
  %v3678 = vpack.c.bf16 %v3670, %v3667
  %v3680 = vsel %vm436, %v3673, 0
  %v3683 = vsel %vm436, %v3674, 0
  %v3686 = vsel %vm436, %v3675, 0
  %v3689 = vsel %vm436, %v3676, 0
  %3691 = vmatprep.subr.bf16.mxu0 0
  %3692 = vmatpush1.bf16.xpose.msra.mxu0 %v3686
  %3693 = vmatprep.subr.bf16.mxu0 0
  %3694 = vmatpush1.bf16.xpose.msra.mxu0 %v3689
  %3695 = vmatprep.subr.bf16.mxu0 0
  %3696 = vmatpush1.bf16.xpose.msra.mxu0 0
  %3697 = vmatprep.subr.bf16.mxu0 0
  %3698 = vmatpush1.bf16.xpose.msra.mxu0 0
  %3699 = vmatprep.subr.bf16.mxu0 0
  %3700 = vmatpush1.bf16.xpose.msra.mxu0 0
  %3701 = vmatprep.subr.bf16.mxu0 0
  %3702 = vmatpush1.bf16.xpose.msra.mxu0 0
  %3703 = vmatprep.subr.bf16.mxu0 0
  %3704 = vmatpush1.bf16.xpose.msra.mxu0 0
  %3705 = vmatprep.subr.bf16.mxu0 0
  %3706 = vmatpush1.bf16.xpose.msra.mxu0 0
  %3707 = vmatprep.subr.bf16.mxu0 0
  %3708 = vmatpush1.bf16.xpose.msra.mxu0 0
  %3709 = vmatprep.subr.bf16.mxu0 0
  %3710 = vmatpush1.bf16.xpose.msra.mxu0 0
  %3711 = vmatprep.subr.bf16.mxu0 0
  %3712 = vmatpush1.bf16.xpose.msra.mxu0 0
  %3713 = vmatprep.subr.bf16.mxu0 0
  %3714 = vmatpush1.bf16.xpose.msra.mxu0 0
  %3715 = vmatprep.subr.bf16.mxu0 0
  %3716 = vmatpush1.bf16.xpose.msra.mxu0 0
  %3717 = vmatprep.subr.bf16.mxu0 0
  %3718 = vmatpush1.bf16.xpose.msra.mxu0 0
  %3719 = vmatprep.subr.bf16.mxu0 0
  %3720 = vmatpush1.bf16.xpose.msra.mxu0 0
  %3721 = vmatprep.subr.bf16.mxu0 0
  %3722 = vmatpush1.bf16.xpose.msra.mxu0 0
  %3723 = vmatprep.mubr.bf16.mxu0 0
  %3724 = vmatmul.mubr.bf16.gmra.mrb[0].mxu0 %v3680
  %v3725 = vpop.f32.mrb[0].mxu0
  %v3726 = vadd.f32 0.0, %v3725
  %v3727 = vpop.f32.mrb[0].mxu0
  %v3728 = vpop.f32.mrb[0].mxu0
  %v3729 = vadd.f32 0.0, %v3728
  %v3730 = vpop.f32.mrb[0].mxu0
  %3731 = vmatprep.mubr.bf16.mxu0 0
  %3732 = vmatmul.mubr.bf16.gmra.mrb[0].mxu0 %v3683
  %v3733 = vpop.f32.mrb[0].mxu0
  %v3734 = vadd.f32 0.0, %v3733
  %v3735 = vpop.f32.mrb[0].mxu0
  %v3736 = vpop.f32.mrb[0].mxu0
  %v3737 = vadd.f32 0.0, %v3736
  %v3738 = vpop.f32.mrb[0].mxu0
  %3739 = vdwg.mxu0
  %v3740 = vmul.f32 %v3726, 0.25
  %v3741 = vmul.f32 %v3729, 0.25
  %v3742 = vmul.f32 %v3734, 0.25
  %v3743 = vmul.f32 %v3737, 0.25
  %v3744 = vadd.f32 %v3740, %v54
  %v3745 = vadd.f32 %v3741, %v55
  %v3746 = vadd.f32 %v3742, %v56
  %v3747 = vadd.f32 %v3743, %v57
  %v3748 = vsel %vm506, %v3744, -inf
  %3749 = vmax.xlane.f32.xlu0 %v3748
  %v3750 = vpop.xlane.xlu0 %3749
  %v3751 = vsel %vm506, %v3745, -inf
  %3752 = vmax.xlane.f32.xlu0 %v3751
  %v3753 = vpop.xlane.xlu0 %3752
  %v3754 = vsel %vm506, %v3746, -inf
  %3755 = vmax.xlane.f32.xlu0 %v3754
  %v3756 = vpop.xlane.xlu0 %3755
  %v3757 = vsel %vm506, %v3747, -inf
  %3758 = vmax.xlane.f32.xlu0 %v3757
  %v3759 = vpop.xlane.xlu0 %3758
  %v3760 = vsub.f32 %v3744, %v3750
  %v3761 = vsub.f32 %v3745, %v3753
  %v3762 = vsub.f32 %v3746, %v3756
  %v3763 = vsub.f32 %v3747, %v3759
  %v3764 = vmul.f32 %v3760, 1.442695
  %v3765 = vpow.pop %v3764
  %v3766 = vmul.f32 %v3761, 1.442695
  %v3767 = vpow.pop %v3766
  %v3768 = vmul.f32 %v3762, 1.442695
  %v3769 = vpow.pop %v3768
  %v3770 = vmul.f32 %v3763, 1.442695
  %v3771 = vpow.pop %v3770
  %v3772 = vsel %vm506, %v3765, 0.0
  %3773 = vadd.xlane.f32.xlu0 %v3772
  %v3774 = vpop.xlane.xlu0 %3773
  %v3775 = vsel %vm506, %v3767, 0.0
  %3776 = vadd.xlane.f32.xlu0 %v3775
  %v3777 = vpop.xlane.xlu0 %3776
  %v3778 = vsel %vm506, %v3769, 0.0
  %3779 = vadd.xlane.f32.xlu0 %v3778
  %v3780 = vpop.xlane.xlu0 %3779
  %v3781 = vsel %vm506, %v3771, 0.0
  %3782 = vadd.xlane.f32.xlu0 %v3781
  %v3783 = vpop.xlane.xlu0 %3782
  %v3784 = vrcp.pop %v3774
  %v3785 = vmul.f32 %v3765, %v3784
  %v3786 = vrcp.pop %v3777
  %v3787 = vmul.f32 %v3767, %v3786
  %v3788 = vrcp.pop %v3780
  %v3789 = vmul.f32 %v3769, %v3788
  %v3790 = vrcp.pop %v3783
  %v3791 = vmul.f32 %v3771, %v3790
  %v3792 = vpack.c.bf16 %v3787, %v3785
  %v3793 = vpack.c.bf16 %v3791, %v3789
  %v3795 = vsel %vm506, %v3792, 0
  %v3798 = vsel %vm506, %v3793, 0
  %3800 = vmatprep.subr.bf16.mxu0 0
  %3801 = vmatpush1.bf16.msra.mxu0 %v3677
  %3802 = vmatprep.subr.bf16.mxu0 0
  %3803 = vmatpush1.bf16.msra.mxu0 %v3678
  %3804 = vmatprep.subr.bf16.mxu0 0
  %3805 = vmatpush1.bf16.msra.mxu0 0
  %3806 = vmatprep.subr.bf16.mxu0 0
  %3807 = vmatpush1.bf16.msra.mxu0 0
  %3808 = vmatprep.subr.bf16.mxu0 0
  %3809 = vmatpush1.bf16.msra.mxu0 0
  %3810 = vmatprep.subr.bf16.mxu0 0
  %3811 = vmatpush1.bf16.msra.mxu0 0
  %3812 = vmatprep.subr.bf16.mxu0 0
  %3813 = vmatpush1.bf16.msra.mxu0 0
  %3814 = vmatprep.subr.bf16.mxu0 0
  %3815 = vmatpush1.bf16.msra.mxu0 0
  %3816 = vmatprep.subr.bf16.mxu0 0
  %3817 = vmatpush1.bf16.msra.mxu0 0
  %3818 = vmatprep.subr.bf16.mxu0 0
  %3819 = vmatpush1.bf16.msra.mxu0 0
  %3820 = vmatprep.subr.bf16.mxu0 0
  %3821 = vmatpush1.bf16.msra.mxu0 0
  %3822 = vmatprep.subr.bf16.mxu0 0
  %3823 = vmatpush1.bf16.msra.mxu0 0
  %3824 = vmatprep.subr.bf16.mxu0 0
  %3825 = vmatpush1.bf16.msra.mxu0 0
  %3826 = vmatprep.subr.bf16.mxu0 0
  %3827 = vmatpush1.bf16.msra.mxu0 0
  %3828 = vmatprep.subr.bf16.mxu0 0
  %3829 = vmatpush1.bf16.msra.mxu0 0
  %3830 = vmatprep.subr.bf16.mxu0 0
  %3831 = vmatpush1.bf16.msra.mxu0 0
  %3832 = vmatprep.mubr.bf16.mxu0 0
  %3833 = vmatmul.mubr.bf16.gmra.mrb[0].mxu0 %v3795
  %v3834 = vpop.f32.mrb[0].mxu0
  %v3835 = vadd.f32 0.0, %v3834
  %v3836 = vpop.f32.mrb[0].mxu0
  %v3837 = vpop.f32.mrb[0].mxu0
  %v3838 = vadd.f32 0.0, %v3837
  %v3839 = vpop.f32.mrb[0].mxu0
  %3840 = vmatprep.mubr.bf16.mxu0 0
  %3841 = vmatmul.mubr.bf16.gmra.mrb[0].mxu0 %v3798
  %v3842 = vpop.f32.mrb[0].mxu0
  %v3843 = vadd.f32 0.0, %v3842
  %v3844 = vpop.f32.mrb[0].mxu0
  %v3845 = vpop.f32.mrb[0].mxu0
  %v3846 = vadd.f32 0.0, %v3845
  %v3847 = vpop.f32.mrb[0].mxu0
  %3848 = vdwg.mxu0
  %3851 = vrot.lane.b32.xlu0 %v3673, 112
  %v3852 = vpop.permute.xlu0 %3851
  %3853 = vrot.lane.b32.xlu0 %v3674, 112
  %v3854 = vpop.permute.xlu0 %3853
  %3857 = vrot.lane.b32.xlu0 %v3675, 112
  %v3858 = vpop.permute.xlu0 %3857
  %3859 = vrot.lane.b32.xlu0 %v3676, 112
  %v3860 = vpop.permute.xlu0 %3859
  %v3862 = vsel %vm436, %v3852, 0
  %v3865 = vsel %vm436, %v3854, 0
  %v3868 = vsel %vm436, %v3858, 0
  %v3871 = vsel %vm436, %v3860, 0
  %3873 = vmatprep.subr.bf16.mxu0 0
  %3874 = vmatpush1.bf16.xpose.msra.mxu0 %v3868
  %3875 = vmatprep.subr.bf16.mxu0 0
  %3876 = vmatpush1.bf16.xpose.msra.mxu0 %v3871
  %3877 = vmatprep.subr.bf16.mxu0 0
  %3878 = vmatpush1.bf16.xpose.msra.mxu0 0
  %3879 = vmatprep.subr.bf16.mxu0 0
  %3880 = vmatpush1.bf16.xpose.msra.mxu0 0
  %3881 = vmatprep.subr.bf16.mxu0 0
  %3882 = vmatpush1.bf16.xpose.msra.mxu0 0
  %3883 = vmatprep.subr.bf16.mxu0 0
  %3884 = vmatpush1.bf16.xpose.msra.mxu0 0
  %3885 = vmatprep.subr.bf16.mxu0 0
  %3886 = vmatpush1.bf16.xpose.msra.mxu0 0
  %3887 = vmatprep.subr.bf16.mxu0 0
  %3888 = vmatpush1.bf16.xpose.msra.mxu0 0
  %3889 = vmatprep.subr.bf16.mxu0 0
  %3890 = vmatpush1.bf16.xpose.msra.mxu0 0
  %3891 = vmatprep.subr.bf16.mxu0 0
  %3892 = vmatpush1.bf16.xpose.msra.mxu0 0
  %3893 = vmatprep.subr.bf16.mxu0 0
  %3894 = vmatpush1.bf16.xpose.msra.mxu0 0
  %3895 = vmatprep.subr.bf16.mxu0 0
  %3896 = vmatpush1.bf16.xpose.msra.mxu0 0
  %3897 = vmatprep.subr.bf16.mxu0 0
  %3898 = vmatpush1.bf16.xpose.msra.mxu0 0
  %3899 = vmatprep.subr.bf16.mxu0 0
  %3900 = vmatpush1.bf16.xpose.msra.mxu0 0
  %3901 = vmatprep.subr.bf16.mxu0 0
  %3902 = vmatpush1.bf16.xpose.msra.mxu0 0
  %3903 = vmatprep.subr.bf16.mxu0 0
  %3904 = vmatpush1.bf16.xpose.msra.mxu0 0
  %3905 = vmatprep.mubr.bf16.mxu0 0
  %3906 = vmatmul.mubr.bf16.gmra.mrb[0].mxu0 %v3862
  %v3907 = vpop.f32.mrb[0].mxu0
  %v3908 = vadd.f32 0.0, %v3907
  %v3909 = vpop.f32.mrb[0].mxu0
  %v3910 = vpop.f32.mrb[0].mxu0
  %v3911 = vadd.f32 0.0, %v3910
  %v3912 = vpop.f32.mrb[0].mxu0
  %3913 = vmatprep.mubr.bf16.mxu0 0
  %3914 = vmatmul.mubr.bf16.gmra.mrb[0].mxu0 %v3865
  %v3915 = vpop.f32.mrb[0].mxu0
  %v3916 = vadd.f32 0.0, %v3915
  %v3917 = vpop.f32.mrb[0].mxu0
  %v3918 = vpop.f32.mrb[0].mxu0
  %v3919 = vadd.f32 0.0, %v3918
  %v3920 = vpop.f32.mrb[0].mxu0
  %3921 = vdwg.mxu0
  %v3922 = vmul.f32 %v3908, 0.25
  %v3923 = vmul.f32 %v3911, 0.25
  %v3924 = vmul.f32 %v3916, 0.25
  %v3925 = vmul.f32 %v3919, 0.25
  %v3926 = vadd.f32 %v3922, %v54
  %v3927 = vadd.f32 %v3923, %v55
  %v3928 = vadd.f32 %v3924, %v56
  %v3929 = vadd.f32 %v3925, %v57
  %v3930 = vsel %vm506, %v3926, -inf
  %3931 = vmax.xlane.f32.xlu0 %v3930
  %v3932 = vpop.xlane.xlu0 %3931
  %v3933 = vsel %vm506, %v3927, -inf
  %3934 = vmax.xlane.f32.xlu0 %v3933
  %v3935 = vpop.xlane.xlu0 %3934
  %v3936 = vsel %vm506, %v3928, -inf
  %3937 = vmax.xlane.f32.xlu0 %v3936
  %v3938 = vpop.xlane.xlu0 %3937
  %v3939 = vsel %vm506, %v3929, -inf
  %3940 = vmax.xlane.f32.xlu0 %v3939
  %v3941 = vpop.xlane.xlu0 %3940
  %v3942 = vsub.f32 %v3926, %v3932
  %v3943 = vsub.f32 %v3927, %v3935
  %v3944 = vsub.f32 %v3928, %v3938
  %v3945 = vsub.f32 %v3929, %v3941
  %v3946 = vmul.f32 %v3942, 1.442695
  %v3947 = vpow.pop %v3946
  %v3948 = vmul.f32 %v3943, 1.442695
  %v3949 = vpow.pop %v3948
  %v3950 = vmul.f32 %v3944, 1.442695
  %v3951 = vpow.pop %v3950
  %v3952 = vmul.f32 %v3945, 1.442695
  %v3953 = vpow.pop %v3952
  %v3954 = vsel %vm506, %v3947, 0.0
  %3955 = vadd.xlane.f32.xlu0 %v3954
  %v3956 = vpop.xlane.xlu0 %3955
  %v3957 = vsel %vm506, %v3949, 0.0
  %3958 = vadd.xlane.f32.xlu0 %v3957
  %v3959 = vpop.xlane.xlu0 %3958
  %v3960 = vsel %vm506, %v3951, 0.0
  %3961 = vadd.xlane.f32.xlu0 %v3960
  %v3962 = vpop.xlane.xlu0 %3961
  %v3963 = vsel %vm506, %v3953, 0.0
  %3964 = vadd.xlane.f32.xlu0 %v3963
  %v3965 = vpop.xlane.xlu0 %3964
  %v3966 = vrcp.pop %v3956
  %v3967 = vmul.f32 %v3947, %v3966
  %v3968 = vrcp.pop %v3959
  %v3969 = vmul.f32 %v3949, %v3968
  %v3970 = vrcp.pop %v3962
  %v3971 = vmul.f32 %v3951, %v3970
  %v3972 = vrcp.pop %v3965
  %v3973 = vmul.f32 %v3953, %v3972
  %v3974 = vpack.c.bf16 %v3969, %v3967
  %v3975 = vpack.c.bf16 %v3973, %v3971
  %3978 = vrot.lane.b32.xlu0 %v3677, 112
  %v3979 = vpop.permute.xlu0 %3978
  %3980 = vrot.lane.b32.xlu0 %v3678, 112
  %v3981 = vpop.permute.xlu0 %3980
  %v3985 = vsel %vm506, %v3974, 0
  %v3988 = vsel %vm506, %v3975, 0
  %3990 = vmatprep.subr.bf16.mxu0 0
  %3991 = vmatpush1.bf16.msra.mxu0 %v3979
  %3992 = vmatprep.subr.bf16.mxu0 0
  %3993 = vmatpush1.bf16.msra.mxu0 %v3981
  %3994 = vmatprep.subr.bf16.mxu0 0
  %3995 = vmatpush1.bf16.msra.mxu0 0
  %3996 = vmatprep.subr.bf16.mxu0 0
  %3997 = vmatpush1.bf16.msra.mxu0 0
  %3998 = vmatprep.subr.bf16.mxu0 0
  %3999 = vmatpush1.bf16.msra.mxu0 0
  %4000 = vmatprep.subr.bf16.mxu0 0
  %4001 = vmatpush1.bf16.msra.mxu0 0
  %4002 = vmatprep.subr.bf16.mxu0 0
  %4003 = vmatpush1.bf16.msra.mxu0 0
  %4004 = vmatprep.subr.bf16.mxu0 0
  %4005 = vmatpush1.bf16.msra.mxu0 0
  %4006 = vmatprep.subr.bf16.mxu0 0
  %4007 = vmatpush1.bf16.msra.mxu0 0
  %4008 = vmatprep.subr.bf16.mxu0 0
  %4009 = vmatpush1.bf16.msra.mxu0 0
  %4010 = vmatprep.subr.bf16.mxu0 0
  %4011 = vmatpush1.bf16.msra.mxu0 0
  %4012 = vmatprep.subr.bf16.mxu0 0
  %4013 = vmatpush1.bf16.msra.mxu0 0
  %4014 = vmatprep.subr.bf16.mxu0 0
  %4015 = vmatpush1.bf16.msra.mxu0 0
  %4016 = vmatprep.subr.bf16.mxu0 0
  %4017 = vmatpush1.bf16.msra.mxu0 0
  %4018 = vmatprep.subr.bf16.mxu0 0
  %4019 = vmatpush1.bf16.msra.mxu0 0
  %4020 = vmatprep.subr.bf16.mxu0 0
  %4021 = vmatpush1.bf16.msra.mxu0 0
  %4022 = vmatprep.mubr.bf16.mxu0 0
  %4023 = vmatmul.mubr.bf16.gmra.mrb[0].mxu0 %v3985
  %v4024 = vpop.f32.mrb[0].mxu0
  %v4025 = vadd.f32 0.0, %v4024
  %v4026 = vpop.f32.mrb[0].mxu0
  %v4027 = vpop.f32.mrb[0].mxu0
  %v4028 = vadd.f32 0.0, %v4027
  %v4029 = vpop.f32.mrb[0].mxu0
  %4030 = vmatprep.mubr.bf16.mxu0 0
  %4031 = vmatmul.mubr.bf16.gmra.mrb[0].mxu0 %v3988
  %v4032 = vpop.f32.mrb[0].mxu0
  %v4033 = vadd.f32 0.0, %v4032
  %v4034 = vpop.f32.mrb[0].mxu0
  %v4035 = vpop.f32.mrb[0].mxu0
  %v4036 = vadd.f32 0.0, %v4035
  %v4037 = vpop.f32.mrb[0].mxu0
  %4038 = vdwg.mxu0
  %4039 = vrot.lane.b32.xlu0 %v3673, 96
  %v4040 = vpop.permute.xlu0 %4039
  %4041 = vrot.lane.b32.xlu0 %v3674, 96
  %v4042 = vpop.permute.xlu0 %4041
  %4043 = vrot.lane.b32.xlu0 %v3675, 96
  %v4044 = vpop.permute.xlu0 %4043
  %4045 = vrot.lane.b32.xlu0 %v3676, 96
  %v4046 = vpop.permute.xlu0 %4045
  %v4048 = vsel %vm436, %v4040, 0
  %v4051 = vsel %vm436, %v4042, 0
  %v4054 = vsel %vm436, %v4044, 0
  %v4057 = vsel %vm436, %v4046, 0
  %4059 = vmatprep.subr.bf16.mxu0 0
  %4060 = vmatpush1.bf16.xpose.msra.mxu0 %v4054
  %4061 = vmatprep.subr.bf16.mxu0 0
  %4062 = vmatpush1.bf16.xpose.msra.mxu0 %v4057
  %4063 = vmatprep.subr.bf16.mxu0 0
  %4064 = vmatpush1.bf16.xpose.msra.mxu0 0
  %4065 = vmatprep.subr.bf16.mxu0 0
  %4066 = vmatpush1.bf16.xpose.msra.mxu0 0
  %4067 = vmatprep.subr.bf16.mxu0 0
  %4068 = vmatpush1.bf16.xpose.msra.mxu0 0
  %4069 = vmatprep.subr.bf16.mxu0 0
  %4070 = vmatpush1.bf16.xpose.msra.mxu0 0
  %4071 = vmatprep.subr.bf16.mxu0 0
  %4072 = vmatpush1.bf16.xpose.msra.mxu0 0
  %4073 = vmatprep.subr.bf16.mxu0 0
  %4074 = vmatpush1.bf16.xpose.msra.mxu0 0
  %4075 = vmatprep.subr.bf16.mxu0 0
  %4076 = vmatpush1.bf16.xpose.msra.mxu0 0
  %4077 = vmatprep.subr.bf16.mxu0 0
  %4078 = vmatpush1.bf16.xpose.msra.mxu0 0
  %4079 = vmatprep.subr.bf16.mxu0 0
  %4080 = vmatpush1.bf16.xpose.msra.mxu0 0
  %4081 = vmatprep.subr.bf16.mxu0 0
  %4082 = vmatpush1.bf16.xpose.msra.mxu0 0
  %4083 = vmatprep.subr.bf16.mxu0 0
  %4084 = vmatpush1.bf16.xpose.msra.mxu0 0
  %4085 = vmatprep.subr.bf16.mxu0 0
  %4086 = vmatpush1.bf16.xpose.msra.mxu0 0
  %4087 = vmatprep.subr.bf16.mxu0 0
  %4088 = vmatpush1.bf16.xpose.msra.mxu0 0
  %4089 = vmatprep.subr.bf16.mxu0 0
  %4090 = vmatpush1.bf16.xpose.msra.mxu0 0
  %4091 = vmatprep.mubr.bf16.mxu0 0
  %4092 = vmatmul.mubr.bf16.gmra.mrb[0].mxu0 %v4048
  %v4093 = vpop.f32.mrb[0].mxu0
  %v4094 = vadd.f32 0.0, %v4093
  %v4095 = vpop.f32.mrb[0].mxu0
  %v4096 = vpop.f32.mrb[0].mxu0
  %v4097 = vadd.f32 0.0, %v4096
  %v4098 = vpop.f32.mrb[0].mxu0
  %4099 = vmatprep.mubr.bf16.mxu0 0
  %4100 = vmatmul.mubr.bf16.gmra.mrb[0].mxu0 %v4051
  %v4101 = vpop.f32.mrb[0].mxu0
  %v4102 = vadd.f32 0.0, %v4101
  %v4103 = vpop.f32.mrb[0].mxu0
  %v4104 = vpop.f32.mrb[0].mxu0
  %v4105 = vadd.f32 0.0, %v4104
  %v4106 = vpop.f32.mrb[0].mxu0
  %4107 = vdwg.mxu0
  %v4108 = vmul.f32 %v4094, 0.25
  %v4109 = vmul.f32 %v4097, 0.25
  %v4110 = vmul.f32 %v4102, 0.25
  %v4111 = vmul.f32 %v4105, 0.25
  %v4112 = vadd.f32 %v4108, %v54
  %v4113 = vadd.f32 %v4109, %v55
  %v4114 = vadd.f32 %v4110, %v56
  %v4115 = vadd.f32 %v4111, %v57
  %v4116 = vsel %vm506, %v4112, -inf
  %4117 = vmax.xlane.f32.xlu0 %v4116
  %v4118 = vpop.xlane.xlu0 %4117
  %v4119 = vsel %vm506, %v4113, -inf
  %4120 = vmax.xlane.f32.xlu0 %v4119
  %v4121 = vpop.xlane.xlu0 %4120
  %v4122 = vsel %vm506, %v4114, -inf
  %4123 = vmax.xlane.f32.xlu0 %v4122
  %v4124 = vpop.xlane.xlu0 %4123
  %v4125 = vsel %vm506, %v4115, -inf
  %4126 = vmax.xlane.f32.xlu0 %v4125
  %v4127 = vpop.xlane.xlu0 %4126
  %v4128 = vsub.f32 %v4112, %v4118
  %v4129 = vsub.f32 %v4113, %v4121
  %v4130 = vsub.f32 %v4114, %v4124
  %v4131 = vsub.f32 %v4115, %v4127
  %v4132 = vmul.f32 %v4128, 1.442695
  %v4133 = vpow.pop %v4132
  %v4134 = vmul.f32 %v4129, 1.442695
  %v4135 = vpow.pop %v4134
  %v4136 = vmul.f32 %v4130, 1.442695
  %v4137 = vpow.pop %v4136
  %v4138 = vmul.f32 %v4131, 1.442695
  %v4139 = vpow.pop %v4138
  %v4140 = vsel %vm506, %v4133, 0.0
  %4141 = vadd.xlane.f32.xlu0 %v4140
  %v4142 = vpop.xlane.xlu0 %4141
  %v4143 = vsel %vm506, %v4135, 0.0
  %4144 = vadd.xlane.f32.xlu0 %v4143
  %v4145 = vpop.xlane.xlu0 %4144
  %v4146 = vsel %vm506, %v4137, 0.0
  %4147 = vadd.xlane.f32.xlu0 %v4146
  %v4148 = vpop.xlane.xlu0 %4147
  %v4149 = vsel %vm506, %v4139, 0.0
  %4150 = vadd.xlane.f32.xlu0 %v4149
  %v4151 = vpop.xlane.xlu0 %4150
  %v4152 = vrcp.pop %v4142
  %v4153 = vmul.f32 %v4133, %v4152
  %v4154 = vrcp.pop %v4145
  %v4155 = vmul.f32 %v4135, %v4154
  %v4156 = vrcp.pop %v4148
  %v4157 = vmul.f32 %v4137, %v4156
  %v4158 = vrcp.pop %v4151
  %v4159 = vmul.f32 %v4139, %v4158
  %v4160 = vpack.c.bf16 %v4155, %v4153
  %v4161 = vpack.c.bf16 %v4159, %v4157
  %4162 = vrot.lane.b32.xlu0 %v3677, 96
  %v4163 = vpop.permute.xlu0 %4162
  %4164 = vrot.lane.b32.xlu0 %v3678, 96
  %v4165 = vpop.permute.xlu0 %4164
  %v4169 = vsel %vm506, %v4160, 0
  %v4172 = vsel %vm506, %v4161, 0
  %4174 = vmatprep.subr.bf16.mxu0 0
  %4175 = vmatpush1.bf16.msra.mxu0 %v4163
  %4176 = vmatprep.subr.bf16.mxu0 0
  %4177 = vmatpush1.bf16.msra.mxu0 %v4165
  %4178 = vmatprep.subr.bf16.mxu0 0
  %4179 = vmatpush1.bf16.msra.mxu0 0
  %4180 = vmatprep.subr.bf16.mxu0 0
  %4181 = vmatpush1.bf16.msra.mxu0 0
  %4182 = vmatprep.subr.bf16.mxu0 0
  %4183 = vmatpush1.bf16.msra.mxu0 0
  %4184 = vmatprep.subr.bf16.mxu0 0
  %4185 = vmatpush1.bf16.msra.mxu0 0
  %4186 = vmatprep.subr.bf16.mxu0 0
  %4187 = vmatpush1.bf16.msra.mxu0 0
  %4188 = vmatprep.subr.bf16.mxu0 0
  %4189 = vmatpush1.bf16.msra.mxu0 0
  %4190 = vmatprep.subr.bf16.mxu0 0
  %4191 = vmatpush1.bf16.msra.mxu0 0
  %4192 = vmatprep.subr.bf16.mxu0 0
  %4193 = vmatpush1.bf16.msra.mxu0 0
  %4194 = vmatprep.subr.bf16.mxu0 0
  %4195 = vmatpush1.bf16.msra.mxu0 0
  %4196 = vmatprep.subr.bf16.mxu0 0
  %4197 = vmatpush1.bf16.msra.mxu0 0
  %4198 = vmatprep.subr.bf16.mxu0 0
  %4199 = vmatpush1.bf16.msra.mxu0 0
  %4200 = vmatprep.subr.bf16.mxu0 0
  %4201 = vmatpush1.bf16.msra.mxu0 0
  %4202 = vmatprep.subr.bf16.mxu0 0
  %4203 = vmatpush1.bf16.msra.mxu0 0
  %4204 = vmatprep.subr.bf16.mxu0 0
  %4205 = vmatpush1.bf16.msra.mxu0 0
  %4206 = vmatprep.mubr.bf16.mxu0 0
  %4207 = vmatmul.mubr.bf16.gmra.mrb[0].mxu0 %v4169
  %v4208 = vpop.f32.mrb[0].mxu0
  %v4209 = vadd.f32 0.0, %v4208
  %v4210 = vpop.f32.mrb[0].mxu0
  %v4211 = vpop.f32.mrb[0].mxu0
  %v4212 = vadd.f32 0.0, %v4211
  %v4213 = vpop.f32.mrb[0].mxu0
  %4214 = vmatprep.mubr.bf16.mxu0 0
  %4215 = vmatmul.mubr.bf16.gmra.mrb[0].mxu0 %v4172
  %v4216 = vpop.f32.mrb[0].mxu0
  %v4217 = vadd.f32 0.0, %v4216
  %v4218 = vpop.f32.mrb[0].mxu0
  %v4219 = vpop.f32.mrb[0].mxu0
  %v4220 = vadd.f32 0.0, %v4219
  %v4221 = vpop.f32.mrb[0].mxu0
  %4222 = vdwg.mxu0
  %4223 = vrot.lane.b32.xlu0 %v3673, 80
  %v4224 = vpop.permute.xlu0 %4223
  %4225 = vrot.lane.b32.xlu0 %v3674, 80
  %v4226 = vpop.permute.xlu0 %4225
  %4227 = vrot.lane.b32.xlu0 %v3675, 80
  %v4228 = vpop.permute.xlu0 %4227
  %4229 = vrot.lane.b32.xlu0 %v3676, 80
  %v4230 = vpop.permute.xlu0 %4229
  %v4232 = vsel %vm436, %v4224, 0
  %v4235 = vsel %vm436, %v4226, 0
  %v4238 = vsel %vm436, %v4228, 0
  %v4241 = vsel %vm436, %v4230, 0
  %4243 = vmatprep.subr.bf16.mxu0 0
  %4244 = vmatpush1.bf16.xpose.msra.mxu0 %v4238
  %4245 = vmatprep.subr.bf16.mxu0 0
  %4246 = vmatpush1.bf16.xpose.msra.mxu0 %v4241
  %4247 = vmatprep.subr.bf16.mxu0 0
  %4248 = vmatpush1.bf16.xpose.msra.mxu0 0
  %4249 = vmatprep.subr.bf16.mxu0 0
  %4250 = vmatpush1.bf16.xpose.msra.mxu0 0
  %4251 = vmatprep.subr.bf16.mxu0 0
  %4252 = vmatpush1.bf16.xpose.msra.mxu0 0
  %4253 = vmatprep.subr.bf16.mxu0 0
  %4254 = vmatpush1.bf16.xpose.msra.mxu0 0
  %4255 = vmatprep.subr.bf16.mxu0 0
  %4256 = vmatpush1.bf16.xpose.msra.mxu0 0
  %4257 = vmatprep.subr.bf16.mxu0 0
  %4258 = vmatpush1.bf16.xpose.msra.mxu0 0
  %4259 = vmatprep.subr.bf16.mxu0 0
  %4260 = vmatpush1.bf16.xpose.msra.mxu0 0
  %4261 = vmatprep.subr.bf16.mxu0 0
  %4262 = vmatpush1.bf16.xpose.msra.mxu0 0
  %4263 = vmatprep.subr.bf16.mxu0 0
  %4264 = vmatpush1.bf16.xpose.msra.mxu0 0
  %4265 = vmatprep.subr.bf16.mxu0 0
  %4266 = vmatpush1.bf16.xpose.msra.mxu0 0
  %4267 = vmatprep.subr.bf16.mxu0 0
  %4268 = vmatpush1.bf16.xpose.msra.mxu0 0
  %4269 = vmatprep.subr.bf16.mxu0 0
  %4270 = vmatpush1.bf16.xpose.msra.mxu0 0
  %4271 = vmatprep.subr.bf16.mxu0 0
  %4272 = vmatpush1.bf16.xpose.msra.mxu0 0
  %4273 = vmatprep.subr.bf16.mxu0 0
  %4274 = vmatpush1.bf16.xpose.msra.mxu0 0
  %4275 = vmatprep.mubr.bf16.mxu0 0
  %4276 = vmatmul.mubr.bf16.gmra.mrb[0].mxu0 %v4232
  %v4277 = vpop.f32.mrb[0].mxu0
  %v4278 = vadd.f32 0.0, %v4277
  %v4279 = vpop.f32.mrb[0].mxu0
  %v4280 = vpop.f32.mrb[0].mxu0
  %v4281 = vadd.f32 0.0, %v4280
  %v4282 = vpop.f32.mrb[0].mxu0
  %4283 = vmatprep.mubr.bf16.mxu0 0
  %4284 = vmatmul.mubr.bf16.gmra.mrb[0].mxu0 %v4235
  %v4285 = vpop.f32.mrb[0].mxu0
  %v4286 = vadd.f32 0.0, %v4285
  %v4287 = vpop.f32.mrb[0].mxu0
  %v4288 = vpop.f32.mrb[0].mxu0
  %v4289 = vadd.f32 0.0, %v4288
  %v4290 = vpop.f32.mrb[0].mxu0
  %4291 = vdwg.mxu0
  %v4292 = vmul.f32 %v4278, 0.25
  %v4293 = vmul.f32 %v4281, 0.25
  %v4294 = vmul.f32 %v4286, 0.25
  %v4295 = vmul.f32 %v4289, 0.25
  %v4296 = vadd.f32 %v4292, %v54
  %v4297 = vadd.f32 %v4293, %v55
  %v4298 = vadd.f32 %v4294, %v56
  %v4299 = vadd.f32 %v4295, %v57
  %v4300 = vsel %vm506, %v4296, -inf
  %4301 = vmax.xlane.f32.xlu0 %v4300
  %v4302 = vpop.xlane.xlu0 %4301
  %v4303 = vsel %vm506, %v4297, -inf
  %4304 = vmax.xlane.f32.xlu0 %v4303
  %v4305 = vpop.xlane.xlu0 %4304
  %v4306 = vsel %vm506, %v4298, -inf
  %4307 = vmax.xlane.f32.xlu0 %v4306
  %v4308 = vpop.xlane.xlu0 %4307
  %v4309 = vsel %vm506, %v4299, -inf
  %4310 = vmax.xlane.f32.xlu0 %v4309
  %v4311 = vpop.xlane.xlu0 %4310
  %v4312 = vsub.f32 %v4296, %v4302
  %v4313 = vsub.f32 %v4297, %v4305
  %v4314 = vsub.f32 %v4298, %v4308
  %v4315 = vsub.f32 %v4299, %v4311
  %v4316 = vmul.f32 %v4312, 1.442695
  %v4317 = vpow.pop %v4316
  %v4318 = vmul.f32 %v4313, 1.442695
  %v4319 = vpow.pop %v4318
  %v4320 = vmul.f32 %v4314, 1.442695
  %v4321 = vpow.pop %v4320
  %v4322 = vmul.f32 %v4315, 1.442695
  %v4323 = vpow.pop %v4322
  %v4324 = vsel %vm506, %v4317, 0.0
  %4325 = vadd.xlane.f32.xlu0 %v4324
  %v4326 = vpop.xlane.xlu0 %4325
  %v4327 = vsel %vm506, %v4319, 0.0
  %4328 = vadd.xlane.f32.xlu0 %v4327
  %v4329 = vpop.xlane.xlu0 %4328
  %v4330 = vsel %vm506, %v4321, 0.0
  %4331 = vadd.xlane.f32.xlu0 %v4330
  %v4332 = vpop.xlane.xlu0 %4331
  %v4333 = vsel %vm506, %v4323, 0.0
  %4334 = vadd.xlane.f32.xlu0 %v4333
  %v4335 = vpop.xlane.xlu0 %4334
  %v4336 = vrcp.pop %v4326
  %v4337 = vmul.f32 %v4317, %v4336
  %v4338 = vrcp.pop %v4329
  %v4339 = vmul.f32 %v4319, %v4338
  %v4340 = vrcp.pop %v4332
  %v4341 = vmul.f32 %v4321, %v4340
  %v4342 = vrcp.pop %v4335
  %v4343 = vmul.f32 %v4323, %v4342
  %v4344 = vpack.c.bf16 %v4339, %v4337
  %v4345 = vpack.c.bf16 %v4343, %v4341
  %4346 = vrot.lane.b32.xlu0 %v3677, 80
  %v4347 = vpop.permute.xlu0 %4346
  %4348 = vrot.lane.b32.xlu0 %v3678, 80
  %v4349 = vpop.permute.xlu0 %4348
  %v4353 = vsel %vm506, %v4344, 0
  %v4356 = vsel %vm506, %v4345, 0
  %4358 = vmatprep.subr.bf16.mxu0 0
  %4359 = vmatpush1.bf16.msra.mxu0 %v4347
  %4360 = vmatprep.subr.bf16.mxu0 0
  %4361 = vmatpush1.bf16.msra.mxu0 %v4349
  %4362 = vmatprep.subr.bf16.mxu0 0
  %4363 = vmatpush1.bf16.msra.mxu0 0
  %4364 = vmatprep.subr.bf16.mxu0 0
  %4365 = vmatpush1.bf16.msra.mxu0 0
  %4366 = vmatprep.subr.bf16.mxu0 0
  %4367 = vmatpush1.bf16.msra.mxu0 0
  %4368 = vmatprep.subr.bf16.mxu0 0
  %4369 = vmatpush1.bf16.msra.mxu0 0
  %4370 = vmatprep.subr.bf16.mxu0 0
  %4371 = vmatpush1.bf16.msra.mxu0 0
  %4372 = vmatprep.subr.bf16.mxu0 0
  %4373 = vmatpush1.bf16.msra.mxu0 0
  %4374 = vmatprep.subr.bf16.mxu0 0
  %4375 = vmatpush1.bf16.msra.mxu0 0
  %4376 = vmatprep.subr.bf16.mxu0 0
  %4377 = vmatpush1.bf16.msra.mxu0 0
  %4378 = vmatprep.subr.bf16.mxu0 0
  %4379 = vmatpush1.bf16.msra.mxu0 0
  %4380 = vmatprep.subr.bf16.mxu0 0
  %4381 = vmatpush1.bf16.msra.mxu0 0
  %4382 = vmatprep.subr.bf16.mxu0 0
  %4383 = vmatpush1.bf16.msra.mxu0 0
  %4384 = vmatprep.subr.bf16.mxu0 0
  %4385 = vmatpush1.bf16.msra.mxu0 0
  %4386 = vmatprep.subr.bf16.mxu0 0
  %4387 = vmatpush1.bf16.msra.mxu0 0
  %4388 = vmatprep.subr.bf16.mxu0 0
  %4389 = vmatpush1.bf16.msra.mxu0 0
  %4390 = vmatprep.mubr.bf16.mxu0 0
  %4391 = vmatmul.mubr.bf16.gmra.mrb[0].mxu0 %v4353
  %v4392 = vpop.f32.mrb[0].mxu0
  %v4393 = vadd.f32 0.0, %v4392
  %v4394 = vpop.f32.mrb[0].mxu0
  %v4395 = vpop.f32.mrb[0].mxu0
  %v4396 = vadd.f32 0.0, %v4395
  %v4397 = vpop.f32.mrb[0].mxu0
  %4398 = vmatprep.mubr.bf16.mxu0 0
  %4399 = vmatmul.mubr.bf16.gmra.mrb[0].mxu0 %v4356
  %v4400 = vpop.f32.mrb[0].mxu0
  %v4401 = vadd.f32 0.0, %v4400
  %v4402 = vpop.f32.mrb[0].mxu0
  %v4403 = vpop.f32.mrb[0].mxu0
  %v4404 = vadd.f32 0.0, %v4403
  %v4405 = vpop.f32.mrb[0].mxu0
  %4406 = vdwg.mxu0
  %4411 = vrot.lane.b32.xlu0 %v4025, 16
  %v4412 = vpop.permute.xlu0 %4411
  %4413 = vrot.lane.b32.xlu0 %v4028, 16
  %v4414 = vpop.permute.xlu0 %4413
  %4415 = vrot.lane.b32.xlu0 %v4033, 16
  %v4416 = vpop.permute.xlu0 %4415
  %4417 = vrot.lane.b32.xlu0 %v4036, 16
  %v4418 = vpop.permute.xlu0 %4417
  %4427 = vrot.lane.b32.xlu0 %v4209, 32
  %v4428 = vpop.permute.xlu0 %4427
  %4429 = vrot.lane.b32.xlu0 %v4212, 32
  %v4430 = vpop.permute.xlu0 %4429
  %4431 = vrot.lane.b32.xlu0 %v4217, 32
  %v4432 = vpop.permute.xlu0 %4431
  %4433 = vrot.lane.b32.xlu0 %v4220, 32
  %v4434 = vpop.permute.xlu0 %4433
  %4443 = vrot.lane.b32.xlu0 %v4393, 48
  %v4444 = vpop.permute.xlu0 %4443
  %4445 = vrot.lane.b32.xlu0 %v4396, 48
  %v4446 = vpop.permute.xlu0 %4445
  %4447 = vrot.lane.b32.xlu0 %v4401, 48
  %v4448 = vpop.permute.xlu0 %4447
  %4449 = vrot.lane.b32.xlu0 %v4404, 48
  %v4450 = vpop.permute.xlu0 %4449
  %v4455 = vsel %vm436, %v3835, %v4412
  %v4456 = vsel %vm436, %v3838, %v4414
  %v4457 = vsel %vm436, %v3843, %v4416
  %v4458 = vsel %vm436, %v3846, %v4418
  %v4459 = vsel %vm506, %v4455, %v4428
  %v4460 = vsel %vm506, %v4456, %v4430
  %v4461 = vsel %vm506, %v4457, %v4432
  %v4462 = vsel %vm506, %v4458, %v4434
  %v4463 = vsel %vm1222, %v4459, %v4444
  %v4464 = vsel %vm1222, %v4460, %v4446
  %v4465 = vsel %vm1222, %v4461, %v4448
  %v4466 = vsel %vm1222, %v4462, %v4450
  %v4467 = vpack.c.bf16 %v4464, %v4463
  %v4468 = vpack.c.bf16 %v4466, %v4465
  %v4469 = vlaneseq
  %v4470 = vshrl.u32 %v4469, 7
  %v4471 = vsub.s32 7, %v4470
  %v4472 = vrot.slane %v60, %v4471
  %v4481 = vunpack.c.l.b16 %v3400
  %v4482 = vunpack.c.l.b16 %v3401
  %v4483 = vunpack.c.l.b16 %v3402
  %v4484 = vunpack.c.l.b16 %v3403
  %v4485 = vunpack.c.l.b16 %v3404
  %v4486 = vunpack.c.l.b16 %v3405
  %v4487 = vunpack.c.l.b16 %v3406
  %v4488 = vunpack.c.l.b16 %v3407
  %v4489 = vpack.c.b16 %v4482, %v4481
  %v4490 = vpack.c.b16 %v4484, %v4483
  %v4491 = vpack.c.b16 %v4486, %v4485
  %v4492 = vpack.c.b16 %v4488, %v4487
  %v4498 = vsel %vm65, %v4467, 0
  %v4501 = vsel %vm65, %v4468, 0
  %4503 = vmatprep.subr.bf16.mxu0 0
  %4504 = vmatpush1.bf16.msra.mxu0 %v4489
  %4505 = vmatprep.subr.bf16.mxu0 0
  %4506 = vmatpush1.bf16.msra.mxu0 %v4490
  %4507 = vmatprep.subr.bf16.mxu0 0
  %4508 = vmatpush1.bf16.msra.mxu0 %v4491
  %4509 = vmatprep.subr.bf16.mxu0 0
  %4510 = vmatpush1.bf16.msra.mxu0 %v4492
  %4511 = vmatprep.subr.bf16.mxu0 0
  %4512 = vmatpush1.bf16.msra.mxu0 0
  %4513 = vmatprep.subr.bf16.mxu0 0
  %4514 = vmatpush1.bf16.msra.mxu0 0
  %4515 = vmatprep.subr.bf16.mxu0 0
  %4516 = vmatpush1.bf16.msra.mxu0 0
  %4517 = vmatprep.subr.bf16.mxu0 0
  %4518 = vmatpush1.bf16.msra.mxu0 0
  %4519 = vmatprep.subr.bf16.mxu0 0
  %4520 = vmatpush1.bf16.msra.mxu0 0
  %4521 = vmatprep.subr.bf16.mxu0 0
  %4522 = vmatpush1.bf16.msra.mxu0 0
  %4523 = vmatprep.subr.bf16.mxu0 0
  %4524 = vmatpush1.bf16.msra.mxu0 0
  %4525 = vmatprep.subr.bf16.mxu0 0
  %4526 = vmatpush1.bf16.msra.mxu0 0
  %4527 = vmatprep.subr.bf16.mxu0 0
  %4528 = vmatpush1.bf16.msra.mxu0 0
  %4529 = vmatprep.subr.bf16.mxu0 0
  %4530 = vmatpush1.bf16.msra.mxu0 0
  %4531 = vmatprep.subr.bf16.mxu0 0
  %4532 = vmatpush1.bf16.msra.mxu0 0
  %4533 = vmatprep.subr.bf16.mxu0 0
  %4534 = vmatpush1.bf16.msra.mxu0 0
  %4535 = vmatprep.mubr.bf16.mxu0 0
  %4536 = vmatmul.mubr.bf16.gmra.mrb[0].mxu0 %v4498
  %v4537 = vpop.f32.mrb[0].mxu0
  %v4538 = vadd.f32 %v4472, %v4537
  %v4539 = vpop.f32.mrb[0].mxu0
  %v4540 = vpop.f32.mrb[0].mxu0
  %v4541 = vadd.f32 %v4472, %v4540
  %v4542 = vpop.f32.mrb[0].mxu0
  %4543 = vmatprep.mubr.bf16.mxu0 0
  %4544 = vmatmul.mubr.bf16.gmra.mrb[0].mxu0 %v4501
  %v4545 = vpop.f32.mrb[0].mxu0
  %v4546 = vadd.f32 %v4472, %v4545
  %v4547 = vpop.f32.mrb[0].mxu0
  %v4548 = vpop.f32.mrb[0].mxu0
  %v4549 = vadd.f32 %v4472, %v4548
  %v4550 = vpop.f32.mrb[0].mxu0
  %4551 = vdwg.mxu0
  %v4552 = vadd.f32 %v3368, %v4538
  %v4553 = vadd.f32 %v3369, %v4541
  %v4554 = vadd.f32 %v3370, %v4546
  %v4555 = vadd.f32 %v3371, %v4549
  %v4556 = vsel %vm65, %v4552, 0.0
  %4557 = vadd.xlane.f32.xlu0 %v4556
  %v4558 = vpop.xlane.xlu0 %4557
  %v4559 = vsel %vm65, %v4553, 0.0
  %4560 = vadd.xlane.f32.xlu0 %v4559
  %v4561 = vpop.xlane.xlu0 %4560
  %v4562 = vsel %vm65, %v4554, 0.0
  %4563 = vadd.xlane.f32.xlu0 %v4562
  %v4564 = vpop.xlane.xlu0 %4563
  %v4565 = vsel %vm65, %v4555, 0.0
  %4566 = vadd.xlane.f32.xlu0 %v4565
  %v4567 = vpop.xlane.xlu0 %4566
  %v4568 = vmul.f32 %v4558, %v78
  %v4569 = vmul.f32 %v4561, %v78
  %v4570 = vmul.f32 %v4564, %v78
  %v4571 = vmul.f32 %v4567, %v78
  %v4572 = vsub.f32 %v4552, %v4568
  %v4573 = vsub.f32 %v4553, %v4569
  %v4574 = vsub.f32 %v4554, %v4570
  %v4575 = vsub.f32 %v4555, %v4571
  %v4576 = vmul.f32 %v4572, %v4572
  %v4577 = vmul.f32 %v4573, %v4573
  %v4578 = vmul.f32 %v4574, %v4574
  %v4579 = vmul.f32 %v4575, %v4575
  %v4580 = vsel %vm65, %v4576, 0.0
  %4581 = vadd.xlane.f32.xlu0 %v4580
  %v4582 = vpop.xlane.xlu0 %4581
  %v4583 = vsel %vm65, %v4577, 0.0
  %4584 = vadd.xlane.f32.xlu0 %v4583
  %v4585 = vpop.xlane.xlu0 %4584
  %v4586 = vsel %vm65, %v4578, 0.0
  %4587 = vadd.xlane.f32.xlu0 %v4586
  %v4588 = vpop.xlane.xlu0 %4587
  %v4589 = vsel %vm65, %v4579, 0.0
  %4590 = vadd.xlane.f32.xlu0 %v4589
  %v4591 = vpop.xlane.xlu0 %4590
  %v4592 = vmul.f32 %v4582, %v78
  %v4593 = vmul.f32 %v4585, %v78
  %v4594 = vmul.f32 %v4588, %v78
  %v4595 = vmul.f32 %v4591, %v78
  %v4596 = vadd.f32 %v4592, 1e-07
  %v4597 = vadd.f32 %v4593, 1e-07
  %v4598 = vadd.f32 %v4594, 1e-07
  %v4599 = vadd.f32 %v4595, 1e-07
  %v4600 = vrsqrt.pop %v4596
  %v4601 = vrsqrt.pop %v4597
  %v4602 = vrsqrt.pop %v4598
  %v4603 = vrsqrt.pop %v4599
  %v4604 = vmul.f32 %v4572, %v4600
  %v4605 = vmul.f32 %v4573, %v4601
  %v4606 = vmul.f32 %v4574, %v4602
  %v4607 = vmul.f32 %v4575, %v4603
  %v4608 = vlaneseq
  %v4609 = vshrl.u32 %v4608, 7
  %v4610 = vsub.s32 0, %v4609
  %v4611 = vrot.slane %v61, %v4610
  %v4612 = vmul.f32 %v4604, %v4611
  %v4613 = vmul.f32 %v4605, %v4611
  %v4614 = vmul.f32 %v4606, %v4611
  %v4615 = vmul.f32 %v4607, %v4611
  %v4616 = vlaneseq
  %v4617 = vshrl.u32 %v4616, 7
  %v4618 = vsub.s32 1, %v4617
  %v4619 = vrot.slane %v61, %v4618
  %v4620 = vadd.f32 %v4612, %v4619
  %v4621 = vadd.f32 %v4613, %v4619
  %v4622 = vadd.f32 %v4614, %v4619
  %v4623 = vadd.f32 %v4615, %v4619
  %v4624 = vpack.c.bf16 %v4621, %v4620
  %v4625 = vpack.c.bf16 %v4623, %v4622
  %v4626 = vlaneseq
  %v4627 = vshrl.u32 %v4626, 7
  %v4628 = vsub.s32 2, %v4627
  %v4629 = vrot.slane %v63, %v4628
  %v4638 = vunpack.c.l.b16 %v3409
  %v4639 = vunpack.c.l.b16 %v3410
  %v4640 = vunpack.c.l.b16 %v3411
  %v4641 = vunpack.c.l.b16 %v3412
  %v4642 = vunpack.c.l.b16 %v3413
  %v4643 = vunpack.c.l.b16 %v3414
  %v4644 = vunpack.c.l.b16 %v3415
  %v4645 = vunpack.c.l.b16 %v3416
  %v4646 = vpack.c.b16 %v4639, %v4638
  %v4647 = vpack.c.b16 %v4641, %v4640
  %v4648 = vpack.c.b16 %v4643, %v4642
  %v4649 = vpack.c.b16 %v4645, %v4644
  %v4655 = vsel %vm65, %v4624, 0
  %v4658 = vsel %vm65, %v4625, 0
  %4660 = vmatprep.subr.bf16.mxu0 0
  %4661 = vmatpush1.bf16.msra.mxu0 %v4646
  %4662 = vmatprep.subr.bf16.mxu0 0
  %4663 = vmatpush1.bf16.msra.mxu0 %v4647
  %4664 = vmatprep.subr.bf16.mxu0 0
  %4665 = vmatpush1.bf16.msra.mxu0 %v4648
  %4666 = vmatprep.subr.bf16.mxu0 0
  %4667 = vmatpush1.bf16.msra.mxu0 %v4649
  %4668 = vmatprep.subr.bf16.mxu0 0
  %4669 = vmatpush1.bf16.msra.mxu0 0
  %4670 = vmatprep.subr.bf16.mxu0 0
  %4671 = vmatpush1.bf16.msra.mxu0 0
  %4672 = vmatprep.subr.bf16.mxu0 0
  %4673 = vmatpush1.bf16.msra.mxu0 0
  %4674 = vmatprep.subr.bf16.mxu0 0
  %4675 = vmatpush1.bf16.msra.mxu0 0
  %4676 = vmatprep.subr.bf16.mxu0 0
  %4677 = vmatpush1.bf16.msra.mxu0 0
  %4678 = vmatprep.subr.bf16.mxu0 0
  %4679 = vmatpush1.bf16.msra.mxu0 0
  %4680 = vmatprep.subr.bf16.mxu0 0
  %4681 = vmatpush1.bf16.msra.mxu0 0
  %4682 = vmatprep.subr.bf16.mxu0 0
  %4683 = vmatpush1.bf16.msra.mxu0 0
  %4684 = vmatprep.subr.bf16.mxu0 0
  %4685 = vmatpush1.bf16.msra.mxu0 0
  %4686 = vmatprep.subr.bf16.mxu0 0
  %4687 = vmatpush1.bf16.msra.mxu0 0
  %4688 = vmatprep.subr.bf16.mxu0 0
  %4689 = vmatpush1.bf16.msra.mxu0 0
  %4690 = vmatprep.subr.bf16.mxu0 0
  %4691 = vmatpush1.bf16.msra.mxu0 0
  %4692 = vmatprep.mubr.bf16.mxu0 0
  %4693 = vmatmul.mubr.bf16.gmra.mrb[0].mxu0 %v4655
  %v4694 = vpop.f32.mrb[0].mxu0
  %v4695 = vadd.f32 %v4629, %v4694
  %v4696 = vpop.f32.mrb[0].mxu0
  %v4697 = vpop.f32.mrb[0].mxu0
  %v4698 = vadd.f32 %v4629, %v4697
  %v4699 = vpop.f32.mrb[0].mxu0
  %4700 = vmatprep.mubr.bf16.mxu0 0
  %4701 = vmatmul.mubr.bf16.gmra.mrb[0].mxu0 %v4658
  %v4702 = vpop.f32.mrb[0].mxu0
  %v4703 = vadd.f32 %v4629, %v4702
  %v4704 = vpop.f32.mrb[0].mxu0
  %v4705 = vpop.f32.mrb[0].mxu0
  %v4706 = vadd.f32 %v4629, %v4705
  %v4707 = vpop.f32.mrb[0].mxu0
  %4708 = vdwg.mxu0
  %v4709 = vmul.f32 %v4695, 0.5
  %v4710 = vmul.f32 %v4698, 0.5
  %v4711 = vmul.f32 %v4703, 0.5
  %v4712 = vmul.f32 %v4706, 0.5
  %v4713 = vmul.f32 %v4695, 0.70710677
  %v4714 = vmul.f32 %v4698, 0.70710677
  %v4715 = vmul.f32 %v4703, 0.70710677
  %v4716 = vmul.f32 %v4706, 0.70710677
  %vm4717 = vcmp.ge.f32.partialorder %v4713, 0.0
  %vm4718 = vcmp.ge.f32.partialorder %v4714, 0.0
  %vm4719 = vcmp.ge.f32.partialorder %v4715, 0.0
  %vm4720 = vcmp.ge.f32.partialorder %v4716, 0.0
  %v4721 = vsel %vm4717, 1.0, -1.0
  %v4722 = vsel %vm4718, 1.0, -1.0
  %v4723 = vsel %vm4719, 1.0, -1.0
  %v4724 = vsel %vm4720, 1.0, -1.0
  %v4725 = vand.u32 2147483647, %v4713
  %v4726 = vand.u32 2147483647, %v4714
  %v4727 = vand.u32 2147483647, %v4715
  %v4728 = vand.u32 2147483647, %v4716
  %v4729 = vmul.f32 %v4725, 0.3275911
  %v4730 = vmul.f32 %v4726, 0.3275911
  %v4731 = vmul.f32 %v4727, 0.3275911
  %v4732 = vmul.f32 %v4728, 0.3275911
  %v4733 = vadd.f32 %v4729, 1.0
  %v4734 = vadd.f32 %v4730, 1.0
  %v4735 = vadd.f32 %v4731, 1.0
  %v4736 = vadd.f32 %v4732, 1.0
  %v4737 = vrcp.pop %v4733
  %v4738 = vmul.f32 1.0, %v4737
  %v4739 = vrcp.pop %v4734
  %v4740 = vmul.f32 1.0, %v4739
  %v4741 = vrcp.pop %v4735
  %v4742 = vmul.f32 1.0, %v4741
  %v4743 = vrcp.pop %v4736
  %v4744 = vmul.f32 1.0, %v4743
  %v4745 = vmul.f32 %v4738, 1.0614054
  %v4746 = vmul.f32 %v4740, 1.0614054
  %v4747 = vmul.f32 %v4742, 1.0614054
  %v4748 = vmul.f32 %v4744, 1.0614054
  %v4749 = vadd.f32 %v4745, -1.4531521
  %v4750 = vadd.f32 %v4746, -1.4531521
  %v4751 = vadd.f32 %v4747, -1.4531521
  %v4752 = vadd.f32 %v4748, -1.4531521
  %v4753 = vmul.f32 %v4749, %v4738
  %v4754 = vmul.f32 %v4750, %v4740
  %v4755 = vmul.f32 %v4751, %v4742
  %v4756 = vmul.f32 %v4752, %v4744
  %v4757 = vadd.f32 %v4753, 1.4214138
  %v4758 = vadd.f32 %v4754, 1.4214138
  %v4759 = vadd.f32 %v4755, 1.4214138
  %v4760 = vadd.f32 %v4756, 1.4214138
  %v4761 = vmul.f32 %v4757, %v4738
  %v4762 = vmul.f32 %v4758, %v4740
  %v4763 = vmul.f32 %v4759, %v4742
  %v4764 = vmul.f32 %v4760, %v4744
  %v4765 = vadd.f32 %v4761, -0.28449672
  %v4766 = vadd.f32 %v4762, -0.28449672
  %v4767 = vadd.f32 %v4763, -0.28449672
  %v4768 = vadd.f32 %v4764, -0.28449672
  %v4769 = vmul.f32 %v4765, %v4738
  %v4770 = vmul.f32 %v4766, %v4740
  %v4771 = vmul.f32 %v4767, %v4742
  %v4772 = vmul.f32 %v4768, %v4744
  %v4773 = vadd.f32 %v4769, 0.2548296
  %v4774 = vadd.f32 %v4770, 0.2548296
  %v4775 = vadd.f32 %v4771, 0.2548296
  %v4776 = vadd.f32 %v4772, 0.2548296
  %v4777 = vmul.f32 %v4773, %v4738
  %v4778 = vmul.f32 %v4774, %v4740
  %v4779 = vmul.f32 %v4775, %v4742
  %v4780 = vmul.f32 %v4776, %v4744
  %v4781 = vsub.f32 0.0, %v4725
  %v4782 = vsub.f32 0.0, %v4726
  %v4783 = vsub.f32 0.0, %v4727
  %v4784 = vsub.f32 0.0, %v4728
  %v4785 = vmul.f32 %v4781, %v4725
  %v4786 = vmul.f32 %v4782, %v4726
  %v4787 = vmul.f32 %v4783, %v4727
  %v4788 = vmul.f32 %v4784, %v4728
  %v4789 = vmul.f32 %v4785, 1.442695
  %v4790 = vpow.pop %v4789
  %v4791 = vmul.f32 %v4786, 1.442695
  %v4792 = vpow.pop %v4791
  %v4793 = vmul.f32 %v4787, 1.442695
  %v4794 = vpow.pop %v4793
  %v4795 = vmul.f32 %v4788, 1.442695
  %v4796 = vpow.pop %v4795
  %v4797 = vmul.f32 %v4777, %v4790
  %v4798 = vmul.f32 %v4778, %v4792
  %v4799 = vmul.f32 %v4779, %v4794
  %v4800 = vmul.f32 %v4780, %v4796
  %v4801 = vsub.f32 1.0, %v4797
  %v4802 = vsub.f32 1.0, %v4798
  %v4803 = vsub.f32 1.0, %v4799
  %v4804 = vsub.f32 1.0, %v4800
  %v4805 = vmul.f32 %v4721, %v4801
  %v4806 = vmul.f32 %v4722, %v4802
  %v4807 = vmul.f32 %v4723, %v4803
  %v4808 = vmul.f32 %v4724, %v4804
  %v4809 = vadd.f32 %v4805, 1.0
  %v4810 = vadd.f32 %v4806, 1.0
  %v4811 = vadd.f32 %v4807, 1.0
  %v4812 = vadd.f32 %v4808, 1.0
  %v4813 = vmul.f32 %v4709, %v4809
  %v4814 = vmul.f32 %v4710, %v4810
  %v4815 = vmul.f32 %v4711, %v4811
  %v4816 = vmul.f32 %v4712, %v4812
  %v4817 = vpack.c.bf16 %v4814, %v4813
  %v4818 = vpack.c.bf16 %v4816, %v4815
  %v4819 = vlaneseq
  %v4820 = vshrl.u32 %v4819, 7
  %v4821 = vsub.s32 2, %v4820
  %v4822 = vrot.slane %v61, %v4821
  %v4839 = vunpack.c.l.b16 %v3418
  %v4840 = vunpack.c.l.b16 %v3419
  %v4841 = vunpack.c.l.b16 %v3420
  %v4842 = vunpack.c.l.b16 %v3421
  %v4843 = vunpack.c.l.b16 %v3422
  %v4844 = vunpack.c.l.b16 %v3423
  %v4845 = vunpack.c.l.b16 %v3424
  %v4846 = vunpack.c.l.b16 %v3425
  %v4847 = vunpack.c.l.b16 %v3426
  %v4848 = vunpack.c.l.b16 %v3427
  %v4849 = vunpack.c.l.b16 %v3428
  %v4850 = vunpack.c.l.b16 %v3429
  %v4851 = vunpack.c.l.b16 %v3430
  %v4852 = vunpack.c.l.b16 %v3431
  %v4853 = vunpack.c.l.b16 %v3432
  %v4854 = vunpack.c.l.b16 %v3433
  %v4855 = vpack.c.b16 %v4840, %v4839
  %v4856 = vpack.c.b16 %v4842, %v4841
  %v4857 = vpack.c.b16 %v4844, %v4843
  %v4858 = vpack.c.b16 %v4846, %v4845
  %v4859 = vpack.c.b16 %v4848, %v4847
  %v4860 = vpack.c.b16 %v4850, %v4849
  %v4861 = vpack.c.b16 %v4852, %v4851
  %v4862 = vpack.c.b16 %v4854, %v4853
  %4871 = vmatprep.subr.bf16.mxu0 0
  %4872 = vmatpush1.bf16.msra.mxu0 %v4855
  %4873 = vmatprep.subr.bf16.mxu0 0
  %4874 = vmatpush1.bf16.msra.mxu0 %v4856
  %4875 = vmatprep.subr.bf16.mxu0 0
  %4876 = vmatpush1.bf16.msra.mxu0 %v4857
  %4877 = vmatprep.subr.bf16.mxu0 0
  %4878 = vmatpush1.bf16.msra.mxu0 %v4858
  %4879 = vmatprep.subr.bf16.mxu0 0
  %4880 = vmatpush1.bf16.msra.mxu0 %v4859
  %4881 = vmatprep.subr.bf16.mxu0 0
  %4882 = vmatpush1.bf16.msra.mxu0 %v4860
  %4883 = vmatprep.subr.bf16.mxu0 0
  %4884 = vmatpush1.bf16.msra.mxu0 %v4861
  %4885 = vmatprep.subr.bf16.mxu0 0
  %4886 = vmatpush1.bf16.msra.mxu0 %v4862
  %4887 = vmatprep.subr.bf16.mxu0 0
  %4888 = vmatpush1.bf16.msra.mxu0 0
  %4889 = vmatprep.subr.bf16.mxu0 0
  %4890 = vmatpush1.bf16.msra.mxu0 0
  %4891 = vmatprep.subr.bf16.mxu0 0
  %4892 = vmatpush1.bf16.msra.mxu0 0
  %4893 = vmatprep.subr.bf16.mxu0 0
  %4894 = vmatpush1.bf16.msra.mxu0 0
  %4895 = vmatprep.subr.bf16.mxu0 0
  %4896 = vmatpush1.bf16.msra.mxu0 0
  %4897 = vmatprep.subr.bf16.mxu0 0
  %4898 = vmatpush1.bf16.msra.mxu0 0
  %4899 = vmatprep.subr.bf16.mxu0 0
  %4900 = vmatpush1.bf16.msra.mxu0 0
  %4901 = vmatprep.subr.bf16.mxu0 0
  %4902 = vmatpush1.bf16.msra.mxu0 0
  %4903 = vmatprep.mubr.bf16.mxu0 0
  %4904 = vmatmul.mubr.bf16.gmra.mrb[0].mxu0 %v4817
  %v4905 = vpop.f32.mrb[0].mxu0
  %v4906 = vadd.f32 %v4822, %v4905
  %v4907 = vpop.f32.mrb[0].mxu0
  %v4908 = vpop.f32.mrb[0].mxu0
  %v4909 = vadd.f32 %v4822, %v4908
  %v4910 = vpop.f32.mrb[0].mxu0
  %4911 = vmatprep.mubr.bf16.mxu0 0
  %4912 = vmatmul.mubr.bf16.gmra.mrb[0].mxu0 %v4818
  %v4913 = vpop.f32.mrb[0].mxu0
  %v4914 = vadd.f32 %v4822, %v4913
  %v4915 = vpop.f32.mrb[0].mxu0
  %v4916 = vpop.f32.mrb[0].mxu0
  %v4917 = vadd.f32 %v4822, %v4916
  %v4918 = vpop.f32.mrb[0].mxu0
  %4919 = vdwg.mxu0
  %v4920 = vadd.f32 %v4620, %v4906
  %v4921 = vadd.f32 %v4621, %v4909
  %v4922 = vadd.f32 %v4622, %v4914
  %v4923 = vadd.f32 %v4623, %v4917
  %v4924 = vsel %vm65, %v4920, 0.0
  %4925 = vadd.xlane.f32.xlu0 %v4924
  %v4926 = vpop.xlane.xlu0 %4925
  %v4927 = vsel %vm65, %v4921, 0.0
  %4928 = vadd.xlane.f32.xlu0 %v4927
  %v4929 = vpop.xlane.xlu0 %4928
  %v4930 = vsel %vm65, %v4922, 0.0
  %4931 = vadd.xlane.f32.xlu0 %v4930
  %v4932 = vpop.xlane.xlu0 %4931
  %v4933 = vsel %vm65, %v4923, 0.0
  %4934 = vadd.xlane.f32.xlu0 %v4933
  %v4935 = vpop.xlane.xlu0 %4934
  %v4936 = vmul.f32 %v4926, %v78
  %v4937 = vmul.f32 %v4929, %v78
  %v4938 = vmul.f32 %v4932, %v78
  %v4939 = vmul.f32 %v4935, %v78
  %v4940 = vsub.f32 %v4920, %v4936
  %v4941 = vsub.f32 %v4921, %v4937
  %v4942 = vsub.f32 %v4922, %v4938
  %v4943 = vsub.f32 %v4923, %v4939
  %v4944 = vmul.f32 %v4940, %v4940
  %v4945 = vmul.f32 %v4941, %v4941
  %v4946 = vmul.f32 %v4942, %v4942
  %v4947 = vmul.f32 %v4943, %v4943
  %v4948 = vsel %vm65, %v4944, 0.0
  %4949 = vadd.xlane.f32.xlu0 %v4948
  %v4950 = vpop.xlane.xlu0 %4949
  %v4951 = vsel %vm65, %v4945, 0.0
  %4952 = vadd.xlane.f32.xlu0 %v4951
  %v4953 = vpop.xlane.xlu0 %4952
  %v4954 = vsel %vm65, %v4946, 0.0
  %4955 = vadd.xlane.f32.xlu0 %v4954
  %v4956 = vpop.xlane.xlu0 %4955
  %v4957 = vsel %vm65, %v4947, 0.0
  %4958 = vadd.xlane.f32.xlu0 %v4957
  %v4959 = vpop.xlane.xlu0 %4958
  %v4960 = vmul.f32 %v4950, %v78
  %v4961 = vmul.f32 %v4953, %v78
  %v4962 = vmul.f32 %v4956, %v78
  %v4963 = vmul.f32 %v4959, %v78
  %v4964 = vadd.f32 %v4960, 1e-07
  %v4965 = vadd.f32 %v4961, 1e-07
  %v4966 = vadd.f32 %v4962, 1e-07
  %v4967 = vadd.f32 %v4963, 1e-07
  %v4968 = vrsqrt.pop %v4964
  %v4969 = vrsqrt.pop %v4965
  %v4970 = vrsqrt.pop %v4966
  %v4971 = vrsqrt.pop %v4967
  %v4972 = vmul.f32 %v4940, %v4968
  %v4973 = vmul.f32 %v4941, %v4969
  %v4974 = vmul.f32 %v4942, %v4970
  %v4975 = vmul.f32 %v4943, %v4971
  %v4976 = vlaneseq
  %v4977 = vshrl.u32 %v4976, 7
  %v4978 = vsub.s32 3, %v4977
  %v4979 = vrot.slane %v61, %v4978
  %v4980 = vmul.f32 %v4972, %v4979
  %v4981 = vmul.f32 %v4973, %v4979
  %v4982 = vmul.f32 %v4974, %v4979
  %v4983 = vmul.f32 %v4975, %v4979
  %v4984 = vlaneseq
  %v4985 = vshrl.u32 %v4984, 7
  %v4986 = vsub.s32 4, %v4985
  %v4987 = vrot.slane %v61, %v4986
  %v4988 = vadd.f32 %v4980, %v4987
  %v4989 = vadd.f32 %v4981, %v4987
  %v4990 = vadd.f32 %v4982, %v4987
  %v4991 = vadd.f32 %v4983, %v4987
  %s4992 = scalar_lea.vmem %s6, 96
  %v4993 = vld [vmem:[%s4992] sm:$0xf]
  %v4994 = vld [vmem:[%s4992 + $0x4] sm:$0xf]
  %v4995 = vld [vmem:[%s4992 + $0x8] sm:$0xf]
  %v4996 = vld [vmem:[%s4992 + $0xc] sm:$0xf]
  %v4997 = vld [vmem:[%s4992 + $0x10] sm:$0xf]
  %v4998 = vld [vmem:[%s4992 + $0x14] sm:$0xf]
  %v4999 = vld [vmem:[%s4992 + $0x18] sm:$0xf]
  %v5000 = vld [vmem:[%s4992 + $0x1c] sm:$0xf]
  %s5001 = scalar_lea.vmem %s7, 96
  %v5002 = vld [vmem:[%s5001] sm:$0xf]
  %v5003 = vld [vmem:[%s5001 + $0x4] sm:$0xf]
  %v5004 = vld [vmem:[%s5001 + $0x8] sm:$0xf]
  %v5005 = vld [vmem:[%s5001 + $0xc] sm:$0xf]
  %v5006 = vld [vmem:[%s5001 + $0x10] sm:$0xf]
  %v5007 = vld [vmem:[%s5001 + $0x14] sm:$0xf]
  %v5008 = vld [vmem:[%s5001 + $0x18] sm:$0xf]
  %v5009 = vld [vmem:[%s5001 + $0x1c] sm:$0xf]
  %s5010 = scalar_lea.vmem %s8, 96
  %v5011 = vld [vmem:[%s5010] sm:$0xf]
  %v5012 = vld [vmem:[%s5010 + $0x4] sm:$0xf]
  %v5013 = vld [vmem:[%s5010 + $0x8] sm:$0xf]
  %v5014 = vld [vmem:[%s5010 + $0xc] sm:$0xf]
  %v5015 = vld [vmem:[%s5010 + $0x10] sm:$0xf]
  %v5016 = vld [vmem:[%s5010 + $0x14] sm:$0xf]
  %v5017 = vld [vmem:[%s5010 + $0x18] sm:$0xf]
  %v5018 = vld [vmem:[%s5010 + $0x1c] sm:$0xf]
  %s5019 = scalar_lea.vmem %s9, 96
  %v5020 = vld [vmem:[%s5019] sm:$0xf]
  %v5021 = vld [vmem:[%s5019 + $0x4] sm:$0xf]
  %v5022 = vld [vmem:[%s5019 + $0x8] sm:$0xf]
  %v5023 = vld [vmem:[%s5019 + $0xc] sm:$0xf]
  %v5024 = vld [vmem:[%s5019 + $0x10] sm:$0xf]
  %v5025 = vld [vmem:[%s5019 + $0x14] sm:$0xf]
  %v5026 = vld [vmem:[%s5019 + $0x18] sm:$0xf]
  %v5027 = vld [vmem:[%s5019 + $0x1c] sm:$0xf]
  %s5028 = scalar_lea.vmem %s10, 96
  %v5029 = vld [vmem:[%s5028] sm:$0xf]
  %v5030 = vld [vmem:[%s5028 + $0x4] sm:$0xf]
  %v5031 = vld [vmem:[%s5028 + $0x8] sm:$0xf]
  %v5032 = vld [vmem:[%s5028 + $0xc] sm:$0xf]
  %v5033 = vld [vmem:[%s5028 + $0x10] sm:$0xf]
  %v5034 = vld [vmem:[%s5028 + $0x14] sm:$0xf]
  %v5035 = vld [vmem:[%s5028 + $0x18] sm:$0xf]
  %v5036 = vld [vmem:[%s5028 + $0x1c] sm:$0xf]
  %s5037 = scalar_lea.vmem %s11, 192
  %v5038 = vld [vmem:[%s5037] sm:$0xf]
  %v5039 = vld [vmem:[%s5037 + $0x4] sm:$0xf]
  %v5040 = vld [vmem:[%s5037 + $0x8] sm:$0xf]
  %v5041 = vld [vmem:[%s5037 + $0xc] sm:$0xf]
  %v5042 = vld [vmem:[%s5037 + $0x10] sm:$0xf]
  %v5043 = vld [vmem:[%s5037 + $0x14] sm:$0xf]
  %v5044 = vld [vmem:[%s5037 + $0x18] sm:$0xf]
  %v5045 = vld [vmem:[%s5037 + $0x1c] sm:$0xf]
  %v5046 = vld [vmem:[%s5037 + $0x20] sm:$0xf]
  %v5047 = vld [vmem:[%s5037 + $0x24] sm:$0xf]
  %v5048 = vld [vmem:[%s5037 + $0x28] sm:$0xf]
  %v5049 = vld [vmem:[%s5037 + $0x2c] sm:$0xf]
  %v5050 = vld [vmem:[%s5037 + $0x30] sm:$0xf]
  %v5051 = vld [vmem:[%s5037 + $0x34] sm:$0xf]
  %v5052 = vld [vmem:[%s5037 + $0x38] sm:$0xf]
  %v5053 = vld [vmem:[%s5037 + $0x3c] sm:$0xf]
  %v5054 = vpack.c.bf16 %v4989, %v4988
  %v5055 = vpack.c.bf16 %v4991, %v4990
  %v5056 = vlaneseq
  %v5057 = vshrl.u32 %v5056, 7
  %v5058 = vsub.s32 5, %v5057
  %v5059 = vrot.slane %v61, %v5058
  %v5068 = vunpack.c.l.b16 %v4993
  %v5069 = vunpack.c.l.b16 %v4994
  %v5070 = vunpack.c.l.b16 %v4995
  %v5071 = vunpack.c.l.b16 %v4996
  %v5072 = vunpack.c.l.b16 %v4997
  %v5073 = vunpack.c.l.b16 %v4998
  %v5074 = vunpack.c.l.b16 %v4999
  %v5075 = vunpack.c.l.b16 %v5000
  %v5076 = vpack.c.b16 %v5069, %v5068
  %v5077 = vpack.c.b16 %v5071, %v5070
  %v5078 = vpack.c.b16 %v5073, %v5072
  %v5079 = vpack.c.b16 %v5075, %v5074
  %v5085 = vsel %vm65, %v5054, 0
  %v5088 = vsel %vm65, %v5055, 0
  %5090 = vmatprep.subr.bf16.mxu0 0
  %5091 = vmatpush1.bf16.msra.mxu0 %v5076
  %5092 = vmatprep.subr.bf16.mxu0 0
  %5093 = vmatpush1.bf16.msra.mxu0 %v5077
  %5094 = vmatprep.subr.bf16.mxu0 0
  %5095 = vmatpush1.bf16.msra.mxu0 %v5078
  %5096 = vmatprep.subr.bf16.mxu0 0
  %5097 = vmatpush1.bf16.msra.mxu0 %v5079
  %5098 = vmatprep.subr.bf16.mxu0 0
  %5099 = vmatpush1.bf16.msra.mxu0 0
  %5100 = vmatprep.subr.bf16.mxu0 0
  %5101 = vmatpush1.bf16.msra.mxu0 0
  %5102 = vmatprep.subr.bf16.mxu0 0
  %5103 = vmatpush1.bf16.msra.mxu0 0
  %5104 = vmatprep.subr.bf16.mxu0 0
  %5105 = vmatpush1.bf16.msra.mxu0 0
  %5106 = vmatprep.subr.bf16.mxu0 0
  %5107 = vmatpush1.bf16.msra.mxu0 0
  %5108 = vmatprep.subr.bf16.mxu0 0
  %5109 = vmatpush1.bf16.msra.mxu0 0
  %5110 = vmatprep.subr.bf16.mxu0 0
  %5111 = vmatpush1.bf16.msra.mxu0 0
  %5112 = vmatprep.subr.bf16.mxu0 0
  %5113 = vmatpush1.bf16.msra.mxu0 0
  %5114 = vmatprep.subr.bf16.mxu0 0
  %5115 = vmatpush1.bf16.msra.mxu0 0
  %5116 = vmatprep.subr.bf16.mxu0 0
  %5117 = vmatpush1.bf16.msra.mxu0 0
  %5118 = vmatprep.subr.bf16.mxu0 0
  %5119 = vmatpush1.bf16.msra.mxu0 0
  %5120 = vmatprep.subr.bf16.mxu0 0
  %5121 = vmatpush1.bf16.msra.mxu0 0
  %5122 = vmatprep.mubr.bf16.mxu0 0
  %5123 = vmatmul.mubr.bf16.gmra.mrb[0].mxu0 %v5085
  %v5124 = vpop.f32.mrb[0].mxu0
  %v5125 = vadd.f32 %v5059, %v5124
  %v5126 = vpop.f32.mrb[0].mxu0
  %v5127 = vpop.f32.mrb[0].mxu0
  %v5128 = vadd.f32 %v5059, %v5127
  %v5129 = vpop.f32.mrb[0].mxu0
  %5130 = vmatprep.mubr.bf16.mxu0 0
  %5131 = vmatmul.mubr.bf16.gmra.mrb[0].mxu0 %v5088
  %v5132 = vpop.f32.mrb[0].mxu0
  %v5133 = vadd.f32 %v5059, %v5132
  %v5134 = vpop.f32.mrb[0].mxu0
  %v5135 = vpop.f32.mrb[0].mxu0
  %v5136 = vadd.f32 %v5059, %v5135
  %v5137 = vpop.f32.mrb[0].mxu0
  %5138 = vdwg.mxu0
  %v5139 = vlaneseq
  %v5140 = vshrl.u32 %v5139, 7
  %v5141 = vsub.s32 6, %v5140
  %v5142 = vrot.slane %v61, %v5141
  %v5151 = vunpack.c.l.b16 %v5002
  %v5152 = vunpack.c.l.b16 %v5003
  %v5153 = vunpack.c.l.b16 %v5004
  %v5154 = vunpack.c.l.b16 %v5005
  %v5155 = vunpack.c.l.b16 %v5006
  %v5156 = vunpack.c.l.b16 %v5007
  %v5157 = vunpack.c.l.b16 %v5008
  %v5158 = vunpack.c.l.b16 %v5009
  %v5159 = vpack.c.b16 %v5152, %v5151
  %v5160 = vpack.c.b16 %v5154, %v5153
  %v5161 = vpack.c.b16 %v5156, %v5155
  %v5162 = vpack.c.b16 %v5158, %v5157
  %5167 = vmatprep.subr.bf16.mxu0 0
  %5168 = vmatpush1.bf16.msra.mxu0 %v5159
  %5169 = vmatprep.subr.bf16.mxu0 0
  %5170 = vmatpush1.bf16.msra.mxu0 %v5160
  %5171 = vmatprep.subr.bf16.mxu0 0
  %5172 = vmatpush1.bf16.msra.mxu0 %v5161
  %5173 = vmatprep.subr.bf16.mxu0 0
  %5174 = vmatpush1.bf16.msra.mxu0 %v5162
  %5175 = vmatprep.subr.bf16.mxu0 0
  %5176 = vmatpush1.bf16.msra.mxu0 0
  %5177 = vmatprep.subr.bf16.mxu0 0
  %5178 = vmatpush1.bf16.msra.mxu0 0
  %5179 = vmatprep.subr.bf16.mxu0 0
  %5180 = vmatpush1.bf16.msra.mxu0 0
  %5181 = vmatprep.subr.bf16.mxu0 0
  %5182 = vmatpush1.bf16.msra.mxu0 0
  %5183 = vmatprep.subr.bf16.mxu0 0
  %5184 = vmatpush1.bf16.msra.mxu0 0
  %5185 = vmatprep.subr.bf16.mxu0 0
  %5186 = vmatpush1.bf16.msra.mxu0 0
  %5187 = vmatprep.subr.bf16.mxu0 0
  %5188 = vmatpush1.bf16.msra.mxu0 0
  %5189 = vmatprep.subr.bf16.mxu0 0
  %5190 = vmatpush1.bf16.msra.mxu0 0
  %5191 = vmatprep.subr.bf16.mxu0 0
  %5192 = vmatpush1.bf16.msra.mxu0 0
  %5193 = vmatprep.subr.bf16.mxu0 0
  %5194 = vmatpush1.bf16.msra.mxu0 0
  %5195 = vmatprep.subr.bf16.mxu0 0
  %5196 = vmatpush1.bf16.msra.mxu0 0
  %5197 = vmatprep.subr.bf16.mxu0 0
  %5198 = vmatpush1.bf16.msra.mxu0 0
  %5199 = vmatprep.mubr.bf16.mxu0 0
  %5200 = vmatmul.mubr.bf16.gmra.mrb[0].mxu0 %v5085
  %v5201 = vpop.f32.mrb[0].mxu0
  %v5202 = vadd.f32 %v5142, %v5201
  %v5203 = vpop.f32.mrb[0].mxu0
  %v5204 = vpop.f32.mrb[0].mxu0
  %v5205 = vadd.f32 %v5142, %v5204
  %v5206 = vpop.f32.mrb[0].mxu0
  %5207 = vmatprep.mubr.bf16.mxu0 0
  %5208 = vmatmul.mubr.bf16.gmra.mrb[0].mxu0 %v5088
  %v5209 = vpop.f32.mrb[0].mxu0
  %v5210 = vadd.f32 %v5142, %v5209
  %v5211 = vpop.f32.mrb[0].mxu0
  %v5212 = vpop.f32.mrb[0].mxu0
  %v5213 = vadd.f32 %v5142, %v5212
  %v5214 = vpop.f32.mrb[0].mxu0
  %5215 = vdwg.mxu0
  %v5216 = vlaneseq
  %v5217 = vshrl.u32 %v5216, 7
  %v5218 = vsub.s32 7, %v5217
  %v5219 = vrot.slane %v61, %v5218
  %v5228 = vunpack.c.l.b16 %v5011
  %v5229 = vunpack.c.l.b16 %v5012
  %v5230 = vunpack.c.l.b16 %v5013
  %v5231 = vunpack.c.l.b16 %v5014
  %v5232 = vunpack.c.l.b16 %v5015
  %v5233 = vunpack.c.l.b16 %v5016
  %v5234 = vunpack.c.l.b16 %v5017
  %v5235 = vunpack.c.l.b16 %v5018
  %v5236 = vpack.c.b16 %v5229, %v5228
  %v5237 = vpack.c.b16 %v5231, %v5230
  %v5238 = vpack.c.b16 %v5233, %v5232
  %v5239 = vpack.c.b16 %v5235, %v5234
  %5244 = vmatprep.subr.bf16.mxu0 0
  %5245 = vmatpush1.bf16.msra.mxu0 %v5236
  %5246 = vmatprep.subr.bf16.mxu0 0
  %5247 = vmatpush1.bf16.msra.mxu0 %v5237
  %5248 = vmatprep.subr.bf16.mxu0 0
  %5249 = vmatpush1.bf16.msra.mxu0 %v5238
  %5250 = vmatprep.subr.bf16.mxu0 0
  %5251 = vmatpush1.bf16.msra.mxu0 %v5239
  %5252 = vmatprep.subr.bf16.mxu0 0
  %5253 = vmatpush1.bf16.msra.mxu0 0
  %5254 = vmatprep.subr.bf16.mxu0 0
  %5255 = vmatpush1.bf16.msra.mxu0 0
  %5256 = vmatprep.subr.bf16.mxu0 0
  %5257 = vmatpush1.bf16.msra.mxu0 0
  %5258 = vmatprep.subr.bf16.mxu0 0
  %5259 = vmatpush1.bf16.msra.mxu0 0
  %5260 = vmatprep.subr.bf16.mxu0 0
  %5261 = vmatpush1.bf16.msra.mxu0 0
  %5262 = vmatprep.subr.bf16.mxu0 0
  %5263 = vmatpush1.bf16.msra.mxu0 0
  %5264 = vmatprep.subr.bf16.mxu0 0
  %5265 = vmatpush1.bf16.msra.mxu0 0
  %5266 = vmatprep.subr.bf16.mxu0 0
  %5267 = vmatpush1.bf16.msra.mxu0 0
  %5268 = vmatprep.subr.bf16.mxu0 0
  %5269 = vmatpush1.bf16.msra.mxu0 0
  %5270 = vmatprep.subr.bf16.mxu0 0
  %5271 = vmatpush1.bf16.msra.mxu0 0
  %5272 = vmatprep.subr.bf16.mxu0 0
  %5273 = vmatpush1.bf16.msra.mxu0 0
  %5274 = vmatprep.subr.bf16.mxu0 0
  %5275 = vmatpush1.bf16.msra.mxu0 0
  %5276 = vmatprep.mubr.bf16.mxu0 0
  %5277 = vmatmul.mubr.bf16.gmra.mrb[0].mxu0 %v5085
  %v5278 = vpop.f32.mrb[0].mxu0
  %v5279 = vadd.f32 %v5219, %v5278
  %v5280 = vpop.f32.mrb[0].mxu0
  %v5281 = vpop.f32.mrb[0].mxu0
  %v5282 = vadd.f32 %v5219, %v5281
  %v5283 = vpop.f32.mrb[0].mxu0
  %5284 = vmatprep.mubr.bf16.mxu0 0
  %5285 = vmatmul.mubr.bf16.gmra.mrb[0].mxu0 %v5088
  %v5286 = vpop.f32.mrb[0].mxu0
  %v5287 = vadd.f32 %v5219, %v5286
  %v5288 = vpop.f32.mrb[0].mxu0
  %v5289 = vpop.f32.mrb[0].mxu0
  %v5290 = vadd.f32 %v5219, %v5289
  %v5291 = vpop.f32.mrb[0].mxu0
  %5292 = vdwg.mxu0
  %v5293 = vpack.c.bf16 %v5128, %v5125
  %v5294 = vpack.c.bf16 %v5136, %v5133
  %v5295 = vpack.c.bf16 %v5205, %v5202
  %v5296 = vpack.c.bf16 %v5213, %v5210
  %v5297 = vpack.c.bf16 %v5282, %v5279
  %v5298 = vpack.c.bf16 %v5290, %v5287
  %v5300 = vsel %vm436, %v5293, 0
  %v5303 = vsel %vm436, %v5294, 0
  %v5306 = vsel %vm436, %v5295, 0
  %v5309 = vsel %vm436, %v5296, 0
  %5311 = vmatprep.subr.bf16.mxu0 0
  %5312 = vmatpush1.bf16.xpose.msra.mxu0 %v5306
  %5313 = vmatprep.subr.bf16.mxu0 0
  %5314 = vmatpush1.bf16.xpose.msra.mxu0 %v5309
  %5315 = vmatprep.subr.bf16.mxu0 0
  %5316 = vmatpush1.bf16.xpose.msra.mxu0 0
  %5317 = vmatprep.subr.bf16.mxu0 0
  %5318 = vmatpush1.bf16.xpose.msra.mxu0 0
  %5319 = vmatprep.subr.bf16.mxu0 0
  %5320 = vmatpush1.bf16.xpose.msra.mxu0 0
  %5321 = vmatprep.subr.bf16.mxu0 0
  %5322 = vmatpush1.bf16.xpose.msra.mxu0 0
  %5323 = vmatprep.subr.bf16.mxu0 0
  %5324 = vmatpush1.bf16.xpose.msra.mxu0 0
  %5325 = vmatprep.subr.bf16.mxu0 0
  %5326 = vmatpush1.bf16.xpose.msra.mxu0 0
  %5327 = vmatprep.subr.bf16.mxu0 0
  %5328 = vmatpush1.bf16.xpose.msra.mxu0 0
  %5329 = vmatprep.subr.bf16.mxu0 0
  %5330 = vmatpush1.bf16.xpose.msra.mxu0 0
  %5331 = vmatprep.subr.bf16.mxu0 0
  %5332 = vmatpush1.bf16.xpose.msra.mxu0 0
  %5333 = vmatprep.subr.bf16.mxu0 0
  %5334 = vmatpush1.bf16.xpose.msra.mxu0 0
  %5335 = vmatprep.subr.bf16.mxu0 0
  %5336 = vmatpush1.bf16.xpose.msra.mxu0 0
  %5337 = vmatprep.subr.bf16.mxu0 0
  %5338 = vmatpush1.bf16.xpose.msra.mxu0 0
  %5339 = vmatprep.subr.bf16.mxu0 0
  %5340 = vmatpush1.bf16.xpose.msra.mxu0 0
  %5341 = vmatprep.subr.bf16.mxu0 0
  %5342 = vmatpush1.bf16.xpose.msra.mxu0 0
  %5343 = vmatprep.mubr.bf16.mxu0 0
  %5344 = vmatmul.mubr.bf16.gmra.mrb[0].mxu0 %v5300
  %v5345 = vpop.f32.mrb[0].mxu0
  %v5346 = vadd.f32 0.0, %v5345
  %v5347 = vpop.f32.mrb[0].mxu0
  %v5348 = vpop.f32.mrb[0].mxu0
  %v5349 = vadd.f32 0.0, %v5348
  %v5350 = vpop.f32.mrb[0].mxu0
  %5351 = vmatprep.mubr.bf16.mxu0 0
  %5352 = vmatmul.mubr.bf16.gmra.mrb[0].mxu0 %v5303
  %v5353 = vpop.f32.mrb[0].mxu0
  %v5354 = vadd.f32 0.0, %v5353
  %v5355 = vpop.f32.mrb[0].mxu0
  %v5356 = vpop.f32.mrb[0].mxu0
  %v5357 = vadd.f32 0.0, %v5356
  %v5358 = vpop.f32.mrb[0].mxu0
  %5359 = vdwg.mxu0
  %v5360 = vmul.f32 %v5346, 0.25
  %v5361 = vmul.f32 %v5349, 0.25
  %v5362 = vmul.f32 %v5354, 0.25
  %v5363 = vmul.f32 %v5357, 0.25
  %v5364 = vadd.f32 %v5360, %v54
  %v5365 = vadd.f32 %v5361, %v55
  %v5366 = vadd.f32 %v5362, %v56
  %v5367 = vadd.f32 %v5363, %v57
  %v5368 = vsel %vm506, %v5364, -inf
  %5369 = vmax.xlane.f32.xlu0 %v5368
  %v5370 = vpop.xlane.xlu0 %5369
  %v5371 = vsel %vm506, %v5365, -inf
  %5372 = vmax.xlane.f32.xlu0 %v5371
  %v5373 = vpop.xlane.xlu0 %5372
  %v5374 = vsel %vm506, %v5366, -inf
  %5375 = vmax.xlane.f32.xlu0 %v5374
  %v5376 = vpop.xlane.xlu0 %5375
  %v5377 = vsel %vm506, %v5367, -inf
  %5378 = vmax.xlane.f32.xlu0 %v5377
  %v5379 = vpop.xlane.xlu0 %5378
  %v5380 = vsub.f32 %v5364, %v5370
  %v5381 = vsub.f32 %v5365, %v5373
  %v5382 = vsub.f32 %v5366, %v5376
  %v5383 = vsub.f32 %v5367, %v5379
  %v5384 = vmul.f32 %v5380, 1.442695
  %v5385 = vpow.pop %v5384
  %v5386 = vmul.f32 %v5381, 1.442695
  %v5387 = vpow.pop %v5386
  %v5388 = vmul.f32 %v5382, 1.442695
  %v5389 = vpow.pop %v5388
  %v5390 = vmul.f32 %v5383, 1.442695
  %v5391 = vpow.pop %v5390
  %v5392 = vsel %vm506, %v5385, 0.0
  %5393 = vadd.xlane.f32.xlu0 %v5392
  %v5394 = vpop.xlane.xlu0 %5393
  %v5395 = vsel %vm506, %v5387, 0.0
  %5396 = vadd.xlane.f32.xlu0 %v5395
  %v5397 = vpop.xlane.xlu0 %5396
  %v5398 = vsel %vm506, %v5389, 0.0
  %5399 = vadd.xlane.f32.xlu0 %v5398
  %v5400 = vpop.xlane.xlu0 %5399
  %v5401 = vsel %vm506, %v5391, 0.0
  %5402 = vadd.xlane.f32.xlu0 %v5401
  %v5403 = vpop.xlane.xlu0 %5402
  %v5404 = vrcp.pop %v5394
  %v5405 = vmul.f32 %v5385, %v5404
  %v5406 = vrcp.pop %v5397
  %v5407 = vmul.f32 %v5387, %v5406
  %v5408 = vrcp.pop %v5400
  %v5409 = vmul.f32 %v5389, %v5408
  %v5410 = vrcp.pop %v5403
  %v5411 = vmul.f32 %v5391, %v5410
  %v5412 = vpack.c.bf16 %v5407, %v5405
  %v5413 = vpack.c.bf16 %v5411, %v5409
  %v5415 = vsel %vm506, %v5412, 0
  %v5418 = vsel %vm506, %v5413, 0
  %5420 = vmatprep.subr.bf16.mxu0 0
  %5421 = vmatpush1.bf16.msra.mxu0 %v5297
  %5422 = vmatprep.subr.bf16.mxu0 0
  %5423 = vmatpush1.bf16.msra.mxu0 %v5298
  %5424 = vmatprep.subr.bf16.mxu0 0
  %5425 = vmatpush1.bf16.msra.mxu0 0
  %5426 = vmatprep.subr.bf16.mxu0 0
  %5427 = vmatpush1.bf16.msra.mxu0 0
  %5428 = vmatprep.subr.bf16.mxu0 0
  %5429 = vmatpush1.bf16.msra.mxu0 0
  %5430 = vmatprep.subr.bf16.mxu0 0
  %5431 = vmatpush1.bf16.msra.mxu0 0
  %5432 = vmatprep.subr.bf16.mxu0 0
  %5433 = vmatpush1.bf16.msra.mxu0 0
  %5434 = vmatprep.subr.bf16.mxu0 0
  %5435 = vmatpush1.bf16.msra.mxu0 0
  %5436 = vmatprep.subr.bf16.mxu0 0
  %5437 = vmatpush1.bf16.msra.mxu0 0
  %5438 = vmatprep.subr.bf16.mxu0 0
  %5439 = vmatpush1.bf16.msra.mxu0 0
  %5440 = vmatprep.subr.bf16.mxu0 0
  %5441 = vmatpush1.bf16.msra.mxu0 0
  %5442 = vmatprep.subr.bf16.mxu0 0
  %5443 = vmatpush1.bf16.msra.mxu0 0
  %5444 = vmatprep.subr.bf16.mxu0 0
  %5445 = vmatpush1.bf16.msra.mxu0 0
  %5446 = vmatprep.subr.bf16.mxu0 0
  %5447 = vmatpush1.bf16.msra.mxu0 0
  %5448 = vmatprep.subr.bf16.mxu0 0
  %5449 = vmatpush1.bf16.msra.mxu0 0
  %5450 = vmatprep.subr.bf16.mxu0 0
  %5451 = vmatpush1.bf16.msra.mxu0 0
  %5452 = vmatprep.mubr.bf16.mxu0 0
  %5453 = vmatmul.mubr.bf16.gmra.mrb[0].mxu0 %v5415
  %v5454 = vpop.f32.mrb[0].mxu0
  %v5455 = vadd.f32 0.0, %v5454
  %v5456 = vpop.f32.mrb[0].mxu0
  %v5457 = vpop.f32.mrb[0].mxu0
  %v5458 = vadd.f32 0.0, %v5457
  %v5459 = vpop.f32.mrb[0].mxu0
  %5460 = vmatprep.mubr.bf16.mxu0 0
  %5461 = vmatmul.mubr.bf16.gmra.mrb[0].mxu0 %v5418
  %v5462 = vpop.f32.mrb[0].mxu0
  %v5463 = vadd.f32 0.0, %v5462
  %v5464 = vpop.f32.mrb[0].mxu0
  %v5465 = vpop.f32.mrb[0].mxu0
  %v5466 = vadd.f32 0.0, %v5465
  %v5467 = vpop.f32.mrb[0].mxu0
  %5468 = vdwg.mxu0
  %5471 = vrot.lane.b32.xlu0 %v5293, 112
  %v5472 = vpop.permute.xlu0 %5471
  %5473 = vrot.lane.b32.xlu0 %v5294, 112
  %v5474 = vpop.permute.xlu0 %5473
  %5477 = vrot.lane.b32.xlu0 %v5295, 112
  %v5478 = vpop.permute.xlu0 %5477
  %5479 = vrot.lane.b32.xlu0 %v5296, 112
  %v5480 = vpop.permute.xlu0 %5479
  %v5482 = vsel %vm436, %v5472, 0
  %v5485 = vsel %vm436, %v5474, 0
  %v5488 = vsel %vm436, %v5478, 0
  %v5491 = vsel %vm436, %v5480, 0
  %5493 = vmatprep.subr.bf16.mxu0 0
  %5494 = vmatpush1.bf16.xpose.msra.mxu0 %v5488
  %5495 = vmatprep.subr.bf16.mxu0 0
  %5496 = vmatpush1.bf16.xpose.msra.mxu0 %v5491
  %5497 = vmatprep.subr.bf16.mxu0 0
  %5498 = vmatpush1.bf16.xpose.msra.mxu0 0
  %5499 = vmatprep.subr.bf16.mxu0 0
  %5500 = vmatpush1.bf16.xpose.msra.mxu0 0
  %5501 = vmatprep.subr.bf16.mxu0 0
  %5502 = vmatpush1.bf16.xpose.msra.mxu0 0
  %5503 = vmatprep.subr.bf16.mxu0 0
  %5504 = vmatpush1.bf16.xpose.msra.mxu0 0
  %5505 = vmatprep.subr.bf16.mxu0 0
  %5506 = vmatpush1.bf16.xpose.msra.mxu0 0
  %5507 = vmatprep.subr.bf16.mxu0 0
  %5508 = vmatpush1.bf16.xpose.msra.mxu0 0
  %5509 = vmatprep.subr.bf16.mxu0 0
  %5510 = vmatpush1.bf16.xpose.msra.mxu0 0
  %5511 = vmatprep.subr.bf16.mxu0 0
  %5512 = vmatpush1.bf16.xpose.msra.mxu0 0
  %5513 = vmatprep.subr.bf16.mxu0 0
  %5514 = vmatpush1.bf16.xpose.msra.mxu0 0
  %5515 = vmatprep.subr.bf16.mxu0 0
  %5516 = vmatpush1.bf16.xpose.msra.mxu0 0
  %5517 = vmatprep.subr.bf16.mxu0 0
  %5518 = vmatpush1.bf16.xpose.msra.mxu0 0
  %5519 = vmatprep.subr.bf16.mxu0 0
  %5520 = vmatpush1.bf16.xpose.msra.mxu0 0
  %5521 = vmatprep.subr.bf16.mxu0 0
  %5522 = vmatpush1.bf16.xpose.msra.mxu0 0
  %5523 = vmatprep.subr.bf16.mxu0 0
  %5524 = vmatpush1.bf16.xpose.msra.mxu0 0
  %5525 = vmatprep.mubr.bf16.mxu0 0
  %5526 = vmatmul.mubr.bf16.gmra.mrb[0].mxu0 %v5482
  %v5527 = vpop.f32.mrb[0].mxu0
  %v5528 = vadd.f32 0.0, %v5527
  %v5529 = vpop.f32.mrb[0].mxu0
  %v5530 = vpop.f32.mrb[0].mxu0
  %v5531 = vadd.f32 0.0, %v5530
  %v5532 = vpop.f32.mrb[0].mxu0
  %5533 = vmatprep.mubr.bf16.mxu0 0
  %5534 = vmatmul.mubr.bf16.gmra.mrb[0].mxu0 %v5485
  %v5535 = vpop.f32.mrb[0].mxu0
  %v5536 = vadd.f32 0.0, %v5535
  %v5537 = vpop.f32.mrb[0].mxu0
  %v5538 = vpop.f32.mrb[0].mxu0
  %v5539 = vadd.f32 0.0, %v5538
  %v5540 = vpop.f32.mrb[0].mxu0
  %5541 = vdwg.mxu0
  %v5542 = vmul.f32 %v5528, 0.25
  %v5543 = vmul.f32 %v5531, 0.25
  %v5544 = vmul.f32 %v5536, 0.25
  %v5545 = vmul.f32 %v5539, 0.25
  %v5546 = vadd.f32 %v5542, %v54
  %v5547 = vadd.f32 %v5543, %v55
  %v5548 = vadd.f32 %v5544, %v56
  %v5549 = vadd.f32 %v5545, %v57
  %v5550 = vsel %vm506, %v5546, -inf
  %5551 = vmax.xlane.f32.xlu0 %v5550
  %v5552 = vpop.xlane.xlu0 %5551
  %v5553 = vsel %vm506, %v5547, -inf
  %5554 = vmax.xlane.f32.xlu0 %v5553
  %v5555 = vpop.xlane.xlu0 %5554
  %v5556 = vsel %vm506, %v5548, -inf
  %5557 = vmax.xlane.f32.xlu0 %v5556
  %v5558 = vpop.xlane.xlu0 %5557
  %v5559 = vsel %vm506, %v5549, -inf
  %5560 = vmax.xlane.f32.xlu0 %v5559
  %v5561 = vpop.xlane.xlu0 %5560
  %v5562 = vsub.f32 %v5546, %v5552
  %v5563 = vsub.f32 %v5547, %v5555
  %v5564 = vsub.f32 %v5548, %v5558
  %v5565 = vsub.f32 %v5549, %v5561
  %v5566 = vmul.f32 %v5562, 1.442695
  %v5567 = vpow.pop %v5566
  %v5568 = vmul.f32 %v5563, 1.442695
  %v5569 = vpow.pop %v5568
  %v5570 = vmul.f32 %v5564, 1.442695
  %v5571 = vpow.pop %v5570
  %v5572 = vmul.f32 %v5565, 1.442695
  %v5573 = vpow.pop %v5572
  %v5574 = vsel %vm506, %v5567, 0.0
  %5575 = vadd.xlane.f32.xlu0 %v5574
  %v5576 = vpop.xlane.xlu0 %5575
  %v5577 = vsel %vm506, %v5569, 0.0
  %5578 = vadd.xlane.f32.xlu0 %v5577
  %v5579 = vpop.xlane.xlu0 %5578
  %v5580 = vsel %vm506, %v5571, 0.0
  %5581 = vadd.xlane.f32.xlu0 %v5580
  %v5582 = vpop.xlane.xlu0 %5581
  %v5583 = vsel %vm506, %v5573, 0.0
  %5584 = vadd.xlane.f32.xlu0 %v5583
  %v5585 = vpop.xlane.xlu0 %5584
  %v5586 = vrcp.pop %v5576
  %v5587 = vmul.f32 %v5567, %v5586
  %v5588 = vrcp.pop %v5579
  %v5589 = vmul.f32 %v5569, %v5588
  %v5590 = vrcp.pop %v5582
  %v5591 = vmul.f32 %v5571, %v5590
  %v5592 = vrcp.pop %v5585
  %v5593 = vmul.f32 %v5573, %v5592
  %v5594 = vpack.c.bf16 %v5589, %v5587
  %v5595 = vpack.c.bf16 %v5593, %v5591
  %5598 = vrot.lane.b32.xlu0 %v5297, 112
  %v5599 = vpop.permute.xlu0 %5598
  %5600 = vrot.lane.b32.xlu0 %v5298, 112
  %v5601 = vpop.permute.xlu0 %5600
  %v5605 = vsel %vm506, %v5594, 0
  %v5608 = vsel %vm506, %v5595, 0
  %5610 = vmatprep.subr.bf16.mxu0 0
  %5611 = vmatpush1.bf16.msra.mxu0 %v5599
  %5612 = vmatprep.subr.bf16.mxu0 0
  %5613 = vmatpush1.bf16.msra.mxu0 %v5601
  %5614 = vmatprep.subr.bf16.mxu0 0
  %5615 = vmatpush1.bf16.msra.mxu0 0
  %5616 = vmatprep.subr.bf16.mxu0 0
  %5617 = vmatpush1.bf16.msra.mxu0 0
  %5618 = vmatprep.subr.bf16.mxu0 0
  %5619 = vmatpush1.bf16.msra.mxu0 0
  %5620 = vmatprep.subr.bf16.mxu0 0
  %5621 = vmatpush1.bf16.msra.mxu0 0
  %5622 = vmatprep.subr.bf16.mxu0 0
  %5623 = vmatpush1.bf16.msra.mxu0 0
  %5624 = vmatprep.subr.bf16.mxu0 0
  %5625 = vmatpush1.bf16.msra.mxu0 0
  %5626 = vmatprep.subr.bf16.mxu0 0
  %5627 = vmatpush1.bf16.msra.mxu0 0
  %5628 = vmatprep.subr.bf16.mxu0 0
  %5629 = vmatpush1.bf16.msra.mxu0 0
  %5630 = vmatprep.subr.bf16.mxu0 0
  %5631 = vmatpush1.bf16.msra.mxu0 0
  %5632 = vmatprep.subr.bf16.mxu0 0
  %5633 = vmatpush1.bf16.msra.mxu0 0
  %5634 = vmatprep.subr.bf16.mxu0 0
  %5635 = vmatpush1.bf16.msra.mxu0 0
  %5636 = vmatprep.subr.bf16.mxu0 0
  %5637 = vmatpush1.bf16.msra.mxu0 0
  %5638 = vmatprep.subr.bf16.mxu0 0
  %5639 = vmatpush1.bf16.msra.mxu0 0
  %5640 = vmatprep.subr.bf16.mxu0 0
  %5641 = vmatpush1.bf16.msra.mxu0 0
  %5642 = vmatprep.mubr.bf16.mxu0 0
  %5643 = vmatmul.mubr.bf16.gmra.mrb[0].mxu0 %v5605
  %v5644 = vpop.f32.mrb[0].mxu0
  %v5645 = vadd.f32 0.0, %v5644
  %v5646 = vpop.f32.mrb[0].mxu0
  %v5647 = vpop.f32.mrb[0].mxu0
  %v5648 = vadd.f32 0.0, %v5647
  %v5649 = vpop.f32.mrb[0].mxu0
  %5650 = vmatprep.mubr.bf16.mxu0 0
  %5651 = vmatmul.mubr.bf16.gmra.mrb[0].mxu0 %v5608
  %v5652 = vpop.f32.mrb[0].mxu0
  %v5653 = vadd.f32 0.0, %v5652
  %v5654 = vpop.f32.mrb[0].mxu0
  %v5655 = vpop.f32.mrb[0].mxu0
  %v5656 = vadd.f32 0.0, %v5655
  %v5657 = vpop.f32.mrb[0].mxu0
  %5658 = vdwg.mxu0
  %5659 = vrot.lane.b32.xlu0 %v5293, 96
  %v5660 = vpop.permute.xlu0 %5659
  %5661 = vrot.lane.b32.xlu0 %v5294, 96
  %v5662 = vpop.permute.xlu0 %5661
  %5663 = vrot.lane.b32.xlu0 %v5295, 96
  %v5664 = vpop.permute.xlu0 %5663
  %5665 = vrot.lane.b32.xlu0 %v5296, 96
  %v5666 = vpop.permute.xlu0 %5665
  %v5668 = vsel %vm436, %v5660, 0
  %v5671 = vsel %vm436, %v5662, 0
  %v5674 = vsel %vm436, %v5664, 0
  %v5677 = vsel %vm436, %v5666, 0
  %5679 = vmatprep.subr.bf16.mxu0 0
  %5680 = vmatpush1.bf16.xpose.msra.mxu0 %v5674
  %5681 = vmatprep.subr.bf16.mxu0 0
  %5682 = vmatpush1.bf16.xpose.msra.mxu0 %v5677
  %5683 = vmatprep.subr.bf16.mxu0 0
  %5684 = vmatpush1.bf16.xpose.msra.mxu0 0
  %5685 = vmatprep.subr.bf16.mxu0 0
  %5686 = vmatpush1.bf16.xpose.msra.mxu0 0
  %5687 = vmatprep.subr.bf16.mxu0 0
  %5688 = vmatpush1.bf16.xpose.msra.mxu0 0
  %5689 = vmatprep.subr.bf16.mxu0 0
  %5690 = vmatpush1.bf16.xpose.msra.mxu0 0
  %5691 = vmatprep.subr.bf16.mxu0 0
  %5692 = vmatpush1.bf16.xpose.msra.mxu0 0
  %5693 = vmatprep.subr.bf16.mxu0 0
  %5694 = vmatpush1.bf16.xpose.msra.mxu0 0
  %5695 = vmatprep.subr.bf16.mxu0 0
  %5696 = vmatpush1.bf16.xpose.msra.mxu0 0
  %5697 = vmatprep.subr.bf16.mxu0 0
  %5698 = vmatpush1.bf16.xpose.msra.mxu0 0
  %5699 = vmatprep.subr.bf16.mxu0 0
  %5700 = vmatpush1.bf16.xpose.msra.mxu0 0
  %5701 = vmatprep.subr.bf16.mxu0 0
  %5702 = vmatpush1.bf16.xpose.msra.mxu0 0
  %5703 = vmatprep.subr.bf16.mxu0 0
  %5704 = vmatpush1.bf16.xpose.msra.mxu0 0
  %5705 = vmatprep.subr.bf16.mxu0 0
  %5706 = vmatpush1.bf16.xpose.msra.mxu0 0
  %5707 = vmatprep.subr.bf16.mxu0 0
  %5708 = vmatpush1.bf16.xpose.msra.mxu0 0
  %5709 = vmatprep.subr.bf16.mxu0 0
  %5710 = vmatpush1.bf16.xpose.msra.mxu0 0
  %5711 = vmatprep.mubr.bf16.mxu0 0
  %5712 = vmatmul.mubr.bf16.gmra.mrb[0].mxu0 %v5668
  %v5713 = vpop.f32.mrb[0].mxu0
  %v5714 = vadd.f32 0.0, %v5713
  %v5715 = vpop.f32.mrb[0].mxu0
  %v5716 = vpop.f32.mrb[0].mxu0
  %v5717 = vadd.f32 0.0, %v5716
  %v5718 = vpop.f32.mrb[0].mxu0
  %5719 = vmatprep.mubr.bf16.mxu0 0
  %5720 = vmatmul.mubr.bf16.gmra.mrb[0].mxu0 %v5671
  %v5721 = vpop.f32.mrb[0].mxu0
  %v5722 = vadd.f32 0.0, %v5721
  %v5723 = vpop.f32.mrb[0].mxu0
  %v5724 = vpop.f32.mrb[0].mxu0
  %v5725 = vadd.f32 0.0, %v5724
  %v5726 = vpop.f32.mrb[0].mxu0
  %5727 = vdwg.mxu0
  %v5728 = vmul.f32 %v5714, 0.25
  %v5729 = vmul.f32 %v5717, 0.25
  %v5730 = vmul.f32 %v5722, 0.25
  %v5731 = vmul.f32 %v5725, 0.25
  %v5732 = vadd.f32 %v5728, %v54
  %v5733 = vadd.f32 %v5729, %v55
  %v5734 = vadd.f32 %v5730, %v56
  %v5735 = vadd.f32 %v5731, %v57
  %v5736 = vsel %vm506, %v5732, -inf
  %5737 = vmax.xlane.f32.xlu0 %v5736
  %v5738 = vpop.xlane.xlu0 %5737
  %v5739 = vsel %vm506, %v5733, -inf
  %5740 = vmax.xlane.f32.xlu0 %v5739
  %v5741 = vpop.xlane.xlu0 %5740
  %v5742 = vsel %vm506, %v5734, -inf
  %5743 = vmax.xlane.f32.xlu0 %v5742
  %v5744 = vpop.xlane.xlu0 %5743
  %v5745 = vsel %vm506, %v5735, -inf
  %5746 = vmax.xlane.f32.xlu0 %v5745
  %v5747 = vpop.xlane.xlu0 %5746
  %v5748 = vsub.f32 %v5732, %v5738
  %v5749 = vsub.f32 %v5733, %v5741
  %v5750 = vsub.f32 %v5734, %v5744
  %v5751 = vsub.f32 %v5735, %v5747
  %v5752 = vmul.f32 %v5748, 1.442695
  %v5753 = vpow.pop %v5752
  %v5754 = vmul.f32 %v5749, 1.442695
  %v5755 = vpow.pop %v5754
  %v5756 = vmul.f32 %v5750, 1.442695
  %v5757 = vpow.pop %v5756
  %v5758 = vmul.f32 %v5751, 1.442695
  %v5759 = vpow.pop %v5758
  %v5760 = vsel %vm506, %v5753, 0.0
  %5761 = vadd.xlane.f32.xlu0 %v5760
  %v5762 = vpop.xlane.xlu0 %5761
  %v5763 = vsel %vm506, %v5755, 0.0
  %5764 = vadd.xlane.f32.xlu0 %v5763
  %v5765 = vpop.xlane.xlu0 %5764
  %v5766 = vsel %vm506, %v5757, 0.0
  %5767 = vadd.xlane.f32.xlu0 %v5766
  %v5768 = vpop.xlane.xlu0 %5767
  %v5769 = vsel %vm506, %v5759, 0.0
  %5770 = vadd.xlane.f32.xlu0 %v5769
  %v5771 = vpop.xlane.xlu0 %5770
  %v5772 = vrcp.pop %v5762
  %v5773 = vmul.f32 %v5753, %v5772
  %v5774 = vrcp.pop %v5765
  %v5775 = vmul.f32 %v5755, %v5774
  %v5776 = vrcp.pop %v5768
  %v5777 = vmul.f32 %v5757, %v5776
  %v5778 = vrcp.pop %v5771
  %v5779 = vmul.f32 %v5759, %v5778
  %v5780 = vpack.c.bf16 %v5775, %v5773
  %v5781 = vpack.c.bf16 %v5779, %v5777
  %5782 = vrot.lane.b32.xlu0 %v5297, 96
  %v5783 = vpop.permute.xlu0 %5782
  %5784 = vrot.lane.b32.xlu0 %v5298, 96
  %v5785 = vpop.permute.xlu0 %5784
  %v5789 = vsel %vm506, %v5780, 0
  %v5792 = vsel %vm506, %v5781, 0
  %5794 = vmatprep.subr.bf16.mxu0 0
  %5795 = vmatpush1.bf16.msra.mxu0 %v5783
  %5796 = vmatprep.subr.bf16.mxu0 0
  %5797 = vmatpush1.bf16.msra.mxu0 %v5785
  %5798 = vmatprep.subr.bf16.mxu0 0
  %5799 = vmatpush1.bf16.msra.mxu0 0
  %5800 = vmatprep.subr.bf16.mxu0 0
  %5801 = vmatpush1.bf16.msra.mxu0 0
  %5802 = vmatprep.subr.bf16.mxu0 0
  %5803 = vmatpush1.bf16.msra.mxu0 0
  %5804 = vmatprep.subr.bf16.mxu0 0
  %5805 = vmatpush1.bf16.msra.mxu0 0
  %5806 = vmatprep.subr.bf16.mxu0 0
  %5807 = vmatpush1.bf16.msra.mxu0 0
  %5808 = vmatprep.subr.bf16.mxu0 0
  %5809 = vmatpush1.bf16.msra.mxu0 0
  %5810 = vmatprep.subr.bf16.mxu0 0
  %5811 = vmatpush1.bf16.msra.mxu0 0
  %5812 = vmatprep.subr.bf16.mxu0 0
  %5813 = vmatpush1.bf16.msra.mxu0 0
  %5814 = vmatprep.subr.bf16.mxu0 0
  %5815 = vmatpush1.bf16.msra.mxu0 0
  %5816 = vmatprep.subr.bf16.mxu0 0
  %5817 = vmatpush1.bf16.msra.mxu0 0
  %5818 = vmatprep.subr.bf16.mxu0 0
  %5819 = vmatpush1.bf16.msra.mxu0 0
  %5820 = vmatprep.subr.bf16.mxu0 0
  %5821 = vmatpush1.bf16.msra.mxu0 0
  %5822 = vmatprep.subr.bf16.mxu0 0
  %5823 = vmatpush1.bf16.msra.mxu0 0
  %5824 = vmatprep.subr.bf16.mxu0 0
  %5825 = vmatpush1.bf16.msra.mxu0 0
  %5826 = vmatprep.mubr.bf16.mxu0 0
  %5827 = vmatmul.mubr.bf16.gmra.mrb[0].mxu0 %v5789
  %v5828 = vpop.f32.mrb[0].mxu0
  %v5829 = vadd.f32 0.0, %v5828
  %v5830 = vpop.f32.mrb[0].mxu0
  %v5831 = vpop.f32.mrb[0].mxu0
  %v5832 = vadd.f32 0.0, %v5831
  %v5833 = vpop.f32.mrb[0].mxu0
  %5834 = vmatprep.mubr.bf16.mxu0 0
  %5835 = vmatmul.mubr.bf16.gmra.mrb[0].mxu0 %v5792
  %v5836 = vpop.f32.mrb[0].mxu0
  %v5837 = vadd.f32 0.0, %v5836
  %v5838 = vpop.f32.mrb[0].mxu0
  %v5839 = vpop.f32.mrb[0].mxu0
  %v5840 = vadd.f32 0.0, %v5839
  %v5841 = vpop.f32.mrb[0].mxu0
  %5842 = vdwg.mxu0
  %5843 = vrot.lane.b32.xlu0 %v5293, 80
  %v5844 = vpop.permute.xlu0 %5843
  %5845 = vrot.lane.b32.xlu0 %v5294, 80
  %v5846 = vpop.permute.xlu0 %5845
  %5847 = vrot.lane.b32.xlu0 %v5295, 80
  %v5848 = vpop.permute.xlu0 %5847
  %5849 = vrot.lane.b32.xlu0 %v5296, 80
  %v5850 = vpop.permute.xlu0 %5849
  %v5852 = vsel %vm436, %v5844, 0
  %v5855 = vsel %vm436, %v5846, 0
  %v5858 = vsel %vm436, %v5848, 0
  %v5861 = vsel %vm436, %v5850, 0
  %5863 = vmatprep.subr.bf16.mxu0 0
  %5864 = vmatpush1.bf16.xpose.msra.mxu0 %v5858
  %5865 = vmatprep.subr.bf16.mxu0 0
  %5866 = vmatpush1.bf16.xpose.msra.mxu0 %v5861
  %5867 = vmatprep.subr.bf16.mxu0 0
  %5868 = vmatpush1.bf16.xpose.msra.mxu0 0
  %5869 = vmatprep.subr.bf16.mxu0 0
  %5870 = vmatpush1.bf16.xpose.msra.mxu0 0
  %5871 = vmatprep.subr.bf16.mxu0 0
  %5872 = vmatpush1.bf16.xpose.msra.mxu0 0
  %5873 = vmatprep.subr.bf16.mxu0 0
  %5874 = vmatpush1.bf16.xpose.msra.mxu0 0
  %5875 = vmatprep.subr.bf16.mxu0 0
  %5876 = vmatpush1.bf16.xpose.msra.mxu0 0
  %5877 = vmatprep.subr.bf16.mxu0 0
  %5878 = vmatpush1.bf16.xpose.msra.mxu0 0
  %5879 = vmatprep.subr.bf16.mxu0 0
  %5880 = vmatpush1.bf16.xpose.msra.mxu0 0
  %5881 = vmatprep.subr.bf16.mxu0 0
  %5882 = vmatpush1.bf16.xpose.msra.mxu0 0
  %5883 = vmatprep.subr.bf16.mxu0 0
  %5884 = vmatpush1.bf16.xpose.msra.mxu0 0
  %5885 = vmatprep.subr.bf16.mxu0 0
  %5886 = vmatpush1.bf16.xpose.msra.mxu0 0
  %5887 = vmatprep.subr.bf16.mxu0 0
  %5888 = vmatpush1.bf16.xpose.msra.mxu0 0
  %5889 = vmatprep.subr.bf16.mxu0 0
  %5890 = vmatpush1.bf16.xpose.msra.mxu0 0
  %5891 = vmatprep.subr.bf16.mxu0 0
  %5892 = vmatpush1.bf16.xpose.msra.mxu0 0
  %5893 = vmatprep.subr.bf16.mxu0 0
  %5894 = vmatpush1.bf16.xpose.msra.mxu0 0
  %5895 = vmatprep.mubr.bf16.mxu0 0
  %5896 = vmatmul.mubr.bf16.gmra.mrb[0].mxu0 %v5852
  %v5897 = vpop.f32.mrb[0].mxu0
  %v5898 = vadd.f32 0.0, %v5897
  %v5899 = vpop.f32.mrb[0].mxu0
  %v5900 = vpop.f32.mrb[0].mxu0
  %v5901 = vadd.f32 0.0, %v5900
  %v5902 = vpop.f32.mrb[0].mxu0
  %5903 = vmatprep.mubr.bf16.mxu0 0
  %5904 = vmatmul.mubr.bf16.gmra.mrb[0].mxu0 %v5855
  %v5905 = vpop.f32.mrb[0].mxu0
  %v5906 = vadd.f32 0.0, %v5905
  %v5907 = vpop.f32.mrb[0].mxu0
  %v5908 = vpop.f32.mrb[0].mxu0
  %v5909 = vadd.f32 0.0, %v5908
  %v5910 = vpop.f32.mrb[0].mxu0
  %5911 = vdwg.mxu0
  %v5912 = vmul.f32 %v5898, 0.25
  %v5913 = vmul.f32 %v5901, 0.25
  %v5914 = vmul.f32 %v5906, 0.25
  %v5915 = vmul.f32 %v5909, 0.25
  %v5916 = vadd.f32 %v5912, %v54
  %v5917 = vadd.f32 %v5913, %v55
  %v5918 = vadd.f32 %v5914, %v56
  %v5919 = vadd.f32 %v5915, %v57
  %v5920 = vsel %vm506, %v5916, -inf
  %5921 = vmax.xlane.f32.xlu0 %v5920
  %v5922 = vpop.xlane.xlu0 %5921
  %v5923 = vsel %vm506, %v5917, -inf
  %5924 = vmax.xlane.f32.xlu0 %v5923
  %v5925 = vpop.xlane.xlu0 %5924
  %v5926 = vsel %vm506, %v5918, -inf
  %5927 = vmax.xlane.f32.xlu0 %v5926
  %v5928 = vpop.xlane.xlu0 %5927
  %v5929 = vsel %vm506, %v5919, -inf
  %5930 = vmax.xlane.f32.xlu0 %v5929
  %v5931 = vpop.xlane.xlu0 %5930
  %v5932 = vsub.f32 %v5916, %v5922
  %v5933 = vsub.f32 %v5917, %v5925
  %v5934 = vsub.f32 %v5918, %v5928
  %v5935 = vsub.f32 %v5919, %v5931
  %v5936 = vmul.f32 %v5932, 1.442695
  %v5937 = vpow.pop %v5936
  %v5938 = vmul.f32 %v5933, 1.442695
  %v5939 = vpow.pop %v5938
  %v5940 = vmul.f32 %v5934, 1.442695
  %v5941 = vpow.pop %v5940
  %v5942 = vmul.f32 %v5935, 1.442695
  %v5943 = vpow.pop %v5942
  %v5944 = vsel %vm506, %v5937, 0.0
  %5945 = vadd.xlane.f32.xlu0 %v5944
  %v5946 = vpop.xlane.xlu0 %5945
  %v5947 = vsel %vm506, %v5939, 0.0
  %5948 = vadd.xlane.f32.xlu0 %v5947
  %v5949 = vpop.xlane.xlu0 %5948
  %v5950 = vsel %vm506, %v5941, 0.0
  %5951 = vadd.xlane.f32.xlu0 %v5950
  %v5952 = vpop.xlane.xlu0 %5951
  %v5953 = vsel %vm506, %v5943, 0.0
  %5954 = vadd.xlane.f32.xlu0 %v5953
  %v5955 = vpop.xlane.xlu0 %5954
  %v5956 = vrcp.pop %v5946
  %v5957 = vmul.f32 %v5937, %v5956
  %v5958 = vrcp.pop %v5949
  %v5959 = vmul.f32 %v5939, %v5958
  %v5960 = vrcp.pop %v5952
  %v5961 = vmul.f32 %v5941, %v5960
  %v5962 = vrcp.pop %v5955
  %v5963 = vmul.f32 %v5943, %v5962
  %v5964 = vpack.c.bf16 %v5959, %v5957
  %v5965 = vpack.c.bf16 %v5963, %v5961
  %5966 = vrot.lane.b32.xlu0 %v5297, 80
  %v5967 = vpop.permute.xlu0 %5966
  %5968 = vrot.lane.b32.xlu0 %v5298, 80
  %v5969 = vpop.permute.xlu0 %5968
  %v5973 = vsel %vm506, %v5964, 0
  %v5976 = vsel %vm506, %v5965, 0
  %5978 = vmatprep.subr.bf16.mxu0 0
  %5979 = vmatpush1.bf16.msra.mxu0 %v5967
  %5980 = vmatprep.subr.bf16.mxu0 0
  %5981 = vmatpush1.bf16.msra.mxu0 %v5969
  %5982 = vmatprep.subr.bf16.mxu0 0
  %5983 = vmatpush1.bf16.msra.mxu0 0
  %5984 = vmatprep.subr.bf16.mxu0 0
  %5985 = vmatpush1.bf16.msra.mxu0 0
  %5986 = vmatprep.subr.bf16.mxu0 0
  %5987 = vmatpush1.bf16.msra.mxu0 0
  %5988 = vmatprep.subr.bf16.mxu0 0
  %5989 = vmatpush1.bf16.msra.mxu0 0
  %5990 = vmatprep.subr.bf16.mxu0 0
  %5991 = vmatpush1.bf16.msra.mxu0 0
  %5992 = vmatprep.subr.bf16.mxu0 0
  %5993 = vmatpush1.bf16.msra.mxu0 0
  %5994 = vmatprep.subr.bf16.mxu0 0
  %5995 = vmatpush1.bf16.msra.mxu0 0
  %5996 = vmatprep.subr.bf16.mxu0 0
  %5997 = vmatpush1.bf16.msra.mxu0 0
  %5998 = vmatprep.subr.bf16.mxu0 0
  %5999 = vmatpush1.bf16.msra.mxu0 0
  %6000 = vmatprep.subr.bf16.mxu0 0
  %6001 = vmatpush1.bf16.msra.mxu0 0
  %6002 = vmatprep.subr.bf16.mxu0 0
  %6003 = vmatpush1.bf16.msra.mxu0 0
  %6004 = vmatprep.subr.bf16.mxu0 0
  %6005 = vmatpush1.bf16.msra.mxu0 0
  %6006 = vmatprep.subr.bf16.mxu0 0
  %6007 = vmatpush1.bf16.msra.mxu0 0
  %6008 = vmatprep.subr.bf16.mxu0 0
  %6009 = vmatpush1.bf16.msra.mxu0 0
  %6010 = vmatprep.mubr.bf16.mxu0 0
  %6011 = vmatmul.mubr.bf16.gmra.mrb[0].mxu0 %v5973
  %v6012 = vpop.f32.mrb[0].mxu0
  %v6013 = vadd.f32 0.0, %v6012
  %v6014 = vpop.f32.mrb[0].mxu0
  %v6015 = vpop.f32.mrb[0].mxu0
  %v6016 = vadd.f32 0.0, %v6015
  %v6017 = vpop.f32.mrb[0].mxu0
  %6018 = vmatprep.mubr.bf16.mxu0 0
  %6019 = vmatmul.mubr.bf16.gmra.mrb[0].mxu0 %v5976
  %v6020 = vpop.f32.mrb[0].mxu0
  %v6021 = vadd.f32 0.0, %v6020
  %v6022 = vpop.f32.mrb[0].mxu0
  %v6023 = vpop.f32.mrb[0].mxu0
  %v6024 = vadd.f32 0.0, %v6023
  %v6025 = vpop.f32.mrb[0].mxu0
  %6026 = vdwg.mxu0
  %6031 = vrot.lane.b32.xlu0 %v5645, 16
  %v6032 = vpop.permute.xlu0 %6031
  %6033 = vrot.lane.b32.xlu0 %v5648, 16
  %v6034 = vpop.permute.xlu0 %6033
  %6035 = vrot.lane.b32.xlu0 %v5653, 16
  %v6036 = vpop.permute.xlu0 %6035
  %6037 = vrot.lane.b32.xlu0 %v5656, 16
  %v6038 = vpop.permute.xlu0 %6037
  %6047 = vrot.lane.b32.xlu0 %v5829, 32
  %v6048 = vpop.permute.xlu0 %6047
  %6049 = vrot.lane.b32.xlu0 %v5832, 32
  %v6050 = vpop.permute.xlu0 %6049
  %6051 = vrot.lane.b32.xlu0 %v5837, 32
  %v6052 = vpop.permute.xlu0 %6051
  %6053 = vrot.lane.b32.xlu0 %v5840, 32
  %v6054 = vpop.permute.xlu0 %6053
  %6063 = vrot.lane.b32.xlu0 %v6013, 48
  %v6064 = vpop.permute.xlu0 %6063
  %6065 = vrot.lane.b32.xlu0 %v6016, 48
  %v6066 = vpop.permute.xlu0 %6065
  %6067 = vrot.lane.b32.xlu0 %v6021, 48
  %v6068 = vpop.permute.xlu0 %6067
  %6069 = vrot.lane.b32.xlu0 %v6024, 48
  %v6070 = vpop.permute.xlu0 %6069
  %v6075 = vsel %vm436, %v5455, %v6032
  %v6076 = vsel %vm436, %v5458, %v6034
  %v6077 = vsel %vm436, %v5463, %v6036
  %v6078 = vsel %vm436, %v5466, %v6038
  %v6079 = vsel %vm506, %v6075, %v6048
  %v6080 = vsel %vm506, %v6076, %v6050
  %v6081 = vsel %vm506, %v6077, %v6052
  %v6082 = vsel %vm506, %v6078, %v6054
  %v6083 = vsel %vm1222, %v6079, %v6064
  %v6084 = vsel %vm1222, %v6080, %v6066
  %v6085 = vsel %vm1222, %v6081, %v6068
  %v6086 = vsel %vm1222, %v6082, %v6070
  %v6087 = vpack.c.bf16 %v6084, %v6083
  %v6088 = vpack.c.bf16 %v6086, %v6085
  %v6089 = vlaneseq
  %v6090 = vshrl.u32 %v6089, 7
  %v6091 = vsub.s32 0, %v6090
  %v6092 = vrot.slane %v62, %v6091
  %v6101 = vunpack.c.l.b16 %v5020
  %v6102 = vunpack.c.l.b16 %v5021
  %v6103 = vunpack.c.l.b16 %v5022
  %v6104 = vunpack.c.l.b16 %v5023
  %v6105 = vunpack.c.l.b16 %v5024
  %v6106 = vunpack.c.l.b16 %v5025
  %v6107 = vunpack.c.l.b16 %v5026
  %v6108 = vunpack.c.l.b16 %v5027
  %v6109 = vpack.c.b16 %v6102, %v6101
  %v6110 = vpack.c.b16 %v6104, %v6103
  %v6111 = vpack.c.b16 %v6106, %v6105
  %v6112 = vpack.c.b16 %v6108, %v6107
  %v6118 = vsel %vm65, %v6087, 0
  %v6121 = vsel %vm65, %v6088, 0
  %6123 = vmatprep.subr.bf16.mxu0 0
  %6124 = vmatpush1.bf16.msra.mxu0 %v6109
  %6125 = vmatprep.subr.bf16.mxu0 0
  %6126 = vmatpush1.bf16.msra.mxu0 %v6110
  %6127 = vmatprep.subr.bf16.mxu0 0
  %6128 = vmatpush1.bf16.msra.mxu0 %v6111
  %6129 = vmatprep.subr.bf16.mxu0 0
  %6130 = vmatpush1.bf16.msra.mxu0 %v6112
  %6131 = vmatprep.subr.bf16.mxu0 0
  %6132 = vmatpush1.bf16.msra.mxu0 0
  %6133 = vmatprep.subr.bf16.mxu0 0
  %6134 = vmatpush1.bf16.msra.mxu0 0
  %6135 = vmatprep.subr.bf16.mxu0 0
  %6136 = vmatpush1.bf16.msra.mxu0 0
  %6137 = vmatprep.subr.bf16.mxu0 0
  %6138 = vmatpush1.bf16.msra.mxu0 0
  %6139 = vmatprep.subr.bf16.mxu0 0
  %6140 = vmatpush1.bf16.msra.mxu0 0
  %6141 = vmatprep.subr.bf16.mxu0 0
  %6142 = vmatpush1.bf16.msra.mxu0 0
  %6143 = vmatprep.subr.bf16.mxu0 0
  %6144 = vmatpush1.bf16.msra.mxu0 0
  %6145 = vmatprep.subr.bf16.mxu0 0
  %6146 = vmatpush1.bf16.msra.mxu0 0
  %6147 = vmatprep.subr.bf16.mxu0 0
  %6148 = vmatpush1.bf16.msra.mxu0 0
  %6149 = vmatprep.subr.bf16.mxu0 0
  %6150 = vmatpush1.bf16.msra.mxu0 0
  %6151 = vmatprep.subr.bf16.mxu0 0
  %6152 = vmatpush1.bf16.msra.mxu0 0
  %6153 = vmatprep.subr.bf16.mxu0 0
  %6154 = vmatpush1.bf16.msra.mxu0 0
  %6155 = vmatprep.mubr.bf16.mxu0 0
  %6156 = vmatmul.mubr.bf16.gmra.mrb[0].mxu0 %v6118
  %v6157 = vpop.f32.mrb[0].mxu0
  %v6158 = vadd.f32 %v6092, %v6157
  %v6159 = vpop.f32.mrb[0].mxu0
  %v6160 = vpop.f32.mrb[0].mxu0
  %v6161 = vadd.f32 %v6092, %v6160
  %v6162 = vpop.f32.mrb[0].mxu0
  %6163 = vmatprep.mubr.bf16.mxu0 0
  %6164 = vmatmul.mubr.bf16.gmra.mrb[0].mxu0 %v6121
  %v6165 = vpop.f32.mrb[0].mxu0
  %v6166 = vadd.f32 %v6092, %v6165
  %v6167 = vpop.f32.mrb[0].mxu0
  %v6168 = vpop.f32.mrb[0].mxu0
  %v6169 = vadd.f32 %v6092, %v6168
  %v6170 = vpop.f32.mrb[0].mxu0
  %6171 = vdwg.mxu0
  %v6172 = vadd.f32 %v4988, %v6158
  %v6173 = vadd.f32 %v4989, %v6161
  %v6174 = vadd.f32 %v4990, %v6166
  %v6175 = vadd.f32 %v4991, %v6169
  %v6176 = vsel %vm65, %v6172, 0.0
  %6177 = vadd.xlane.f32.xlu0 %v6176
  %v6178 = vpop.xlane.xlu0 %6177
  %v6179 = vsel %vm65, %v6173, 0.0
  %6180 = vadd.xlane.f32.xlu0 %v6179
  %v6181 = vpop.xlane.xlu0 %6180
  %v6182 = vsel %vm65, %v6174, 0.0
  %6183 = vadd.xlane.f32.xlu0 %v6182
  %v6184 = vpop.xlane.xlu0 %6183
  %v6185 = vsel %vm65, %v6175, 0.0
  %6186 = vadd.xlane.f32.xlu0 %v6185
  %v6187 = vpop.xlane.xlu0 %6186
  %v6188 = vmul.f32 %v6178, %v78
  %v6189 = vmul.f32 %v6181, %v78
  %v6190 = vmul.f32 %v6184, %v78
  %v6191 = vmul.f32 %v6187, %v78
  %v6192 = vsub.f32 %v6172, %v6188
  %v6193 = vsub.f32 %v6173, %v6189
  %v6194 = vsub.f32 %v6174, %v6190
  %v6195 = vsub.f32 %v6175, %v6191
  %v6196 = vmul.f32 %v6192, %v6192
  %v6197 = vmul.f32 %v6193, %v6193
  %v6198 = vmul.f32 %v6194, %v6194
  %v6199 = vmul.f32 %v6195, %v6195
  %v6200 = vsel %vm65, %v6196, 0.0
  %6201 = vadd.xlane.f32.xlu0 %v6200
  %v6202 = vpop.xlane.xlu0 %6201
  %v6203 = vsel %vm65, %v6197, 0.0
  %6204 = vadd.xlane.f32.xlu0 %v6203
  %v6205 = vpop.xlane.xlu0 %6204
  %v6206 = vsel %vm65, %v6198, 0.0
  %6207 = vadd.xlane.f32.xlu0 %v6206
  %v6208 = vpop.xlane.xlu0 %6207
  %v6209 = vsel %vm65, %v6199, 0.0
  %6210 = vadd.xlane.f32.xlu0 %v6209
  %v6211 = vpop.xlane.xlu0 %6210
  %v6212 = vmul.f32 %v6202, %v78
  %v6213 = vmul.f32 %v6205, %v78
  %v6214 = vmul.f32 %v6208, %v78
  %v6215 = vmul.f32 %v6211, %v78
  %v6216 = vadd.f32 %v6212, 1e-07
  %v6217 = vadd.f32 %v6213, 1e-07
  %v6218 = vadd.f32 %v6214, 1e-07
  %v6219 = vadd.f32 %v6215, 1e-07
  %v6220 = vrsqrt.pop %v6216
  %v6221 = vrsqrt.pop %v6217
  %v6222 = vrsqrt.pop %v6218
  %v6223 = vrsqrt.pop %v6219
  %v6224 = vmul.f32 %v6192, %v6220
  %v6225 = vmul.f32 %v6193, %v6221
  %v6226 = vmul.f32 %v6194, %v6222
  %v6227 = vmul.f32 %v6195, %v6223
  %v6228 = vlaneseq
  %v6229 = vshrl.u32 %v6228, 7
  %v6230 = vsub.s32 1, %v6229
  %v6231 = vrot.slane %v62, %v6230
  %v6232 = vmul.f32 %v6224, %v6231
  %v6233 = vmul.f32 %v6225, %v6231
  %v6234 = vmul.f32 %v6226, %v6231
  %v6235 = vmul.f32 %v6227, %v6231
  %v6236 = vlaneseq
  %v6237 = vshrl.u32 %v6236, 7
  %v6238 = vsub.s32 2, %v6237
  %v6239 = vrot.slane %v62, %v6238
  %v6240 = vadd.f32 %v6232, %v6239
  %v6241 = vadd.f32 %v6233, %v6239
  %v6242 = vadd.f32 %v6234, %v6239
  %v6243 = vadd.f32 %v6235, %v6239
  %v6244 = vpack.c.bf16 %v6241, %v6240
  %v6245 = vpack.c.bf16 %v6243, %v6242
  %v6246 = vlaneseq
  %v6247 = vshrl.u32 %v6246, 7
  %v6248 = vsub.s32 3, %v6247
  %v6249 = vrot.slane %v63, %v6248
  %v6258 = vunpack.c.l.b16 %v5029
  %v6259 = vunpack.c.l.b16 %v5030
  %v6260 = vunpack.c.l.b16 %v5031
  %v6261 = vunpack.c.l.b16 %v5032
  %v6262 = vunpack.c.l.b16 %v5033
  %v6263 = vunpack.c.l.b16 %v5034
  %v6264 = vunpack.c.l.b16 %v5035
  %v6265 = vunpack.c.l.b16 %v5036
  %v6266 = vpack.c.b16 %v6259, %v6258
  %v6267 = vpack.c.b16 %v6261, %v6260
  %v6268 = vpack.c.b16 %v6263, %v6262
  %v6269 = vpack.c.b16 %v6265, %v6264
  %v6275 = vsel %vm65, %v6244, 0
  %v6278 = vsel %vm65, %v6245, 0
  %6280 = vmatprep.subr.bf16.mxu0 0
  %6281 = vmatpush1.bf16.msra.mxu0 %v6266
  %6282 = vmatprep.subr.bf16.mxu0 0
  %6283 = vmatpush1.bf16.msra.mxu0 %v6267
  %6284 = vmatprep.subr.bf16.mxu0 0
  %6285 = vmatpush1.bf16.msra.mxu0 %v6268
  %6286 = vmatprep.subr.bf16.mxu0 0
  %6287 = vmatpush1.bf16.msra.mxu0 %v6269
  %6288 = vmatprep.subr.bf16.mxu0 0
  %6289 = vmatpush1.bf16.msra.mxu0 0
  %6290 = vmatprep.subr.bf16.mxu0 0
  %6291 = vmatpush1.bf16.msra.mxu0 0
  %6292 = vmatprep.subr.bf16.mxu0 0
  %6293 = vmatpush1.bf16.msra.mxu0 0
  %6294 = vmatprep.subr.bf16.mxu0 0
  %6295 = vmatpush1.bf16.msra.mxu0 0
  %6296 = vmatprep.subr.bf16.mxu0 0
  %6297 = vmatpush1.bf16.msra.mxu0 0
  %6298 = vmatprep.subr.bf16.mxu0 0
  %6299 = vmatpush1.bf16.msra.mxu0 0
  %6300 = vmatprep.subr.bf16.mxu0 0
  %6301 = vmatpush1.bf16.msra.mxu0 0
  %6302 = vmatprep.subr.bf16.mxu0 0
  %6303 = vmatpush1.bf16.msra.mxu0 0
  %6304 = vmatprep.subr.bf16.mxu0 0
  %6305 = vmatpush1.bf16.msra.mxu0 0
  %6306 = vmatprep.subr.bf16.mxu0 0
  %6307 = vmatpush1.bf16.msra.mxu0 0
  %6308 = vmatprep.subr.bf16.mxu0 0
  %6309 = vmatpush1.bf16.msra.mxu0 0
  %6310 = vmatprep.subr.bf16.mxu0 0
  %6311 = vmatpush1.bf16.msra.mxu0 0
  %6312 = vmatprep.mubr.bf16.mxu0 0
  %6313 = vmatmul.mubr.bf16.gmra.mrb[0].mxu0 %v6275
  %v6314 = vpop.f32.mrb[0].mxu0
  %v6315 = vadd.f32 %v6249, %v6314
  %v6316 = vpop.f32.mrb[0].mxu0
  %v6317 = vpop.f32.mrb[0].mxu0
  %v6318 = vadd.f32 %v6249, %v6317
  %v6319 = vpop.f32.mrb[0].mxu0
  %6320 = vmatprep.mubr.bf16.mxu0 0
  %6321 = vmatmul.mubr.bf16.gmra.mrb[0].mxu0 %v6278
  %v6322 = vpop.f32.mrb[0].mxu0
  %v6323 = vadd.f32 %v6249, %v6322
  %v6324 = vpop.f32.mrb[0].mxu0
  %v6325 = vpop.f32.mrb[0].mxu0
  %v6326 = vadd.f32 %v6249, %v6325
  %v6327 = vpop.f32.mrb[0].mxu0
  %6328 = vdwg.mxu0
  %v6329 = vmul.f32 %v6315, 0.5
  %v6330 = vmul.f32 %v6318, 0.5
  %v6331 = vmul.f32 %v6323, 0.5
  %v6332 = vmul.f32 %v6326, 0.5
  %v6333 = vmul.f32 %v6315, 0.70710677
  %v6334 = vmul.f32 %v6318, 0.70710677
  %v6335 = vmul.f32 %v6323, 0.70710677
  %v6336 = vmul.f32 %v6326, 0.70710677
  %vm6337 = vcmp.ge.f32.partialorder %v6333, 0.0
  %vm6338 = vcmp.ge.f32.partialorder %v6334, 0.0
  %vm6339 = vcmp.ge.f32.partialorder %v6335, 0.0
  %vm6340 = vcmp.ge.f32.partialorder %v6336, 0.0
  %v6341 = vsel %vm6337, 1.0, -1.0
  %v6342 = vsel %vm6338, 1.0, -1.0
  %v6343 = vsel %vm6339, 1.0, -1.0
  %v6344 = vsel %vm6340, 1.0, -1.0
  %v6345 = vand.u32 2147483647, %v6333
  %v6346 = vand.u32 2147483647, %v6334
  %v6347 = vand.u32 2147483647, %v6335
  %v6348 = vand.u32 2147483647, %v6336
  %v6349 = vmul.f32 %v6345, 0.3275911
  %v6350 = vmul.f32 %v6346, 0.3275911
  %v6351 = vmul.f32 %v6347, 0.3275911
  %v6352 = vmul.f32 %v6348, 0.3275911
  %v6353 = vadd.f32 %v6349, 1.0
  %v6354 = vadd.f32 %v6350, 1.0
  %v6355 = vadd.f32 %v6351, 1.0
  %v6356 = vadd.f32 %v6352, 1.0
  %v6357 = vrcp.pop %v6353
  %v6358 = vmul.f32 1.0, %v6357
  %v6359 = vrcp.pop %v6354
  %v6360 = vmul.f32 1.0, %v6359
  %v6361 = vrcp.pop %v6355
  %v6362 = vmul.f32 1.0, %v6361
  %v6363 = vrcp.pop %v6356
  %v6364 = vmul.f32 1.0, %v6363
  %v6365 = vmul.f32 %v6358, 1.0614054
  %v6366 = vmul.f32 %v6360, 1.0614054
  %v6367 = vmul.f32 %v6362, 1.0614054
  %v6368 = vmul.f32 %v6364, 1.0614054
  %v6369 = vadd.f32 %v6365, -1.4531521
  %v6370 = vadd.f32 %v6366, -1.4531521
  %v6371 = vadd.f32 %v6367, -1.4531521
  %v6372 = vadd.f32 %v6368, -1.4531521
  %v6373 = vmul.f32 %v6369, %v6358
  %v6374 = vmul.f32 %v6370, %v6360
  %v6375 = vmul.f32 %v6371, %v6362
  %v6376 = vmul.f32 %v6372, %v6364
  %v6377 = vadd.f32 %v6373, 1.4214138
  %v6378 = vadd.f32 %v6374, 1.4214138
  %v6379 = vadd.f32 %v6375, 1.4214138
  %v6380 = vadd.f32 %v6376, 1.4214138
  %v6381 = vmul.f32 %v6377, %v6358
  %v6382 = vmul.f32 %v6378, %v6360
  %v6383 = vmul.f32 %v6379, %v6362
  %v6384 = vmul.f32 %v6380, %v6364
  %v6385 = vadd.f32 %v6381, -0.28449672
  %v6386 = vadd.f32 %v6382, -0.28449672
  %v6387 = vadd.f32 %v6383, -0.28449672
  %v6388 = vadd.f32 %v6384, -0.28449672
  %v6389 = vmul.f32 %v6385, %v6358
  %v6390 = vmul.f32 %v6386, %v6360
  %v6391 = vmul.f32 %v6387, %v6362
  %v6392 = vmul.f32 %v6388, %v6364
  %v6393 = vadd.f32 %v6389, 0.2548296
  %v6394 = vadd.f32 %v6390, 0.2548296
  %v6395 = vadd.f32 %v6391, 0.2548296
  %v6396 = vadd.f32 %v6392, 0.2548296
  %v6397 = vmul.f32 %v6393, %v6358
  %v6398 = vmul.f32 %v6394, %v6360
  %v6399 = vmul.f32 %v6395, %v6362
  %v6400 = vmul.f32 %v6396, %v6364
  %v6401 = vsub.f32 0.0, %v6345
  %v6402 = vsub.f32 0.0, %v6346
  %v6403 = vsub.f32 0.0, %v6347
  %v6404 = vsub.f32 0.0, %v6348
  %v6405 = vmul.f32 %v6401, %v6345
  %v6406 = vmul.f32 %v6402, %v6346
  %v6407 = vmul.f32 %v6403, %v6347
  %v6408 = vmul.f32 %v6404, %v6348
  %v6409 = vmul.f32 %v6405, 1.442695
  %v6410 = vpow.pop %v6409
  %v6411 = vmul.f32 %v6406, 1.442695
  %v6412 = vpow.pop %v6411
  %v6413 = vmul.f32 %v6407, 1.442695
  %v6414 = vpow.pop %v6413
  %v6415 = vmul.f32 %v6408, 1.442695
  %v6416 = vpow.pop %v6415
  %v6417 = vmul.f32 %v6397, %v6410
  %v6418 = vmul.f32 %v6398, %v6412
  %v6419 = vmul.f32 %v6399, %v6414
  %v6420 = vmul.f32 %v6400, %v6416
  %v6421 = vsub.f32 1.0, %v6417
  %v6422 = vsub.f32 1.0, %v6418
  %v6423 = vsub.f32 1.0, %v6419
  %v6424 = vsub.f32 1.0, %v6420
  %v6425 = vmul.f32 %v6341, %v6421
  %v6426 = vmul.f32 %v6342, %v6422
  %v6427 = vmul.f32 %v6343, %v6423
  %v6428 = vmul.f32 %v6344, %v6424
  %v6429 = vadd.f32 %v6425, 1.0
  %v6430 = vadd.f32 %v6426, 1.0
  %v6431 = vadd.f32 %v6427, 1.0
  %v6432 = vadd.f32 %v6428, 1.0
  %v6433 = vmul.f32 %v6329, %v6429
  %v6434 = vmul.f32 %v6330, %v6430
  %v6435 = vmul.f32 %v6331, %v6431
  %v6436 = vmul.f32 %v6332, %v6432
  %v6437 = vpack.c.bf16 %v6434, %v6433
  %v6438 = vpack.c.bf16 %v6436, %v6435
  %v6439 = vlaneseq
  %v6440 = vshrl.u32 %v6439, 7
  %v6441 = vsub.s32 3, %v6440
  %v6442 = vrot.slane %v62, %v6441
  %v6459 = vunpack.c.l.b16 %v5038
  %v6460 = vunpack.c.l.b16 %v5039
  %v6461 = vunpack.c.l.b16 %v5040
  %v6462 = vunpack.c.l.b16 %v5041
  %v6463 = vunpack.c.l.b16 %v5042
  %v6464 = vunpack.c.l.b16 %v5043
  %v6465 = vunpack.c.l.b16 %v5044
  %v6466 = vunpack.c.l.b16 %v5045
  %v6467 = vunpack.c.l.b16 %v5046
  %v6468 = vunpack.c.l.b16 %v5047
  %v6469 = vunpack.c.l.b16 %v5048
  %v6470 = vunpack.c.l.b16 %v5049
  %v6471 = vunpack.c.l.b16 %v5050
  %v6472 = vunpack.c.l.b16 %v5051
  %v6473 = vunpack.c.l.b16 %v5052
  %v6474 = vunpack.c.l.b16 %v5053
  %v6475 = vpack.c.b16 %v6460, %v6459
  %v6476 = vpack.c.b16 %v6462, %v6461
  %v6477 = vpack.c.b16 %v6464, %v6463
  %v6478 = vpack.c.b16 %v6466, %v6465
  %v6479 = vpack.c.b16 %v6468, %v6467
  %v6480 = vpack.c.b16 %v6470, %v6469
  %v6481 = vpack.c.b16 %v6472, %v6471
  %v6482 = vpack.c.b16 %v6474, %v6473
  %6491 = vmatprep.subr.bf16.mxu0 0
  %6492 = vmatpush1.bf16.msra.mxu0 %v6475
  %6493 = vmatprep.subr.bf16.mxu0 0
  %6494 = vmatpush1.bf16.msra.mxu0 %v6476
  %6495 = vmatprep.subr.bf16.mxu0 0
  %6496 = vmatpush1.bf16.msra.mxu0 %v6477
  %6497 = vmatprep.subr.bf16.mxu0 0
  %6498 = vmatpush1.bf16.msra.mxu0 %v6478
  %6499 = vmatprep.subr.bf16.mxu0 0
  %6500 = vmatpush1.bf16.msra.mxu0 %v6479
  %6501 = vmatprep.subr.bf16.mxu0 0
  %6502 = vmatpush1.bf16.msra.mxu0 %v6480
  %6503 = vmatprep.subr.bf16.mxu0 0
  %6504 = vmatpush1.bf16.msra.mxu0 %v6481
  %6505 = vmatprep.subr.bf16.mxu0 0
  %6506 = vmatpush1.bf16.msra.mxu0 %v6482
  %6507 = vmatprep.subr.bf16.mxu0 0
  %6508 = vmatpush1.bf16.msra.mxu0 0
  %6509 = vmatprep.subr.bf16.mxu0 0
  %6510 = vmatpush1.bf16.msra.mxu0 0
  %6511 = vmatprep.subr.bf16.mxu0 0
  %6512 = vmatpush1.bf16.msra.mxu0 0
  %6513 = vmatprep.subr.bf16.mxu0 0
  %6514 = vmatpush1.bf16.msra.mxu0 0
  %6515 = vmatprep.subr.bf16.mxu0 0
  %6516 = vmatpush1.bf16.msra.mxu0 0
  %6517 = vmatprep.subr.bf16.mxu0 0
  %6518 = vmatpush1.bf16.msra.mxu0 0
  %6519 = vmatprep.subr.bf16.mxu0 0
  %6520 = vmatpush1.bf16.msra.mxu0 0
  %6521 = vmatprep.subr.bf16.mxu0 0
  %6522 = vmatpush1.bf16.msra.mxu0 0
  %6523 = vmatprep.mubr.bf16.mxu0 0
  %6524 = vmatmul.mubr.bf16.gmra.mrb[0].mxu0 %v6437
  %v6525 = vpop.f32.mrb[0].mxu0
  %v6526 = vadd.f32 %v6442, %v6525
  %v6527 = vpop.f32.mrb[0].mxu0
  %v6528 = vpop.f32.mrb[0].mxu0
  %v6529 = vadd.f32 %v6442, %v6528
  %v6530 = vpop.f32.mrb[0].mxu0
  %6531 = vmatprep.mubr.bf16.mxu0 0
  %6532 = vmatmul.mubr.bf16.gmra.mrb[0].mxu0 %v6438
  %v6533 = vpop.f32.mrb[0].mxu0
  %v6534 = vadd.f32 %v6442, %v6533
  %v6535 = vpop.f32.mrb[0].mxu0
  %v6536 = vpop.f32.mrb[0].mxu0
  %v6537 = vadd.f32 %v6442, %v6536
  %v6538 = vpop.f32.mrb[0].mxu0
  %6539 = vdwg.mxu0
  %v6540 = vadd.f32 %v6240, %v6526
  %v6541 = vadd.f32 %v6241, %v6529
  %v6542 = vadd.f32 %v6242, %v6534
  %v6543 = vadd.f32 %v6243, %v6537
  %v6544 = vsel %vm65, %v6540, 0.0
  %6545 = vadd.xlane.f32.xlu0 %v6544
  %v6546 = vpop.xlane.xlu0 %6545
  %v6547 = vsel %vm65, %v6541, 0.0
  %6548 = vadd.xlane.f32.xlu0 %v6547
  %v6549 = vpop.xlane.xlu0 %6548
  %v6550 = vsel %vm65, %v6542, 0.0
  %6551 = vadd.xlane.f32.xlu0 %v6550
  %v6552 = vpop.xlane.xlu0 %6551
  %v6553 = vsel %vm65, %v6543, 0.0
  %6554 = vadd.xlane.f32.xlu0 %v6553
  %v6555 = vpop.xlane.xlu0 %6554
  %v6556 = vmul.f32 %v6546, %v78
  %v6557 = vmul.f32 %v6549, %v78
  %v6558 = vmul.f32 %v6552, %v78
  %v6559 = vmul.f32 %v6555, %v78
  %v6560 = vsub.f32 %v6540, %v6556
  %v6561 = vsub.f32 %v6541, %v6557
  %v6562 = vsub.f32 %v6542, %v6558
  %v6563 = vsub.f32 %v6543, %v6559
  %v6564 = vmul.f32 %v6560, %v6560
  %v6565 = vmul.f32 %v6561, %v6561
  %v6566 = vmul.f32 %v6562, %v6562
  %v6567 = vmul.f32 %v6563, %v6563
  %v6568 = vsel %vm65, %v6564, 0.0
  %6569 = vadd.xlane.f32.xlu0 %v6568
  %v6570 = vpop.xlane.xlu0 %6569
  %v6571 = vsel %vm65, %v6565, 0.0
  %6572 = vadd.xlane.f32.xlu0 %v6571
  %v6573 = vpop.xlane.xlu0 %6572
  %v6574 = vsel %vm65, %v6566, 0.0
  %6575 = vadd.xlane.f32.xlu0 %v6574
  %v6576 = vpop.xlane.xlu0 %6575
  %v6577 = vsel %vm65, %v6567, 0.0
  %6578 = vadd.xlane.f32.xlu0 %v6577
  %v6579 = vpop.xlane.xlu0 %6578
  %v6580 = vmul.f32 %v6570, %v78
  %v6581 = vmul.f32 %v6573, %v78
  %v6582 = vmul.f32 %v6576, %v78
  %v6583 = vmul.f32 %v6579, %v78
  %v6584 = vadd.f32 %v6580, 1e-07
  %v6585 = vadd.f32 %v6581, 1e-07
  %v6586 = vadd.f32 %v6582, 1e-07
  %v6587 = vadd.f32 %v6583, 1e-07
  %v6588 = vrsqrt.pop %v6584
  %v6589 = vrsqrt.pop %v6585
  %v6590 = vrsqrt.pop %v6586
  %v6591 = vrsqrt.pop %v6587
  %v6592 = vmul.f32 %v6560, %v6588
  %v6593 = vmul.f32 %v6561, %v6589
  %v6594 = vmul.f32 %v6562, %v6590
  %v6595 = vmul.f32 %v6563, %v6591
  %v6596 = vlaneseq
  %v6597 = vshrl.u32 %v6596, 7
  %v6598 = vsub.s32 4, %v6597
  %v6599 = vrot.slane %v62, %v6598
  %v6600 = vmul.f32 %v6592, %v6599
  %v6601 = vmul.f32 %v6593, %v6599
  %v6602 = vmul.f32 %v6594, %v6599
  %v6603 = vmul.f32 %v6595, %v6599
  %v6604 = vlaneseq
  %v6605 = vshrl.u32 %v6604, 7
  %v6606 = vsub.s32 5, %v6605
  %v6607 = vrot.slane %v62, %v6606
  %v6608 = vadd.f32 %v6600, %v6607
  %v6609 = vadd.f32 %v6601, %v6607
  %v6610 = vadd.f32 %v6602, %v6607
  %v6611 = vadd.f32 %v6603, %v6607
  %6616 = vrot.lane.b32.xlu0 %v4988, 64
  %v6617 = vpop.permute.xlu0 %6616
  %6618 = vrot.lane.b32.xlu0 %v4989, 64
  %v6619 = vpop.permute.xlu0 %6618
  %6620 = vrot.lane.b32.xlu0 %v4990, 64
  %v6621 = vpop.permute.xlu0 %6620
  %6622 = vrot.lane.b32.xlu0 %v4991, 64
  %v6623 = vpop.permute.xlu0 %6622
  %6632 = vrot.lane.b32.xlu0 %v1748, 64
  %v6633 = vpop.permute.xlu0 %6632
  %6634 = vrot.lane.b32.xlu0 %v1749, 64
  %v6635 = vpop.permute.xlu0 %6634
  %6636 = vrot.lane.b32.xlu0 %v1750, 64
  %v6637 = vpop.permute.xlu0 %6636
  %6638 = vrot.lane.b32.xlu0 %v1751, 64
  %v6639 = vpop.permute.xlu0 %6638
  %v6644 = vsel %vm65, %v6608, %v6617
  %v6645 = vsel %vm65, %v6609, %v6619
  %v6646 = vsel %vm65, %v6610, %v6621
  %v6647 = vsel %vm65, %v6611, %v6623
  %v6648 = vsel %vm65, %v3368, %v6633
  %v6649 = vsel %vm65, %v3369, %v6635
  %v6650 = vsel %vm65, %v3370, %v6637
  %v6651 = vsel %vm65, %v3371, %v6639
  %v6652 = vpack.c.bf16 %v6645, %v6644
  %v6653 = vpack.c.bf16 %v6649, %v6648
  %v6654 = vpack.c.bf16 %v6647, %v6646
  %v6655 = vpack.c.bf16 %v6651, %v6650
  %v6656 = vld [vmem:[%s12] sm:$0xf]
  %v6657 = vld [vmem:[%s12 + $0x4] sm:$0xf]
  %v6658 = vld [vmem:[%s12 + $0x8] sm:$0xf]
  %v6659 = vld [vmem:[%s12 + $0xc] sm:$0xf]
  %v6660 = vld [vmem:[%s12 + $0x10] sm:$0xf]
  %v6661 = vld [vmem:[%s12 + $0x14] sm:$0xf]
  %v6662 = vld [vmem:[%s12 + $0x18] sm:$0xf]
  %v6663 = vld [vmem:[%s12 + $0x1c] sm:$0xf]
  %v6664 = vld [vmem:[%s12 + $0x20] sm:$0xf]
  %v6665 = vld [vmem:[%s12 + $0x24] sm:$0xf]
  %v6666 = vld [vmem:[%s12 + $0x28] sm:$0xf]
  %v6667 = vld [vmem:[%s12 + $0x2c] sm:$0xf]
  %v6668 = vld [vmem:[%s12 + $0x30] sm:$0xf]
  %v6669 = vld [vmem:[%s12 + $0x34] sm:$0xf]
  %v6670 = vld [vmem:[%s12 + $0x38] sm:$0xf]
  %v6671 = vld [vmem:[%s12 + $0x3c] sm:$0xf]
  %v6672 = vld [vmem:[%s12 + $0x40] sm:$0xf]
  %v6673 = vld [vmem:[%s12 + $0x44] sm:$0xf]
  %v6674 = vld [vmem:[%s12 + $0x48] sm:$0xf]
  %v6675 = vld [vmem:[%s12 + $0x4c] sm:$0xf]
  %v6676 = vld [vmem:[%s12 + $0x50] sm:$0xf]
  %v6677 = vld [vmem:[%s12 + $0x54] sm:$0xf]
  %v6678 = vld [vmem:[%s12 + $0x58] sm:$0xf]
  %v6679 = vld [vmem:[%s12 + $0x5c] sm:$0xf]
  %v6680 = vld [vmem:[%s12 + $0x60] sm:$0xf]
  %v6681 = vld [vmem:[%s12 + $0x64] sm:$0xf]
  %v6682 = vld [vmem:[%s12 + $0x68] sm:$0xf]
  %v6683 = vld [vmem:[%s12 + $0x6c] sm:$0xf]
  %v6684 = vld [vmem:[%s12 + $0x70] sm:$0xf]
  %v6685 = vld [vmem:[%s12 + $0x74] sm:$0xf]
  %v6686 = vld [vmem:[%s12 + $0x78] sm:$0xf]
  %v6687 = vld [vmem:[%s12 + $0x7c] sm:$0xf]
  %v6688 = vlaneseq
  %v6689 = vshrl.u32 %v6688, 7
  %v6690 = vsub.s32 6, %v6689
  %v6691 = vrot.slane %v62, %v6690
  %v6724 = vunpack.c.l.b16 %v6656
  %v6725 = vunpack.c.l.b16 %v6657
  %v6726 = vunpack.c.l.b16 %v6658
  %v6727 = vunpack.c.l.b16 %v6659
  %v6728 = vunpack.c.l.b16 %v6660
  %v6729 = vunpack.c.l.b16 %v6661
  %v6730 = vunpack.c.l.b16 %v6662
  %v6731 = vunpack.c.l.b16 %v6663
  %v6732 = vunpack.c.l.b16 %v6664
  %v6733 = vunpack.c.l.b16 %v6665
  %v6734 = vunpack.c.l.b16 %v6666
  %v6735 = vunpack.c.l.b16 %v6667
  %v6736 = vunpack.c.l.b16 %v6668
  %v6737 = vunpack.c.l.b16 %v6669
  %v6738 = vunpack.c.l.b16 %v6670
  %v6739 = vunpack.c.l.b16 %v6671
  %v6740 = vunpack.c.l.b16 %v6672
  %v6741 = vunpack.c.l.b16 %v6673
  %v6742 = vunpack.c.l.b16 %v6674
  %v6743 = vunpack.c.l.b16 %v6675
  %v6744 = vunpack.c.l.b16 %v6676
  %v6745 = vunpack.c.l.b16 %v6677
  %v6746 = vunpack.c.l.b16 %v6678
  %v6747 = vunpack.c.l.b16 %v6679
  %v6748 = vunpack.c.l.b16 %v6680
  %v6749 = vunpack.c.l.b16 %v6681
  %v6750 = vunpack.c.l.b16 %v6682
  %v6751 = vunpack.c.l.b16 %v6683
  %v6752 = vunpack.c.l.b16 %v6684
  %v6753 = vunpack.c.l.b16 %v6685
  %v6754 = vunpack.c.l.b16 %v6686
  %v6755 = vunpack.c.l.b16 %v6687
  %v6756 = vpack.c.b16 %v6725, %v6724
  %v6757 = vpack.c.b16 %v6727, %v6726
  %v6758 = vpack.c.b16 %v6729, %v6728
  %v6759 = vpack.c.b16 %v6731, %v6730
  %v6760 = vpack.c.b16 %v6733, %v6732
  %v6761 = vpack.c.b16 %v6735, %v6734
  %v6762 = vpack.c.b16 %v6737, %v6736
  %v6763 = vpack.c.b16 %v6739, %v6738
  %v6764 = vpack.c.b16 %v6741, %v6740
  %v6765 = vpack.c.b16 %v6743, %v6742
  %v6766 = vpack.c.b16 %v6745, %v6744
  %v6767 = vpack.c.b16 %v6747, %v6746
  %v6768 = vpack.c.b16 %v6749, %v6748
  %v6769 = vpack.c.b16 %v6751, %v6750
  %v6770 = vpack.c.b16 %v6753, %v6752
  %v6771 = vpack.c.b16 %v6755, %v6754
  %6788 = vmatprep.subr.bf16.mxu0 0
  %6789 = vmatpush1.bf16.msra.mxu0 %v6756
  %6790 = vmatprep.subr.bf16.mxu0 0
  %6791 = vmatpush1.bf16.msra.mxu0 %v6757
  %6792 = vmatprep.subr.bf16.mxu0 0
  %6793 = vmatpush1.bf16.msra.mxu0 %v6758
  %6794 = vmatprep.subr.bf16.mxu0 0
  %6795 = vmatpush1.bf16.msra.mxu0 %v6759
  %6796 = vmatprep.subr.bf16.mxu0 0
  %6797 = vmatpush1.bf16.msra.mxu0 %v6760
  %6798 = vmatprep.subr.bf16.mxu0 0
  %6799 = vmatpush1.bf16.msra.mxu0 %v6761
  %6800 = vmatprep.subr.bf16.mxu0 0
  %6801 = vmatpush1.bf16.msra.mxu0 %v6762
  %6802 = vmatprep.subr.bf16.mxu0 0
  %6803 = vmatpush1.bf16.msra.mxu0 %v6763
  %6804 = vmatprep.subr.bf16.mxu0 0
  %6805 = vmatpush1.bf16.msra.mxu0 %v6764
  %6806 = vmatprep.subr.bf16.mxu0 0
  %6807 = vmatpush1.bf16.msra.mxu0 %v6765
  %6808 = vmatprep.subr.bf16.mxu0 0
  %6809 = vmatpush1.bf16.msra.mxu0 %v6766
  %6810 = vmatprep.subr.bf16.mxu0 0
  %6811 = vmatpush1.bf16.msra.mxu0 %v6767
  %6812 = vmatprep.subr.bf16.mxu0 0
  %6813 = vmatpush1.bf16.msra.mxu0 %v6768
  %6814 = vmatprep.subr.bf16.mxu0 0
  %6815 = vmatpush1.bf16.msra.mxu0 %v6769
  %6816 = vmatprep.subr.bf16.mxu0 0
  %6817 = vmatpush1.bf16.msra.mxu0 %v6770
  %6818 = vmatprep.subr.bf16.mxu0 0
  %6819 = vmatpush1.bf16.msra.mxu0 %v6771
  %6820 = vmatprep.mubr.bf16.mxu0 %v6653
  %6821 = vmatmul.mubr.bf16.gmra.mrb[0].mxu0 %v6652
  %v6822 = vpop.f32.mrb[0].mxu0
  %v6823 = vadd.f32 %v6691, %v6822
  %v6824 = vpop.f32.mrb[0].mxu0
  %v6825 = vpop.f32.mrb[0].mxu0
  %v6826 = vadd.f32 %v6691, %v6825
  %v6827 = vpop.f32.mrb[0].mxu0
  %6828 = vmatprep.mubr.bf16.mxu0 %v6655
  %6829 = vmatmul.mubr.bf16.gmra.mrb[0].mxu0 %v6654
  %v6830 = vpop.f32.mrb[0].mxu0
  %v6831 = vadd.f32 %v6691, %v6830
  %v6832 = vpop.f32.mrb[0].mxu0
  %v6833 = vpop.f32.mrb[0].mxu0
  %v6834 = vadd.f32 %v6691, %v6833
  %v6835 = vpop.f32.mrb[0].mxu0
  %6836 = vdwg.mxu0
  %v6837 = vmax.f32 %v6823, 0.0
  %v6838 = vmax.f32 %v6826, 0.0
  %v6839 = vmax.f32 %v6831, 0.0
  %v6840 = vmax.f32 %v6834, 0.0
  %v6841 = vpack.c.bf16 %v6838, %v6837
  %v6842 = vpack.c.bf16 %v6840, %v6839
  %v6843 = vld [vmem:[%s13] sm:$0xf]
  %v6844 = vld [vmem:[%s13 + $0x4] sm:$0xf]
  %v6845 = vld [vmem:[%s13 + $0x8] sm:$0xf]
  %v6846 = vld [vmem:[%s13 + $0xc] sm:$0xf]
  %v6847 = vld [vmem:[%s13 + $0x10] sm:$0xf]
  %v6848 = vld [vmem:[%s13 + $0x14] sm:$0xf]
  %v6849 = vld [vmem:[%s13 + $0x18] sm:$0xf]
  %v6850 = vld [vmem:[%s13 + $0x1c] sm:$0xf]
  %v6851 = vlaneseq
  %v6852 = vshrl.u32 %v6851, 7
  %v6853 = vsub.s32 0, %v6852
  %v6854 = vrot.slane %v64, %v6853
  %v6863 = vunpack.c.l.b16 %v6843
  %v6864 = vunpack.c.l.b16 %v6844
  %v6865 = vunpack.c.l.b16 %v6845
  %v6866 = vunpack.c.l.b16 %v6846
  %v6867 = vunpack.c.l.b16 %v6847
  %v6868 = vunpack.c.l.b16 %v6848
  %v6869 = vunpack.c.l.b16 %v6849
  %v6870 = vunpack.c.l.b16 %v6850
  %v6871 = vpack.c.b16 %v6864, %v6863
  %v6872 = vpack.c.b16 %v6866, %v6865
  %v6873 = vpack.c.b16 %v6868, %v6867
  %v6874 = vpack.c.b16 %v6870, %v6869
  %v6880 = vsel %vm65, %v6841, 0
  %v6883 = vsel %vm65, %v6842, 0
  %6885 = vmatprep.subr.bf16.mxu0 0
  %6886 = vmatpush1.bf16.msra.mxu0 %v6871
  %6887 = vmatprep.subr.bf16.mxu0 0
  %6888 = vmatpush1.bf16.msra.mxu0 %v6872
  %6889 = vmatprep.subr.bf16.mxu0 0
  %6890 = vmatpush1.bf16.msra.mxu0 %v6873
  %6891 = vmatprep.subr.bf16.mxu0 0
  %6892 = vmatpush1.bf16.msra.mxu0 %v6874
  %6893 = vmatprep.subr.bf16.mxu0 0
  %6894 = vmatpush1.bf16.msra.mxu0 0
  %6895 = vmatprep.subr.bf16.mxu0 0
  %6896 = vmatpush1.bf16.msra.mxu0 0
  %6897 = vmatprep.subr.bf16.mxu0 0
  %6898 = vmatpush1.bf16.msra.mxu0 0
  %6899 = vmatprep.subr.bf16.mxu0 0
  %6900 = vmatpush1.bf16.msra.mxu0 0
  %6901 = vmatprep.subr.bf16.mxu0 0
  %6902 = vmatpush1.bf16.msra.mxu0 0
  %6903 = vmatprep.subr.bf16.mxu0 0
  %6904 = vmatpush1.bf16.msra.mxu0 0
  %6905 = vmatprep.subr.bf16.mxu0 0
  %6906 = vmatpush1.bf16.msra.mxu0 0
  %6907 = vmatprep.subr.bf16.mxu0 0
  %6908 = vmatpush1.bf16.msra.mxu0 0
  %6909 = vmatprep.subr.bf16.mxu0 0
  %6910 = vmatpush1.bf16.msra.mxu0 0
  %6911 = vmatprep.subr.bf16.mxu0 0
  %6912 = vmatpush1.bf16.msra.mxu0 0
  %6913 = vmatprep.subr.bf16.mxu0 0
  %6914 = vmatpush1.bf16.msra.mxu0 0
  %6915 = vmatprep.subr.bf16.mxu0 0
  %6916 = vmatpush1.bf16.msra.mxu0 0
  %6917 = vmatprep.mubr.bf16.mxu0 0
  %6918 = vmatmul.mubr.bf16.gmra.mrb[0].mxu0 %v6880
  %v6919 = vpop.f32.mrb[0].mxu0
  %v6920 = vadd.f32 %v6854, %v6919
  %v6921 = vpop.f32.mrb[0].mxu0
  %v6922 = vpop.f32.mrb[0].mxu0
  %v6923 = vadd.f32 %v6854, %v6922
  %v6924 = vpop.f32.mrb[0].mxu0
  %6925 = vmatprep.mubr.bf16.mxu0 0
  %6926 = vmatmul.mubr.bf16.gmra.mrb[0].mxu0 %v6883
  %v6927 = vpop.f32.mrb[0].mxu0
  %v6928 = vadd.f32 %v6854, %v6927
  %v6929 = vpop.f32.mrb[0].mxu0
  %v6930 = vpop.f32.mrb[0].mxu0
  %v6931 = vadd.f32 %v6854, %v6930
  %v6932 = vpop.f32.mrb[0].mxu0
  %6933 = vdwg.mxu0
  %v6934 = vmax.f32 %v6920, 0.0
  %v6935 = vmax.f32 %v6923, 0.0
  %v6936 = vmax.f32 %v6928, 0.0
  %v6937 = vmax.f32 %v6931, 0.0
  %v6938 = vlaneseq
  %v6939 = vshrl.u32 %v6938, 7
  %v6940 = vsub.s32 1, %v6939
  %v6941 = vrot.slane %v64, %v6940
  %v6942 = vmul.f32 %v6934, %v6941
  %v6943 = vmul.f32 %v6935, %v6941
  %v6944 = vmul.f32 %v6936, %v6941
  %v6945 = vmul.f32 %v6937, %v6941
  %6946 = vadd.xlane.f32.xlu0 %v6942
  %v6947 = vpop.xlane.xlu0 %6946
  %6948 = vadd.xlane.f32.xlu0 %v6943
  %v6949 = vpop.xlane.xlu0 %6948
  %6950 = vadd.xlane.f32.xlu0 %v6944
  %v6951 = vpop.xlane.xlu0 %6950
  %6952 = vadd.xlane.f32.xlu0 %v6945
  %v6953 = vpop.xlane.xlu0 %6952
  %v6954 = vld [vmem:[#allocation2] sm:$0x1]
  %v6956 = vlaneseq
  %v6957 = vshrl.u32 %v6956, 7
  %v6958 = vsub.s32 0, %v6957
  %v6959 = vrot.slane %v6954, %v6958
  %v6961 = vadd.f32 %v6947, %v6959
  %v6962 = vadd.f32 %v6949, %v6959
  %v6963 = vadd.f32 %v6951, %v6959
  %v6964 = vadd.f32 %v6953, %v6959
  %vm6965 = vcmask 7168
  %6966 = vst.msk [vmem:[%s14] sm:$0xff] %vm6965, %v6961
  %6967 = vst.msk [vmem:[%s14 + $0x8] sm:$0xff] %vm6965, %v6962
  %6968 = vst.msk [vmem:[%s14 + $0x10] sm:$0xff] %vm6965, %v6963
  %6969 = vst.msk [vmem:[%s14 + $0x18] sm:$0xff] %vm6965, %v6964
  // Predicated region
  $region58: #{forward.1} parent=0 // pred_check
    _
  $region59: #{forward.1} parent=0 // pred_check_branch
    %6971 = sbr.rel (0) target = $region61
  $region60: #{forward.1} parent=0 // pred_region
    _
  $region61: #{forward.1} parent=0 // pred_fallthru
    _
  // Predicated region
  $region62: #{forward.1} parent=0 // pred_check
    _
  $region63: #{forward.1} parent=0 // pred_check_branch
    %6973 = sbr.rel (0) target = $region65
  $region64: #{forward.1} parent=0 // pred_region
    _
  $region65: #{forward.1} parent=0 // pred_fallthru
    _

</llo_original>
